<compile_context>
chip_gen: v7x
topology: tpu7x:2x2x1
jax: 0.10.0
libtpu: 0.0.40
codegen_flags: <defaults>
</compile_context>

<pallas_src>
import jax
import jax.numpy as jnp
from jax.experimental import pallas as pl
from jax.experimental.pallas import tpu as pltpu

# ----------------------------- static LeNet geometry ------------------------
KH = KW = 5
OC_PAD = 128                     # lane-dense padded output-channel width

H1 = W1 = 32                     # conv1 input spatial
C1 = 3
OH1 = OW1 = H1 - KH + 1          # 28
PH1 = PW1 = OH1 // 2             # 14
H2 = W2 = PH1                    # conv2 input spatial (14)
C2 = 6
OH2 = OW2 = H2 - KH + 1          # 10
PH2 = PW2 = OH2 // 2             # 5
FC_IN = 16 * PH2 * PW2           # 400

assert OH1 % 2 == 0 and OW1 % 2 == 0 and OH2 % 2 == 0 and OW2 % 2 == 0

M1 = (OH1 - 1) * W1 + OW1        # 892 flat conv1 rows (incl. junk columns)
LA1 = (KH - 1) * W1 + M1         # 1020 rows needed for the ki shifts
L1 = 2 * (PH1 - 1) * W1 + 2 * (PW1 - 1) + 1   # 859 rows carrying 2x2 maxes
M2 = (OH2 - 1) * W2 + OW2        # 136
L2 = 2 * (PH2 - 1) * W2 + 2 * (PW2 - 1) + 1   # 121


# ----------------------------- fused Pallas kernel --------------------------

def _lenet_kernel(x_ref, c1w_ref, c1b_ref, c2w_ref, c2b_ref,
                  f1w_ref, f1b_ref, f2w_ref, f2b_ref, f3w_ref, f3b_ref,
                  o_ref, scr, pool1, pool2):
    """Whole LeNet forward for one image (grid axis = batch).

    x_ref : (1, H1*W1, C1)  channel-minor flat image rows.
    c*w   : (KH*KW*Cin, 128) conv weights, OC zero-padded to 128 lanes.
    c*b   : (1, 128)
    f*w   : fc weights pre-transposed (in, out); f1w rows permuted to the
            in-kernel pooled layout (row = ph*PW2 + pw, lane = channel).
    o_ref : (1, 1, 10)
    scr   : (896, 128)  conv-output / pooling staging buffer.
    pool1 : (200, 128)  pooled conv1 activations, row = ph*14 + pw.
    pool2 : (32, 128)   pooled conv2 activations, row = ph*5  + pw.
    """
    # ------------------------ conv1 + relu + 2x2 maxpool --------------------
    # kj (width) direction of im2col: 5 lane-concatenated shifted row reads.
    kjs = jnp.concatenate(
        [x_ref[0, pl.ds(kj, LA1), :] for kj in range(KW)], axis=-1)  # (1020, 15)
    # ki (height) direction: sublane-aligned value slices (offsets are 32*k).
    lhs1 = jnp.concatenate(
        [kjs[ki * W1: ki * W1 + M1, :] for ki in range(KH)], axis=-1)  # (892, 75)
    y1 = jnp.maximum(
        jnp.dot(lhs1, c1w_ref[...], preferred_element_type=jnp.float32)
        + c1b_ref[...], 0.0)                                           # (892, 128)
    scr[0:M1, :] = y1

    # 2x2 max over the flat row layout (row pitch = W1); junk columns (the last
    # KW-1 positions of every image row) are never read back.
    ym1 = jnp.maximum(
        jnp.maximum(scr[pl.ds(0, L1), :], scr[pl.ds(1, L1), :]),
        jnp.maximum(scr[pl.ds(W1, L1), :], scr[pl.ds(W1 + 1, L1), :]))
    scr[0:L1, :] = ym1
    for ph in range(PH1):        # decimate-by-2 via strided VMEM reads
        pool1[pl.ds(ph * PW1, PW1), :] = \
            scr[pl.ds(2 * ph * W1, PW1, stride=2), :]

    # ------------------------ conv2 + relu + 2x2 maxpool --------------------
    lhs2 = jnp.concatenate(
        [pool1[pl.ds(ki * W2 + kj, M2), :][:, :C2]
         for ki in range(KH) for kj in range(KW)], axis=-1)            # (136, 150)
    y2 = jnp.maximum(
        jnp.dot(lhs2, c2w_ref[...], preferred_element_type=jnp.float32)
        + c2b_ref[...], 0.0)                                           # (136, 128)
    scr[0:M2, :] = y2

    ym2 = jnp.maximum(
        jnp.maximum(scr[pl.ds(0, L2), :], scr[pl.ds(1, L2), :]),
        jnp.maximum(scr[pl.ds(W2, L2), :], scr[pl.ds(W2 + 1, L2), :]))
    scr[0:L2, :] = ym2
    for ph in range(PH2):
        pool2[pl.ds(ph * PW2, PW2), :] = \
            scr[pl.ds(2 * ph * W2, PW2, stride=2), :]

    # ------------------------ flatten + fc1 -> fc2 -> fc3 -------------------
    # fc1 weight rows are pre-permuted so this (row-major, channel-minor) lane
    # concat reproduces torch.flatten's channel-major ordering exactly.
    flat = jnp.concatenate(
        [pool2[s:s + 1, 0:16] for s in range(PH2 * PW2)], axis=-1)     # (1, 400)
    h = jnp.maximum(jnp.dot(flat, f1w_ref[...],
                            preferred_element_type=jnp.float32) + f1b_ref[...],
                    0.0)
    h = jnp.maximum(jnp.dot(h, f2w_ref[...],
                            preferred_element_type=jnp.float32) + f2b_ref[...],
                    0.0)
    o_ref[0] = (jnp.dot(h, f3w_ref[...],
                        preferred_element_type=jnp.float32)
                + f3b_ref[...]).astype(o_ref.dtype)


# ----------------------------- kernel wrapper --------------------------------

def lenet_forward_pallas(x_flat, p):
    """x_flat: (B, H1*W1, C1) channel-minor flat images -> logits (B, 1, 10)."""
    b = x_flat.shape[0]
    assert x_flat.shape[1:] == (H1 * W1, C1)

    weights = (p["conv1_w"], p["conv1_b"], p["conv2_w"], p["conv2_b"],
               p["fc1_w"], p["fc1_b"], p["fc2_w"], p["fc2_b"],
               p["fc3_w"], p["fc3_b"])

    def full_spec(a):
        return pl.BlockSpec(a.shape, lambda i: (0,) * a.ndim)

    flops = 2 * b * (M1 * 75 * OC_PAD + M2 * 150 * OC_PAD
                     + FC_IN * 120 + 120 * 84 + 84 * 10)
    bytes_accessed = 4 * (x_flat.size + sum(int(w.size) for w in weights)
                          + b * 10)

    return pl.pallas_call(
        _lenet_kernel,
        out_shape=jax.ShapeDtypeStruct((b, 1, 10), jnp.float32),
        grid=(b,),
        in_specs=[pl.BlockSpec((1, H1 * W1, C1), lambda i: (i, 0, 0))]
                 + [full_spec(w) for w in weights],
        out_specs=pl.BlockSpec((1, 1, 10), lambda i: (i, 0, 0)),
        scratch_shapes=[pltpu.VMEM((896, OC_PAD), jnp.float32),   # conv staging
                        pltpu.VMEM((200, OC_PAD), jnp.float32),   # pooled conv1
                        pltpu.VMEM((32, OC_PAD), jnp.float32)],   # pooled conv2
        compiler_params=pltpu.CompilerParams(
            dimension_semantics=("parallel",)),
        cost_estimate=pl.CostEstimate(flops=flops, transcendentals=0,
                                      bytes_accessed=bytes_accessed),
    )(x_flat, *weights)


# ----------------------------- parameters ------------------------------------

def init_params(key):
    """PyTorch-layout parameters (Conv2d: (OC, IC, KH, KW); Linear: (out, in))."""
    ks = jax.random.split(key, 10)

    def u(k, shape, fan_in):
        bound = 1.0 / jnp.sqrt(fan_in)
        return jax.random.uniform(k, shape, jnp.float32, -bound, bound)

    return {
        "conv1_w": u(ks[0], (6, 3, 5, 5), 3 * 5 * 5),
        "conv1_b": u(ks[1], (6,), 3 * 5 * 5),
        "conv2_w": u(ks[2], (16, 6, 5, 5), 6 * 5 * 5),
        "conv2_b": u(ks[3], (16,), 6 * 5 * 5),
        "fc1_w": u(ks[4], (120, 400), 400),
        "fc1_b": u(ks[5], (120,), 400),
        "fc2_w": u(ks[6], (84, 120), 120),
        "fc2_b": u(ks[7], (84,), 120),
        "fc3_w": u(ks[8], (10, 84), 84),
        "fc3_b": u(ks[9], (10,), 84),
    }


def prepare_params(params):
    """One-time layout prep OUTSIDE the jitted forward."""

    def prep_conv_w(w):                 # (OC, C, KH, KW) -> (KH*KW*C, OC_PAD)
        oc, c = w.shape[0], w.shape[1]
        wt = w.transpose(2, 3, 1, 0).reshape(KH * KW * c, oc)  # rows (ki,kj,c)
        return jnp.pad(wt, ((0, 0), (0, OC_PAD - oc)))

    def prep_conv_b(bv):                # (OC,) -> (1, OC_PAD)
        return jnp.pad(bv, (0, OC_PAD - bv.shape[0])).reshape(1, OC_PAD)

    # fc1: permute rows so the kernel's pooled layout (row = ph*5+pw, lane = c)
    # maps exactly onto torch.flatten's channel-major (c, ph, pw) ordering.
    f1 = params["fc1_w"].reshape(120, 16, PH2 * PW2).transpose(2, 1, 0)
    f1 = f1.reshape(PH2 * PW2 * 16, 120)                      # row = s*16 + c

    return {
        "conv1_w": prep_conv_w(params["conv1_w"]),
        "conv1_b": prep_conv_b(params["conv1_b"]),
        "conv2_w": prep_conv_w(params["conv2_w"]),
        "conv2_b": prep_conv_b(params["conv2_b"]),
        "fc1_w": f1, "fc1_b": params["fc1_b"].reshape(1, -1),
        "fc2_w": params["fc2_w"].T, "fc2_b": params["fc2_b"].reshape(1, -1),
        "fc3_w": params["fc3_w"].T, "fc3_b": params["fc3_b"].reshape(1, -1),
    }


# ----------------------------- forward pass ----------------------------------

@jax.jit
def net_forward(prep, x):
    # x: (B, 3, 32, 32) NCHW float32.  One tiny relayout to channel-minor flat
    # rows; everything else runs inside a single fused Pallas kernel.
    b = x.shape[0]
    x_flat = x.transpose(0, 2, 3, 1).reshape(b, H1 * W1, C1)
    out = lenet_forward_pallas(x_flat, prep)                  # (B, 1, 10)
    return out.reshape(b, 10)


# ----------------------------- pure-JAX reference ----------------------------

def net_forward_reference(params, x):
    def conv(h, w, bv):
        y = jax.lax.conv_general_dilated(
            h, w, window_strides=(1, 1), padding="VALID",
            dimension_numbers=("NCHW", "OIHW", "NCHW"))
        return y + bv.reshape(1, -1, 1, 1)

    def pool(h):
        return jax.lax.reduce_window(h, -jnp.inf, jax.lax.max,
                                     (1, 1, 2, 2), (1, 1, 2, 2), "VALID")

    h = pool(jax.nn.relu(conv(x, params["conv1_w"], params["conv1_b"])))
    h = pool(jax.nn.relu(conv(h, params["conv2_w"], params["conv2_b"])))
    h = h.reshape(x.shape[0], -1)
    h = jax.nn.relu(h @ params["fc1_w"].T + params["fc1_b"])
    h = jax.nn.relu(h @ params["fc2_w"].T + params["fc2_b"])
    return h @ params["fc3_w"].T + params["fc3_b"]


if __name__ == "__main__":
    key = jax.random.PRNGKey(0)
    pkey, xkey = jax.random.split(key)
    params = init_params(pkey)
    prep = prepare_params(params)          # one-time weight packing

    # Input shape implied by fc1 (16*5*5): 3x32x32 images, small batch = 2.
    x = jax.random.normal(xkey, (2, 3, 32, 32), dtype=jnp.float32)

    out = jax.block_until_ready(net_forward(prep, x))
    assert out.shape == (2, 10) and out.dtype == jnp.float32

    ref = jax.block_until_ready(net_forward_reference(params, x))
    max_err = float(jnp.max(jnp.abs(out - ref)))
    assert max_err < 1e-3, f"mismatch vs reference: {max_err}"

    print("KERNEL_OK")
</pallas_src>

<mosaic_0001>
module attributes {stable_mosaic.version = 11 : i64} {
  func.func @_lenet_kernel(%arg0: i32, %arg1: memref<1x1024x3xf32, #tpu.memory_space<vmem>>, %arg2: memref<75x128xf32, #tpu.memory_space<vmem>>, %arg3: memref<1x128xf32, #tpu.memory_space<vmem>>, %arg4: memref<150x128xf32, #tpu.memory_space<vmem>>, %arg5: memref<1x128xf32, #tpu.memory_space<vmem>>, %arg6: memref<400x120xf32, #tpu.memory_space<vmem>>, %arg7: memref<1x120xf32, #tpu.memory_space<vmem>>, %arg8: memref<120x84xf32, #tpu.memory_space<vmem>>, %arg9: memref<1x84xf32, #tpu.memory_space<vmem>>, %arg10: memref<84x10xf32, #tpu.memory_space<vmem>>, %arg11: memref<1x10xf32, #tpu.memory_space<vmem>>, %arg12: memref<1x1x10xf32, #tpu.memory_space<vmem>>, %arg13: memref<896x128xf32, #tpu.memory_space<vmem>>, %arg14: memref<200x128xf32, #tpu.memory_space<vmem>>, %arg15: memref<32x128xf32, #tpu.memory_space<vmem>>) attributes {dimension_semantics = [#tpu.dimension_semantics<parallel>], iteration_bounds = array<i64: 2>, scalar_prefetch = 0 : i64, scratch_operands = 3 : i64, tpu.core_type = #tpu.core_type<tc>, window_params = [{transform_indices = @transform_0, window_bounds = array<i64: 1, 1024, 3>}, {pipeline_mode = #tpu.pipeline_mode<synchronous>, transform_indices = @transform_1, window_bounds = array<i64: 75, 128>}, {pipeline_mode = #tpu.pipeline_mode<synchronous>, transform_indices = @transform_2, window_bounds = array<i64: 1, 128>}, {pipeline_mode = #tpu.pipeline_mode<synchronous>, transform_indices = @transform_3, window_bounds = array<i64: 150, 128>}, {pipeline_mode = #tpu.pipeline_mode<synchronous>, transform_indices = @transform_4, window_bounds = array<i64: 1, 128>}, {pipeline_mode = #tpu.pipeline_mode<synchronous>, transform_indices = @transform_5, window_bounds = array<i64: 400, 120>}, {pipeline_mode = #tpu.pipeline_mode<synchronous>, transform_indices = @transform_6, window_bounds = array<i64: 1, 120>}, {pipeline_mode = #tpu.pipeline_mode<synchronous>, transform_indices = @transform_7, window_bounds = array<i64: 120, 84>}, {pipeline_mode = #tpu.pipeline_mode<synchronous>, transform_indices = @transform_8, window_bounds = array<i64: 1, 84>}, {pipeline_mode = #tpu.pipeline_mode<synchronous>, transform_indices = @transform_9, window_bounds = array<i64: 84, 10>}, {pipeline_mode = #tpu.pipeline_mode<synchronous>, transform_indices = @transform_10, window_bounds = array<i64: 1, 10>}, {transform_indices = @transform_11, window_bounds = array<i64: 1, 1, 10>}]} {
    %c0 = arith.constant 0 : index
    %c0_0 = arith.constant 0 : index
    %c0_1 = arith.constant 0 : index
    %0 = vector.load %arg1[%c0, %c0_0, %c0_1] : memref<1x1024x3xf32, #tpu.memory_space<vmem>>, vector<1x1020x3xf32>
    %1 = vector.shape_cast %0 : vector<1x1020x3xf32> to vector<1020x3xf32>
    %c0_2 = arith.constant 0 : index
    %c1 = arith.constant 1 : index
    %c0_3 = arith.constant 0 : index
    %2 = vector.load %arg1[%c0_2, %c1, %c0_3] : memref<1x1024x3xf32, #tpu.memory_space<vmem>>, vector<1x1020x3xf32>
    %3 = vector.shape_cast %2 : vector<1x1020x3xf32> to vector<1020x3xf32>
    %c0_4 = arith.constant 0 : index
    %c2 = arith.constant 2 : index
    %c0_5 = arith.constant 0 : index
    %4 = vector.load %arg1[%c0_4, %c2, %c0_5] : memref<1x1024x3xf32, #tpu.memory_space<vmem>>, vector<1x1020x3xf32>
    %5 = vector.shape_cast %4 : vector<1x1020x3xf32> to vector<1020x3xf32>
    %c0_6 = arith.constant 0 : index
    %c3 = arith.constant 3 : index
    %c0_7 = arith.constant 0 : index
    %6 = vector.load %arg1[%c0_6, %c3, %c0_7] : memref<1x1024x3xf32, #tpu.memory_space<vmem>>, vector<1x1020x3xf32>
    %7 = vector.shape_cast %6 : vector<1x1020x3xf32> to vector<1020x3xf32>
    %c0_8 = arith.constant 0 : index
    %c4 = arith.constant 4 : index
    %c0_9 = arith.constant 0 : index
    %8 = vector.load %arg1[%c0_8, %c4, %c0_9] : memref<1x1024x3xf32, #tpu.memory_space<vmem>>, vector<1x1020x3xf32>
    %9 = vector.shape_cast %8 : vector<1x1020x3xf32> to vector<1020x3xf32>
    %10 = tpu.concatenate %1, %3, %5, %7, %9 in 1 : vector<1020x3xf32>, vector<1020x3xf32>, vector<1020x3xf32>, vector<1020x3xf32>, vector<1020x3xf32> -> vector<1020x15xf32>
    %11 = vector.extract_strided_slice %10 {offsets = [0, 0], sizes = [892, 15], strides = [1, 1]} : vector<1020x15xf32> to vector<892x15xf32>
    %12 = vector.extract_strided_slice %10 {offsets = [32, 0], sizes = [892, 15], strides = [1, 1]} : vector<1020x15xf32> to vector<892x15xf32>
    %13 = vector.extract_strided_slice %10 {offsets = [64, 0], sizes = [892, 15], strides = [1, 1]} : vector<1020x15xf32> to vector<892x15xf32>
    %14 = vector.extract_strided_slice %10 {offsets = [96, 0], sizes = [892, 15], strides = [1, 1]} : vector<1020x15xf32> to vector<892x15xf32>
    %15 = vector.extract_strided_slice %10 {offsets = [128, 0], sizes = [892, 15], strides = [1, 1]} : vector<1020x15xf32> to vector<892x15xf32>
    %16 = tpu.concatenate %11, %12, %13, %14, %15 in 1 : vector<892x15xf32>, vector<892x15xf32>, vector<892x15xf32>, vector<892x15xf32>, vector<892x15xf32> -> vector<892x75xf32>
    %c0_10 = arith.constant 0 : index
    %c0_11 = arith.constant 0 : index
    %17 = vector.load %arg2[%c0_10, %c0_11] : memref<75x128xf32, #tpu.memory_space<vmem>>, vector<75x128xf32>
    %cst = arith.constant dense<0.000000e+00> : vector<892x128xf32>
    %18 = tpu.matmul %16, %17, %cst {dimension_numbers = #tpu.dot_dimension_numbers<[1], [0], [0], [1], [0, 0, 1, 1], [], []>} : vector<892x75xf32>, vector<75x128xf32>, vector<892x128xf32> -> vector<892x128xf32>
    %c0_12 = arith.constant 0 : index
    %c0_13 = arith.constant 0 : index
    %19 = vector.load %arg3[%c0_12, %c0_13] : memref<1x128xf32, #tpu.memory_space<vmem>>, vector<1x128xf32>
    %20 = vector.broadcast %19 : vector<1x128xf32> to vector<892x128xf32>
    %21 = arith.addf %18, %20 : vector<892x128xf32>
    %cst_14 = arith.constant 0.000000e+00 : f32
    %22 = vector.broadcast %cst_14 : f32 to vector<892x128xf32>
    %23 = arith.maximumf %21, %22 : vector<892x128xf32>
    %c0_15 = arith.constant 0 : index
    %c0_16 = arith.constant 0 : index
    %24 = vector.load %arg13[%c0_15, %c0_16] : memref<896x128xf32, #tpu.memory_space<vmem>>, vector<892x128xf32>
    tpu.vector_store %arg13[%c0_15, %c0_16], %23 {strides = array<i32>} : memref<896x128xf32, #tpu.memory_space<vmem>>, vector<892x128xf32>,
    %c0_17 = arith.constant 0 : index
    %c0_18 = arith.constant 0 : index
    %25 = vector.load %arg13[%c0_17, %c0_18] : memref<896x128xf32, #tpu.memory_space<vmem>>, vector<859x128xf32>
    %c1_19 = arith.constant 1 : index
    %c0_20 = arith.constant 0 : index
    %26 = vector.load %arg13[%c1_19, %c0_20] : memref<896x128xf32, #tpu.memory_space<vmem>>, vector<859x128xf32>
    %27 = arith.maximumf %25, %26 : vector<859x128xf32>
    %c32 = arith.constant 32 : index
    %c0_21 = arith.constant 0 : index
    %28 = vector.load %arg13[%c32, %c0_21] : memref<896x128xf32, #tpu.memory_space<vmem>>, vector<859x128xf32>
    %c33 = arith.constant 33 : index
    %c0_22 = arith.constant 0 : index
    %29 = vector.load %arg13[%c33, %c0_22] : memref<896x128xf32, #tpu.memory_space<vmem>>, vector<859x128xf32>
    %30 = arith.maximumf %28, %29 : vector<859x128xf32>
    %31 = arith.maximumf %27, %30 : vector<859x128xf32>
    %c0_23 = arith.constant 0 : index
    %c0_24 = arith.constant 0 : index
    %32 = vector.load %arg13[%c0_23, %c0_24] : memref<896x128xf32, #tpu.memory_space<vmem>>, vector<859x128xf32>
    tpu.vector_store %arg13[%c0_23, %c0_24], %31 {strides = array<i32>} : memref<896x128xf32, #tpu.memory_space<vmem>>, vector<859x128xf32>,
    %c0_25 = arith.constant 0 : index
    %c0_26 = arith.constant 0 : index
    %33 = tpu.strided_load %arg13[%c0_25, %c0_26] {strides = array<i32: 2, 1>} : memref<896x128xf32, #tpu.memory_space<vmem>>, vector<14x128xf32>
    %c0_27 = arith.constant 0 : index
    %c0_28 = arith.constant 0 : index
    %34 = vector.load %arg14[%c0_27, %c0_28] : memref<200x128xf32, #tpu.memory_space<vmem>>, vector<14x128xf32>
    tpu.vector_store %arg14[%c0_27, %c0_28], %33 {strides = array<i32>} : memref<200x128xf32, #tpu.memory_space<vmem>>, vector<14x128xf32>,
    %c64 = arith.constant 64 : index
    %c0_29 = arith.constant 0 : index
    %35 = tpu.strided_load %arg13[%c64, %c0_29] {strides = array<i32: 2, 1>} : memref<896x128xf32, #tpu.memory_space<vmem>>, vector<14x128xf32>
    %c14 = arith.constant 14 : index
    %c0_30 = arith.constant 0 : index
    %36 = vector.load %arg14[%c14, %c0_30] : memref<200x128xf32, #tpu.memory_space<vmem>>, vector<14x128xf32>
    tpu.vector_store %arg14[%c14, %c0_30], %35 {strides = array<i32>} : memref<200x128xf32, #tpu.memory_space<vmem>>, vector<14x128xf32>,
    %c128 = arith.constant 128 : index
    %c0_31 = arith.constant 0 : index
    %37 = tpu.strided_load %arg13[%c128, %c0_31] {strides = array<i32: 2, 1>} : memref<896x128xf32, #tpu.memory_space<vmem>>, vector<14x128xf32>
    %c28 = arith.constant 28 : index
    %c0_32 = arith.constant 0 : index
    %38 = vector.load %arg14[%c28, %c0_32] : memref<200x128xf32, #tpu.memory_space<vmem>>, vector<14x128xf32>
    tpu.vector_store %arg14[%c28, %c0_32], %37 {strides = array<i32>} : memref<200x128xf32, #tpu.memory_space<vmem>>, vector<14x128xf32>,
    %c192 = arith.constant 192 : index
    %c0_33 = arith.constant 0 : index
    %39 = tpu.strided_load %arg13[%c192, %c0_33] {strides = array<i32: 2, 1>} : memref<896x128xf32, #tpu.memory_space<vmem>>, vector<14x128xf32>
    %c42 = arith.constant 42 : index
    %c0_34 = arith.constant 0 : index
    %40 = vector.load %arg14[%c42, %c0_34] : memref<200x128xf32, #tpu.memory_space<vmem>>, vector<14x128xf32>
    tpu.vector_store %arg14[%c42, %c0_34], %39 {strides = array<i32>} : memref<200x128xf32, #tpu.memory_space<vmem>>, vector<14x128xf32>,
    %c256 = arith.constant 256 : index
    %c0_35 = arith.constant 0 : index
    %41 = tpu.strided_load %arg13[%c256, %c0_35] {strides = array<i32: 2, 1>} : memref<896x128xf32, #tpu.memory_space<vmem>>, vector<14x128xf32>
    %c56 = arith.constant 56 : index
    %c0_36 = arith.constant 0 : index
    %42 = vector.load %arg14[%c56, %c0_36] : memref<200x128xf32, #tpu.memory_space<vmem>>, vector<14x128xf32>
    tpu.vector_store %arg14[%c56, %c0_36], %41 {strides = array<i32>} : memref<200x128xf32, #tpu.memory_space<vmem>>, vector<14x128xf32>,
    %c320 = arith.constant 320 : index
    %c0_37 = arith.constant 0 : index
    %43 = tpu.strided_load %arg13[%c320, %c0_37] {strides = array<i32: 2, 1>} : memref<896x128xf32, #tpu.memory_space<vmem>>, vector<14x128xf32>
    %c70 = arith.constant 70 : index
    %c0_38 = arith.constant 0 : index
    %44 = vector.load %arg14[%c70, %c0_38] : memref<200x128xf32, #tpu.memory_space<vmem>>, vector<14x128xf32>
    tpu.vector_store %arg14[%c70, %c0_38], %43 {strides = array<i32>} : memref<200x128xf32, #tpu.memory_space<vmem>>, vector<14x128xf32>,
    %c384 = arith.constant 384 : index
    %c0_39 = arith.constant 0 : index
    %45 = tpu.strided_load %arg13[%c384, %c0_39] {strides = array<i32: 2, 1>} : memref<896x128xf32, #tpu.memory_space<vmem>>, vector<14x128xf32>
    %c84 = arith.constant 84 : index
    %c0_40 = arith.constant 0 : index
    %46 = vector.load %arg14[%c84, %c0_40] : memref<200x128xf32, #tpu.memory_space<vmem>>, vector<14x128xf32>
    tpu.vector_store %arg14[%c84, %c0_40], %45 {strides = array<i32>} : memref<200x128xf32, #tpu.memory_space<vmem>>, vector<14x128xf32>,
    %c448 = arith.constant 448 : index
    %c0_41 = arith.constant 0 : index
    %47 = tpu.strided_load %arg13[%c448, %c0_41] {strides = array<i32: 2, 1>} : memref<896x128xf32, #tpu.memory_space<vmem>>, vector<14x128xf32>
    %c98 = arith.constant 98 : index
    %c0_42 = arith.constant 0 : index
    %48 = vector.load %arg14[%c98, %c0_42] : memref<200x128xf32, #tpu.memory_space<vmem>>, vector<14x128xf32>
    tpu.vector_store %arg14[%c98, %c0_42], %47 {strides = array<i32>} : memref<200x128xf32, #tpu.memory_space<vmem>>, vector<14x128xf32>,
    %c512 = arith.constant 512 : index
    %c0_43 = arith.constant 0 : index
    %49 = tpu.strided_load %arg13[%c512, %c0_43] {strides = array<i32: 2, 1>} : memref<896x128xf32, #tpu.memory_space<vmem>>, vector<14x128xf32>
    %c112 = arith.constant 112 : index
    %c0_44 = arith.constant 0 : index
    %50 = vector.load %arg14[%c112, %c0_44] : memref<200x128xf32, #tpu.memory_space<vmem>>, vector<14x128xf32>
    tpu.vector_store %arg14[%c112, %c0_44], %49 {strides = array<i32>} : memref<200x128xf32, #tpu.memory_space<vmem>>, vector<14x128xf32>,
    %c576 = arith.constant 576 : index
    %c0_45 = arith.constant 0 : index
    %51 = tpu.strided_load %arg13[%c576, %c0_45] {strides = array<i32: 2, 1>} : memref<896x128xf32, #tpu.memory_space<vmem>>, vector<14x128xf32>
    %c126 = arith.constant 126 : index
    %c0_46 = arith.constant 0 : index
    %52 = vector.load %arg14[%c126, %c0_46] : memref<200x128xf32, #tpu.memory_space<vmem>>, vector<14x128xf32>
    tpu.vector_store %arg14[%c126, %c0_46], %51 {strides = array<i32>} : memref<200x128xf32, #tpu.memory_space<vmem>>, vector<14x128xf32>,
    %c640 = arith.constant 640 : index
    %c0_47 = arith.constant 0 : index
    %53 = tpu.strided_load %arg13[%c640, %c0_47] {strides = array<i32: 2, 1>} : memref<896x128xf32, #tpu.memory_space<vmem>>, vector<14x128xf32>
    %c140 = arith.constant 140 : index
    %c0_48 = arith.constant 0 : index
    %54 = vector.load %arg14[%c140, %c0_48] : memref<200x128xf32, #tpu.memory_space<vmem>>, vector<14x128xf32>
    tpu.vector_store %arg14[%c140, %c0_48], %53 {strides = array<i32>} : memref<200x128xf32, #tpu.memory_space<vmem>>, vector<14x128xf32>,
    %c704 = arith.constant 704 : index
    %c0_49 = arith.constant 0 : index
    %55 = tpu.strided_load %arg13[%c704, %c0_49] {strides = array<i32: 2, 1>} : memref<896x128xf32, #tpu.memory_space<vmem>>, vector<14x128xf32>
    %c154 = arith.constant 154 : index
    %c0_50 = arith.constant 0 : index
    %56 = vector.load %arg14[%c154, %c0_50] : memref<200x128xf32, #tpu.memory_space<vmem>>, vector<14x128xf32>
    tpu.vector_store %arg14[%c154, %c0_50], %55 {strides = array<i32>} : memref<200x128xf32, #tpu.memory_space<vmem>>, vector<14x128xf32>,
    %c768 = arith.constant 768 : index
    %c0_51 = arith.constant 0 : index
    %57 = tpu.strided_load %arg13[%c768, %c0_51] {strides = array<i32: 2, 1>} : memref<896x128xf32, #tpu.memory_space<vmem>>, vector<14x128xf32>
    %c168 = arith.constant 168 : index
    %c0_52 = arith.constant 0 : index
    %58 = vector.load %arg14[%c168, %c0_52] : memref<200x128xf32, #tpu.memory_space<vmem>>, vector<14x128xf32>
    tpu.vector_store %arg14[%c168, %c0_52], %57 {strides = array<i32>} : memref<200x128xf32, #tpu.memory_space<vmem>>, vector<14x128xf32>,
    %c832 = arith.constant 832 : index
    %c0_53 = arith.constant 0 : index
    %59 = tpu.strided_load %arg13[%c832, %c0_53] {strides = array<i32: 2, 1>} : memref<896x128xf32, #tpu.memory_space<vmem>>, vector<14x128xf32>
    %c182 = arith.constant 182 : index
    %c0_54 = arith.constant 0 : index
    %60 = vector.load %arg14[%c182, %c0_54] : memref<200x128xf32, #tpu.memory_space<vmem>>, vector<14x128xf32>
    tpu.vector_store %arg14[%c182, %c0_54], %59 {strides = array<i32>} : memref<200x128xf32, #tpu.memory_space<vmem>>, vector<14x128xf32>,
    %c0_55 = arith.constant 0 : index
    %c0_56 = arith.constant 0 : index
    %61 = vector.load %arg14[%c0_55, %c0_56] : memref<200x128xf32, #tpu.memory_space<vmem>>, vector<136x128xf32>
    %62 = vector.extract_strided_slice %61 {offsets = [0, 0], sizes = [136, 6], strides = [1, 1]} : vector<136x128xf32> to vector<136x6xf32>
    %c1_57 = arith.constant 1 : index
    %c0_58 = arith.constant 0 : index
    %63 = vector.load %arg14[%c1_57, %c0_58] : memref<200x128xf32, #tpu.memory_space<vmem>>, vector<136x128xf32>
    %64 = vector.extract_strided_slice %63 {offsets = [0, 0], sizes = [136, 6], strides = [1, 1]} : vector<136x128xf32> to vector<136x6xf32>
    %c2_59 = arith.constant 2 : index
    %c0_60 = arith.constant 0 : index
    %65 = vector.load %arg14[%c2_59, %c0_60] : memref<200x128xf32, #tpu.memory_space<vmem>>, vector<136x128xf32>
    %66 = vector.extract_strided_slice %65 {offsets = [0, 0], sizes = [136, 6], strides = [1, 1]} : vector<136x128xf32> to vector<136x6xf32>
    %c3_61 = arith.constant 3 : index
    %c0_62 = arith.constant 0 : index
    %67 = vector.load %arg14[%c3_61, %c0_62] : memref<200x128xf32, #tpu.memory_space<vmem>>, vector<136x128xf32>
    %68 = vector.extract_strided_slice %67 {offsets = [0, 0], sizes = [136, 6], strides = [1, 1]} : vector<136x128xf32> to vector<136x6xf32>
    %c4_63 = arith.constant 4 : index
    %c0_64 = arith.constant 0 : index
    %69 = vector.load %arg14[%c4_63, %c0_64] : memref<200x128xf32, #tpu.memory_space<vmem>>, vector<136x128xf32>
    %70 = vector.extract_strided_slice %69 {offsets = [0, 0], sizes = [136, 6], strides = [1, 1]} : vector<136x128xf32> to vector<136x6xf32>
    %c14_65 = arith.constant 14 : index
    %c0_66 = arith.constant 0 : index
    %71 = vector.load %arg14[%c14_65, %c0_66] : memref<200x128xf32, #tpu.memory_space<vmem>>, vector<136x128xf32>
    %72 = vector.extract_strided_slice %71 {offsets = [0, 0], sizes = [136, 6], strides = [1, 1]} : vector<136x128xf32> to vector<136x6xf32>
    %c15 = arith.constant 15 : index
    %c0_67 = arith.constant 0 : index
    %73 = vector.load %arg14[%c15, %c0_67] : memref<200x128xf32, #tpu.memory_space<vmem>>, vector<136x128xf32>
    %74 = vector.extract_strided_slice %73 {offsets = [0, 0], sizes = [136, 6], strides = [1, 1]} : vector<136x128xf32> to vector<136x6xf32>
    %c16 = arith.constant 16 : index
    %c0_68 = arith.constant 0 : index
    %75 = vector.load %arg14[%c16, %c0_68] : memref<200x128xf32, #tpu.memory_space<vmem>>, vector<136x128xf32>
    %76 = vector.extract_strided_slice %75 {offsets = [0, 0], sizes = [136, 6], strides = [1, 1]} : vector<136x128xf32> to vector<136x6xf32>
    %c17 = arith.constant 17 : index
    %c0_69 = arith.constant 0 : index
    %77 = vector.load %arg14[%c17, %c0_69] : memref<200x128xf32, #tpu.memory_space<vmem>>, vector<136x128xf32>
    %78 = vector.extract_strided_slice %77 {offsets = [0, 0], sizes = [136, 6], strides = [1, 1]} : vector<136x128xf32> to vector<136x6xf32>
    %c18 = arith.constant 18 : index
    %c0_70 = arith.constant 0 : index
    %79 = vector.load %arg14[%c18, %c0_70] : memref<200x128xf32, #tpu.memory_space<vmem>>, vector<136x128xf32>
    %80 = vector.extract_strided_slice %79 {offsets = [0, 0], sizes = [136, 6], strides = [1, 1]} : vector<136x128xf32> to vector<136x6xf32>
    %c28_71 = arith.constant 28 : index
    %c0_72 = arith.constant 0 : index
    %81 = vector.load %arg14[%c28_71, %c0_72] : memref<200x128xf32, #tpu.memory_space<vmem>>, vector<136x128xf32>
    %82 = vector.extract_strided_slice %81 {offsets = [0, 0], sizes = [136, 6], strides = [1, 1]} : vector<136x128xf32> to vector<136x6xf32>
    %c29 = arith.constant 29 : index
    %c0_73 = arith.constant 0 : index
    %83 = vector.load %arg14[%c29, %c0_73] : memref<200x128xf32, #tpu.memory_space<vmem>>, vector<136x128xf32>
    %84 = vector.extract_strided_slice %83 {offsets = [0, 0], sizes = [136, 6], strides = [1, 1]} : vector<136x128xf32> to vector<136x6xf32>
    %c30 = arith.constant 30 : index
    %c0_74 = arith.constant 0 : index
    %85 = vector.load %arg14[%c30, %c0_74] : memref<200x128xf32, #tpu.memory_space<vmem>>, vector<136x128xf32>
    %86 = vector.extract_strided_slice %85 {offsets = [0, 0], sizes = [136, 6], strides = [1, 1]} : vector<136x128xf32> to vector<136x6xf32>
    %c31 = arith.constant 31 : index
    %c0_75 = arith.constant 0 : index
    %87 = vector.load %arg14[%c31, %c0_75] : memref<200x128xf32, #tpu.memory_space<vmem>>, vector<136x128xf32>
    %88 = vector.extract_strided_slice %87 {offsets = [0, 0], sizes = [136, 6], strides = [1, 1]} : vector<136x128xf32> to vector<136x6xf32>
    %c32_76 = arith.constant 32 : index
    %c0_77 = arith.constant 0 : index
    %89 = vector.load %arg14[%c32_76, %c0_77] : memref<200x128xf32, #tpu.memory_space<vmem>>, vector<136x128xf32>
    %90 = vector.extract_strided_slice %89 {offsets = [0, 0], sizes = [136, 6], strides = [1, 1]} : vector<136x128xf32> to vector<136x6xf32>
    %c42_78 = arith.constant 42 : index
    %c0_79 = arith.constant 0 : index
    %91 = vector.load %arg14[%c42_78, %c0_79] : memref<200x128xf32, #tpu.memory_space<vmem>>, vector<136x128xf32>
    %92 = vector.extract_strided_slice %91 {offsets = [0, 0], sizes = [136, 6], strides = [1, 1]} : vector<136x128xf32> to vector<136x6xf32>
    %c43 = arith.constant 43 : index
    %c0_80 = arith.constant 0 : index
    %93 = vector.load %arg14[%c43, %c0_80] : memref<200x128xf32, #tpu.memory_space<vmem>>, vector<136x128xf32>
    %94 = vector.extract_strided_slice %93 {offsets = [0, 0], sizes = [136, 6], strides = [1, 1]} : vector<136x128xf32> to vector<136x6xf32>
    %c44 = arith.constant 44 : index
    %c0_81 = arith.constant 0 : index
    %95 = vector.load %arg14[%c44, %c0_81] : memref<200x128xf32, #tpu.memory_space<vmem>>, vector<136x128xf32>
    %96 = vector.extract_strided_slice %95 {offsets = [0, 0], sizes = [136, 6], strides = [1, 1]} : vector<136x128xf32> to vector<136x6xf32>
    %c45 = arith.constant 45 : index
    %c0_82 = arith.constant 0 : index
    %97 = vector.load %arg14[%c45, %c0_82] : memref<200x128xf32, #tpu.memory_space<vmem>>, vector<136x128xf32>
    %98 = vector.extract_strided_slice %97 {offsets = [0, 0], sizes = [136, 6], strides = [1, 1]} : vector<136x128xf32> to vector<136x6xf32>
    %c46 = arith.constant 46 : index
    %c0_83 = arith.constant 0 : index
    %99 = vector.load %arg14[%c46, %c0_83] : memref<200x128xf32, #tpu.memory_space<vmem>>, vector<136x128xf32>
    %100 = vector.extract_strided_slice %99 {offsets = [0, 0], sizes = [136, 6], strides = [1, 1]} : vector<136x128xf32> to vector<136x6xf32>
    %c56_84 = arith.constant 56 : index
    %c0_85 = arith.constant 0 : index
    %101 = vector.load %arg14[%c56_84, %c0_85] : memref<200x128xf32, #tpu.memory_space<vmem>>, vector<136x128xf32>
    %102 = vector.extract_strided_slice %101 {offsets = [0, 0], sizes = [136, 6], strides = [1, 1]} : vector<136x128xf32> to vector<136x6xf32>
    %c57 = arith.constant 57 : index
    %c0_86 = arith.constant 0 : index
    %103 = vector.load %arg14[%c57, %c0_86] : memref<200x128xf32, #tpu.memory_space<vmem>>, vector<136x128xf32>
    %104 = vector.extract_strided_slice %103 {offsets = [0, 0], sizes = [136, 6], strides = [1, 1]} : vector<136x128xf32> to vector<136x6xf32>
    %c58 = arith.constant 58 : index
    %c0_87 = arith.constant 0 : index
    %105 = vector.load %arg14[%c58, %c0_87] : memref<200x128xf32, #tpu.memory_space<vmem>>, vector<136x128xf32>
    %106 = vector.extract_strided_slice %105 {offsets = [0, 0], sizes = [136, 6], strides = [1, 1]} : vector<136x128xf32> to vector<136x6xf32>
    %c59 = arith.constant 59 : index
    %c0_88 = arith.constant 0 : index
    %107 = vector.load %arg14[%c59, %c0_88] : memref<200x128xf32, #tpu.memory_space<vmem>>, vector<136x128xf32>
    %108 = vector.extract_strided_slice %107 {offsets = [0, 0], sizes = [136, 6], strides = [1, 1]} : vector<136x128xf32> to vector<136x6xf32>
    %c60 = arith.constant 60 : index
    %c0_89 = arith.constant 0 : index
    %109 = vector.load %arg14[%c60, %c0_89] : memref<200x128xf32, #tpu.memory_space<vmem>>, vector<136x128xf32>
    %110 = vector.extract_strided_slice %109 {offsets = [0, 0], sizes = [136, 6], strides = [1, 1]} : vector<136x128xf32> to vector<136x6xf32>
    %111 = tpu.concatenate %62, %64, %66, %68, %70, %72, %74, %76, %78, %80, %82, %84, %86, %88, %90, %92 in 1 : vector<136x6xf32>, vector<136x6xf32>, vector<136x6xf32>, vector<136x6xf32>, vector<136x6xf32>, vector<136x6xf32>, vector<136x6xf32>, vector<136x6xf32>, vector<136x6xf32>, vector<136x6xf32>, vector<136x6xf32>, vector<136x6xf32>, vector<136x6xf32>, vector<136x6xf32>, vector<136x6xf32>, vector<136x6xf32> -> vector<136x96xf32>
    %112 = tpu.concatenate %94, %96, %98, %100, %102, %104, %106, %108, %110 in 1 : vector<136x6xf32>, vector<136x6xf32>, vector<136x6xf32>, vector<136x6xf32>, vector<136x6xf32>, vector<136x6xf32>, vector<136x6xf32>, vector<136x6xf32>, vector<136x6xf32> -> vector<136x54xf32>
    %113 = tpu.concatenate %111, %112 in 1 : vector<136x96xf32>, vector<136x54xf32> -> vector<136x150xf32>
    %c0_90 = arith.constant 0 : index
    %c0_91 = arith.constant 0 : index
    %114 = vector.load %arg4[%c0_90, %c0_91] : memref<150x128xf32, #tpu.memory_space<vmem>>, vector<150x128xf32>
    %cst_92 = arith.constant dense<0.000000e+00> : vector<136x128xf32>
    %115 = tpu.matmul %113, %114, %cst_92 {dimension_numbers = #tpu.dot_dimension_numbers<[1], [0], [0], [1], [0, 0, 1, 1], [], []>} : vector<136x150xf32>, vector<150x128xf32>, vector<136x128xf32> -> vector<136x128xf32>
    %c0_93 = arith.constant 0 : index
    %c0_94 = arith.constant 0 : index
    %116 = vector.load %arg5[%c0_93, %c0_94] : memref<1x128xf32, #tpu.memory_space<vmem>>, vector<1x128xf32>
    %117 = vector.broadcast %116 : vector<1x128xf32> to vector<136x128xf32>
    %118 = arith.addf %115, %117 : vector<136x128xf32>
    %cst_95 = arith.constant 0.000000e+00 : f32
    %119 = vector.broadcast %cst_95 : f32 to vector<136x128xf32>
    %120 = arith.maximumf %118, %119 : vector<136x128xf32>
    %c0_96 = arith.constant 0 : index
    %c0_97 = arith.constant 0 : index
    %121 = vector.load %arg13[%c0_96, %c0_97] : memref<896x128xf32, #tpu.memory_space<vmem>>, vector<136x128xf32>
    tpu.vector_store %arg13[%c0_96, %c0_97], %120 {strides = array<i32>} : memref<896x128xf32, #tpu.memory_space<vmem>>, vector<136x128xf32>,
    %c0_98 = arith.constant 0 : index
    %c0_99 = arith.constant 0 : index
    %122 = vector.load %arg13[%c0_98, %c0_99] : memref<896x128xf32, #tpu.memory_space<vmem>>, vector<121x128xf32>
    %c1_100 = arith.constant 1 : index
    %c0_101 = arith.constant 0 : index
    %123 = vector.load %arg13[%c1_100, %c0_101] : memref<896x128xf32, #tpu.memory_space<vmem>>, vector<121x128xf32>
    %124 = arith.maximumf %122, %123 : vector<121x128xf32>
    %c14_102 = arith.constant 14 : index
    %c0_103 = arith.constant 0 : index
    %125 = vector.load %arg13[%c14_102, %c0_103] : memref<896x128xf32, #tpu.memory_space<vmem>>, vector<121x128xf32>
    %c15_104 = arith.constant 15 : index
    %c0_105 = arith.constant 0 : index
    %126 = vector.load %arg13[%c15_104, %c0_105] : memref<896x128xf32, #tpu.memory_space<vmem>>, vector<121x128xf32>
    %127 = arith.maximumf %125, %126 : vector<121x128xf32>
    %128 = arith.maximumf %124, %127 : vector<121x128xf32>
    %c0_106 = arith.constant 0 : index
    %c0_107 = arith.constant 0 : index
    %129 = vector.load %arg13[%c0_106, %c0_107] : memref<896x128xf32, #tpu.memory_space<vmem>>, vector<121x128xf32>
    tpu.vector_store %arg13[%c0_106, %c0_107], %128 {strides = array<i32>} : memref<896x128xf32, #tpu.memory_space<vmem>>, vector<121x128xf32>,
    %c0_108 = arith.constant 0 : index
    %c0_109 = arith.constant 0 : index
    %130 = tpu.strided_load %arg13[%c0_108, %c0_109] {strides = array<i32: 2, 1>} : memref<896x128xf32, #tpu.memory_space<vmem>>, vector<5x128xf32>
    %c0_110 = arith.constant 0 : index
    %c0_111 = arith.constant 0 : index
    %131 = vector.load %arg15[%c0_110, %c0_111] : memref<32x128xf32, #tpu.memory_space<vmem>>, vector<5x128xf32>
    tpu.vector_store %arg15[%c0_110, %c0_111], %130 {strides = array<i32>} : memref<32x128xf32, #tpu.memory_space<vmem>>, vector<5x128xf32>,
    %c28_112 = arith.constant 28 : index
    %c0_113 = arith.constant 0 : index
    %132 = tpu.strided_load %arg13[%c28_112, %c0_113] {strides = array<i32: 2, 1>} : memref<896x128xf32, #tpu.memory_space<vmem>>, vector<5x128xf32>
    %c5 = arith.constant 5 : index
    %c0_114 = arith.constant 0 : index
    %133 = vector.load %arg15[%c5, %c0_114] : memref<32x128xf32, #tpu.memory_space<vmem>>, vector<5x128xf32>
    tpu.vector_store %arg15[%c5, %c0_114], %132 {strides = array<i32>} : memref<32x128xf32, #tpu.memory_space<vmem>>, vector<5x128xf32>,
    %c56_115 = arith.constant 56 : index
    %c0_116 = arith.constant 0 : index
    %134 = tpu.strided_load %arg13[%c56_115, %c0_116] {strides = array<i32: 2, 1>} : memref<896x128xf32, #tpu.memory_space<vmem>>, vector<5x128xf32>
    %c10 = arith.constant 10 : index
    %c0_117 = arith.constant 0 : index
    %135 = vector.load %arg15[%c10, %c0_117] : memref<32x128xf32, #tpu.memory_space<vmem>>, vector<5x128xf32>
    tpu.vector_store %arg15[%c10, %c0_117], %134 {strides = array<i32>} : memref<32x128xf32, #tpu.memory_space<vmem>>, vector<5x128xf32>,
    %c84_118 = arith.constant 84 : index
    %c0_119 = arith.constant 0 : index
    %136 = tpu.strided_load %arg13[%c84_118, %c0_119] {strides = array<i32: 2, 1>} : memref<896x128xf32, #tpu.memory_space<vmem>>, vector<5x128xf32>
    %c15_120 = arith.constant 15 : index
    %c0_121 = arith.constant 0 : index
    %137 = vector.load %arg15[%c15_120, %c0_121] : memref<32x128xf32, #tpu.memory_space<vmem>>, vector<5x128xf32>
    tpu.vector_store %arg15[%c15_120, %c0_121], %136 {strides = array<i32>} : memref<32x128xf32, #tpu.memory_space<vmem>>, vector<5x128xf32>,
    %c112_122 = arith.constant 112 : index
    %c0_123 = arith.constant 0 : index
    %138 = tpu.strided_load %arg13[%c112_122, %c0_123] {strides = array<i32: 2, 1>} : memref<896x128xf32, #tpu.memory_space<vmem>>, vector<5x128xf32>
    %c20 = arith.constant 20 : index
    %c0_124 = arith.constant 0 : index
    %139 = vector.load %arg15[%c20, %c0_124] : memref<32x128xf32, #tpu.memory_space<vmem>>, vector<5x128xf32>
    tpu.vector_store %arg15[%c20, %c0_124], %138 {strides = array<i32>} : memref<32x128xf32, #tpu.memory_space<vmem>>, vector<5x128xf32>,
    %c0_125 = arith.constant 0 : index
    %c0_126 = arith.constant 0 : index
    %140 = vector.load %arg15[%c0_125, %c0_126] : memref<32x128xf32, #tpu.memory_space<vmem>>, vector<1x16xf32>
    %c1_127 = arith.constant 1 : index
    %c0_128 = arith.constant 0 : index
    %141 = vector.load %arg15[%c1_127, %c0_128] : memref<32x128xf32, #tpu.memory_space<vmem>>, vector<1x16xf32>
    %c2_129 = arith.constant 2 : index
    %c0_130 = arith.constant 0 : index
    %142 = vector.load %arg15[%c2_129, %c0_130] : memref<32x128xf32, #tpu.memory_space<vmem>>, vector<1x16xf32>
    %c3_131 = arith.constant 3 : index
    %c0_132 = arith.constant 0 : index
    %143 = vector.load %arg15[%c3_131, %c0_132] : memref<32x128xf32, #tpu.memory_space<vmem>>, vector<1x16xf32>
    %c4_133 = arith.constant 4 : index
    %c0_134 = arith.constant 0 : index
    %144 = vector.load %arg15[%c4_133, %c0_134] : memref<32x128xf32, #tpu.memory_space<vmem>>, vector<1x16xf32>
    %c5_135 = arith.constant 5 : index
    %c0_136 = arith.constant 0 : index
    %145 = vector.load %arg15[%c5_135, %c0_136] : memref<32x128xf32, #tpu.memory_space<vmem>>, vector<1x16xf32>
    %c6 = arith.constant 6 : index
    %c0_137 = arith.constant 0 : index
    %146 = vector.load %arg15[%c6, %c0_137] : memref<32x128xf32, #tpu.memory_space<vmem>>, vector<1x16xf32>
    %c7 = arith.constant 7 : index
    %c0_138 = arith.constant 0 : index
    %147 = vector.load %arg15[%c7, %c0_138] : memref<32x128xf32, #tpu.memory_space<vmem>>, vector<1x16xf32>
    %c8 = arith.constant 8 : index
    %c0_139 = arith.constant 0 : index
    %148 = vector.load %arg15[%c8, %c0_139] : memref<32x128xf32, #tpu.memory_space<vmem>>, vector<1x16xf32>
    %c9 = arith.constant 9 : index
    %c0_140 = arith.constant 0 : index
    %149 = vector.load %arg15[%c9, %c0_140] : memref<32x128xf32, #tpu.memory_space<vmem>>, vector<1x16xf32>
    %c10_141 = arith.constant 10 : index
    %c0_142 = arith.constant 0 : index
    %150 = vector.load %arg15[%c10_141, %c0_142] : memref<32x128xf32, #tpu.memory_space<vmem>>, vector<1x16xf32>
    %c11 = arith.constant 11 : index
    %c0_143 = arith.constant 0 : index
    %151 = vector.load %arg15[%c11, %c0_143] : memref<32x128xf32, #tpu.memory_space<vmem>>, vector<1x16xf32>
    %c12 = arith.constant 12 : index
    %c0_144 = arith.constant 0 : index
    %152 = vector.load %arg15[%c12, %c0_144] : memref<32x128xf32, #tpu.memory_space<vmem>>, vector<1x16xf32>
    %c13 = arith.constant 13 : index
    %c0_145 = arith.constant 0 : index
    %153 = vector.load %arg15[%c13, %c0_145] : memref<32x128xf32, #tpu.memory_space<vmem>>, vector<1x16xf32>
    %c14_146 = arith.constant 14 : index
    %c0_147 = arith.constant 0 : index
    %154 = vector.load %arg15[%c14_146, %c0_147] : memref<32x128xf32, #tpu.memory_space<vmem>>, vector<1x16xf32>
    %c15_148 = arith.constant 15 : index
    %c0_149 = arith.constant 0 : index
    %155 = vector.load %arg15[%c15_148, %c0_149] : memref<32x128xf32, #tpu.memory_space<vmem>>, vector<1x16xf32>
    %c16_150 = arith.constant 16 : index
    %c0_151 = arith.constant 0 : index
    %156 = vector.load %arg15[%c16_150, %c0_151] : memref<32x128xf32, #tpu.memory_space<vmem>>, vector<1x16xf32>
    %c17_152 = arith.constant 17 : index
    %c0_153 = arith.constant 0 : index
    %157 = vector.load %arg15[%c17_152, %c0_153] : memref<32x128xf32, #tpu.memory_space<vmem>>, vector<1x16xf32>
    %c18_154 = arith.constant 18 : index
    %c0_155 = arith.constant 0 : index
    %158 = vector.load %arg15[%c18_154, %c0_155] : memref<32x128xf32, #tpu.memory_space<vmem>>, vector<1x16xf32>
    %c19 = arith.constant 19 : index
    %c0_156 = arith.constant 0 : index
    %159 = vector.load %arg15[%c19, %c0_156] : memref<32x128xf32, #tpu.memory_space<vmem>>, vector<1x16xf32>
    %c20_157 = arith.constant 20 : index
    %c0_158 = arith.constant 0 : index
    %160 = vector.load %arg15[%c20_157, %c0_158] : memref<32x128xf32, #tpu.memory_space<vmem>>, vector<1x16xf32>
    %c21 = arith.constant 21 : index
    %c0_159 = arith.constant 0 : index
    %161 = vector.load %arg15[%c21, %c0_159] : memref<32x128xf32, #tpu.memory_space<vmem>>, vector<1x16xf32>
    %c22 = arith.constant 22 : index
    %c0_160 = arith.constant 0 : index
    %162 = vector.load %arg15[%c22, %c0_160] : memref<32x128xf32, #tpu.memory_space<vmem>>, vector<1x16xf32>
    %c23 = arith.constant 23 : index
    %c0_161 = arith.constant 0 : index
    %163 = vector.load %arg15[%c23, %c0_161] : memref<32x128xf32, #tpu.memory_space<vmem>>, vector<1x16xf32>
    %c24 = arith.constant 24 : index
    %c0_162 = arith.constant 0 : index
    %164 = vector.load %arg15[%c24, %c0_162] : memref<32x128xf32, #tpu.memory_space<vmem>>, vector<1x16xf32>
    %165 = tpu.concatenate %140, %141, %142, %143, %144, %145, %146, %147, %148, %149, %150, %151, %152, %153, %154, %155 in 1 : vector<1x16xf32>, vector<1x16xf32>, vector<1x16xf32>, vector<1x16xf32>, vector<1x16xf32>, vector<1x16xf32>, vector<1x16xf32>, vector<1x16xf32>, vector<1x16xf32>, vector<1x16xf32>, vector<1x16xf32>, vector<1x16xf32>, vector<1x16xf32>, vector<1x16xf32>, vector<1x16xf32>, vector<1x16xf32> -> vector<1x256xf32>
    %166 = tpu.concatenate %156, %157, %158, %159, %160, %161, %162, %163, %164 in 1 : vector<1x16xf32>, vector<1x16xf32>, vector<1x16xf32>, vector<1x16xf32>, vector<1x16xf32>, vector<1x16xf32>, vector<1x16xf32>, vector<1x16xf32>, vector<1x16xf32> -> vector<1x144xf32>
    %167 = tpu.concatenate %165, %166 in 1 : vector<1x256xf32>, vector<1x144xf32> -> vector<1x400xf32>
    %c0_163 = arith.constant 0 : index
    %c0_164 = arith.constant 0 : index
    %168 = vector.load %arg6[%c0_163, %c0_164] : memref<400x120xf32, #tpu.memory_space<vmem>>, vector<400x120xf32>
    %cst_165 = arith.constant dense<0.000000e+00> : vector<1x120xf32>
    %169 = tpu.matmul %167, %168, %cst_165 {dimension_numbers = #tpu.dot_dimension_numbers<[1], [0], [0], [1], [0, 0, 1, 1], [], []>} : vector<1x400xf32>, vector<400x120xf32>, vector<1x120xf32> -> vector<1x120xf32>
    %c0_166 = arith.constant 0 : index
    %c0_167 = arith.constant 0 : index
    %170 = vector.load %arg7[%c0_166, %c0_167] : memref<1x120xf32, #tpu.memory_space<vmem>>, vector<1x120xf32>
    %171 = arith.addf %169, %170 : vector<1x120xf32>
    %cst_168 = arith.constant 0.000000e+00 : f32
    %172 = vector.broadcast %cst_168 : f32 to vector<1x120xf32>
    %173 = arith.maximumf %171, %172 : vector<1x120xf32>
    %c0_169 = arith.constant 0 : index
    %c0_170 = arith.constant 0 : index
    %174 = vector.load %arg8[%c0_169, %c0_170] : memref<120x84xf32, #tpu.memory_space<vmem>>, vector<120x84xf32>
    %cst_171 = arith.constant dense<0.000000e+00> : vector<1x84xf32>
    %175 = tpu.matmul %173, %174, %cst_171 {dimension_numbers = #tpu.dot_dimension_numbers<[1], [0], [0], [1], [0, 0, 1, 1], [], []>} : vector<1x120xf32>, vector<120x84xf32>, vector<1x84xf32> -> vector<1x84xf32>
    %c0_172 = arith.constant 0 : index
    %c0_173 = arith.constant 0 : index
    %176 = vector.load %arg9[%c0_172, %c0_173] : memref<1x84xf32, #tpu.memory_space<vmem>>, vector<1x84xf32>
    %177 = arith.addf %175, %176 : vector<1x84xf32>
    %cst_174 = arith.constant 0.000000e+00 : f32
    %178 = vector.broadcast %cst_174 : f32 to vector<1x84xf32>
    %179 = arith.maximumf %177, %178 : vector<1x84xf32>
    %c0_175 = arith.constant 0 : index
    %c0_176 = arith.constant 0 : index
    %180 = vector.load %arg10[%c0_175, %c0_176] : memref<84x10xf32, #tpu.memory_space<vmem>>, vector<84x10xf32>
    %cst_177 = arith.constant dense<0.000000e+00> : vector<1x10xf32>
    %181 = tpu.matmul %179, %180, %cst_177 {dimension_numbers = #tpu.dot_dimension_numbers<[1], [0], [0], [1], [0, 0, 1, 1], [], []>} : vector<1x84xf32>, vector<84x10xf32>, vector<1x10xf32> -> vector<1x10xf32>
    %c0_178 = arith.constant 0 : index
    %c0_179 = arith.constant 0 : index
    %182 = vector.load %arg11[%c0_178, %c0_179] : memref<1x10xf32, #tpu.memory_space<vmem>>, vector<1x10xf32>
    %183 = arith.addf %181, %182 : vector<1x10xf32>
    %c0_180 = arith.constant 0 : index
    %c0_181 = arith.constant 0 : index
    %c0_182 = arith.constant 0 : index
    %184 = vector.load %arg12[%c0_180, %c0_181, %c0_182] : memref<1x1x10xf32, #tpu.memory_space<vmem>>, vector<1x1x10xf32>
    %185 = vector.shape_cast %184 : vector<1x1x10xf32> to vector<1x10xf32>
    %186 = vector.shape_cast %183 : vector<1x10xf32> to vector<1x1x10xf32>
    tpu.vector_store %arg12[%c0_180, %c0_181, %c0_182], %186 {strides = array<i32>} : memref<1x1x10xf32, #tpu.memory_space<vmem>>, vector<1x1x10xf32>,
    return
  }
  func.func @transform_0(%arg0: i32) -> (i32, i32, i32) {
    %c0_i32 = arith.constant 0 : i32
    %c0_i32_0 = arith.constant 0 : i32
    %c0_i32_1 = arith.constant 0 : i32
    return %arg0, %c0_i32, %c0_i32_0 : i32, i32, i32
  }
  func.func @transform_1(%arg0: i32) -> (i32, i32) {
    %c0_i32 = arith.constant 0 : i32
    %c0_i32_0 = arith.constant 0 : i32
    %c0_i32_1 = arith.constant 0 : i32
    return %c0_i32, %c0_i32_0 : i32, i32
  }
  func.func @transform_2(%arg0: i32) -> (i32, i32) {
    %c0_i32 = arith.constant 0 : i32
    %c0_i32_0 = arith.constant 0 : i32
    %c0_i32_1 = arith.constant 0 : i32
    return %c0_i32, %c0_i32_0 : i32, i32
  }
  func.func @transform_3(%arg0: i32) -> (i32, i32) {
    %c0_i32 = arith.constant 0 : i32
    %c0_i32_0 = arith.constant 0 : i32
    %c0_i32_1 = arith.constant 0 : i32
    return %c0_i32, %c0_i32_0 : i32, i32
  }
  func.func @transform_4(%arg0: i32) -> (i32, i32) {
    %c0_i32 = arith.constant 0 : i32
    %c0_i32_0 = arith.constant 0 : i32
    %c0_i32_1 = arith.constant 0 : i32
    return %c0_i32, %c0_i32_0 : i32, i32
  }
  func.func @transform_5(%arg0: i32) -> (i32, i32) {
    %c0_i32 = arith.constant 0 : i32
    %c0_i32_0 = arith.constant 0 : i32
    %c0_i32_1 = arith.constant 0 : i32
    return %c0_i32, %c0_i32_0 : i32, i32
  }
  func.func @transform_6(%arg0: i32) -> (i32, i32) {
    %c0_i32 = arith.constant 0 : i32
    %c0_i32_0 = arith.constant 0 : i32
    %c0_i32_1 = arith.constant 0 : i32
    return %c0_i32, %c0_i32_0 : i32, i32
  }
  func.func @transform_7(%arg0: i32) -> (i32, i32) {
    %c0_i32 = arith.constant 0 : i32
    %c0_i32_0 = arith.constant 0 : i32
    %c0_i32_1 = arith.constant 0 : i32
    return %c0_i32, %c0_i32_0 : i32, i32
  }
  func.func @transform_8(%arg0: i32) -> (i32, i32) {
    %c0_i32 = arith.constant 0 : i32
    %c0_i32_0 = arith.constant 0 : i32
    %c0_i32_1 = arith.constant 0 : i32
    return %c0_i32, %c0_i32_0 : i32, i32
  }
  func.func @transform_9(%arg0: i32) -> (i32, i32) {
    %c0_i32 = arith.constant 0 : i32
    %c0_i32_0 = arith.constant 0 : i32
    %c0_i32_1 = arith.constant 0 : i32
    return %c0_i32, %c0_i32_0 : i32, i32
  }
  func.func @transform_10(%arg0: i32) -> (i32, i32) {
    %c0_i32 = arith.constant 0 : i32
    %c0_i32_0 = arith.constant 0 : i32
    %c0_i32_1 = arith.constant 0 : i32
    return %c0_i32, %c0_i32_0 : i32, i32
  }
  func.func @transform_11(%arg0: i32) -> (i32, i32, i32) {
    %c0_i32 = arith.constant 0 : i32
    %c0_i32_0 = arith.constant 0 : i32
    %c0_i32_1 = arith.constant 0 : i32
    return %arg0, %c0_i32, %c0_i32_0 : i32, i32, i32
  }
}

</mosaic_0001>

<llo_original>
// kernel: net_forward.1
$region0: #{net_forward.1}
  #allocation0 [shape = 'u32[]', space=smem, size = 0x4, offset = 0x4, fixed_abs, tag = 'smem constant byte address 0x4 - core index']
  #allocation1 [shape = 'u32[144,128]{1,0:T(1,128)}', space=vmem, size = 0x12000, scoped, tag = 'internal scratch']
  #allocation2 [shape = 'f32[896,128]{1,0:T(8,128)}', space=vmem, size = 0x70000, scoped, tag = 'scratch operand']
  #allocation3 [shape = 'f32[200,128]{1,0:T(8,128)}', space=vmem, size = 0x19000, scoped, tag = 'scratch operand']
  #allocation4 [shape = 'f32[32,128]{1,0:T(8,128)}', space=vmem, size = 0x4000, scoped, tag = 'scratch operand']
  %s0 = inlined_call_operand.vmem [shape: f32[2,1024,3], index: 0, kind: input, shape index: {}]
  %s1 = inlined_call_operand.vmem [shape: f32[75,128], index: 1, kind: input, shape index: {}]
  %s2 = inlined_call_operand.vmem [shape: f32[1,128], index: 2, kind: input, shape index: {}]
  %s3 = inlined_call_operand.vmem [shape: f32[150,128], index: 3, kind: input, shape index: {}]
  %s4 = inlined_call_operand.vmem [shape: f32[1,128], index: 4, kind: input, shape index: {}]
  %s5 = inlined_call_operand.vmem [shape: f32[400,120], index: 5, kind: input, shape index: {}]
  %s6 = inlined_call_operand.vmem [shape: f32[1,120], index: 6, kind: input, shape index: {}]
  %s7 = inlined_call_operand.vmem [shape: f32[120,84], index: 7, kind: input, shape index: {}]
  %s8 = inlined_call_operand.vmem [shape: f32[1,84], index: 8, kind: input, shape index: {}]
  %s9 = inlined_call_operand.vmem [shape: f32[84,10], index: 9, kind: input, shape index: {}]
  %s10 = inlined_call_operand.vmem [shape: f32[1,10], index: 10, kind: input, shape index: {}]
  %s11 = inlined_call_operand.hbm [shape: f32[2,1,10], index: 11, kind: output, shape index: {}]
  %s12 = sld [smem:[#allocation0]]
  $region77: #{net_forward.1} parent=0
    _
  %s14 = ssub.s32 1, %s12
  %s15 = scalar_select 0, %s14, %s12
  $region1: #{net_forward.1} parent=0
    #allocation5 [shape = 'u8[1024]{0}', space=vmem, size = 0x400, scoped, tag = 'output window, operand 0']
    #allocation6 [shape = 's32[2]{0}', space=sflag, size = 0x8, scoped, tag = 'scoped memory for net_forward.1']
    %16 = vsyncpa [#allocation6], 0
    %s17 = scalar_lea.sflag [#allocation6], 1
    %18 = vsyncpa %s17, 0
    loop: start=0, step=1, limit=4
    $region2: #{net_forward.1} parent=1 // loop_pre_header
      _
    $region3: #{net_forward.1} parent=1 // loop_header
      %s20 = sphi 0, %s24
      %p21 = scmp.ge.s32.totalorder %s20, 4
      %s30 = sphi 0, %s32
      %s33 = sphi 0, %s30
      %s34 = sphi 0, %s33
      %s50 = sphi 0, %s34
      %s54 = sphi 0, %s54
      %s56 = sphi 0, %s54
      %s57 = sphi 0, %s56
      %s71 = sphi 0, %s57
      %s75 = sphi 0, %s75
      %s77 = sphi 0, %s75
      %s78 = sphi 0, %s77
      %s92 = sphi 0, %s78
      %s96 = sphi 0, %s96
      %s98 = sphi 0, %s96
      %s99 = sphi 0, %s98
      %s113 = sphi 0, %s99
      %s117 = sphi 0, %s117
      %s119 = sphi 0, %s117
      %s120 = sphi 0, %s119
      %s134 = sphi 0, %s120
      %s138 = sphi 0, %s138
      %s140 = sphi 0, %s138
      %s141 = sphi 0, %s140
      %s155 = sphi 0, %s141
      %s159 = sphi 0, %s159
      %s161 = sphi 0, %s159
      %s162 = sphi 0, %s161
      %s176 = sphi 0, %s162
      %s180 = sphi 0, %s180
      %s182 = sphi 0, %s180
      %s183 = sphi 0, %s182
      %s197 = sphi 0, %s183
      %s201 = sphi 0, %s201
      %s203 = sphi 0, %s201
      %s204 = sphi 0, %s203
      %s218 = sphi 0, %s204
      %s222 = sphi 0, %s222
      %s224 = sphi 0, %s222
      %s225 = sphi 0, %s224
      %s239 = sphi 0, %s225
      %s243 = sphi 0, %s243
      %s245 = sphi 0, %s243
      %s246 = sphi 0, %s245
      %s260 = sphi 0, %s246
      %s266 = sphi 0, %s268
      %s269 = sphi 0, %s266
      %s270 = sphi 0, %s269
      %s286 = sphi 0, %s270
    $region4: #{net_forward.1} parent=1 // loop_header_branch
      %23 = sbr.rel (%p21) target = $region8
    $region5: #{net_forward.1} parent=1 // loop_body
      %s25 = ssub.s32 %s20, 1
      %s26 = ssub.s32 %s20, 2
      %s27 = sadd.s32 %s20, 1
      %s28 = ssub.s32 %s20, %s27
      %p29 = scmp.eq.s32.totalorder %s28, 0
      %s31 = sadd.s32 %s30, 1
      %s32 = scalar_select %p29, %s30, %s31
      %p35 = pneg %p29
      %p36 = scmp.eq.s32.totalorder %s20, 1
      %p37 = por %p35, %p36
      %p38 = scmp.ne.s32.totalorder %s30, %s33
      %p39 = scmp.eq.s32.totalorder %s20, 0
      %p40 = por %p38, %p39
      %p41 = scmp.ne.s32.totalorder %s30, %s33
      %p42 = scmp.eq.s32.totalorder %s25, 1
      %p43 = por %p41, %p42
      %p44 = scmp.ne.s32.totalorder %s33, %s34
      %p45 = scmp.eq.s32.totalorder %s25, 0
      %p46 = por %p44, %p45
      %p47 = scmp.ne.s32.totalorder %s33, %s34
      %p48 = scmp.eq.s32.totalorder %s26, 1
      %p49 = por %p47, %p48
      %p51 = scmp.ne.s32.totalorder %s34, %s50
      %p52 = scmp.eq.s32.totalorder %s26, 0
      %p53 = por %p51, %p52
      %s55 = sadd.s32 %s54, 1
      %p58 = scmp.eq.s32.totalorder %s20, 1
      %p59 = scmp.ne.s32.totalorder %s54, %s56
      %p60 = scmp.eq.s32.totalorder %s20, 0
      %p61 = por %p59, %p60
      %p62 = scmp.ne.s32.totalorder %s54, %s56
      %p63 = scmp.eq.s32.totalorder %s25, 1
      %p64 = por %p62, %p63
      %p65 = scmp.ne.s32.totalorder %s56, %s57
      %p66 = scmp.eq.s32.totalorder %s25, 0
      %p67 = por %p65, %p66
      %p68 = scmp.ne.s32.totalorder %s56, %s57
      %p69 = scmp.eq.s32.totalorder %s26, 1
      %p70 = por %p68, %p69
      %p72 = scmp.ne.s32.totalorder %s57, %s71
      %p73 = scmp.eq.s32.totalorder %s26, 0
      %p74 = por %p72, %p73
      %s76 = sadd.s32 %s75, 1
      %p79 = scmp.eq.s32.totalorder %s20, 1
      %p80 = scmp.ne.s32.totalorder %s75, %s77
      %p81 = scmp.eq.s32.totalorder %s20, 0
      %p82 = por %p80, %p81
      %p83 = scmp.ne.s32.totalorder %s75, %s77
      %p84 = scmp.eq.s32.totalorder %s25, 1
      %p85 = por %p83, %p84
      %p86 = scmp.ne.s32.totalorder %s77, %s78
      %p87 = scmp.eq.s32.totalorder %s25, 0
      %p88 = por %p86, %p87
      %p89 = scmp.ne.s32.totalorder %s77, %s78
      %p90 = scmp.eq.s32.totalorder %s26, 1
      %p91 = por %p89, %p90
      %p93 = scmp.ne.s32.totalorder %s78, %s92
      %p94 = scmp.eq.s32.totalorder %s26, 0
      %p95 = por %p93, %p94
      %s97 = sadd.s32 %s96, 1
      %p100 = scmp.eq.s32.totalorder %s20, 1
      %p101 = scmp.ne.s32.totalorder %s96, %s98
      %p102 = scmp.eq.s32.totalorder %s20, 0
      %p103 = por %p101, %p102
      %p104 = scmp.ne.s32.totalorder %s96, %s98
      %p105 = scmp.eq.s32.totalorder %s25, 1
      %p106 = por %p104, %p105
      %p107 = scmp.ne.s32.totalorder %s98, %s99
      %p108 = scmp.eq.s32.totalorder %s25, 0
      %p109 = por %p107, %p108
      %p110 = scmp.ne.s32.totalorder %s98, %s99
      %p111 = scmp.eq.s32.totalorder %s26, 1
      %p112 = por %p110, %p111
      %p114 = scmp.ne.s32.totalorder %s99, %s113
      %p115 = scmp.eq.s32.totalorder %s26, 0
      %p116 = por %p114, %p115
      %s118 = sadd.s32 %s117, 1
      %p121 = scmp.eq.s32.totalorder %s20, 1
      %p122 = scmp.ne.s32.totalorder %s117, %s119
      %p123 = scmp.eq.s32.totalorder %s20, 0
      %p124 = por %p122, %p123
      %p125 = scmp.ne.s32.totalorder %s117, %s119
      %p126 = scmp.eq.s32.totalorder %s25, 1
      %p127 = por %p125, %p126
      %p128 = scmp.ne.s32.totalorder %s119, %s120
      %p129 = scmp.eq.s32.totalorder %s25, 0
      %p130 = por %p128, %p129
      %p131 = scmp.ne.s32.totalorder %s119, %s120
      %p132 = scmp.eq.s32.totalorder %s26, 1
      %p133 = por %p131, %p132
      %p135 = scmp.ne.s32.totalorder %s120, %s134
      %p136 = scmp.eq.s32.totalorder %s26, 0
      %p137 = por %p135, %p136
      %s139 = sadd.s32 %s138, 1
      %p142 = scmp.eq.s32.totalorder %s20, 1
      %p143 = scmp.ne.s32.totalorder %s138, %s140
      %p144 = scmp.eq.s32.totalorder %s20, 0
      %p145 = por %p143, %p144
      %p146 = scmp.ne.s32.totalorder %s138, %s140
      %p147 = scmp.eq.s32.totalorder %s25, 1
      %p148 = por %p146, %p147
      %p149 = scmp.ne.s32.totalorder %s140, %s141
      %p150 = scmp.eq.s32.totalorder %s25, 0
      %p151 = por %p149, %p150
      %p152 = scmp.ne.s32.totalorder %s140, %s141
      %p153 = scmp.eq.s32.totalorder %s26, 1
      %p154 = por %p152, %p153
      %p156 = scmp.ne.s32.totalorder %s141, %s155
      %p157 = scmp.eq.s32.totalorder %s26, 0
      %p158 = por %p156, %p157
      %s160 = sadd.s32 %s159, 1
      %p163 = scmp.eq.s32.totalorder %s20, 1
      %p164 = scmp.ne.s32.totalorder %s159, %s161
      %p165 = scmp.eq.s32.totalorder %s20, 0
      %p166 = por %p164, %p165
      %p167 = scmp.ne.s32.totalorder %s159, %s161
      %p168 = scmp.eq.s32.totalorder %s25, 1
      %p169 = por %p167, %p168
      %p170 = scmp.ne.s32.totalorder %s161, %s162
      %p171 = scmp.eq.s32.totalorder %s25, 0
      %p172 = por %p170, %p171
      %p173 = scmp.ne.s32.totalorder %s161, %s162
      %p174 = scmp.eq.s32.totalorder %s26, 1
      %p175 = por %p173, %p174
      %p177 = scmp.ne.s32.totalorder %s162, %s176
      %p178 = scmp.eq.s32.totalorder %s26, 0
      %p179 = por %p177, %p178
      %s181 = sadd.s32 %s180, 1
      %p184 = scmp.eq.s32.totalorder %s20, 1
      %p185 = scmp.ne.s32.totalorder %s180, %s182
      %p186 = scmp.eq.s32.totalorder %s20, 0
      %p187 = por %p185, %p186
      %p188 = scmp.ne.s32.totalorder %s180, %s182
      %p189 = scmp.eq.s32.totalorder %s25, 1
      %p190 = por %p188, %p189
      %p191 = scmp.ne.s32.totalorder %s182, %s183
      %p192 = scmp.eq.s32.totalorder %s25, 0
      %p193 = por %p191, %p192
      %p194 = scmp.ne.s32.totalorder %s182, %s183
      %p195 = scmp.eq.s32.totalorder %s26, 1
      %p196 = por %p194, %p195
      %p198 = scmp.ne.s32.totalorder %s183, %s197
      %p199 = scmp.eq.s32.totalorder %s26, 0
      %p200 = por %p198, %p199
      %s202 = sadd.s32 %s201, 1
      %p205 = scmp.eq.s32.totalorder %s20, 1
      %p206 = scmp.ne.s32.totalorder %s201, %s203
      %p207 = scmp.eq.s32.totalorder %s20, 0
      %p208 = por %p206, %p207
      %p209 = scmp.ne.s32.totalorder %s201, %s203
      %p210 = scmp.eq.s32.totalorder %s25, 1
      %p211 = por %p209, %p210
      %p212 = scmp.ne.s32.totalorder %s203, %s204
      %p213 = scmp.eq.s32.totalorder %s25, 0
      %p214 = por %p212, %p213
      %p215 = scmp.ne.s32.totalorder %s203, %s204
      %p216 = scmp.eq.s32.totalorder %s26, 1
      %p217 = por %p215, %p216
      %p219 = scmp.ne.s32.totalorder %s204, %s218
      %p220 = scmp.eq.s32.totalorder %s26, 0
      %p221 = por %p219, %p220
      %s223 = sadd.s32 %s222, 1
      %p226 = scmp.eq.s32.totalorder %s20, 1
      %p227 = scmp.ne.s32.totalorder %s222, %s224
      %p228 = scmp.eq.s32.totalorder %s20, 0
      %p229 = por %p227, %p228
      %p230 = scmp.ne.s32.totalorder %s222, %s224
      %p231 = scmp.eq.s32.totalorder %s25, 1
      %p232 = por %p230, %p231
      %p233 = scmp.ne.s32.totalorder %s224, %s225
      %p234 = scmp.eq.s32.totalorder %s25, 0
      %p235 = por %p233, %p234
      %p236 = scmp.ne.s32.totalorder %s224, %s225
      %p237 = scmp.eq.s32.totalorder %s26, 1
      %p238 = por %p236, %p237
      %p240 = scmp.ne.s32.totalorder %s225, %s239
      %p241 = scmp.eq.s32.totalorder %s26, 0
      %p242 = por %p240, %p241
      %s244 = sadd.s32 %s243, 1
      %p247 = scmp.eq.s32.totalorder %s20, 1
      %p248 = scmp.ne.s32.totalorder %s243, %s245
      %p249 = scmp.eq.s32.totalorder %s20, 0
      %p250 = por %p248, %p249
      %p251 = scmp.ne.s32.totalorder %s243, %s245
      %p252 = scmp.eq.s32.totalorder %s25, 1
      %p253 = por %p251, %p252
      %p254 = scmp.ne.s32.totalorder %s245, %s246
      %p255 = scmp.eq.s32.totalorder %s25, 0
      %p256 = por %p254, %p255
      %p257 = scmp.ne.s32.totalorder %s245, %s246
      %p258 = scmp.eq.s32.totalorder %s26, 1
      %p259 = por %p257, %p258
      %p261 = scmp.ne.s32.totalorder %s246, %s260
      %p262 = scmp.eq.s32.totalorder %s26, 0
      %p263 = por %p261, %p262
      %s264 = ssub.s32 %s20, %s27
      %p265 = scmp.eq.s32.totalorder %s264, 0
      %s267 = sadd.s32 %s266, 1
      %s268 = scalar_select %p265, %s266, %s267
      %p271 = pneg %p265
      %p272 = scmp.eq.s32.totalorder %s20, 1
      %p273 = por %p271, %p272
      %p274 = scmp.ne.s32.totalorder %s266, %s269
      %p275 = scmp.eq.s32.totalorder %s20, 0
      %p276 = por %p274, %p275
      %p277 = scmp.ne.s32.totalorder %s266, %s269
      %p278 = scmp.eq.s32.totalorder %s25, 1
      %p279 = por %p277, %p278
      %p280 = scmp.ne.s32.totalorder %s269, %s270
      %p281 = scmp.eq.s32.totalorder %s25, 0
      %p282 = por %p280, %p281
      %p283 = scmp.ne.s32.totalorder %s269, %s270
      %p284 = scmp.eq.s32.totalorder %s26, 1
      %p285 = por %p283, %p284
      %p287 = scmp.ne.s32.totalorder %s270, %s286
      %p288 = scmp.eq.s32.totalorder %s26, 0
      %p289 = por %p287, %p288
      %p290 = scmp.le.s32.totalorder 1, %s20
      %p291 = scmp.lt.s32.totalorder %s20, 3
      %p292 = pnand %p290, %p291
      %p293 = pneg %p292
      // Predicated region
      $region9: #{net_forward.1} parent=5 // pred_check
        _
      $region10: #{net_forward.1} parent=5 // pred_check_branch
        %295 = sbr.rel (%p292) target = $region12
      $region11: #{net_forward.1} parent=5 // pred_region
        %s296 = ssub.s32 %s20, 1
        // Predicated region
        $region13: #{net_forward.1} parent=11 // pred_check
          %p297 = pneg %p67
        $region14: #{net_forward.1} parent=11 // pred_check_branch
          %299 = sbr.rel (%p297) target = $region16
        $region15: #{net_forward.1} parent=11 // pred_region
          _
        $region16: #{net_forward.1} parent=11 // pred_fallthru
          _
        // Predicated region
        $region17: #{net_forward.1} parent=11 // pred_check
          %p300 = pneg %p88
        $region18: #{net_forward.1} parent=11 // pred_check_branch
          %302 = sbr.rel (%p300) target = $region20
        $region19: #{net_forward.1} parent=11 // pred_region
          _
        $region20: #{net_forward.1} parent=11 // pred_fallthru
          _
        // Predicated region
        $region21: #{net_forward.1} parent=11 // pred_check
          %p303 = pneg %p109
        $region22: #{net_forward.1} parent=11 // pred_check_branch
          %305 = sbr.rel (%p303) target = $region24
        $region23: #{net_forward.1} parent=11 // pred_region
          _
        $region24: #{net_forward.1} parent=11 // pred_fallthru
          _
        // Predicated region
        $region25: #{net_forward.1} parent=11 // pred_check
          %p306 = pneg %p130
        $region26: #{net_forward.1} parent=11 // pred_check_branch
          %308 = sbr.rel (%p306) target = $region28
        $region27: #{net_forward.1} parent=11 // pred_region
          _
        $region28: #{net_forward.1} parent=11 // pred_fallthru
          _
        // Predicated region
        $region29: #{net_forward.1} parent=11 // pred_check
          %p309 = pneg %p151
        $region30: #{net_forward.1} parent=11 // pred_check_branch
          %311 = sbr.rel (%p309) target = $region32
        $region31: #{net_forward.1} parent=11 // pred_region
          _
        $region32: #{net_forward.1} parent=11 // pred_fallthru
          _
        // Predicated region
        $region33: #{net_forward.1} parent=11 // pred_check
          %p312 = pneg %p172
        $region34: #{net_forward.1} parent=11 // pred_check_branch
          %314 = sbr.rel (%p312) target = $region36
        $region35: #{net_forward.1} parent=11 // pred_region
          _
        $region36: #{net_forward.1} parent=11 // pred_fallthru
          _
        // Predicated region
        $region37: #{net_forward.1} parent=11 // pred_check
          %p315 = pneg %p193
        $region38: #{net_forward.1} parent=11 // pred_check_branch
          %317 = sbr.rel (%p315) target = $region40
        $region39: #{net_forward.1} parent=11 // pred_region
          _
        $region40: #{net_forward.1} parent=11 // pred_fallthru
          _
        // Predicated region
        $region41: #{net_forward.1} parent=11 // pred_check
          %p318 = pneg %p214
        $region42: #{net_forward.1} parent=11 // pred_check_branch
          %320 = sbr.rel (%p318) target = $region44
        $region43: #{net_forward.1} parent=11 // pred_region
          _
        $region44: #{net_forward.1} parent=11 // pred_fallthru
          _
        // Predicated region
        $region45: #{net_forward.1} parent=11 // pred_check
          %p321 = pneg %p235
        $region46: #{net_forward.1} parent=11 // pred_check_branch
          %323 = sbr.rel (%p321) target = $region48
        $region47: #{net_forward.1} parent=11 // pred_region
          _
        $region48: #{net_forward.1} parent=11 // pred_fallthru
          _
        // Predicated region
        $region49: #{net_forward.1} parent=11 // pred_check
          %p324 = pneg %p256
        $region50: #{net_forward.1} parent=11 // pred_check_branch
          %326 = sbr.rel (%p324) target = $region52
        $region51: #{net_forward.1} parent=11 // pred_region
          _
        $region52: #{net_forward.1} parent=11 // pred_fallthru
          _
      $region12: #{net_forward.1} parent=5 // pred_fallthru
        _
      %p327 = scmp.lt.s32.totalorder %s20, 2
      // Predicated region
      $region53: #{net_forward.1} parent=5 // pred_check
        %p328 = pneg %p327
      $region54: #{net_forward.1} parent=5 // pred_check_branch
        %330 = sbr.rel (%p328) target = $region56
      $region55: #{net_forward.1} parent=5 // pred_region
        // Predicated region
        $region57: #{net_forward.1} parent=55 // pred_check
          %p331 = pneg %p40
        $region58: #{net_forward.1} parent=55 // pred_check_branch
          %333 = sbr.rel (%p331) target = $region60
        $region59: #{net_forward.1} parent=55 // pred_region
          %p334 = scmp.lt.s32.totalorder %s20, 1
          %s335 = scalar_select %p334, %s20, 1
          %s336 = smul.addr %s335, 128
          %s337 = smul.addr %s336, 8
          %s338 = scalar_lea.vmem %s0, %s337
        $region60: #{net_forward.1} parent=55 // pred_fallthru
          _
      $region56: #{net_forward.1} parent=5 // pred_fallthru
        _
      %p339 = scmp.le.s32.totalorder 1, %s20
      %p340 = scmp.lt.s32.totalorder %s20, 3
      %p341 = pnand %p339, %p340
      %p342 = pneg %p341
      // Predicated region
      $region61: #{net_forward.1} parent=5 // pred_check
        _
      $region62: #{net_forward.1} parent=5 // pred_check_branch
        %344 = sbr.rel (%p341) target = $region64
      $region63: #{net_forward.1} parent=5 // pred_region
        %s345 = ssub.s32 %s20, 1
        %p346 = scmp.lt.s32.totalorder %s25, 1
        %s347 = scalar_select %p346, %s25, 1
        %s348 = smul.addr %s347, 128
        %s349 = smul.addr %s348, 8
        %s350 = scalar_lea.vmem %s0, %s349
        %p351 = pneg %p46
        %p352 = pneg %p43
        %p353 = pneg %p67
        %p354 = pneg %p64
        %p355 = pneg %p88
        %p356 = pneg %p85
        %p357 = pneg %p109
        %p358 = pneg %p106
        %p359 = pneg %p130
        %p360 = pneg %p127
        %p361 = pneg %p151
        %p362 = pneg %p148
        %p363 = pneg %p172
        %p364 = pneg %p169
        %p365 = pneg %p193
        %p366 = pneg %p190
        %p367 = pneg %p214
        %p368 = pneg %p211
        %p369 = pneg %p235
        %p370 = pneg %p232
        %p371 = pneg %p256
        %p372 = pneg %p253
        %p373 = pneg %p282
        %p374 = pneg %p279
        %s375 = sand.u32 %s269, 1
        %s376 = scalar_lea.sflag [#allocation6], %s375
        %s377 = sand.u32 %s269, 1
        %s378 = scalar_lea.vmem [#allocation5], %s377
        %p379 = scmp.lt.s32.totalorder %s25, 1
        %s380 = scalar_select %p379, %s25, 1
        %s381 = smul.addr %s380, 128
        %s382 = smul.addr %s381, 8
        %s383 = scalar_lea.vmem %s0, %s382
        %v384 = vld [vmem:[%s383] sm:$0xff]
        %v385 = vld [vmem:[%s383 + $0x8] sm:$0xff]
        %v386 = vld [vmem:[%s383 + $0x10] sm:$0xff]
        %v387 = vld [vmem:[%s383 + $0x18] sm:$0xff]
        %v388 = vld [vmem:[%s383 + $0x20] sm:$0xff]
        %v389 = vld [vmem:[%s383 + $0x28] sm:$0xff]
        %v390 = vld [vmem:[%s383 + $0x30] sm:$0xff]
        %v391 = vld [vmem:[%s383 + $0x38] sm:$0xff]
        %v392 = vld [vmem:[%s383 + $0x40] sm:$0xff]
        %v393 = vld [vmem:[%s383 + $0x48] sm:$0xff]
        %v394 = vld [vmem:[%s383 + $0x50] sm:$0xff]
        %v395 = vld [vmem:[%s383 + $0x58] sm:$0xff]
        %v396 = vld [vmem:[%s383 + $0x60] sm:$0xff]
        %v397 = vld [vmem:[%s383 + $0x68] sm:$0xff]
        %v398 = vld [vmem:[%s383 + $0x70] sm:$0xff]
        %v399 = vld [vmem:[%s383 + $0x78] sm:$0xff]
        %v400 = vld [vmem:[%s383 + $0x80] sm:$0xff]
        %v401 = vld [vmem:[%s383 + $0x88] sm:$0xff]
        %v402 = vld [vmem:[%s383 + $0x90] sm:$0xff]
        %v403 = vld [vmem:[%s383 + $0x98] sm:$0xff]
        %v404 = vld [vmem:[%s383 + $0xa0] sm:$0xff]
        %v405 = vld [vmem:[%s383 + $0xa8] sm:$0xff]
        %v406 = vld [vmem:[%s383 + $0xb0] sm:$0xff]
        %v407 = vld [vmem:[%s383 + $0xb8] sm:$0xff]
        %v408 = vld [vmem:[%s383 + $0xc0] sm:$0xff]
        %v409 = vld [vmem:[%s383 + $0xc8] sm:$0xff]
        %v410 = vld [vmem:[%s383 + $0xd0] sm:$0xff]
        %v411 = vld [vmem:[%s383 + $0xd8] sm:$0xff]
        %v412 = vld [vmem:[%s383 + $0xe0] sm:$0xff]
        %v413 = vld [vmem:[%s383 + $0xe8] sm:$0xff]
        %v414 = vld [vmem:[%s383 + $0xf0] sm:$0xff]
        %v415 = vld [vmem:[%s383 + $0xf8] sm:$0xff]
        %v416 = vld [vmem:[%s383 + $0x100] sm:$0xff]
        %v417 = vld [vmem:[%s383 + $0x108] sm:$0xff]
        %v418 = vld [vmem:[%s383 + $0x110] sm:$0xff]
        %v419 = vld [vmem:[%s383 + $0x118] sm:$0xff]
        %v420 = vld [vmem:[%s383 + $0x120] sm:$0xff]
        %v421 = vld [vmem:[%s383 + $0x128] sm:$0xff]
        %v422 = vld [vmem:[%s383 + $0x130] sm:$0xff]
        %v423 = vld [vmem:[%s383 + $0x138] sm:$0xff]
        %v424 = vld [vmem:[%s383 + $0x140] sm:$0xff]
        %v425 = vld [vmem:[%s383 + $0x148] sm:$0xff]
        %v426 = vld [vmem:[%s383 + $0x150] sm:$0xff]
        %v427 = vld [vmem:[%s383 + $0x158] sm:$0xff]
        %v428 = vld [vmem:[%s383 + $0x160] sm:$0xff]
        %v429 = vld [vmem:[%s383 + $0x168] sm:$0xff]
        %v430 = vld [vmem:[%s383 + $0x170] sm:$0xff]
        %v431 = vld [vmem:[%s383 + $0x178] sm:$0xff]
        %v432 = vld [vmem:[%s383 + $0x180] sm:$0xff]
        %v433 = vld [vmem:[%s383 + $0x188] sm:$0xff]
        %v434 = vld [vmem:[%s383 + $0x190] sm:$0xff]
        %v435 = vld [vmem:[%s383 + $0x198] sm:$0xff]
        %v436 = vld [vmem:[%s383 + $0x1a0] sm:$0xff]
        %v437 = vld [vmem:[%s383 + $0x1a8] sm:$0xff]
        %v438 = vld [vmem:[%s383 + $0x1b0] sm:$0xff]
        %v439 = vld [vmem:[%s383 + $0x1b8] sm:$0xff]
        %v440 = vld [vmem:[%s383 + $0x1c0] sm:$0xff]
        %v441 = vld [vmem:[%s383 + $0x1c8] sm:$0xff]
        %v442 = vld [vmem:[%s383 + $0x1d0] sm:$0xff]
        %v443 = vld [vmem:[%s383 + $0x1d8] sm:$0xff]
        %v444 = vld [vmem:[%s383 + $0x1e0] sm:$0xff]
        %v445 = vld [vmem:[%s383 + $0x1e8] sm:$0xff]
        %v446 = vld [vmem:[%s383 + $0x1f0] sm:$0xff]
        %v447 = vld [vmem:[%s383 + $0x1f8] sm:$0xff]
        %v448 = vld [vmem:[%s383 + $0x200] sm:$0xff]
        %v449 = vld [vmem:[%s383 + $0x208] sm:$0xff]
        %v450 = vld [vmem:[%s383 + $0x210] sm:$0xff]
        %v451 = vld [vmem:[%s383 + $0x218] sm:$0xff]
        %v452 = vld [vmem:[%s383 + $0x220] sm:$0xff]
        %v453 = vld [vmem:[%s383 + $0x228] sm:$0xff]
        %v454 = vld [vmem:[%s383 + $0x230] sm:$0xff]
        %v455 = vld [vmem:[%s383 + $0x238] sm:$0xff]
        %v456 = vld [vmem:[%s383 + $0x240] sm:$0xff]
        %v457 = vld [vmem:[%s383 + $0x248] sm:$0xff]
        %v458 = vld [vmem:[%s383 + $0x250] sm:$0xff]
        %v459 = vld [vmem:[%s383 + $0x258] sm:$0xff]
        %v460 = vld [vmem:[%s383 + $0x260] sm:$0xff]
        %v461 = vld [vmem:[%s383 + $0x268] sm:$0xff]
        %v462 = vld [vmem:[%s383 + $0x270] sm:$0xff]
        %v463 = vld [vmem:[%s383 + $0x278] sm:$0xff]
        %v464 = vld [vmem:[%s383 + $0x280] sm:$0xff]
        %v465 = vld [vmem:[%s383 + $0x288] sm:$0xff]
        %v466 = vld [vmem:[%s383 + $0x290] sm:$0xff]
        %v467 = vld [vmem:[%s383 + $0x298] sm:$0xff]
        %v468 = vld [vmem:[%s383 + $0x2a0] sm:$0xff]
        %v469 = vld [vmem:[%s383 + $0x2a8] sm:$0xff]
        %v470 = vld [vmem:[%s383 + $0x2b0] sm:$0xff]
        %v471 = vld [vmem:[%s383 + $0x2b8] sm:$0xff]
        %v472 = vld [vmem:[%s383 + $0x2c0] sm:$0xff]
        %v473 = vld [vmem:[%s383 + $0x2c8] sm:$0xff]
        %v474 = vld [vmem:[%s383 + $0x2d0] sm:$0xff]
        %v475 = vld [vmem:[%s383 + $0x2d8] sm:$0xff]
        %v476 = vld [vmem:[%s383 + $0x2e0] sm:$0xff]
        %v477 = vld [vmem:[%s383 + $0x2e8] sm:$0xff]
        %v478 = vld [vmem:[%s383 + $0x2f0] sm:$0xff]
        %v479 = vld [vmem:[%s383 + $0x2f8] sm:$0xff]
        %v480 = vld [vmem:[%s383 + $0x300] sm:$0xff]
        %v481 = vld [vmem:[%s383 + $0x308] sm:$0xff]
        %v482 = vld [vmem:[%s383 + $0x310] sm:$0xff]
        %v483 = vld [vmem:[%s383 + $0x318] sm:$0xff]
        %v484 = vld [vmem:[%s383 + $0x320] sm:$0xff]
        %v485 = vld [vmem:[%s383 + $0x328] sm:$0xff]
        %v486 = vld [vmem:[%s383 + $0x330] sm:$0xff]
        %v487 = vld [vmem:[%s383 + $0x338] sm:$0xff]
        %v488 = vld [vmem:[%s383 + $0x340] sm:$0xff]
        %v489 = vld [vmem:[%s383 + $0x348] sm:$0xff]
        %v490 = vld [vmem:[%s383 + $0x350] sm:$0xff]
        %v491 = vld [vmem:[%s383 + $0x358] sm:$0xff]
        %v492 = vld [vmem:[%s383 + $0x360] sm:$0xff]
        %v493 = vld [vmem:[%s383 + $0x368] sm:$0xff]
        %v494 = vld [vmem:[%s383 + $0x370] sm:$0xff]
        %v495 = vld [vmem:[%s383 + $0x378] sm:$0xff]
        %v496 = vld [vmem:[%s383 + $0x380] sm:$0xff]
        %v497 = vld [vmem:[%s383 + $0x388] sm:$0xff]
        %v498 = vld [vmem:[%s383 + $0x390] sm:$0xff]
        %v499 = vld [vmem:[%s383 + $0x398] sm:$0xff]
        %v500 = vld [vmem:[%s383 + $0x3a0] sm:$0xff]
        %v501 = vld [vmem:[%s383 + $0x3a8] sm:$0xff]
        %v502 = vld [vmem:[%s383 + $0x3b0] sm:$0xff]
        %v503 = vld [vmem:[%s383 + $0x3b8] sm:$0xff]
        %v504 = vld [vmem:[%s383 + $0x3c0] sm:$0xff]
        %v505 = vld [vmem:[%s383 + $0x3c8] sm:$0xff]
        %v506 = vld [vmem:[%s383 + $0x3d0] sm:$0xff]
        %v507 = vld [vmem:[%s383 + $0x3d8] sm:$0xff]
        %v508 = vld [vmem:[%s383 + $0x3e0] sm:$0xff]
        %v509 = vld [vmem:[%s383 + $0x3e8] sm:$0xff]
        %v510 = vld [vmem:[%s383 + $0x3f0] sm:$0xff]
        %v511 = vld [vmem:[%s383 + $0x3f8] sm:$0xf]
        %v512 = vld [vmem:[%s383 + $0x1] sm:$0xff]
        %v513 = vld [vmem:[%s383 + $0x9] sm:$0xff]
        %v514 = vld [vmem:[%s383 + $0x11] sm:$0xff]
        %v515 = vld [vmem:[%s383 + $0x19] sm:$0xff]
        %v516 = vld [vmem:[%s383 + $0x21] sm:$0xff]
        %v517 = vld [vmem:[%s383 + $0x29] sm:$0xff]
        %v518 = vld [vmem:[%s383 + $0x31] sm:$0xff]
        %v519 = vld [vmem:[%s383 + $0x39] sm:$0xff]
        %v520 = vld [vmem:[%s383 + $0x41] sm:$0xff]
        %v521 = vld [vmem:[%s383 + $0x49] sm:$0xff]
        %v522 = vld [vmem:[%s383 + $0x51] sm:$0xff]
        %v523 = vld [vmem:[%s383 + $0x59] sm:$0xff]
        %v524 = vld [vmem:[%s383 + $0x61] sm:$0xff]
        %v525 = vld [vmem:[%s383 + $0x69] sm:$0xff]
        %v526 = vld [vmem:[%s383 + $0x71] sm:$0xff]
        %v527 = vld [vmem:[%s383 + $0x79] sm:$0xff]
        %v528 = vld [vmem:[%s383 + $0x81] sm:$0xff]
        %v529 = vld [vmem:[%s383 + $0x89] sm:$0xff]
        %v530 = vld [vmem:[%s383 + $0x91] sm:$0xff]
        %v531 = vld [vmem:[%s383 + $0x99] sm:$0xff]
        %v532 = vld [vmem:[%s383 + $0xa1] sm:$0xff]
        %v533 = vld [vmem:[%s383 + $0xa9] sm:$0xff]
        %v534 = vld [vmem:[%s383 + $0xb1] sm:$0xff]
        %v535 = vld [vmem:[%s383 + $0xb9] sm:$0xff]
        %v536 = vld [vmem:[%s383 + $0xc1] sm:$0xff]
        %v537 = vld [vmem:[%s383 + $0xc9] sm:$0xff]
        %v538 = vld [vmem:[%s383 + $0xd1] sm:$0xff]
        %v539 = vld [vmem:[%s383 + $0xd9] sm:$0xff]
        %v540 = vld [vmem:[%s383 + $0xe1] sm:$0xff]
        %v541 = vld [vmem:[%s383 + $0xe9] sm:$0xff]
        %v542 = vld [vmem:[%s383 + $0xf1] sm:$0xff]
        %v543 = vld [vmem:[%s383 + $0xf9] sm:$0xff]
        %v544 = vld [vmem:[%s383 + $0x101] sm:$0xff]
        %v545 = vld [vmem:[%s383 + $0x109] sm:$0xff]
        %v546 = vld [vmem:[%s383 + $0x111] sm:$0xff]
        %v547 = vld [vmem:[%s383 + $0x119] sm:$0xff]
        %v548 = vld [vmem:[%s383 + $0x121] sm:$0xff]
        %v549 = vld [vmem:[%s383 + $0x129] sm:$0xff]
        %v550 = vld [vmem:[%s383 + $0x131] sm:$0xff]
        %v551 = vld [vmem:[%s383 + $0x139] sm:$0xff]
        %v552 = vld [vmem:[%s383 + $0x141] sm:$0xff]
        %v553 = vld [vmem:[%s383 + $0x149] sm:$0xff]
        %v554 = vld [vmem:[%s383 + $0x151] sm:$0xff]
        %v555 = vld [vmem:[%s383 + $0x159] sm:$0xff]
        %v556 = vld [vmem:[%s383 + $0x161] sm:$0xff]
        %v557 = vld [vmem:[%s383 + $0x169] sm:$0xff]
        %v558 = vld [vmem:[%s383 + $0x171] sm:$0xff]
        %v559 = vld [vmem:[%s383 + $0x179] sm:$0xff]
        %v560 = vld [vmem:[%s383 + $0x181] sm:$0xff]
        %v561 = vld [vmem:[%s383 + $0x189] sm:$0xff]
        %v562 = vld [vmem:[%s383 + $0x191] sm:$0xff]
        %v563 = vld [vmem:[%s383 + $0x199] sm:$0xff]
        %v564 = vld [vmem:[%s383 + $0x1a1] sm:$0xff]
        %v565 = vld [vmem:[%s383 + $0x1a9] sm:$0xff]
        %v566 = vld [vmem:[%s383 + $0x1b1] sm:$0xff]
        %v567 = vld [vmem:[%s383 + $0x1b9] sm:$0xff]
        %v568 = vld [vmem:[%s383 + $0x1c1] sm:$0xff]
        %v569 = vld [vmem:[%s383 + $0x1c9] sm:$0xff]
        %v570 = vld [vmem:[%s383 + $0x1d1] sm:$0xff]
        %v571 = vld [vmem:[%s383 + $0x1d9] sm:$0xff]
        %v572 = vld [vmem:[%s383 + $0x1e1] sm:$0xff]
        %v573 = vld [vmem:[%s383 + $0x1e9] sm:$0xff]
        %v574 = vld [vmem:[%s383 + $0x1f1] sm:$0xff]
        %v575 = vld [vmem:[%s383 + $0x1f9] sm:$0xff]
        %v576 = vld [vmem:[%s383 + $0x201] sm:$0xff]
        %v577 = vld [vmem:[%s383 + $0x209] sm:$0xff]
        %v578 = vld [vmem:[%s383 + $0x211] sm:$0xff]
        %v579 = vld [vmem:[%s383 + $0x219] sm:$0xff]
        %v580 = vld [vmem:[%s383 + $0x221] sm:$0xff]
        %v581 = vld [vmem:[%s383 + $0x229] sm:$0xff]
        %v582 = vld [vmem:[%s383 + $0x231] sm:$0xff]
        %v583 = vld [vmem:[%s383 + $0x239] sm:$0xff]
        %v584 = vld [vmem:[%s383 + $0x241] sm:$0xff]
        %v585 = vld [vmem:[%s383 + $0x249] sm:$0xff]
        %v586 = vld [vmem:[%s383 + $0x251] sm:$0xff]
        %v587 = vld [vmem:[%s383 + $0x259] sm:$0xff]
        %v588 = vld [vmem:[%s383 + $0x261] sm:$0xff]
        %v589 = vld [vmem:[%s383 + $0x269] sm:$0xff]
        %v590 = vld [vmem:[%s383 + $0x271] sm:$0xff]
        %v591 = vld [vmem:[%s383 + $0x279] sm:$0xff]
        %v592 = vld [vmem:[%s383 + $0x281] sm:$0xff]
        %v593 = vld [vmem:[%s383 + $0x289] sm:$0xff]
        %v594 = vld [vmem:[%s383 + $0x291] sm:$0xff]
        %v595 = vld [vmem:[%s383 + $0x299] sm:$0xff]
        %v596 = vld [vmem:[%s383 + $0x2a1] sm:$0xff]
        %v597 = vld [vmem:[%s383 + $0x2a9] sm:$0xff]
        %v598 = vld [vmem:[%s383 + $0x2b1] sm:$0xff]
        %v599 = vld [vmem:[%s383 + $0x2b9] sm:$0xff]
        %v600 = vld [vmem:[%s383 + $0x2c1] sm:$0xff]
        %v601 = vld [vmem:[%s383 + $0x2c9] sm:$0xff]
        %v602 = vld [vmem:[%s383 + $0x2d1] sm:$0xff]
        %v603 = vld [vmem:[%s383 + $0x2d9] sm:$0xff]
        %v604 = vld [vmem:[%s383 + $0x2e1] sm:$0xff]
        %v605 = vld [vmem:[%s383 + $0x2e9] sm:$0xff]
        %v606 = vld [vmem:[%s383 + $0x2f1] sm:$0xff]
        %v607 = vld [vmem:[%s383 + $0x2f9] sm:$0xff]
        %v608 = vld [vmem:[%s383 + $0x301] sm:$0xff]
        %v609 = vld [vmem:[%s383 + $0x309] sm:$0xff]
        %v610 = vld [vmem:[%s383 + $0x311] sm:$0xff]
        %v611 = vld [vmem:[%s383 + $0x319] sm:$0xff]
        %v612 = vld [vmem:[%s383 + $0x321] sm:$0xff]
        %v613 = vld [vmem:[%s383 + $0x329] sm:$0xff]
        %v614 = vld [vmem:[%s383 + $0x331] sm:$0xff]
        %v615 = vld [vmem:[%s383 + $0x339] sm:$0xff]
        %v616 = vld [vmem:[%s383 + $0x341] sm:$0xff]
        %v617 = vld [vmem:[%s383 + $0x349] sm:$0xff]
        %v618 = vld [vmem:[%s383 + $0x351] sm:$0xff]
        %v619 = vld [vmem:[%s383 + $0x359] sm:$0xff]
        %v620 = vld [vmem:[%s383 + $0x361] sm:$0xff]
        %v621 = vld [vmem:[%s383 + $0x369] sm:$0xff]
        %v622 = vld [vmem:[%s383 + $0x371] sm:$0xff]
        %v623 = vld [vmem:[%s383 + $0x379] sm:$0xff]
        %v624 = vld [vmem:[%s383 + $0x381] sm:$0xff]
        %v625 = vld [vmem:[%s383 + $0x389] sm:$0xff]
        %v626 = vld [vmem:[%s383 + $0x391] sm:$0xff]
        %v627 = vld [vmem:[%s383 + $0x399] sm:$0xff]
        %v628 = vld [vmem:[%s383 + $0x3a1] sm:$0xff]
        %v629 = vld [vmem:[%s383 + $0x3a9] sm:$0xff]
        %v630 = vld [vmem:[%s383 + $0x3b1] sm:$0xff]
        %v631 = vld [vmem:[%s383 + $0x3b9] sm:$0xff]
        %v632 = vld [vmem:[%s383 + $0x3c1] sm:$0xff]
        %v633 = vld [vmem:[%s383 + $0x3c9] sm:$0xff]
        %v634 = vld [vmem:[%s383 + $0x3d1] sm:$0xff]
        %v635 = vld [vmem:[%s383 + $0x3d9] sm:$0xff]
        %v636 = vld [vmem:[%s383 + $0x3e1] sm:$0xff]
        %v637 = vld [vmem:[%s383 + $0x3e9] sm:$0xff]
        %v638 = vld [vmem:[%s383 + $0x3f1] sm:$0xff]
        %v639 = vld [vmem:[%s383 + $0x3f9] sm:$0xf]
        %v640 = vld [vmem:[%s383 + $0x2] sm:$0xff]
        %v641 = vld [vmem:[%s383 + $0xa] sm:$0xff]
        %v642 = vld [vmem:[%s383 + $0x12] sm:$0xff]
        %v643 = vld [vmem:[%s383 + $0x1a] sm:$0xff]
        %v644 = vld [vmem:[%s383 + $0x22] sm:$0xff]
        %v645 = vld [vmem:[%s383 + $0x2a] sm:$0xff]
        %v646 = vld [vmem:[%s383 + $0x32] sm:$0xff]
        %v647 = vld [vmem:[%s383 + $0x3a] sm:$0xff]
        %v648 = vld [vmem:[%s383 + $0x42] sm:$0xff]
        %v649 = vld [vmem:[%s383 + $0x4a] sm:$0xff]
        %v650 = vld [vmem:[%s383 + $0x52] sm:$0xff]
        %v651 = vld [vmem:[%s383 + $0x5a] sm:$0xff]
        %v652 = vld [vmem:[%s383 + $0x62] sm:$0xff]
        %v653 = vld [vmem:[%s383 + $0x6a] sm:$0xff]
        %v654 = vld [vmem:[%s383 + $0x72] sm:$0xff]
        %v655 = vld [vmem:[%s383 + $0x7a] sm:$0xff]
        %v656 = vld [vmem:[%s383 + $0x82] sm:$0xff]
        %v657 = vld [vmem:[%s383 + $0x8a] sm:$0xff]
        %v658 = vld [vmem:[%s383 + $0x92] sm:$0xff]
        %v659 = vld [vmem:[%s383 + $0x9a] sm:$0xff]
        %v660 = vld [vmem:[%s383 + $0xa2] sm:$0xff]
        %v661 = vld [vmem:[%s383 + $0xaa] sm:$0xff]
        %v662 = vld [vmem:[%s383 + $0xb2] sm:$0xff]
        %v663 = vld [vmem:[%s383 + $0xba] sm:$0xff]
        %v664 = vld [vmem:[%s383 + $0xc2] sm:$0xff]
        %v665 = vld [vmem:[%s383 + $0xca] sm:$0xff]
        %v666 = vld [vmem:[%s383 + $0xd2] sm:$0xff]
        %v667 = vld [vmem:[%s383 + $0xda] sm:$0xff]
        %v668 = vld [vmem:[%s383 + $0xe2] sm:$0xff]
        %v669 = vld [vmem:[%s383 + $0xea] sm:$0xff]
        %v670 = vld [vmem:[%s383 + $0xf2] sm:$0xff]
        %v671 = vld [vmem:[%s383 + $0xfa] sm:$0xff]
        %v672 = vld [vmem:[%s383 + $0x102] sm:$0xff]
        %v673 = vld [vmem:[%s383 + $0x10a] sm:$0xff]
        %v674 = vld [vmem:[%s383 + $0x112] sm:$0xff]
        %v675 = vld [vmem:[%s383 + $0x11a] sm:$0xff]
        %v676 = vld [vmem:[%s383 + $0x122] sm:$0xff]
        %v677 = vld [vmem:[%s383 + $0x12a] sm:$0xff]
        %v678 = vld [vmem:[%s383 + $0x132] sm:$0xff]
        %v679 = vld [vmem:[%s383 + $0x13a] sm:$0xff]
        %v680 = vld [vmem:[%s383 + $0x142] sm:$0xff]
        %v681 = vld [vmem:[%s383 + $0x14a] sm:$0xff]
        %v682 = vld [vmem:[%s383 + $0x152] sm:$0xff]
        %v683 = vld [vmem:[%s383 + $0x15a] sm:$0xff]
        %v684 = vld [vmem:[%s383 + $0x162] sm:$0xff]
        %v685 = vld [vmem:[%s383 + $0x16a] sm:$0xff]
        %v686 = vld [vmem:[%s383 + $0x172] sm:$0xff]
        %v687 = vld [vmem:[%s383 + $0x17a] sm:$0xff]
        %v688 = vld [vmem:[%s383 + $0x182] sm:$0xff]
        %v689 = vld [vmem:[%s383 + $0x18a] sm:$0xff]
        %v690 = vld [vmem:[%s383 + $0x192] sm:$0xff]
        %v691 = vld [vmem:[%s383 + $0x19a] sm:$0xff]
        %v692 = vld [vmem:[%s383 + $0x1a2] sm:$0xff]
        %v693 = vld [vmem:[%s383 + $0x1aa] sm:$0xff]
        %v694 = vld [vmem:[%s383 + $0x1b2] sm:$0xff]
        %v695 = vld [vmem:[%s383 + $0x1ba] sm:$0xff]
        %v696 = vld [vmem:[%s383 + $0x1c2] sm:$0xff]
        %v697 = vld [vmem:[%s383 + $0x1ca] sm:$0xff]
        %v698 = vld [vmem:[%s383 + $0x1d2] sm:$0xff]
        %v699 = vld [vmem:[%s383 + $0x1da] sm:$0xff]
        %v700 = vld [vmem:[%s383 + $0x1e2] sm:$0xff]
        %v701 = vld [vmem:[%s383 + $0x1ea] sm:$0xff]
        %v702 = vld [vmem:[%s383 + $0x1f2] sm:$0xff]
        %v703 = vld [vmem:[%s383 + $0x1fa] sm:$0xff]
        %v704 = vld [vmem:[%s383 + $0x202] sm:$0xff]
        %v705 = vld [vmem:[%s383 + $0x20a] sm:$0xff]
        %v706 = vld [vmem:[%s383 + $0x212] sm:$0xff]
        %v707 = vld [vmem:[%s383 + $0x21a] sm:$0xff]
        %v708 = vld [vmem:[%s383 + $0x222] sm:$0xff]
        %v709 = vld [vmem:[%s383 + $0x22a] sm:$0xff]
        %v710 = vld [vmem:[%s383 + $0x232] sm:$0xff]
        %v711 = vld [vmem:[%s383 + $0x23a] sm:$0xff]
        %v712 = vld [vmem:[%s383 + $0x242] sm:$0xff]
        %v713 = vld [vmem:[%s383 + $0x24a] sm:$0xff]
        %v714 = vld [vmem:[%s383 + $0x252] sm:$0xff]
        %v715 = vld [vmem:[%s383 + $0x25a] sm:$0xff]
        %v716 = vld [vmem:[%s383 + $0x262] sm:$0xff]
        %v717 = vld [vmem:[%s383 + $0x26a] sm:$0xff]
        %v718 = vld [vmem:[%s383 + $0x272] sm:$0xff]
        %v719 = vld [vmem:[%s383 + $0x27a] sm:$0xff]
        %v720 = vld [vmem:[%s383 + $0x282] sm:$0xff]
        %v721 = vld [vmem:[%s383 + $0x28a] sm:$0xff]
        %v722 = vld [vmem:[%s383 + $0x292] sm:$0xff]
        %v723 = vld [vmem:[%s383 + $0x29a] sm:$0xff]
        %v724 = vld [vmem:[%s383 + $0x2a2] sm:$0xff]
        %v725 = vld [vmem:[%s383 + $0x2aa] sm:$0xff]
        %v726 = vld [vmem:[%s383 + $0x2b2] sm:$0xff]
        %v727 = vld [vmem:[%s383 + $0x2ba] sm:$0xff]
        %v728 = vld [vmem:[%s383 + $0x2c2] sm:$0xff]
        %v729 = vld [vmem:[%s383 + $0x2ca] sm:$0xff]
        %v730 = vld [vmem:[%s383 + $0x2d2] sm:$0xff]
        %v731 = vld [vmem:[%s383 + $0x2da] sm:$0xff]
        %v732 = vld [vmem:[%s383 + $0x2e2] sm:$0xff]
        %v733 = vld [vmem:[%s383 + $0x2ea] sm:$0xff]
        %v734 = vld [vmem:[%s383 + $0x2f2] sm:$0xff]
        %v735 = vld [vmem:[%s383 + $0x2fa] sm:$0xff]
        %v736 = vld [vmem:[%s383 + $0x302] sm:$0xff]
        %v737 = vld [vmem:[%s383 + $0x30a] sm:$0xff]
        %v738 = vld [vmem:[%s383 + $0x312] sm:$0xff]
        %v739 = vld [vmem:[%s383 + $0x31a] sm:$0xff]
        %v740 = vld [vmem:[%s383 + $0x322] sm:$0xff]
        %v741 = vld [vmem:[%s383 + $0x32a] sm:$0xff]
        %v742 = vld [vmem:[%s383 + $0x332] sm:$0xff]
        %v743 = vld [vmem:[%s383 + $0x33a] sm:$0xff]
        %v744 = vld [vmem:[%s383 + $0x342] sm:$0xff]
        %v745 = vld [vmem:[%s383 + $0x34a] sm:$0xff]
        %v746 = vld [vmem:[%s383 + $0x352] sm:$0xff]
        %v747 = vld [vmem:[%s383 + $0x35a] sm:$0xff]
        %v748 = vld [vmem:[%s383 + $0x362] sm:$0xff]
        %v749 = vld [vmem:[%s383 + $0x36a] sm:$0xff]
        %v750 = vld [vmem:[%s383 + $0x372] sm:$0xff]
        %v751 = vld [vmem:[%s383 + $0x37a] sm:$0xff]
        %v752 = vld [vmem:[%s383 + $0x382] sm:$0xff]
        %v753 = vld [vmem:[%s383 + $0x38a] sm:$0xff]
        %v754 = vld [vmem:[%s383 + $0x392] sm:$0xff]
        %v755 = vld [vmem:[%s383 + $0x39a] sm:$0xff]
        %v756 = vld [vmem:[%s383 + $0x3a2] sm:$0xff]
        %v757 = vld [vmem:[%s383 + $0x3aa] sm:$0xff]
        %v758 = vld [vmem:[%s383 + $0x3b2] sm:$0xff]
        %v759 = vld [vmem:[%s383 + $0x3ba] sm:$0xff]
        %v760 = vld [vmem:[%s383 + $0x3c2] sm:$0xff]
        %v761 = vld [vmem:[%s383 + $0x3ca] sm:$0xff]
        %v762 = vld [vmem:[%s383 + $0x3d2] sm:$0xff]
        %v763 = vld [vmem:[%s383 + $0x3da] sm:$0xff]
        %v764 = vld [vmem:[%s383 + $0x3e2] sm:$0xff]
        %v765 = vld [vmem:[%s383 + $0x3ea] sm:$0xff]
        %v766 = vld [vmem:[%s383 + $0x3f2] sm:$0xff]
        %v767 = vld [vmem:[%s383 + $0x3fa] sm:$0xf]
        %v768 = vld [vmem:[%s383 + $0x3] sm:$0xff]
        %v769 = vld [vmem:[%s383 + $0xb] sm:$0xff]
        %v770 = vld [vmem:[%s383 + $0x13] sm:$0xff]
        %v771 = vld [vmem:[%s383 + $0x1b] sm:$0xff]
        %v772 = vld [vmem:[%s383 + $0x23] sm:$0xff]
        %v773 = vld [vmem:[%s383 + $0x2b] sm:$0xff]
        %v774 = vld [vmem:[%s383 + $0x33] sm:$0xff]
        %v775 = vld [vmem:[%s383 + $0x3b] sm:$0xff]
        %v776 = vld [vmem:[%s383 + $0x43] sm:$0xff]
        %v777 = vld [vmem:[%s383 + $0x4b] sm:$0xff]
        %v778 = vld [vmem:[%s383 + $0x53] sm:$0xff]
        %v779 = vld [vmem:[%s383 + $0x5b] sm:$0xff]
        %v780 = vld [vmem:[%s383 + $0x63] sm:$0xff]
        %v781 = vld [vmem:[%s383 + $0x6b] sm:$0xff]
        %v782 = vld [vmem:[%s383 + $0x73] sm:$0xff]
        %v783 = vld [vmem:[%s383 + $0x7b] sm:$0xff]
        %v784 = vld [vmem:[%s383 + $0x83] sm:$0xff]
        %v785 = vld [vmem:[%s383 + $0x8b] sm:$0xff]
        %v786 = vld [vmem:[%s383 + $0x93] sm:$0xff]
        %v787 = vld [vmem:[%s383 + $0x9b] sm:$0xff]
        %v788 = vld [vmem:[%s383 + $0xa3] sm:$0xff]
        %v789 = vld [vmem:[%s383 + $0xab] sm:$0xff]
        %v790 = vld [vmem:[%s383 + $0xb3] sm:$0xff]
        %v791 = vld [vmem:[%s383 + $0xbb] sm:$0xff]
        %v792 = vld [vmem:[%s383 + $0xc3] sm:$0xff]
        %v793 = vld [vmem:[%s383 + $0xcb] sm:$0xff]
        %v794 = vld [vmem:[%s383 + $0xd3] sm:$0xff]
        %v795 = vld [vmem:[%s383 + $0xdb] sm:$0xff]
        %v796 = vld [vmem:[%s383 + $0xe3] sm:$0xff]
        %v797 = vld [vmem:[%s383 + $0xeb] sm:$0xff]
        %v798 = vld [vmem:[%s383 + $0xf3] sm:$0xff]
        %v799 = vld [vmem:[%s383 + $0xfb] sm:$0xff]
        %v800 = vld [vmem:[%s383 + $0x103] sm:$0xff]
        %v801 = vld [vmem:[%s383 + $0x10b] sm:$0xff]
        %v802 = vld [vmem:[%s383 + $0x113] sm:$0xff]
        %v803 = vld [vmem:[%s383 + $0x11b] sm:$0xff]
        %v804 = vld [vmem:[%s383 + $0x123] sm:$0xff]
        %v805 = vld [vmem:[%s383 + $0x12b] sm:$0xff]
        %v806 = vld [vmem:[%s383 + $0x133] sm:$0xff]
        %v807 = vld [vmem:[%s383 + $0x13b] sm:$0xff]
        %v808 = vld [vmem:[%s383 + $0x143] sm:$0xff]
        %v809 = vld [vmem:[%s383 + $0x14b] sm:$0xff]
        %v810 = vld [vmem:[%s383 + $0x153] sm:$0xff]
        %v811 = vld [vmem:[%s383 + $0x15b] sm:$0xff]
        %v812 = vld [vmem:[%s383 + $0x163] sm:$0xff]
        %v813 = vld [vmem:[%s383 + $0x16b] sm:$0xff]
        %v814 = vld [vmem:[%s383 + $0x173] sm:$0xff]
        %v815 = vld [vmem:[%s383 + $0x17b] sm:$0xff]
        %v816 = vld [vmem:[%s383 + $0x183] sm:$0xff]
        %v817 = vld [vmem:[%s383 + $0x18b] sm:$0xff]
        %v818 = vld [vmem:[%s383 + $0x193] sm:$0xff]
        %v819 = vld [vmem:[%s383 + $0x19b] sm:$0xff]
        %v820 = vld [vmem:[%s383 + $0x1a3] sm:$0xff]
        %v821 = vld [vmem:[%s383 + $0x1ab] sm:$0xff]
        %v822 = vld [vmem:[%s383 + $0x1b3] sm:$0xff]
        %v823 = vld [vmem:[%s383 + $0x1bb] sm:$0xff]
        %v824 = vld [vmem:[%s383 + $0x1c3] sm:$0xff]
        %v825 = vld [vmem:[%s383 + $0x1cb] sm:$0xff]
        %v826 = vld [vmem:[%s383 + $0x1d3] sm:$0xff]
        %v827 = vld [vmem:[%s383 + $0x1db] sm:$0xff]
        %v828 = vld [vmem:[%s383 + $0x1e3] sm:$0xff]
        %v829 = vld [vmem:[%s383 + $0x1eb] sm:$0xff]
        %v830 = vld [vmem:[%s383 + $0x1f3] sm:$0xff]
        %v831 = vld [vmem:[%s383 + $0x1fb] sm:$0xff]
        %v832 = vld [vmem:[%s383 + $0x203] sm:$0xff]
        %v833 = vld [vmem:[%s383 + $0x20b] sm:$0xff]
        %v834 = vld [vmem:[%s383 + $0x213] sm:$0xff]
        %v835 = vld [vmem:[%s383 + $0x21b] sm:$0xff]
        %v836 = vld [vmem:[%s383 + $0x223] sm:$0xff]
        %v837 = vld [vmem:[%s383 + $0x22b] sm:$0xff]
        %v838 = vld [vmem:[%s383 + $0x233] sm:$0xff]
        %v839 = vld [vmem:[%s383 + $0x23b] sm:$0xff]
        %v840 = vld [vmem:[%s383 + $0x243] sm:$0xff]
        %v841 = vld [vmem:[%s383 + $0x24b] sm:$0xff]
        %v842 = vld [vmem:[%s383 + $0x253] sm:$0xff]
        %v843 = vld [vmem:[%s383 + $0x25b] sm:$0xff]
        %v844 = vld [vmem:[%s383 + $0x263] sm:$0xff]
        %v845 = vld [vmem:[%s383 + $0x26b] sm:$0xff]
        %v846 = vld [vmem:[%s383 + $0x273] sm:$0xff]
        %v847 = vld [vmem:[%s383 + $0x27b] sm:$0xff]
        %v848 = vld [vmem:[%s383 + $0x283] sm:$0xff]
        %v849 = vld [vmem:[%s383 + $0x28b] sm:$0xff]
        %v850 = vld [vmem:[%s383 + $0x293] sm:$0xff]
        %v851 = vld [vmem:[%s383 + $0x29b] sm:$0xff]
        %v852 = vld [vmem:[%s383 + $0x2a3] sm:$0xff]
        %v853 = vld [vmem:[%s383 + $0x2ab] sm:$0xff]
        %v854 = vld [vmem:[%s383 + $0x2b3] sm:$0xff]
        %v855 = vld [vmem:[%s383 + $0x2bb] sm:$0xff]
        %v856 = vld [vmem:[%s383 + $0x2c3] sm:$0xff]
        %v857 = vld [vmem:[%s383 + $0x2cb] sm:$0xff]
        %v858 = vld [vmem:[%s383 + $0x2d3] sm:$0xff]
        %v859 = vld [vmem:[%s383 + $0x2db] sm:$0xff]
        %v860 = vld [vmem:[%s383 + $0x2e3] sm:$0xff]
        %v861 = vld [vmem:[%s383 + $0x2eb] sm:$0xff]
        %v862 = vld [vmem:[%s383 + $0x2f3] sm:$0xff]
        %v863 = vld [vmem:[%s383 + $0x2fb] sm:$0xff]
        %v864 = vld [vmem:[%s383 + $0x303] sm:$0xff]
        %v865 = vld [vmem:[%s383 + $0x30b] sm:$0xff]
        %v866 = vld [vmem:[%s383 + $0x313] sm:$0xff]
        %v867 = vld [vmem:[%s383 + $0x31b] sm:$0xff]
        %v868 = vld [vmem:[%s383 + $0x323] sm:$0xff]
        %v869 = vld [vmem:[%s383 + $0x32b] sm:$0xff]
        %v870 = vld [vmem:[%s383 + $0x333] sm:$0xff]
        %v871 = vld [vmem:[%s383 + $0x33b] sm:$0xff]
        %v872 = vld [vmem:[%s383 + $0x343] sm:$0xff]
        %v873 = vld [vmem:[%s383 + $0x34b] sm:$0xff]
        %v874 = vld [vmem:[%s383 + $0x353] sm:$0xff]
        %v875 = vld [vmem:[%s383 + $0x35b] sm:$0xff]
        %v876 = vld [vmem:[%s383 + $0x363] sm:$0xff]
        %v877 = vld [vmem:[%s383 + $0x36b] sm:$0xff]
        %v878 = vld [vmem:[%s383 + $0x373] sm:$0xff]
        %v879 = vld [vmem:[%s383 + $0x37b] sm:$0xff]
        %v880 = vld [vmem:[%s383 + $0x383] sm:$0xff]
        %v881 = vld [vmem:[%s383 + $0x38b] sm:$0xff]
        %v882 = vld [vmem:[%s383 + $0x393] sm:$0xff]
        %v883 = vld [vmem:[%s383 + $0x39b] sm:$0xff]
        %v884 = vld [vmem:[%s383 + $0x3a3] sm:$0xff]
        %v885 = vld [vmem:[%s383 + $0x3ab] sm:$0xff]
        %v886 = vld [vmem:[%s383 + $0x3b3] sm:$0xff]
        %v887 = vld [vmem:[%s383 + $0x3bb] sm:$0xff]
        %v888 = vld [vmem:[%s383 + $0x3c3] sm:$0xff]
        %v889 = vld [vmem:[%s383 + $0x3cb] sm:$0xff]
        %v890 = vld [vmem:[%s383 + $0x3d3] sm:$0xff]
        %v891 = vld [vmem:[%s383 + $0x3db] sm:$0xff]
        %v892 = vld [vmem:[%s383 + $0x3e3] sm:$0xff]
        %v893 = vld [vmem:[%s383 + $0x3eb] sm:$0xff]
        %v894 = vld [vmem:[%s383 + $0x3f3] sm:$0xff]
        %v895 = vld [vmem:[%s383 + $0x3fb] sm:$0xf]
        %v896 = vld [vmem:[%s383 + $0x4] sm:$0xff]
        %v897 = vld [vmem:[%s383 + $0xc] sm:$0xff]
        %v898 = vld [vmem:[%s383 + $0x14] sm:$0xff]
        %v899 = vld [vmem:[%s383 + $0x1c] sm:$0xff]
        %v900 = vld [vmem:[%s383 + $0x24] sm:$0xff]
        %v901 = vld [vmem:[%s383 + $0x2c] sm:$0xff]
        %v902 = vld [vmem:[%s383 + $0x34] sm:$0xff]
        %v903 = vld [vmem:[%s383 + $0x3c] sm:$0xff]
        %v904 = vld [vmem:[%s383 + $0x44] sm:$0xff]
        %v905 = vld [vmem:[%s383 + $0x4c] sm:$0xff]
        %v906 = vld [vmem:[%s383 + $0x54] sm:$0xff]
        %v907 = vld [vmem:[%s383 + $0x5c] sm:$0xff]
        %v908 = vld [vmem:[%s383 + $0x64] sm:$0xff]
        %v909 = vld [vmem:[%s383 + $0x6c] sm:$0xff]
        %v910 = vld [vmem:[%s383 + $0x74] sm:$0xff]
        %v911 = vld [vmem:[%s383 + $0x7c] sm:$0xff]
        %v912 = vld [vmem:[%s383 + $0x84] sm:$0xff]
        %v913 = vld [vmem:[%s383 + $0x8c] sm:$0xff]
        %v914 = vld [vmem:[%s383 + $0x94] sm:$0xff]
        %v915 = vld [vmem:[%s383 + $0x9c] sm:$0xff]
        %v916 = vld [vmem:[%s383 + $0xa4] sm:$0xff]
        %v917 = vld [vmem:[%s383 + $0xac] sm:$0xff]
        %v918 = vld [vmem:[%s383 + $0xb4] sm:$0xff]
        %v919 = vld [vmem:[%s383 + $0xbc] sm:$0xff]
        %v920 = vld [vmem:[%s383 + $0xc4] sm:$0xff]
        %v921 = vld [vmem:[%s383 + $0xcc] sm:$0xff]
        %v922 = vld [vmem:[%s383 + $0xd4] sm:$0xff]
        %v923 = vld [vmem:[%s383 + $0xdc] sm:$0xff]
        %v924 = vld [vmem:[%s383 + $0xe4] sm:$0xff]
        %v925 = vld [vmem:[%s383 + $0xec] sm:$0xff]
        %v926 = vld [vmem:[%s383 + $0xf4] sm:$0xff]
        %v927 = vld [vmem:[%s383 + $0xfc] sm:$0xff]
        %v928 = vld [vmem:[%s383 + $0x104] sm:$0xff]
        %v929 = vld [vmem:[%s383 + $0x10c] sm:$0xff]
        %v930 = vld [vmem:[%s383 + $0x114] sm:$0xff]
        %v931 = vld [vmem:[%s383 + $0x11c] sm:$0xff]
        %v932 = vld [vmem:[%s383 + $0x124] sm:$0xff]
        %v933 = vld [vmem:[%s383 + $0x12c] sm:$0xff]
        %v934 = vld [vmem:[%s383 + $0x134] sm:$0xff]
        %v935 = vld [vmem:[%s383 + $0x13c] sm:$0xff]
        %v936 = vld [vmem:[%s383 + $0x144] sm:$0xff]
        %v937 = vld [vmem:[%s383 + $0x14c] sm:$0xff]
        %v938 = vld [vmem:[%s383 + $0x154] sm:$0xff]
        %v939 = vld [vmem:[%s383 + $0x15c] sm:$0xff]
        %v940 = vld [vmem:[%s383 + $0x164] sm:$0xff]
        %v941 = vld [vmem:[%s383 + $0x16c] sm:$0xff]
        %v942 = vld [vmem:[%s383 + $0x174] sm:$0xff]
        %v943 = vld [vmem:[%s383 + $0x17c] sm:$0xff]
        %v944 = vld [vmem:[%s383 + $0x184] sm:$0xff]
        %v945 = vld [vmem:[%s383 + $0x18c] sm:$0xff]
        %v946 = vld [vmem:[%s383 + $0x194] sm:$0xff]
        %v947 = vld [vmem:[%s383 + $0x19c] sm:$0xff]
        %v948 = vld [vmem:[%s383 + $0x1a4] sm:$0xff]
        %v949 = vld [vmem:[%s383 + $0x1ac] sm:$0xff]
        %v950 = vld [vmem:[%s383 + $0x1b4] sm:$0xff]
        %v951 = vld [vmem:[%s383 + $0x1bc] sm:$0xff]
        %v952 = vld [vmem:[%s383 + $0x1c4] sm:$0xff]
        %v953 = vld [vmem:[%s383 + $0x1cc] sm:$0xff]
        %v954 = vld [vmem:[%s383 + $0x1d4] sm:$0xff]
        %v955 = vld [vmem:[%s383 + $0x1dc] sm:$0xff]
        %v956 = vld [vmem:[%s383 + $0x1e4] sm:$0xff]
        %v957 = vld [vmem:[%s383 + $0x1ec] sm:$0xff]
        %v958 = vld [vmem:[%s383 + $0x1f4] sm:$0xff]
        %v959 = vld [vmem:[%s383 + $0x1fc] sm:$0xff]
        %v960 = vld [vmem:[%s383 + $0x204] sm:$0xff]
        %v961 = vld [vmem:[%s383 + $0x20c] sm:$0xff]
        %v962 = vld [vmem:[%s383 + $0x214] sm:$0xff]
        %v963 = vld [vmem:[%s383 + $0x21c] sm:$0xff]
        %v964 = vld [vmem:[%s383 + $0x224] sm:$0xff]
        %v965 = vld [vmem:[%s383 + $0x22c] sm:$0xff]
        %v966 = vld [vmem:[%s383 + $0x234] sm:$0xff]
        %v967 = vld [vmem:[%s383 + $0x23c] sm:$0xff]
        %v968 = vld [vmem:[%s383 + $0x244] sm:$0xff]
        %v969 = vld [vmem:[%s383 + $0x24c] sm:$0xff]
        %v970 = vld [vmem:[%s383 + $0x254] sm:$0xff]
        %v971 = vld [vmem:[%s383 + $0x25c] sm:$0xff]
        %v972 = vld [vmem:[%s383 + $0x264] sm:$0xff]
        %v973 = vld [vmem:[%s383 + $0x26c] sm:$0xff]
        %v974 = vld [vmem:[%s383 + $0x274] sm:$0xff]
        %v975 = vld [vmem:[%s383 + $0x27c] sm:$0xff]
        %v976 = vld [vmem:[%s383 + $0x284] sm:$0xff]
        %v977 = vld [vmem:[%s383 + $0x28c] sm:$0xff]
        %v978 = vld [vmem:[%s383 + $0x294] sm:$0xff]
        %v979 = vld [vmem:[%s383 + $0x29c] sm:$0xff]
        %v980 = vld [vmem:[%s383 + $0x2a4] sm:$0xff]
        %v981 = vld [vmem:[%s383 + $0x2ac] sm:$0xff]
        %v982 = vld [vmem:[%s383 + $0x2b4] sm:$0xff]
        %v983 = vld [vmem:[%s383 + $0x2bc] sm:$0xff]
        %v984 = vld [vmem:[%s383 + $0x2c4] sm:$0xff]
        %v985 = vld [vmem:[%s383 + $0x2cc] sm:$0xff]
        %v986 = vld [vmem:[%s383 + $0x2d4] sm:$0xff]
        %v987 = vld [vmem:[%s383 + $0x2dc] sm:$0xff]
        %v988 = vld [vmem:[%s383 + $0x2e4] sm:$0xff]
        %v989 = vld [vmem:[%s383 + $0x2ec] sm:$0xff]
        %v990 = vld [vmem:[%s383 + $0x2f4] sm:$0xff]
        %v991 = vld [vmem:[%s383 + $0x2fc] sm:$0xff]
        %v992 = vld [vmem:[%s383 + $0x304] sm:$0xff]
        %v993 = vld [vmem:[%s383 + $0x30c] sm:$0xff]
        %v994 = vld [vmem:[%s383 + $0x314] sm:$0xff]
        %v995 = vld [vmem:[%s383 + $0x31c] sm:$0xff]
        %v996 = vld [vmem:[%s383 + $0x324] sm:$0xff]
        %v997 = vld [vmem:[%s383 + $0x32c] sm:$0xff]
        %v998 = vld [vmem:[%s383 + $0x334] sm:$0xff]
        %v999 = vld [vmem:[%s383 + $0x33c] sm:$0xff]
        %v1000 = vld [vmem:[%s383 + $0x344] sm:$0xff]
        %v1001 = vld [vmem:[%s383 + $0x34c] sm:$0xff]
        %v1002 = vld [vmem:[%s383 + $0x354] sm:$0xff]
        %v1003 = vld [vmem:[%s383 + $0x35c] sm:$0xff]
        %v1004 = vld [vmem:[%s383 + $0x364] sm:$0xff]
        %v1005 = vld [vmem:[%s383 + $0x36c] sm:$0xff]
        %v1006 = vld [vmem:[%s383 + $0x374] sm:$0xff]
        %v1007 = vld [vmem:[%s383 + $0x37c] sm:$0xff]
        %v1008 = vld [vmem:[%s383 + $0x384] sm:$0xff]
        %v1009 = vld [vmem:[%s383 + $0x38c] sm:$0xff]
        %v1010 = vld [vmem:[%s383 + $0x394] sm:$0xff]
        %v1011 = vld [vmem:[%s383 + $0x39c] sm:$0xff]
        %v1012 = vld [vmem:[%s383 + $0x3a4] sm:$0xff]
        %v1013 = vld [vmem:[%s383 + $0x3ac] sm:$0xff]
        %v1014 = vld [vmem:[%s383 + $0x3b4] sm:$0xff]
        %v1015 = vld [vmem:[%s383 + $0x3bc] sm:$0xff]
        %v1016 = vld [vmem:[%s383 + $0x3c4] sm:$0xff]
        %v1017 = vld [vmem:[%s383 + $0x3cc] sm:$0xff]
        %v1018 = vld [vmem:[%s383 + $0x3d4] sm:$0xff]
        %v1019 = vld [vmem:[%s383 + $0x3dc] sm:$0xff]
        %v1020 = vld [vmem:[%s383 + $0x3e4] sm:$0xff]
        %v1021 = vld [vmem:[%s383 + $0x3ec] sm:$0xff]
        %v1022 = vld [vmem:[%s383 + $0x3f4] sm:$0xff]
        %v1023 = vld [vmem:[%s383 + $0x3fc] sm:$0xf]
        %1152 = vrot.lane.b32.xlu0 %v512, 3
        %v1153 = vpop.permute.xlu0 %1152
        %1154 = vrot.lane.b32.xlu0 %v513, 3
        %v1155 = vpop.permute.xlu0 %1154
        %1156 = vrot.lane.b32.xlu0 %v514, 3
        %v1157 = vpop.permute.xlu0 %1156
        %1158 = vrot.lane.b32.xlu0 %v515, 3
        %v1159 = vpop.permute.xlu0 %1158
        %1160 = vrot.lane.b32.xlu0 %v516, 3
        %v1161 = vpop.permute.xlu0 %1160
        %1162 = vrot.lane.b32.xlu0 %v517, 3
        %v1163 = vpop.permute.xlu0 %1162
        %1164 = vrot.lane.b32.xlu0 %v518, 3
        %v1165 = vpop.permute.xlu0 %1164
        %1166 = vrot.lane.b32.xlu0 %v519, 3
        %v1167 = vpop.permute.xlu0 %1166
        %1168 = vrot.lane.b32.xlu0 %v520, 3
        %v1169 = vpop.permute.xlu0 %1168
        %1170 = vrot.lane.b32.xlu0 %v521, 3
        %v1171 = vpop.permute.xlu0 %1170
        %1172 = vrot.lane.b32.xlu0 %v522, 3
        %v1173 = vpop.permute.xlu0 %1172
        %1174 = vrot.lane.b32.xlu0 %v523, 3
        %v1175 = vpop.permute.xlu0 %1174
        %1176 = vrot.lane.b32.xlu0 %v524, 3
        %v1177 = vpop.permute.xlu0 %1176
        %1178 = vrot.lane.b32.xlu0 %v525, 3
        %v1179 = vpop.permute.xlu0 %1178
        %1180 = vrot.lane.b32.xlu0 %v526, 3
        %v1181 = vpop.permute.xlu0 %1180
        %1182 = vrot.lane.b32.xlu0 %v527, 3
        %v1183 = vpop.permute.xlu0 %1182
        %1184 = vrot.lane.b32.xlu0 %v528, 3
        %v1185 = vpop.permute.xlu0 %1184
        %1186 = vrot.lane.b32.xlu0 %v529, 3
        %v1187 = vpop.permute.xlu0 %1186
        %1188 = vrot.lane.b32.xlu0 %v530, 3
        %v1189 = vpop.permute.xlu0 %1188
        %1190 = vrot.lane.b32.xlu0 %v531, 3
        %v1191 = vpop.permute.xlu0 %1190
        %1192 = vrot.lane.b32.xlu0 %v532, 3
        %v1193 = vpop.permute.xlu0 %1192
        %1194 = vrot.lane.b32.xlu0 %v533, 3
        %v1195 = vpop.permute.xlu0 %1194
        %1196 = vrot.lane.b32.xlu0 %v534, 3
        %v1197 = vpop.permute.xlu0 %1196
        %1198 = vrot.lane.b32.xlu0 %v535, 3
        %v1199 = vpop.permute.xlu0 %1198
        %1200 = vrot.lane.b32.xlu0 %v536, 3
        %v1201 = vpop.permute.xlu0 %1200
        %1202 = vrot.lane.b32.xlu0 %v537, 3
        %v1203 = vpop.permute.xlu0 %1202
        %1204 = vrot.lane.b32.xlu0 %v538, 3
        %v1205 = vpop.permute.xlu0 %1204
        %1206 = vrot.lane.b32.xlu0 %v539, 3
        %v1207 = vpop.permute.xlu0 %1206
        %1208 = vrot.lane.b32.xlu0 %v540, 3
        %v1209 = vpop.permute.xlu0 %1208
        %1210 = vrot.lane.b32.xlu0 %v541, 3
        %v1211 = vpop.permute.xlu0 %1210
        %1212 = vrot.lane.b32.xlu0 %v542, 3
        %v1213 = vpop.permute.xlu0 %1212
        %1214 = vrot.lane.b32.xlu0 %v543, 3
        %v1215 = vpop.permute.xlu0 %1214
        %1216 = vrot.lane.b32.xlu0 %v544, 3
        %v1217 = vpop.permute.xlu0 %1216
        %1218 = vrot.lane.b32.xlu0 %v545, 3
        %v1219 = vpop.permute.xlu0 %1218
        %1220 = vrot.lane.b32.xlu0 %v546, 3
        %v1221 = vpop.permute.xlu0 %1220
        %1222 = vrot.lane.b32.xlu0 %v547, 3
        %v1223 = vpop.permute.xlu0 %1222
        %1224 = vrot.lane.b32.xlu0 %v548, 3
        %v1225 = vpop.permute.xlu0 %1224
        %1226 = vrot.lane.b32.xlu0 %v549, 3
        %v1227 = vpop.permute.xlu0 %1226
        %1228 = vrot.lane.b32.xlu0 %v550, 3
        %v1229 = vpop.permute.xlu0 %1228
        %1230 = vrot.lane.b32.xlu0 %v551, 3
        %v1231 = vpop.permute.xlu0 %1230
        %1232 = vrot.lane.b32.xlu0 %v552, 3
        %v1233 = vpop.permute.xlu0 %1232
        %1234 = vrot.lane.b32.xlu0 %v553, 3
        %v1235 = vpop.permute.xlu0 %1234
        %1236 = vrot.lane.b32.xlu0 %v554, 3
        %v1237 = vpop.permute.xlu0 %1236
        %1238 = vrot.lane.b32.xlu0 %v555, 3
        %v1239 = vpop.permute.xlu0 %1238
        %1240 = vrot.lane.b32.xlu0 %v556, 3
        %v1241 = vpop.permute.xlu0 %1240
        %1242 = vrot.lane.b32.xlu0 %v557, 3
        %v1243 = vpop.permute.xlu0 %1242
        %1244 = vrot.lane.b32.xlu0 %v558, 3
        %v1245 = vpop.permute.xlu0 %1244
        %1246 = vrot.lane.b32.xlu0 %v559, 3
        %v1247 = vpop.permute.xlu0 %1246
        %1248 = vrot.lane.b32.xlu0 %v560, 3
        %v1249 = vpop.permute.xlu0 %1248
        %1250 = vrot.lane.b32.xlu0 %v561, 3
        %v1251 = vpop.permute.xlu0 %1250
        %1252 = vrot.lane.b32.xlu0 %v562, 3
        %v1253 = vpop.permute.xlu0 %1252
        %1254 = vrot.lane.b32.xlu0 %v563, 3
        %v1255 = vpop.permute.xlu0 %1254
        %1256 = vrot.lane.b32.xlu0 %v564, 3
        %v1257 = vpop.permute.xlu0 %1256
        %1258 = vrot.lane.b32.xlu0 %v565, 3
        %v1259 = vpop.permute.xlu0 %1258
        %1260 = vrot.lane.b32.xlu0 %v566, 3
        %v1261 = vpop.permute.xlu0 %1260
        %1262 = vrot.lane.b32.xlu0 %v567, 3
        %v1263 = vpop.permute.xlu0 %1262
        %1264 = vrot.lane.b32.xlu0 %v568, 3
        %v1265 = vpop.permute.xlu0 %1264
        %1266 = vrot.lane.b32.xlu0 %v569, 3
        %v1267 = vpop.permute.xlu0 %1266
        %1268 = vrot.lane.b32.xlu0 %v570, 3
        %v1269 = vpop.permute.xlu0 %1268
        %1270 = vrot.lane.b32.xlu0 %v571, 3
        %v1271 = vpop.permute.xlu0 %1270
        %1272 = vrot.lane.b32.xlu0 %v572, 3
        %v1273 = vpop.permute.xlu0 %1272
        %1274 = vrot.lane.b32.xlu0 %v573, 3
        %v1275 = vpop.permute.xlu0 %1274
        %1276 = vrot.lane.b32.xlu0 %v574, 3
        %v1277 = vpop.permute.xlu0 %1276
        %1278 = vrot.lane.b32.xlu0 %v575, 3
        %v1279 = vpop.permute.xlu0 %1278
        %1280 = vrot.lane.b32.xlu0 %v576, 3
        %v1281 = vpop.permute.xlu0 %1280
        %1282 = vrot.lane.b32.xlu0 %v577, 3
        %v1283 = vpop.permute.xlu0 %1282
        %1284 = vrot.lane.b32.xlu0 %v578, 3
        %v1285 = vpop.permute.xlu0 %1284
        %1286 = vrot.lane.b32.xlu0 %v579, 3
        %v1287 = vpop.permute.xlu0 %1286
        %1288 = vrot.lane.b32.xlu0 %v580, 3
        %v1289 = vpop.permute.xlu0 %1288
        %1290 = vrot.lane.b32.xlu0 %v581, 3
        %v1291 = vpop.permute.xlu0 %1290
        %1292 = vrot.lane.b32.xlu0 %v582, 3
        %v1293 = vpop.permute.xlu0 %1292
        %1294 = vrot.lane.b32.xlu0 %v583, 3
        %v1295 = vpop.permute.xlu0 %1294
        %1296 = vrot.lane.b32.xlu0 %v584, 3
        %v1297 = vpop.permute.xlu0 %1296
        %1298 = vrot.lane.b32.xlu0 %v585, 3
        %v1299 = vpop.permute.xlu0 %1298
        %1300 = vrot.lane.b32.xlu0 %v586, 3
        %v1301 = vpop.permute.xlu0 %1300
        %1302 = vrot.lane.b32.xlu0 %v587, 3
        %v1303 = vpop.permute.xlu0 %1302
        %1304 = vrot.lane.b32.xlu0 %v588, 3
        %v1305 = vpop.permute.xlu0 %1304
        %1306 = vrot.lane.b32.xlu0 %v589, 3
        %v1307 = vpop.permute.xlu0 %1306
        %1308 = vrot.lane.b32.xlu0 %v590, 3
        %v1309 = vpop.permute.xlu0 %1308
        %1310 = vrot.lane.b32.xlu0 %v591, 3
        %v1311 = vpop.permute.xlu0 %1310
        %1312 = vrot.lane.b32.xlu0 %v592, 3
        %v1313 = vpop.permute.xlu0 %1312
        %1314 = vrot.lane.b32.xlu0 %v593, 3
        %v1315 = vpop.permute.xlu0 %1314
        %1316 = vrot.lane.b32.xlu0 %v594, 3
        %v1317 = vpop.permute.xlu0 %1316
        %1318 = vrot.lane.b32.xlu0 %v595, 3
        %v1319 = vpop.permute.xlu0 %1318
        %1320 = vrot.lane.b32.xlu0 %v596, 3
        %v1321 = vpop.permute.xlu0 %1320
        %1322 = vrot.lane.b32.xlu0 %v597, 3
        %v1323 = vpop.permute.xlu0 %1322
        %1324 = vrot.lane.b32.xlu0 %v598, 3
        %v1325 = vpop.permute.xlu0 %1324
        %1326 = vrot.lane.b32.xlu0 %v599, 3
        %v1327 = vpop.permute.xlu0 %1326
        %1328 = vrot.lane.b32.xlu0 %v600, 3
        %v1329 = vpop.permute.xlu0 %1328
        %1330 = vrot.lane.b32.xlu0 %v601, 3
        %v1331 = vpop.permute.xlu0 %1330
        %1332 = vrot.lane.b32.xlu0 %v602, 3
        %v1333 = vpop.permute.xlu0 %1332
        %1334 = vrot.lane.b32.xlu0 %v603, 3
        %v1335 = vpop.permute.xlu0 %1334
        %1336 = vrot.lane.b32.xlu0 %v604, 3
        %v1337 = vpop.permute.xlu0 %1336
        %1338 = vrot.lane.b32.xlu0 %v605, 3
        %v1339 = vpop.permute.xlu0 %1338
        %1340 = vrot.lane.b32.xlu0 %v606, 3
        %v1341 = vpop.permute.xlu0 %1340
        %1342 = vrot.lane.b32.xlu0 %v607, 3
        %v1343 = vpop.permute.xlu0 %1342
        %1344 = vrot.lane.b32.xlu0 %v608, 3
        %v1345 = vpop.permute.xlu0 %1344
        %1346 = vrot.lane.b32.xlu0 %v609, 3
        %v1347 = vpop.permute.xlu0 %1346
        %1348 = vrot.lane.b32.xlu0 %v610, 3
        %v1349 = vpop.permute.xlu0 %1348
        %1350 = vrot.lane.b32.xlu0 %v611, 3
        %v1351 = vpop.permute.xlu0 %1350
        %1352 = vrot.lane.b32.xlu0 %v612, 3
        %v1353 = vpop.permute.xlu0 %1352
        %1354 = vrot.lane.b32.xlu0 %v613, 3
        %v1355 = vpop.permute.xlu0 %1354
        %1356 = vrot.lane.b32.xlu0 %v614, 3
        %v1357 = vpop.permute.xlu0 %1356
        %1358 = vrot.lane.b32.xlu0 %v615, 3
        %v1359 = vpop.permute.xlu0 %1358
        %1360 = vrot.lane.b32.xlu0 %v616, 3
        %v1361 = vpop.permute.xlu0 %1360
        %1362 = vrot.lane.b32.xlu0 %v617, 3
        %v1363 = vpop.permute.xlu0 %1362
        %1364 = vrot.lane.b32.xlu0 %v618, 3
        %v1365 = vpop.permute.xlu0 %1364
        %1366 = vrot.lane.b32.xlu0 %v619, 3
        %v1367 = vpop.permute.xlu0 %1366
        %1368 = vrot.lane.b32.xlu0 %v620, 3
        %v1369 = vpop.permute.xlu0 %1368
        %1370 = vrot.lane.b32.xlu0 %v621, 3
        %v1371 = vpop.permute.xlu0 %1370
        %1372 = vrot.lane.b32.xlu0 %v622, 3
        %v1373 = vpop.permute.xlu0 %1372
        %1374 = vrot.lane.b32.xlu0 %v623, 3
        %v1375 = vpop.permute.xlu0 %1374
        %1376 = vrot.lane.b32.xlu0 %v624, 3
        %v1377 = vpop.permute.xlu0 %1376
        %1378 = vrot.lane.b32.xlu0 %v625, 3
        %v1379 = vpop.permute.xlu0 %1378
        %1380 = vrot.lane.b32.xlu0 %v626, 3
        %v1381 = vpop.permute.xlu0 %1380
        %1382 = vrot.lane.b32.xlu0 %v627, 3
        %v1383 = vpop.permute.xlu0 %1382
        %1384 = vrot.lane.b32.xlu0 %v628, 3
        %v1385 = vpop.permute.xlu0 %1384
        %1386 = vrot.lane.b32.xlu0 %v629, 3
        %v1387 = vpop.permute.xlu0 %1386
        %1388 = vrot.lane.b32.xlu0 %v630, 3
        %v1389 = vpop.permute.xlu0 %1388
        %1390 = vrot.lane.b32.xlu0 %v631, 3
        %v1391 = vpop.permute.xlu0 %1390
        %1392 = vrot.lane.b32.xlu0 %v632, 3
        %v1393 = vpop.permute.xlu0 %1392
        %1394 = vrot.lane.b32.xlu0 %v633, 3
        %v1395 = vpop.permute.xlu0 %1394
        %1396 = vrot.lane.b32.xlu0 %v634, 3
        %v1397 = vpop.permute.xlu0 %1396
        %1398 = vrot.lane.b32.xlu0 %v635, 3
        %v1399 = vpop.permute.xlu0 %1398
        %1400 = vrot.lane.b32.xlu0 %v636, 3
        %v1401 = vpop.permute.xlu0 %1400
        %1402 = vrot.lane.b32.xlu0 %v637, 3
        %v1403 = vpop.permute.xlu0 %1402
        %1404 = vrot.lane.b32.xlu0 %v638, 3
        %v1405 = vpop.permute.xlu0 %1404
        %1406 = vrot.lane.b32.xlu0 %v639, 3
        %v1407 = vpop.permute.xlu0 %1406
        %1664 = vrot.lane.b32.xlu0 %v640, 6
        %v1665 = vpop.permute.xlu0 %1664
        %1666 = vrot.lane.b32.xlu0 %v641, 6
        %v1667 = vpop.permute.xlu0 %1666
        %1668 = vrot.lane.b32.xlu0 %v642, 6
        %v1669 = vpop.permute.xlu0 %1668
        %1670 = vrot.lane.b32.xlu0 %v643, 6
        %v1671 = vpop.permute.xlu0 %1670
        %1672 = vrot.lane.b32.xlu0 %v644, 6
        %v1673 = vpop.permute.xlu0 %1672
        %1674 = vrot.lane.b32.xlu0 %v645, 6
        %v1675 = vpop.permute.xlu0 %1674
        %1676 = vrot.lane.b32.xlu0 %v646, 6
        %v1677 = vpop.permute.xlu0 %1676
        %1678 = vrot.lane.b32.xlu0 %v647, 6
        %v1679 = vpop.permute.xlu0 %1678
        %1680 = vrot.lane.b32.xlu0 %v648, 6
        %v1681 = vpop.permute.xlu0 %1680
        %1682 = vrot.lane.b32.xlu0 %v649, 6
        %v1683 = vpop.permute.xlu0 %1682
        %1684 = vrot.lane.b32.xlu0 %v650, 6
        %v1685 = vpop.permute.xlu0 %1684
        %1686 = vrot.lane.b32.xlu0 %v651, 6
        %v1687 = vpop.permute.xlu0 %1686
        %1688 = vrot.lane.b32.xlu0 %v652, 6
        %v1689 = vpop.permute.xlu0 %1688
        %1690 = vrot.lane.b32.xlu0 %v653, 6
        %v1691 = vpop.permute.xlu0 %1690
        %1692 = vrot.lane.b32.xlu0 %v654, 6
        %v1693 = vpop.permute.xlu0 %1692
        %1694 = vrot.lane.b32.xlu0 %v655, 6
        %v1695 = vpop.permute.xlu0 %1694
        %1696 = vrot.lane.b32.xlu0 %v656, 6
        %v1697 = vpop.permute.xlu0 %1696
        %1698 = vrot.lane.b32.xlu0 %v657, 6
        %v1699 = vpop.permute.xlu0 %1698
        %1700 = vrot.lane.b32.xlu0 %v658, 6
        %v1701 = vpop.permute.xlu0 %1700
        %1702 = vrot.lane.b32.xlu0 %v659, 6
        %v1703 = vpop.permute.xlu0 %1702
        %1704 = vrot.lane.b32.xlu0 %v660, 6
        %v1705 = vpop.permute.xlu0 %1704
        %1706 = vrot.lane.b32.xlu0 %v661, 6
        %v1707 = vpop.permute.xlu0 %1706
        %1708 = vrot.lane.b32.xlu0 %v662, 6
        %v1709 = vpop.permute.xlu0 %1708
        %1710 = vrot.lane.b32.xlu0 %v663, 6
        %v1711 = vpop.permute.xlu0 %1710
        %1712 = vrot.lane.b32.xlu0 %v664, 6
        %v1713 = vpop.permute.xlu0 %1712
        %1714 = vrot.lane.b32.xlu0 %v665, 6
        %v1715 = vpop.permute.xlu0 %1714
        %1716 = vrot.lane.b32.xlu0 %v666, 6
        %v1717 = vpop.permute.xlu0 %1716
        %1718 = vrot.lane.b32.xlu0 %v667, 6
        %v1719 = vpop.permute.xlu0 %1718
        %1720 = vrot.lane.b32.xlu0 %v668, 6
        %v1721 = vpop.permute.xlu0 %1720
        %1722 = vrot.lane.b32.xlu0 %v669, 6
        %v1723 = vpop.permute.xlu0 %1722
        %1724 = vrot.lane.b32.xlu0 %v670, 6
        %v1725 = vpop.permute.xlu0 %1724
        %1726 = vrot.lane.b32.xlu0 %v671, 6
        %v1727 = vpop.permute.xlu0 %1726
        %1728 = vrot.lane.b32.xlu0 %v672, 6
        %v1729 = vpop.permute.xlu0 %1728
        %1730 = vrot.lane.b32.xlu0 %v673, 6
        %v1731 = vpop.permute.xlu0 %1730
        %1732 = vrot.lane.b32.xlu0 %v674, 6
        %v1733 = vpop.permute.xlu0 %1732
        %1734 = vrot.lane.b32.xlu0 %v675, 6
        %v1735 = vpop.permute.xlu0 %1734
        %1736 = vrot.lane.b32.xlu0 %v676, 6
        %v1737 = vpop.permute.xlu0 %1736
        %1738 = vrot.lane.b32.xlu0 %v677, 6
        %v1739 = vpop.permute.xlu0 %1738
        %1740 = vrot.lane.b32.xlu0 %v678, 6
        %v1741 = vpop.permute.xlu0 %1740
        %1742 = vrot.lane.b32.xlu0 %v679, 6
        %v1743 = vpop.permute.xlu0 %1742
        %1744 = vrot.lane.b32.xlu0 %v680, 6
        %v1745 = vpop.permute.xlu0 %1744
        %1746 = vrot.lane.b32.xlu0 %v681, 6
        %v1747 = vpop.permute.xlu0 %1746
        %1748 = vrot.lane.b32.xlu0 %v682, 6
        %v1749 = vpop.permute.xlu0 %1748
        %1750 = vrot.lane.b32.xlu0 %v683, 6
        %v1751 = vpop.permute.xlu0 %1750
        %1752 = vrot.lane.b32.xlu0 %v684, 6
        %v1753 = vpop.permute.xlu0 %1752
        %1754 = vrot.lane.b32.xlu0 %v685, 6
        %v1755 = vpop.permute.xlu0 %1754
        %1756 = vrot.lane.b32.xlu0 %v686, 6
        %v1757 = vpop.permute.xlu0 %1756
        %1758 = vrot.lane.b32.xlu0 %v687, 6
        %v1759 = vpop.permute.xlu0 %1758
        %1760 = vrot.lane.b32.xlu0 %v688, 6
        %v1761 = vpop.permute.xlu0 %1760
        %1762 = vrot.lane.b32.xlu0 %v689, 6
        %v1763 = vpop.permute.xlu0 %1762
        %1764 = vrot.lane.b32.xlu0 %v690, 6
        %v1765 = vpop.permute.xlu0 %1764
        %1766 = vrot.lane.b32.xlu0 %v691, 6
        %v1767 = vpop.permute.xlu0 %1766
        %1768 = vrot.lane.b32.xlu0 %v692, 6
        %v1769 = vpop.permute.xlu0 %1768
        %1770 = vrot.lane.b32.xlu0 %v693, 6
        %v1771 = vpop.permute.xlu0 %1770
        %1772 = vrot.lane.b32.xlu0 %v694, 6
        %v1773 = vpop.permute.xlu0 %1772
        %1774 = vrot.lane.b32.xlu0 %v695, 6
        %v1775 = vpop.permute.xlu0 %1774
        %1776 = vrot.lane.b32.xlu0 %v696, 6
        %v1777 = vpop.permute.xlu0 %1776
        %1778 = vrot.lane.b32.xlu0 %v697, 6
        %v1779 = vpop.permute.xlu0 %1778
        %1780 = vrot.lane.b32.xlu0 %v698, 6
        %v1781 = vpop.permute.xlu0 %1780
        %1782 = vrot.lane.b32.xlu0 %v699, 6
        %v1783 = vpop.permute.xlu0 %1782
        %1784 = vrot.lane.b32.xlu0 %v700, 6
        %v1785 = vpop.permute.xlu0 %1784
        %1786 = vrot.lane.b32.xlu0 %v701, 6
        %v1787 = vpop.permute.xlu0 %1786
        %1788 = vrot.lane.b32.xlu0 %v702, 6
        %v1789 = vpop.permute.xlu0 %1788
        %1790 = vrot.lane.b32.xlu0 %v703, 6
        %v1791 = vpop.permute.xlu0 %1790
        %1792 = vrot.lane.b32.xlu0 %v704, 6
        %v1793 = vpop.permute.xlu0 %1792
        %1794 = vrot.lane.b32.xlu0 %v705, 6
        %v1795 = vpop.permute.xlu0 %1794
        %1796 = vrot.lane.b32.xlu0 %v706, 6
        %v1797 = vpop.permute.xlu0 %1796
        %1798 = vrot.lane.b32.xlu0 %v707, 6
        %v1799 = vpop.permute.xlu0 %1798
        %1800 = vrot.lane.b32.xlu0 %v708, 6
        %v1801 = vpop.permute.xlu0 %1800
        %1802 = vrot.lane.b32.xlu0 %v709, 6
        %v1803 = vpop.permute.xlu0 %1802
        %1804 = vrot.lane.b32.xlu0 %v710, 6
        %v1805 = vpop.permute.xlu0 %1804
        %1806 = vrot.lane.b32.xlu0 %v711, 6
        %v1807 = vpop.permute.xlu0 %1806
        %1808 = vrot.lane.b32.xlu0 %v712, 6
        %v1809 = vpop.permute.xlu0 %1808
        %1810 = vrot.lane.b32.xlu0 %v713, 6
        %v1811 = vpop.permute.xlu0 %1810
        %1812 = vrot.lane.b32.xlu0 %v714, 6
        %v1813 = vpop.permute.xlu0 %1812
        %1814 = vrot.lane.b32.xlu0 %v715, 6
        %v1815 = vpop.permute.xlu0 %1814
        %1816 = vrot.lane.b32.xlu0 %v716, 6
        %v1817 = vpop.permute.xlu0 %1816
        %1818 = vrot.lane.b32.xlu0 %v717, 6
        %v1819 = vpop.permute.xlu0 %1818
        %1820 = vrot.lane.b32.xlu0 %v718, 6
        %v1821 = vpop.permute.xlu0 %1820
        %1822 = vrot.lane.b32.xlu0 %v719, 6
        %v1823 = vpop.permute.xlu0 %1822
        %1824 = vrot.lane.b32.xlu0 %v720, 6
        %v1825 = vpop.permute.xlu0 %1824
        %1826 = vrot.lane.b32.xlu0 %v721, 6
        %v1827 = vpop.permute.xlu0 %1826
        %1828 = vrot.lane.b32.xlu0 %v722, 6
        %v1829 = vpop.permute.xlu0 %1828
        %1830 = vrot.lane.b32.xlu0 %v723, 6
        %v1831 = vpop.permute.xlu0 %1830
        %1832 = vrot.lane.b32.xlu0 %v724, 6
        %v1833 = vpop.permute.xlu0 %1832
        %1834 = vrot.lane.b32.xlu0 %v725, 6
        %v1835 = vpop.permute.xlu0 %1834
        %1836 = vrot.lane.b32.xlu0 %v726, 6
        %v1837 = vpop.permute.xlu0 %1836
        %1838 = vrot.lane.b32.xlu0 %v727, 6
        %v1839 = vpop.permute.xlu0 %1838
        %1840 = vrot.lane.b32.xlu0 %v728, 6
        %v1841 = vpop.permute.xlu0 %1840
        %1842 = vrot.lane.b32.xlu0 %v729, 6
        %v1843 = vpop.permute.xlu0 %1842
        %1844 = vrot.lane.b32.xlu0 %v730, 6
        %v1845 = vpop.permute.xlu0 %1844
        %1846 = vrot.lane.b32.xlu0 %v731, 6
        %v1847 = vpop.permute.xlu0 %1846
        %1848 = vrot.lane.b32.xlu0 %v732, 6
        %v1849 = vpop.permute.xlu0 %1848
        %1850 = vrot.lane.b32.xlu0 %v733, 6
        %v1851 = vpop.permute.xlu0 %1850
        %1852 = vrot.lane.b32.xlu0 %v734, 6
        %v1853 = vpop.permute.xlu0 %1852
        %1854 = vrot.lane.b32.xlu0 %v735, 6
        %v1855 = vpop.permute.xlu0 %1854
        %1856 = vrot.lane.b32.xlu0 %v736, 6
        %v1857 = vpop.permute.xlu0 %1856
        %1858 = vrot.lane.b32.xlu0 %v737, 6
        %v1859 = vpop.permute.xlu0 %1858
        %1860 = vrot.lane.b32.xlu0 %v738, 6
        %v1861 = vpop.permute.xlu0 %1860
        %1862 = vrot.lane.b32.xlu0 %v739, 6
        %v1863 = vpop.permute.xlu0 %1862
        %1864 = vrot.lane.b32.xlu0 %v740, 6
        %v1865 = vpop.permute.xlu0 %1864
        %1866 = vrot.lane.b32.xlu0 %v741, 6
        %v1867 = vpop.permute.xlu0 %1866
        %1868 = vrot.lane.b32.xlu0 %v742, 6
        %v1869 = vpop.permute.xlu0 %1868
        %1870 = vrot.lane.b32.xlu0 %v743, 6
        %v1871 = vpop.permute.xlu0 %1870
        %1872 = vrot.lane.b32.xlu0 %v744, 6
        %v1873 = vpop.permute.xlu0 %1872
        %1874 = vrot.lane.b32.xlu0 %v745, 6
        %v1875 = vpop.permute.xlu0 %1874
        %1876 = vrot.lane.b32.xlu0 %v746, 6
        %v1877 = vpop.permute.xlu0 %1876
        %1878 = vrot.lane.b32.xlu0 %v747, 6
        %v1879 = vpop.permute.xlu0 %1878
        %1880 = vrot.lane.b32.xlu0 %v748, 6
        %v1881 = vpop.permute.xlu0 %1880
        %1882 = vrot.lane.b32.xlu0 %v749, 6
        %v1883 = vpop.permute.xlu0 %1882
        %1884 = vrot.lane.b32.xlu0 %v750, 6
        %v1885 = vpop.permute.xlu0 %1884
        %1886 = vrot.lane.b32.xlu0 %v751, 6
        %v1887 = vpop.permute.xlu0 %1886
        %1888 = vrot.lane.b32.xlu0 %v752, 6
        %v1889 = vpop.permute.xlu0 %1888
        %1890 = vrot.lane.b32.xlu0 %v753, 6
        %v1891 = vpop.permute.xlu0 %1890
        %1892 = vrot.lane.b32.xlu0 %v754, 6
        %v1893 = vpop.permute.xlu0 %1892
        %1894 = vrot.lane.b32.xlu0 %v755, 6
        %v1895 = vpop.permute.xlu0 %1894
        %1896 = vrot.lane.b32.xlu0 %v756, 6
        %v1897 = vpop.permute.xlu0 %1896
        %1898 = vrot.lane.b32.xlu0 %v757, 6
        %v1899 = vpop.permute.xlu0 %1898
        %1900 = vrot.lane.b32.xlu0 %v758, 6
        %v1901 = vpop.permute.xlu0 %1900
        %1902 = vrot.lane.b32.xlu0 %v759, 6
        %v1903 = vpop.permute.xlu0 %1902
        %1904 = vrot.lane.b32.xlu0 %v760, 6
        %v1905 = vpop.permute.xlu0 %1904
        %1906 = vrot.lane.b32.xlu0 %v761, 6
        %v1907 = vpop.permute.xlu0 %1906
        %1908 = vrot.lane.b32.xlu0 %v762, 6
        %v1909 = vpop.permute.xlu0 %1908
        %1910 = vrot.lane.b32.xlu0 %v763, 6
        %v1911 = vpop.permute.xlu0 %1910
        %1912 = vrot.lane.b32.xlu0 %v764, 6
        %v1913 = vpop.permute.xlu0 %1912
        %1914 = vrot.lane.b32.xlu0 %v765, 6
        %v1915 = vpop.permute.xlu0 %1914
        %1916 = vrot.lane.b32.xlu0 %v766, 6
        %v1917 = vpop.permute.xlu0 %1916
        %1918 = vrot.lane.b32.xlu0 %v767, 6
        %v1919 = vpop.permute.xlu0 %1918
        %2176 = vrot.lane.b32.xlu0 %v768, 9
        %v2177 = vpop.permute.xlu0 %2176
        %2178 = vrot.lane.b32.xlu0 %v769, 9
        %v2179 = vpop.permute.xlu0 %2178
        %2180 = vrot.lane.b32.xlu0 %v770, 9
        %v2181 = vpop.permute.xlu0 %2180
        %2182 = vrot.lane.b32.xlu0 %v771, 9
        %v2183 = vpop.permute.xlu0 %2182
        %2184 = vrot.lane.b32.xlu0 %v772, 9
        %v2185 = vpop.permute.xlu0 %2184
        %2186 = vrot.lane.b32.xlu0 %v773, 9
        %v2187 = vpop.permute.xlu0 %2186
        %2188 = vrot.lane.b32.xlu0 %v774, 9
        %v2189 = vpop.permute.xlu0 %2188
        %2190 = vrot.lane.b32.xlu0 %v775, 9
        %v2191 = vpop.permute.xlu0 %2190
        %2192 = vrot.lane.b32.xlu0 %v776, 9
        %v2193 = vpop.permute.xlu0 %2192
        %2194 = vrot.lane.b32.xlu0 %v777, 9
        %v2195 = vpop.permute.xlu0 %2194
        %2196 = vrot.lane.b32.xlu0 %v778, 9
        %v2197 = vpop.permute.xlu0 %2196
        %2198 = vrot.lane.b32.xlu0 %v779, 9
        %v2199 = vpop.permute.xlu0 %2198
        %2200 = vrot.lane.b32.xlu0 %v780, 9
        %v2201 = vpop.permute.xlu0 %2200
        %2202 = vrot.lane.b32.xlu0 %v781, 9
        %v2203 = vpop.permute.xlu0 %2202
        %2204 = vrot.lane.b32.xlu0 %v782, 9
        %v2205 = vpop.permute.xlu0 %2204
        %2206 = vrot.lane.b32.xlu0 %v783, 9
        %v2207 = vpop.permute.xlu0 %2206
        %2208 = vrot.lane.b32.xlu0 %v784, 9
        %v2209 = vpop.permute.xlu0 %2208
        %2210 = vrot.lane.b32.xlu0 %v785, 9
        %v2211 = vpop.permute.xlu0 %2210
        %2212 = vrot.lane.b32.xlu0 %v786, 9
        %v2213 = vpop.permute.xlu0 %2212
        %2214 = vrot.lane.b32.xlu0 %v787, 9
        %v2215 = vpop.permute.xlu0 %2214
        %2216 = vrot.lane.b32.xlu0 %v788, 9
        %v2217 = vpop.permute.xlu0 %2216
        %2218 = vrot.lane.b32.xlu0 %v789, 9
        %v2219 = vpop.permute.xlu0 %2218
        %2220 = vrot.lane.b32.xlu0 %v790, 9
        %v2221 = vpop.permute.xlu0 %2220
        %2222 = vrot.lane.b32.xlu0 %v791, 9
        %v2223 = vpop.permute.xlu0 %2222
        %2224 = vrot.lane.b32.xlu0 %v792, 9
        %v2225 = vpop.permute.xlu0 %2224
        %2226 = vrot.lane.b32.xlu0 %v793, 9
        %v2227 = vpop.permute.xlu0 %2226
        %2228 = vrot.lane.b32.xlu0 %v794, 9
        %v2229 = vpop.permute.xlu0 %2228
        %2230 = vrot.lane.b32.xlu0 %v795, 9
        %v2231 = vpop.permute.xlu0 %2230
        %2232 = vrot.lane.b32.xlu0 %v796, 9
        %v2233 = vpop.permute.xlu0 %2232
        %2234 = vrot.lane.b32.xlu0 %v797, 9
        %v2235 = vpop.permute.xlu0 %2234
        %2236 = vrot.lane.b32.xlu0 %v798, 9
        %v2237 = vpop.permute.xlu0 %2236
        %2238 = vrot.lane.b32.xlu0 %v799, 9
        %v2239 = vpop.permute.xlu0 %2238
        %2240 = vrot.lane.b32.xlu0 %v800, 9
        %v2241 = vpop.permute.xlu0 %2240
        %2242 = vrot.lane.b32.xlu0 %v801, 9
        %v2243 = vpop.permute.xlu0 %2242
        %2244 = vrot.lane.b32.xlu0 %v802, 9
        %v2245 = vpop.permute.xlu0 %2244
        %2246 = vrot.lane.b32.xlu0 %v803, 9
        %v2247 = vpop.permute.xlu0 %2246
        %2248 = vrot.lane.b32.xlu0 %v804, 9
        %v2249 = vpop.permute.xlu0 %2248
        %2250 = vrot.lane.b32.xlu0 %v805, 9
        %v2251 = vpop.permute.xlu0 %2250
        %2252 = vrot.lane.b32.xlu0 %v806, 9
        %v2253 = vpop.permute.xlu0 %2252
        %2254 = vrot.lane.b32.xlu0 %v807, 9
        %v2255 = vpop.permute.xlu0 %2254
        %2256 = vrot.lane.b32.xlu0 %v808, 9
        %v2257 = vpop.permute.xlu0 %2256
        %2258 = vrot.lane.b32.xlu0 %v809, 9
        %v2259 = vpop.permute.xlu0 %2258
        %2260 = vrot.lane.b32.xlu0 %v810, 9
        %v2261 = vpop.permute.xlu0 %2260
        %2262 = vrot.lane.b32.xlu0 %v811, 9
        %v2263 = vpop.permute.xlu0 %2262
        %2264 = vrot.lane.b32.xlu0 %v812, 9
        %v2265 = vpop.permute.xlu0 %2264
        %2266 = vrot.lane.b32.xlu0 %v813, 9
        %v2267 = vpop.permute.xlu0 %2266
        %2268 = vrot.lane.b32.xlu0 %v814, 9
        %v2269 = vpop.permute.xlu0 %2268
        %2270 = vrot.lane.b32.xlu0 %v815, 9
        %v2271 = vpop.permute.xlu0 %2270
        %2272 = vrot.lane.b32.xlu0 %v816, 9
        %v2273 = vpop.permute.xlu0 %2272
        %2274 = vrot.lane.b32.xlu0 %v817, 9
        %v2275 = vpop.permute.xlu0 %2274
        %2276 = vrot.lane.b32.xlu0 %v818, 9
        %v2277 = vpop.permute.xlu0 %2276
        %2278 = vrot.lane.b32.xlu0 %v819, 9
        %v2279 = vpop.permute.xlu0 %2278
        %2280 = vrot.lane.b32.xlu0 %v820, 9
        %v2281 = vpop.permute.xlu0 %2280
        %2282 = vrot.lane.b32.xlu0 %v821, 9
        %v2283 = vpop.permute.xlu0 %2282
        %2284 = vrot.lane.b32.xlu0 %v822, 9
        %v2285 = vpop.permute.xlu0 %2284
        %2286 = vrot.lane.b32.xlu0 %v823, 9
        %v2287 = vpop.permute.xlu0 %2286
        %2288 = vrot.lane.b32.xlu0 %v824, 9
        %v2289 = vpop.permute.xlu0 %2288
        %2290 = vrot.lane.b32.xlu0 %v825, 9
        %v2291 = vpop.permute.xlu0 %2290
        %2292 = vrot.lane.b32.xlu0 %v826, 9
        %v2293 = vpop.permute.xlu0 %2292
        %2294 = vrot.lane.b32.xlu0 %v827, 9
        %v2295 = vpop.permute.xlu0 %2294
        %2296 = vrot.lane.b32.xlu0 %v828, 9
        %v2297 = vpop.permute.xlu0 %2296
        %2298 = vrot.lane.b32.xlu0 %v829, 9
        %v2299 = vpop.permute.xlu0 %2298
        %2300 = vrot.lane.b32.xlu0 %v830, 9
        %v2301 = vpop.permute.xlu0 %2300
        %2302 = vrot.lane.b32.xlu0 %v831, 9
        %v2303 = vpop.permute.xlu0 %2302
        %2304 = vrot.lane.b32.xlu0 %v832, 9
        %v2305 = vpop.permute.xlu0 %2304
        %2306 = vrot.lane.b32.xlu0 %v833, 9
        %v2307 = vpop.permute.xlu0 %2306
        %2308 = vrot.lane.b32.xlu0 %v834, 9
        %v2309 = vpop.permute.xlu0 %2308
        %2310 = vrot.lane.b32.xlu0 %v835, 9
        %v2311 = vpop.permute.xlu0 %2310
        %2312 = vrot.lane.b32.xlu0 %v836, 9
        %v2313 = vpop.permute.xlu0 %2312
        %2314 = vrot.lane.b32.xlu0 %v837, 9
        %v2315 = vpop.permute.xlu0 %2314
        %2316 = vrot.lane.b32.xlu0 %v838, 9
        %v2317 = vpop.permute.xlu0 %2316
        %2318 = vrot.lane.b32.xlu0 %v839, 9
        %v2319 = vpop.permute.xlu0 %2318
        %2320 = vrot.lane.b32.xlu0 %v840, 9
        %v2321 = vpop.permute.xlu0 %2320
        %2322 = vrot.lane.b32.xlu0 %v841, 9
        %v2323 = vpop.permute.xlu0 %2322
        %2324 = vrot.lane.b32.xlu0 %v842, 9
        %v2325 = vpop.permute.xlu0 %2324
        %2326 = vrot.lane.b32.xlu0 %v843, 9
        %v2327 = vpop.permute.xlu0 %2326
        %2328 = vrot.lane.b32.xlu0 %v844, 9
        %v2329 = vpop.permute.xlu0 %2328
        %2330 = vrot.lane.b32.xlu0 %v845, 9
        %v2331 = vpop.permute.xlu0 %2330
        %2332 = vrot.lane.b32.xlu0 %v846, 9
        %v2333 = vpop.permute.xlu0 %2332
        %2334 = vrot.lane.b32.xlu0 %v847, 9
        %v2335 = vpop.permute.xlu0 %2334
        %2336 = vrot.lane.b32.xlu0 %v848, 9
        %v2337 = vpop.permute.xlu0 %2336
        %2338 = vrot.lane.b32.xlu0 %v849, 9
        %v2339 = vpop.permute.xlu0 %2338
        %2340 = vrot.lane.b32.xlu0 %v850, 9
        %v2341 = vpop.permute.xlu0 %2340
        %2342 = vrot.lane.b32.xlu0 %v851, 9
        %v2343 = vpop.permute.xlu0 %2342
        %2344 = vrot.lane.b32.xlu0 %v852, 9
        %v2345 = vpop.permute.xlu0 %2344
        %2346 = vrot.lane.b32.xlu0 %v853, 9
        %v2347 = vpop.permute.xlu0 %2346
        %2348 = vrot.lane.b32.xlu0 %v854, 9
        %v2349 = vpop.permute.xlu0 %2348
        %2350 = vrot.lane.b32.xlu0 %v855, 9
        %v2351 = vpop.permute.xlu0 %2350
        %2352 = vrot.lane.b32.xlu0 %v856, 9
        %v2353 = vpop.permute.xlu0 %2352
        %2354 = vrot.lane.b32.xlu0 %v857, 9
        %v2355 = vpop.permute.xlu0 %2354
        %2356 = vrot.lane.b32.xlu0 %v858, 9
        %v2357 = vpop.permute.xlu0 %2356
        %2358 = vrot.lane.b32.xlu0 %v859, 9
        %v2359 = vpop.permute.xlu0 %2358
        %2360 = vrot.lane.b32.xlu0 %v860, 9
        %v2361 = vpop.permute.xlu0 %2360
        %2362 = vrot.lane.b32.xlu0 %v861, 9
        %v2363 = vpop.permute.xlu0 %2362
        %2364 = vrot.lane.b32.xlu0 %v862, 9
        %v2365 = vpop.permute.xlu0 %2364
        %2366 = vrot.lane.b32.xlu0 %v863, 9
        %v2367 = vpop.permute.xlu0 %2366
        %2368 = vrot.lane.b32.xlu0 %v864, 9
        %v2369 = vpop.permute.xlu0 %2368
        %2370 = vrot.lane.b32.xlu0 %v865, 9
        %v2371 = vpop.permute.xlu0 %2370
        %2372 = vrot.lane.b32.xlu0 %v866, 9
        %v2373 = vpop.permute.xlu0 %2372
        %2374 = vrot.lane.b32.xlu0 %v867, 9
        %v2375 = vpop.permute.xlu0 %2374
        %2376 = vrot.lane.b32.xlu0 %v868, 9
        %v2377 = vpop.permute.xlu0 %2376
        %2378 = vrot.lane.b32.xlu0 %v869, 9
        %v2379 = vpop.permute.xlu0 %2378
        %2380 = vrot.lane.b32.xlu0 %v870, 9
        %v2381 = vpop.permute.xlu0 %2380
        %2382 = vrot.lane.b32.xlu0 %v871, 9
        %v2383 = vpop.permute.xlu0 %2382
        %2384 = vrot.lane.b32.xlu0 %v872, 9
        %v2385 = vpop.permute.xlu0 %2384
        %2386 = vrot.lane.b32.xlu0 %v873, 9
        %v2387 = vpop.permute.xlu0 %2386
        %2388 = vrot.lane.b32.xlu0 %v874, 9
        %v2389 = vpop.permute.xlu0 %2388
        %2390 = vrot.lane.b32.xlu0 %v875, 9
        %v2391 = vpop.permute.xlu0 %2390
        %2392 = vrot.lane.b32.xlu0 %v876, 9
        %v2393 = vpop.permute.xlu0 %2392
        %2394 = vrot.lane.b32.xlu0 %v877, 9
        %v2395 = vpop.permute.xlu0 %2394
        %2396 = vrot.lane.b32.xlu0 %v878, 9
        %v2397 = vpop.permute.xlu0 %2396
        %2398 = vrot.lane.b32.xlu0 %v879, 9
        %v2399 = vpop.permute.xlu0 %2398
        %2400 = vrot.lane.b32.xlu0 %v880, 9
        %v2401 = vpop.permute.xlu0 %2400
        %2402 = vrot.lane.b32.xlu0 %v881, 9
        %v2403 = vpop.permute.xlu0 %2402
        %2404 = vrot.lane.b32.xlu0 %v882, 9
        %v2405 = vpop.permute.xlu0 %2404
        %2406 = vrot.lane.b32.xlu0 %v883, 9
        %v2407 = vpop.permute.xlu0 %2406
        %2408 = vrot.lane.b32.xlu0 %v884, 9
        %v2409 = vpop.permute.xlu0 %2408
        %2410 = vrot.lane.b32.xlu0 %v885, 9
        %v2411 = vpop.permute.xlu0 %2410
        %2412 = vrot.lane.b32.xlu0 %v886, 9
        %v2413 = vpop.permute.xlu0 %2412
        %2414 = vrot.lane.b32.xlu0 %v887, 9
        %v2415 = vpop.permute.xlu0 %2414
        %2416 = vrot.lane.b32.xlu0 %v888, 9
        %v2417 = vpop.permute.xlu0 %2416
        %2418 = vrot.lane.b32.xlu0 %v889, 9
        %v2419 = vpop.permute.xlu0 %2418
        %2420 = vrot.lane.b32.xlu0 %v890, 9
        %v2421 = vpop.permute.xlu0 %2420
        %2422 = vrot.lane.b32.xlu0 %v891, 9
        %v2423 = vpop.permute.xlu0 %2422
        %2424 = vrot.lane.b32.xlu0 %v892, 9
        %v2425 = vpop.permute.xlu0 %2424
        %2426 = vrot.lane.b32.xlu0 %v893, 9
        %v2427 = vpop.permute.xlu0 %2426
        %2428 = vrot.lane.b32.xlu0 %v894, 9
        %v2429 = vpop.permute.xlu0 %2428
        %2430 = vrot.lane.b32.xlu0 %v895, 9
        %v2431 = vpop.permute.xlu0 %2430
        %2688 = vrot.lane.b32.xlu0 %v896, 12
        %v2689 = vpop.permute.xlu0 %2688
        %2690 = vrot.lane.b32.xlu0 %v897, 12
        %v2691 = vpop.permute.xlu0 %2690
        %2692 = vrot.lane.b32.xlu0 %v898, 12
        %v2693 = vpop.permute.xlu0 %2692
        %2694 = vrot.lane.b32.xlu0 %v899, 12
        %v2695 = vpop.permute.xlu0 %2694
        %2696 = vrot.lane.b32.xlu0 %v900, 12
        %v2697 = vpop.permute.xlu0 %2696
        %2698 = vrot.lane.b32.xlu0 %v901, 12
        %v2699 = vpop.permute.xlu0 %2698
        %2700 = vrot.lane.b32.xlu0 %v902, 12
        %v2701 = vpop.permute.xlu0 %2700
        %2702 = vrot.lane.b32.xlu0 %v903, 12
        %v2703 = vpop.permute.xlu0 %2702
        %2704 = vrot.lane.b32.xlu0 %v904, 12
        %v2705 = vpop.permute.xlu0 %2704
        %2706 = vrot.lane.b32.xlu0 %v905, 12
        %v2707 = vpop.permute.xlu0 %2706
        %2708 = vrot.lane.b32.xlu0 %v906, 12
        %v2709 = vpop.permute.xlu0 %2708
        %2710 = vrot.lane.b32.xlu0 %v907, 12
        %v2711 = vpop.permute.xlu0 %2710
        %2712 = vrot.lane.b32.xlu0 %v908, 12
        %v2713 = vpop.permute.xlu0 %2712
        %2714 = vrot.lane.b32.xlu0 %v909, 12
        %v2715 = vpop.permute.xlu0 %2714
        %2716 = vrot.lane.b32.xlu0 %v910, 12
        %v2717 = vpop.permute.xlu0 %2716
        %2718 = vrot.lane.b32.xlu0 %v911, 12
        %v2719 = vpop.permute.xlu0 %2718
        %2720 = vrot.lane.b32.xlu0 %v912, 12
        %v2721 = vpop.permute.xlu0 %2720
        %2722 = vrot.lane.b32.xlu0 %v913, 12
        %v2723 = vpop.permute.xlu0 %2722
        %2724 = vrot.lane.b32.xlu0 %v914, 12
        %v2725 = vpop.permute.xlu0 %2724
        %2726 = vrot.lane.b32.xlu0 %v915, 12
        %v2727 = vpop.permute.xlu0 %2726
        %2728 = vrot.lane.b32.xlu0 %v916, 12
        %v2729 = vpop.permute.xlu0 %2728
        %2730 = vrot.lane.b32.xlu0 %v917, 12
        %v2731 = vpop.permute.xlu0 %2730
        %2732 = vrot.lane.b32.xlu0 %v918, 12
        %v2733 = vpop.permute.xlu0 %2732
        %2734 = vrot.lane.b32.xlu0 %v919, 12
        %v2735 = vpop.permute.xlu0 %2734
        %2736 = vrot.lane.b32.xlu0 %v920, 12
        %v2737 = vpop.permute.xlu0 %2736
        %2738 = vrot.lane.b32.xlu0 %v921, 12
        %v2739 = vpop.permute.xlu0 %2738
        %2740 = vrot.lane.b32.xlu0 %v922, 12
        %v2741 = vpop.permute.xlu0 %2740
        %2742 = vrot.lane.b32.xlu0 %v923, 12
        %v2743 = vpop.permute.xlu0 %2742
        %2744 = vrot.lane.b32.xlu0 %v924, 12
        %v2745 = vpop.permute.xlu0 %2744
        %2746 = vrot.lane.b32.xlu0 %v925, 12
        %v2747 = vpop.permute.xlu0 %2746
        %2748 = vrot.lane.b32.xlu0 %v926, 12
        %v2749 = vpop.permute.xlu0 %2748
        %2750 = vrot.lane.b32.xlu0 %v927, 12
        %v2751 = vpop.permute.xlu0 %2750
        %2752 = vrot.lane.b32.xlu0 %v928, 12
        %v2753 = vpop.permute.xlu0 %2752
        %2754 = vrot.lane.b32.xlu0 %v929, 12
        %v2755 = vpop.permute.xlu0 %2754
        %2756 = vrot.lane.b32.xlu0 %v930, 12
        %v2757 = vpop.permute.xlu0 %2756
        %2758 = vrot.lane.b32.xlu0 %v931, 12
        %v2759 = vpop.permute.xlu0 %2758
        %2760 = vrot.lane.b32.xlu0 %v932, 12
        %v2761 = vpop.permute.xlu0 %2760
        %2762 = vrot.lane.b32.xlu0 %v933, 12
        %v2763 = vpop.permute.xlu0 %2762
        %2764 = vrot.lane.b32.xlu0 %v934, 12
        %v2765 = vpop.permute.xlu0 %2764
        %2766 = vrot.lane.b32.xlu0 %v935, 12
        %v2767 = vpop.permute.xlu0 %2766
        %2768 = vrot.lane.b32.xlu0 %v936, 12
        %v2769 = vpop.permute.xlu0 %2768
        %2770 = vrot.lane.b32.xlu0 %v937, 12
        %v2771 = vpop.permute.xlu0 %2770
        %2772 = vrot.lane.b32.xlu0 %v938, 12
        %v2773 = vpop.permute.xlu0 %2772
        %2774 = vrot.lane.b32.xlu0 %v939, 12
        %v2775 = vpop.permute.xlu0 %2774
        %2776 = vrot.lane.b32.xlu0 %v940, 12
        %v2777 = vpop.permute.xlu0 %2776
        %2778 = vrot.lane.b32.xlu0 %v941, 12
        %v2779 = vpop.permute.xlu0 %2778
        %2780 = vrot.lane.b32.xlu0 %v942, 12
        %v2781 = vpop.permute.xlu0 %2780
        %2782 = vrot.lane.b32.xlu0 %v943, 12
        %v2783 = vpop.permute.xlu0 %2782
        %2784 = vrot.lane.b32.xlu0 %v944, 12
        %v2785 = vpop.permute.xlu0 %2784
        %2786 = vrot.lane.b32.xlu0 %v945, 12
        %v2787 = vpop.permute.xlu0 %2786
        %2788 = vrot.lane.b32.xlu0 %v946, 12
        %v2789 = vpop.permute.xlu0 %2788
        %2790 = vrot.lane.b32.xlu0 %v947, 12
        %v2791 = vpop.permute.xlu0 %2790
        %2792 = vrot.lane.b32.xlu0 %v948, 12
        %v2793 = vpop.permute.xlu0 %2792
        %2794 = vrot.lane.b32.xlu0 %v949, 12
        %v2795 = vpop.permute.xlu0 %2794
        %2796 = vrot.lane.b32.xlu0 %v950, 12
        %v2797 = vpop.permute.xlu0 %2796
        %2798 = vrot.lane.b32.xlu0 %v951, 12
        %v2799 = vpop.permute.xlu0 %2798
        %2800 = vrot.lane.b32.xlu0 %v952, 12
        %v2801 = vpop.permute.xlu0 %2800
        %2802 = vrot.lane.b32.xlu0 %v953, 12
        %v2803 = vpop.permute.xlu0 %2802
        %2804 = vrot.lane.b32.xlu0 %v954, 12
        %v2805 = vpop.permute.xlu0 %2804
        %2806 = vrot.lane.b32.xlu0 %v955, 12
        %v2807 = vpop.permute.xlu0 %2806
        %2808 = vrot.lane.b32.xlu0 %v956, 12
        %v2809 = vpop.permute.xlu0 %2808
        %2810 = vrot.lane.b32.xlu0 %v957, 12
        %v2811 = vpop.permute.xlu0 %2810
        %2812 = vrot.lane.b32.xlu0 %v958, 12
        %v2813 = vpop.permute.xlu0 %2812
        %2814 = vrot.lane.b32.xlu0 %v959, 12
        %v2815 = vpop.permute.xlu0 %2814
        %2816 = vrot.lane.b32.xlu0 %v960, 12
        %v2817 = vpop.permute.xlu0 %2816
        %2818 = vrot.lane.b32.xlu0 %v961, 12
        %v2819 = vpop.permute.xlu0 %2818
        %2820 = vrot.lane.b32.xlu0 %v962, 12
        %v2821 = vpop.permute.xlu0 %2820
        %2822 = vrot.lane.b32.xlu0 %v963, 12
        %v2823 = vpop.permute.xlu0 %2822
        %2824 = vrot.lane.b32.xlu0 %v964, 12
        %v2825 = vpop.permute.xlu0 %2824
        %2826 = vrot.lane.b32.xlu0 %v965, 12
        %v2827 = vpop.permute.xlu0 %2826
        %2828 = vrot.lane.b32.xlu0 %v966, 12
        %v2829 = vpop.permute.xlu0 %2828
        %2830 = vrot.lane.b32.xlu0 %v967, 12
        %v2831 = vpop.permute.xlu0 %2830
        %2832 = vrot.lane.b32.xlu0 %v968, 12
        %v2833 = vpop.permute.xlu0 %2832
        %2834 = vrot.lane.b32.xlu0 %v969, 12
        %v2835 = vpop.permute.xlu0 %2834
        %2836 = vrot.lane.b32.xlu0 %v970, 12
        %v2837 = vpop.permute.xlu0 %2836
        %2838 = vrot.lane.b32.xlu0 %v971, 12
        %v2839 = vpop.permute.xlu0 %2838
        %2840 = vrot.lane.b32.xlu0 %v972, 12
        %v2841 = vpop.permute.xlu0 %2840
        %2842 = vrot.lane.b32.xlu0 %v973, 12
        %v2843 = vpop.permute.xlu0 %2842
        %2844 = vrot.lane.b32.xlu0 %v974, 12
        %v2845 = vpop.permute.xlu0 %2844
        %2846 = vrot.lane.b32.xlu0 %v975, 12
        %v2847 = vpop.permute.xlu0 %2846
        %2848 = vrot.lane.b32.xlu0 %v976, 12
        %v2849 = vpop.permute.xlu0 %2848
        %2850 = vrot.lane.b32.xlu0 %v977, 12
        %v2851 = vpop.permute.xlu0 %2850
        %2852 = vrot.lane.b32.xlu0 %v978, 12
        %v2853 = vpop.permute.xlu0 %2852
        %2854 = vrot.lane.b32.xlu0 %v979, 12
        %v2855 = vpop.permute.xlu0 %2854
        %2856 = vrot.lane.b32.xlu0 %v980, 12
        %v2857 = vpop.permute.xlu0 %2856
        %2858 = vrot.lane.b32.xlu0 %v981, 12
        %v2859 = vpop.permute.xlu0 %2858
        %2860 = vrot.lane.b32.xlu0 %v982, 12
        %v2861 = vpop.permute.xlu0 %2860
        %2862 = vrot.lane.b32.xlu0 %v983, 12
        %v2863 = vpop.permute.xlu0 %2862
        %2864 = vrot.lane.b32.xlu0 %v984, 12
        %v2865 = vpop.permute.xlu0 %2864
        %2866 = vrot.lane.b32.xlu0 %v985, 12
        %v2867 = vpop.permute.xlu0 %2866
        %2868 = vrot.lane.b32.xlu0 %v986, 12
        %v2869 = vpop.permute.xlu0 %2868
        %2870 = vrot.lane.b32.xlu0 %v987, 12
        %v2871 = vpop.permute.xlu0 %2870
        %2872 = vrot.lane.b32.xlu0 %v988, 12
        %v2873 = vpop.permute.xlu0 %2872
        %2874 = vrot.lane.b32.xlu0 %v989, 12
        %v2875 = vpop.permute.xlu0 %2874
        %2876 = vrot.lane.b32.xlu0 %v990, 12
        %v2877 = vpop.permute.xlu0 %2876
        %2878 = vrot.lane.b32.xlu0 %v991, 12
        %v2879 = vpop.permute.xlu0 %2878
        %2880 = vrot.lane.b32.xlu0 %v992, 12
        %v2881 = vpop.permute.xlu0 %2880
        %2882 = vrot.lane.b32.xlu0 %v993, 12
        %v2883 = vpop.permute.xlu0 %2882
        %2884 = vrot.lane.b32.xlu0 %v994, 12
        %v2885 = vpop.permute.xlu0 %2884
        %2886 = vrot.lane.b32.xlu0 %v995, 12
        %v2887 = vpop.permute.xlu0 %2886
        %2888 = vrot.lane.b32.xlu0 %v996, 12
        %v2889 = vpop.permute.xlu0 %2888
        %2890 = vrot.lane.b32.xlu0 %v997, 12
        %v2891 = vpop.permute.xlu0 %2890
        %2892 = vrot.lane.b32.xlu0 %v998, 12
        %v2893 = vpop.permute.xlu0 %2892
        %2894 = vrot.lane.b32.xlu0 %v999, 12
        %v2895 = vpop.permute.xlu0 %2894
        %2896 = vrot.lane.b32.xlu0 %v1000, 12
        %v2897 = vpop.permute.xlu0 %2896
        %2898 = vrot.lane.b32.xlu0 %v1001, 12
        %v2899 = vpop.permute.xlu0 %2898
        %2900 = vrot.lane.b32.xlu0 %v1002, 12
        %v2901 = vpop.permute.xlu0 %2900
        %2902 = vrot.lane.b32.xlu0 %v1003, 12
        %v2903 = vpop.permute.xlu0 %2902
        %2904 = vrot.lane.b32.xlu0 %v1004, 12
        %v2905 = vpop.permute.xlu0 %2904
        %2906 = vrot.lane.b32.xlu0 %v1005, 12
        %v2907 = vpop.permute.xlu0 %2906
        %2908 = vrot.lane.b32.xlu0 %v1006, 12
        %v2909 = vpop.permute.xlu0 %2908
        %2910 = vrot.lane.b32.xlu0 %v1007, 12
        %v2911 = vpop.permute.xlu0 %2910
        %2912 = vrot.lane.b32.xlu0 %v1008, 12
        %v2913 = vpop.permute.xlu0 %2912
        %2914 = vrot.lane.b32.xlu0 %v1009, 12
        %v2915 = vpop.permute.xlu0 %2914
        %2916 = vrot.lane.b32.xlu0 %v1010, 12
        %v2917 = vpop.permute.xlu0 %2916
        %2918 = vrot.lane.b32.xlu0 %v1011, 12
        %v2919 = vpop.permute.xlu0 %2918
        %2920 = vrot.lane.b32.xlu0 %v1012, 12
        %v2921 = vpop.permute.xlu0 %2920
        %2922 = vrot.lane.b32.xlu0 %v1013, 12
        %v2923 = vpop.permute.xlu0 %2922
        %2924 = vrot.lane.b32.xlu0 %v1014, 12
        %v2925 = vpop.permute.xlu0 %2924
        %2926 = vrot.lane.b32.xlu0 %v1015, 12
        %v2927 = vpop.permute.xlu0 %2926
        %2928 = vrot.lane.b32.xlu0 %v1016, 12
        %v2929 = vpop.permute.xlu0 %2928
        %2930 = vrot.lane.b32.xlu0 %v1017, 12
        %v2931 = vpop.permute.xlu0 %2930
        %2932 = vrot.lane.b32.xlu0 %v1018, 12
        %v2933 = vpop.permute.xlu0 %2932
        %2934 = vrot.lane.b32.xlu0 %v1019, 12
        %v2935 = vpop.permute.xlu0 %2934
        %2936 = vrot.lane.b32.xlu0 %v1020, 12
        %v2937 = vpop.permute.xlu0 %2936
        %2938 = vrot.lane.b32.xlu0 %v1021, 12
        %v2939 = vpop.permute.xlu0 %2938
        %2940 = vrot.lane.b32.xlu0 %v1022, 12
        %v2941 = vpop.permute.xlu0 %2940
        %2942 = vrot.lane.b32.xlu0 %v1023, 12
        %v2943 = vpop.permute.xlu0 %2942
        %vm3072 = vcmask 23552
        %v3073 = vsel %vm3072, %v384, %v1153
        %v3074 = vsel %vm3072, %v385, %v1155
        %v3075 = vsel %vm3072, %v386, %v1157
        %v3076 = vsel %vm3072, %v387, %v1159
        %v3077 = vsel %vm3072, %v388, %v1161
        %v3078 = vsel %vm3072, %v389, %v1163
        %v3079 = vsel %vm3072, %v390, %v1165
        %v3080 = vsel %vm3072, %v391, %v1167
        %v3081 = vsel %vm3072, %v392, %v1169
        %v3082 = vsel %vm3072, %v393, %v1171
        %v3083 = vsel %vm3072, %v394, %v1173
        %v3084 = vsel %vm3072, %v395, %v1175
        %v3085 = vsel %vm3072, %v396, %v1177
        %v3086 = vsel %vm3072, %v397, %v1179
        %v3087 = vsel %vm3072, %v398, %v1181
        %v3088 = vsel %vm3072, %v399, %v1183
        %v3089 = vsel %vm3072, %v400, %v1185
        %v3090 = vsel %vm3072, %v401, %v1187
        %v3091 = vsel %vm3072, %v402, %v1189
        %v3092 = vsel %vm3072, %v403, %v1191
        %v3093 = vsel %vm3072, %v404, %v1193
        %v3094 = vsel %vm3072, %v405, %v1195
        %v3095 = vsel %vm3072, %v406, %v1197
        %v3096 = vsel %vm3072, %v407, %v1199
        %v3097 = vsel %vm3072, %v408, %v1201
        %v3098 = vsel %vm3072, %v409, %v1203
        %v3099 = vsel %vm3072, %v410, %v1205
        %v3100 = vsel %vm3072, %v411, %v1207
        %v3101 = vsel %vm3072, %v412, %v1209
        %v3102 = vsel %vm3072, %v413, %v1211
        %v3103 = vsel %vm3072, %v414, %v1213
        %v3104 = vsel %vm3072, %v415, %v1215
        %v3105 = vsel %vm3072, %v416, %v1217
        %v3106 = vsel %vm3072, %v417, %v1219
        %v3107 = vsel %vm3072, %v418, %v1221
        %v3108 = vsel %vm3072, %v419, %v1223
        %v3109 = vsel %vm3072, %v420, %v1225
        %v3110 = vsel %vm3072, %v421, %v1227
        %v3111 = vsel %vm3072, %v422, %v1229
        %v3112 = vsel %vm3072, %v423, %v1231
        %v3113 = vsel %vm3072, %v424, %v1233
        %v3114 = vsel %vm3072, %v425, %v1235
        %v3115 = vsel %vm3072, %v426, %v1237
        %v3116 = vsel %vm3072, %v427, %v1239
        %v3117 = vsel %vm3072, %v428, %v1241
        %v3118 = vsel %vm3072, %v429, %v1243
        %v3119 = vsel %vm3072, %v430, %v1245
        %v3120 = vsel %vm3072, %v431, %v1247
        %v3121 = vsel %vm3072, %v432, %v1249
        %v3122 = vsel %vm3072, %v433, %v1251
        %v3123 = vsel %vm3072, %v434, %v1253
        %v3124 = vsel %vm3072, %v435, %v1255
        %v3125 = vsel %vm3072, %v436, %v1257
        %v3126 = vsel %vm3072, %v437, %v1259
        %v3127 = vsel %vm3072, %v438, %v1261
        %v3128 = vsel %vm3072, %v439, %v1263
        %v3129 = vsel %vm3072, %v440, %v1265
        %v3130 = vsel %vm3072, %v441, %v1267
        %v3131 = vsel %vm3072, %v442, %v1269
        %v3132 = vsel %vm3072, %v443, %v1271
        %v3133 = vsel %vm3072, %v444, %v1273
        %v3134 = vsel %vm3072, %v445, %v1275
        %v3135 = vsel %vm3072, %v446, %v1277
        %v3136 = vsel %vm3072, %v447, %v1279
        %v3137 = vsel %vm3072, %v448, %v1281
        %v3138 = vsel %vm3072, %v449, %v1283
        %v3139 = vsel %vm3072, %v450, %v1285
        %v3140 = vsel %vm3072, %v451, %v1287
        %v3141 = vsel %vm3072, %v452, %v1289
        %v3142 = vsel %vm3072, %v453, %v1291
        %v3143 = vsel %vm3072, %v454, %v1293
        %v3144 = vsel %vm3072, %v455, %v1295
        %v3145 = vsel %vm3072, %v456, %v1297
        %v3146 = vsel %vm3072, %v457, %v1299
        %v3147 = vsel %vm3072, %v458, %v1301
        %v3148 = vsel %vm3072, %v459, %v1303
        %v3149 = vsel %vm3072, %v460, %v1305
        %v3150 = vsel %vm3072, %v461, %v1307
        %v3151 = vsel %vm3072, %v462, %v1309
        %v3152 = vsel %vm3072, %v463, %v1311
        %v3153 = vsel %vm3072, %v464, %v1313
        %v3154 = vsel %vm3072, %v465, %v1315
        %v3155 = vsel %vm3072, %v466, %v1317
        %v3156 = vsel %vm3072, %v467, %v1319
        %v3157 = vsel %vm3072, %v468, %v1321
        %v3158 = vsel %vm3072, %v469, %v1323
        %v3159 = vsel %vm3072, %v470, %v1325
        %v3160 = vsel %vm3072, %v471, %v1327
        %v3161 = vsel %vm3072, %v472, %v1329
        %v3162 = vsel %vm3072, %v473, %v1331
        %v3163 = vsel %vm3072, %v474, %v1333
        %v3164 = vsel %vm3072, %v475, %v1335
        %v3165 = vsel %vm3072, %v476, %v1337
        %v3166 = vsel %vm3072, %v477, %v1339
        %v3167 = vsel %vm3072, %v478, %v1341
        %v3168 = vsel %vm3072, %v479, %v1343
        %v3169 = vsel %vm3072, %v480, %v1345
        %v3170 = vsel %vm3072, %v481, %v1347
        %v3171 = vsel %vm3072, %v482, %v1349
        %v3172 = vsel %vm3072, %v483, %v1351
        %v3173 = vsel %vm3072, %v484, %v1353
        %v3174 = vsel %vm3072, %v485, %v1355
        %v3175 = vsel %vm3072, %v486, %v1357
        %v3176 = vsel %vm3072, %v487, %v1359
        %v3177 = vsel %vm3072, %v488, %v1361
        %v3178 = vsel %vm3072, %v489, %v1363
        %v3179 = vsel %vm3072, %v490, %v1365
        %v3180 = vsel %vm3072, %v491, %v1367
        %v3181 = vsel %vm3072, %v492, %v1369
        %v3182 = vsel %vm3072, %v493, %v1371
        %v3183 = vsel %vm3072, %v494, %v1373
        %v3184 = vsel %vm3072, %v495, %v1375
        %v3185 = vsel %vm3072, %v496, %v1377
        %v3186 = vsel %vm3072, %v497, %v1379
        %v3187 = vsel %vm3072, %v498, %v1381
        %v3188 = vsel %vm3072, %v499, %v1383
        %v3189 = vsel %vm3072, %v500, %v1385
        %v3190 = vsel %vm3072, %v501, %v1387
        %v3191 = vsel %vm3072, %v502, %v1389
        %v3192 = vsel %vm3072, %v503, %v1391
        %v3193 = vsel %vm3072, %v504, %v1393
        %v3194 = vsel %vm3072, %v505, %v1395
        %v3195 = vsel %vm3072, %v506, %v1397
        %v3196 = vsel %vm3072, %v507, %v1399
        %v3197 = vsel %vm3072, %v508, %v1401
        %v3198 = vsel %vm3072, %v509, %v1403
        %v3199 = vsel %vm3072, %v510, %v1405
        %v3200 = vsel %vm3072, %v511, %v1407
        %vm3201 = vcmask 48128
        %v3202 = vsel %vm3201, %v3073, %v1665
        %v3203 = vsel %vm3201, %v3074, %v1667
        %v3204 = vsel %vm3201, %v3075, %v1669
        %v3205 = vsel %vm3201, %v3076, %v1671
        %v3206 = vsel %vm3201, %v3077, %v1673
        %v3207 = vsel %vm3201, %v3078, %v1675
        %v3208 = vsel %vm3201, %v3079, %v1677
        %v3209 = vsel %vm3201, %v3080, %v1679
        %v3210 = vsel %vm3201, %v3081, %v1681
        %v3211 = vsel %vm3201, %v3082, %v1683
        %v3212 = vsel %vm3201, %v3083, %v1685
        %v3213 = vsel %vm3201, %v3084, %v1687
        %v3214 = vsel %vm3201, %v3085, %v1689
        %v3215 = vsel %vm3201, %v3086, %v1691
        %v3216 = vsel %vm3201, %v3087, %v1693
        %v3217 = vsel %vm3201, %v3088, %v1695
        %v3218 = vsel %vm3201, %v3089, %v1697
        %v3219 = vsel %vm3201, %v3090, %v1699
        %v3220 = vsel %vm3201, %v3091, %v1701
        %v3221 = vsel %vm3201, %v3092, %v1703
        %v3222 = vsel %vm3201, %v3093, %v1705
        %v3223 = vsel %vm3201, %v3094, %v1707
        %v3224 = vsel %vm3201, %v3095, %v1709
        %v3225 = vsel %vm3201, %v3096, %v1711
        %v3226 = vsel %vm3201, %v3097, %v1713
        %v3227 = vsel %vm3201, %v3098, %v1715
        %v3228 = vsel %vm3201, %v3099, %v1717
        %v3229 = vsel %vm3201, %v3100, %v1719
        %v3230 = vsel %vm3201, %v3101, %v1721
        %v3231 = vsel %vm3201, %v3102, %v1723
        %v3232 = vsel %vm3201, %v3103, %v1725
        %v3233 = vsel %vm3201, %v3104, %v1727
        %v3234 = vsel %vm3201, %v3105, %v1729
        %v3235 = vsel %vm3201, %v3106, %v1731
        %v3236 = vsel %vm3201, %v3107, %v1733
        %v3237 = vsel %vm3201, %v3108, %v1735
        %v3238 = vsel %vm3201, %v3109, %v1737
        %v3239 = vsel %vm3201, %v3110, %v1739
        %v3240 = vsel %vm3201, %v3111, %v1741
        %v3241 = vsel %vm3201, %v3112, %v1743
        %v3242 = vsel %vm3201, %v3113, %v1745
        %v3243 = vsel %vm3201, %v3114, %v1747
        %v3244 = vsel %vm3201, %v3115, %v1749
        %v3245 = vsel %vm3201, %v3116, %v1751
        %v3246 = vsel %vm3201, %v3117, %v1753
        %v3247 = vsel %vm3201, %v3118, %v1755
        %v3248 = vsel %vm3201, %v3119, %v1757
        %v3249 = vsel %vm3201, %v3120, %v1759
        %v3250 = vsel %vm3201, %v3121, %v1761
        %v3251 = vsel %vm3201, %v3122, %v1763
        %v3252 = vsel %vm3201, %v3123, %v1765
        %v3253 = vsel %vm3201, %v3124, %v1767
        %v3254 = vsel %vm3201, %v3125, %v1769
        %v3255 = vsel %vm3201, %v3126, %v1771
        %v3256 = vsel %vm3201, %v3127, %v1773
        %v3257 = vsel %vm3201, %v3128, %v1775
        %v3258 = vsel %vm3201, %v3129, %v1777
        %v3259 = vsel %vm3201, %v3130, %v1779
        %v3260 = vsel %vm3201, %v3131, %v1781
        %v3261 = vsel %vm3201, %v3132, %v1783
        %v3262 = vsel %vm3201, %v3133, %v1785
        %v3263 = vsel %vm3201, %v3134, %v1787
        %v3264 = vsel %vm3201, %v3135, %v1789
        %v3265 = vsel %vm3201, %v3136, %v1791
        %v3266 = vsel %vm3201, %v3137, %v1793
        %v3267 = vsel %vm3201, %v3138, %v1795
        %v3268 = vsel %vm3201, %v3139, %v1797
        %v3269 = vsel %vm3201, %v3140, %v1799
        %v3270 = vsel %vm3201, %v3141, %v1801
        %v3271 = vsel %vm3201, %v3142, %v1803
        %v3272 = vsel %vm3201, %v3143, %v1805
        %v3273 = vsel %vm3201, %v3144, %v1807
        %v3274 = vsel %vm3201, %v3145, %v1809
        %v3275 = vsel %vm3201, %v3146, %v1811
        %v3276 = vsel %vm3201, %v3147, %v1813
        %v3277 = vsel %vm3201, %v3148, %v1815
        %v3278 = vsel %vm3201, %v3149, %v1817
        %v3279 = vsel %vm3201, %v3150, %v1819
        %v3280 = vsel %vm3201, %v3151, %v1821
        %v3281 = vsel %vm3201, %v3152, %v1823
        %v3282 = vsel %vm3201, %v3153, %v1825
        %v3283 = vsel %vm3201, %v3154, %v1827
        %v3284 = vsel %vm3201, %v3155, %v1829
        %v3285 = vsel %vm3201, %v3156, %v1831
        %v3286 = vsel %vm3201, %v3157, %v1833
        %v3287 = vsel %vm3201, %v3158, %v1835
        %v3288 = vsel %vm3201, %v3159, %v1837
        %v3289 = vsel %vm3201, %v3160, %v1839
        %v3290 = vsel %vm3201, %v3161, %v1841
        %v3291 = vsel %vm3201, %v3162, %v1843
        %v3292 = vsel %vm3201, %v3163, %v1845
        %v3293 = vsel %vm3201, %v3164, %v1847
        %v3294 = vsel %vm3201, %v3165, %v1849
        %v3295 = vsel %vm3201, %v3166, %v1851
        %v3296 = vsel %vm3201, %v3167, %v1853
        %v3297 = vsel %vm3201, %v3168, %v1855
        %v3298 = vsel %vm3201, %v3169, %v1857
        %v3299 = vsel %vm3201, %v3170, %v1859
        %v3300 = vsel %vm3201, %v3171, %v1861
        %v3301 = vsel %vm3201, %v3172, %v1863
        %v3302 = vsel %vm3201, %v3173, %v1865
        %v3303 = vsel %vm3201, %v3174, %v1867
        %v3304 = vsel %vm3201, %v3175, %v1869
        %v3305 = vsel %vm3201, %v3176, %v1871
        %v3306 = vsel %vm3201, %v3177, %v1873
        %v3307 = vsel %vm3201, %v3178, %v1875
        %v3308 = vsel %vm3201, %v3179, %v1877
        %v3309 = vsel %vm3201, %v3180, %v1879
        %v3310 = vsel %vm3201, %v3181, %v1881
        %v3311 = vsel %vm3201, %v3182, %v1883
        %v3312 = vsel %vm3201, %v3183, %v1885
        %v3313 = vsel %vm3201, %v3184, %v1887
        %v3314 = vsel %vm3201, %v3185, %v1889
        %v3315 = vsel %vm3201, %v3186, %v1891
        %v3316 = vsel %vm3201, %v3187, %v1893
        %v3317 = vsel %vm3201, %v3188, %v1895
        %v3318 = vsel %vm3201, %v3189, %v1897
        %v3319 = vsel %vm3201, %v3190, %v1899
        %v3320 = vsel %vm3201, %v3191, %v1901
        %v3321 = vsel %vm3201, %v3192, %v1903
        %v3322 = vsel %vm3201, %v3193, %v1905
        %v3323 = vsel %vm3201, %v3194, %v1907
        %v3324 = vsel %vm3201, %v3195, %v1909
        %v3325 = vsel %vm3201, %v3196, %v1911
        %v3326 = vsel %vm3201, %v3197, %v1913
        %v3327 = vsel %vm3201, %v3198, %v1915
        %v3328 = vsel %vm3201, %v3199, %v1917
        %v3329 = vsel %vm3201, %v3200, %v1919
        %vm3330 = vcmask 72704
        %v3331 = vsel %vm3330, %v3202, %v2177
        %v3332 = vsel %vm3330, %v3203, %v2179
        %v3333 = vsel %vm3330, %v3204, %v2181
        %v3334 = vsel %vm3330, %v3205, %v2183
        %v3335 = vsel %vm3330, %v3206, %v2185
        %v3336 = vsel %vm3330, %v3207, %v2187
        %v3337 = vsel %vm3330, %v3208, %v2189
        %v3338 = vsel %vm3330, %v3209, %v2191
        %v3339 = vsel %vm3330, %v3210, %v2193
        %v3340 = vsel %vm3330, %v3211, %v2195
        %v3341 = vsel %vm3330, %v3212, %v2197
        %v3342 = vsel %vm3330, %v3213, %v2199
        %v3343 = vsel %vm3330, %v3214, %v2201
        %v3344 = vsel %vm3330, %v3215, %v2203
        %v3345 = vsel %vm3330, %v3216, %v2205
        %v3346 = vsel %vm3330, %v3217, %v2207
        %v3347 = vsel %vm3330, %v3218, %v2209
        %v3348 = vsel %vm3330, %v3219, %v2211
        %v3349 = vsel %vm3330, %v3220, %v2213
        %v3350 = vsel %vm3330, %v3221, %v2215
        %v3351 = vsel %vm3330, %v3222, %v2217
        %v3352 = vsel %vm3330, %v3223, %v2219
        %v3353 = vsel %vm3330, %v3224, %v2221
        %v3354 = vsel %vm3330, %v3225, %v2223
        %v3355 = vsel %vm3330, %v3226, %v2225
        %v3356 = vsel %vm3330, %v3227, %v2227
        %v3357 = vsel %vm3330, %v3228, %v2229
        %v3358 = vsel %vm3330, %v3229, %v2231
        %v3359 = vsel %vm3330, %v3230, %v2233
        %v3360 = vsel %vm3330, %v3231, %v2235
        %v3361 = vsel %vm3330, %v3232, %v2237
        %v3362 = vsel %vm3330, %v3233, %v2239
        %v3363 = vsel %vm3330, %v3234, %v2241
        %v3364 = vsel %vm3330, %v3235, %v2243
        %v3365 = vsel %vm3330, %v3236, %v2245
        %v3366 = vsel %vm3330, %v3237, %v2247
        %v3367 = vsel %vm3330, %v3238, %v2249
        %v3368 = vsel %vm3330, %v3239, %v2251
        %v3369 = vsel %vm3330, %v3240, %v2253
        %v3370 = vsel %vm3330, %v3241, %v2255
        %v3371 = vsel %vm3330, %v3242, %v2257
        %v3372 = vsel %vm3330, %v3243, %v2259
        %v3373 = vsel %vm3330, %v3244, %v2261
        %v3374 = vsel %vm3330, %v3245, %v2263
        %v3375 = vsel %vm3330, %v3246, %v2265
        %v3376 = vsel %vm3330, %v3247, %v2267
        %v3377 = vsel %vm3330, %v3248, %v2269
        %v3378 = vsel %vm3330, %v3249, %v2271
        %v3379 = vsel %vm3330, %v3250, %v2273
        %v3380 = vsel %vm3330, %v3251, %v2275
        %v3381 = vsel %vm3330, %v3252, %v2277
        %v3382 = vsel %vm3330, %v3253, %v2279
        %v3383 = vsel %vm3330, %v3254, %v2281
        %v3384 = vsel %vm3330, %v3255, %v2283
        %v3385 = vsel %vm3330, %v3256, %v2285
        %v3386 = vsel %vm3330, %v3257, %v2287
        %v3387 = vsel %vm3330, %v3258, %v2289
        %v3388 = vsel %vm3330, %v3259, %v2291
        %v3389 = vsel %vm3330, %v3260, %v2293
        %v3390 = vsel %vm3330, %v3261, %v2295
        %v3391 = vsel %vm3330, %v3262, %v2297
        %v3392 = vsel %vm3330, %v3263, %v2299
        %v3393 = vsel %vm3330, %v3264, %v2301
        %v3394 = vsel %vm3330, %v3265, %v2303
        %v3395 = vsel %vm3330, %v3266, %v2305
        %v3396 = vsel %vm3330, %v3267, %v2307
        %v3397 = vsel %vm3330, %v3268, %v2309
        %v3398 = vsel %vm3330, %v3269, %v2311
        %v3399 = vsel %vm3330, %v3270, %v2313
        %v3400 = vsel %vm3330, %v3271, %v2315
        %v3401 = vsel %vm3330, %v3272, %v2317
        %v3402 = vsel %vm3330, %v3273, %v2319
        %v3403 = vsel %vm3330, %v3274, %v2321
        %v3404 = vsel %vm3330, %v3275, %v2323
        %v3405 = vsel %vm3330, %v3276, %v2325
        %v3406 = vsel %vm3330, %v3277, %v2327
        %v3407 = vsel %vm3330, %v3278, %v2329
        %v3408 = vsel %vm3330, %v3279, %v2331
        %v3409 = vsel %vm3330, %v3280, %v2333
        %v3410 = vsel %vm3330, %v3281, %v2335
        %v3411 = vsel %vm3330, %v3282, %v2337
        %v3412 = vsel %vm3330, %v3283, %v2339
        %v3413 = vsel %vm3330, %v3284, %v2341
        %v3414 = vsel %vm3330, %v3285, %v2343
        %v3415 = vsel %vm3330, %v3286, %v2345
        %v3416 = vsel %vm3330, %v3287, %v2347
        %v3417 = vsel %vm3330, %v3288, %v2349
        %v3418 = vsel %vm3330, %v3289, %v2351
        %v3419 = vsel %vm3330, %v3290, %v2353
        %v3420 = vsel %vm3330, %v3291, %v2355
        %v3421 = vsel %vm3330, %v3292, %v2357
        %v3422 = vsel %vm3330, %v3293, %v2359
        %v3423 = vsel %vm3330, %v3294, %v2361
        %v3424 = vsel %vm3330, %v3295, %v2363
        %v3425 = vsel %vm3330, %v3296, %v2365
        %v3426 = vsel %vm3330, %v3297, %v2367
        %v3427 = vsel %vm3330, %v3298, %v2369
        %v3428 = vsel %vm3330, %v3299, %v2371
        %v3429 = vsel %vm3330, %v3300, %v2373
        %v3430 = vsel %vm3330, %v3301, %v2375
        %v3431 = vsel %vm3330, %v3302, %v2377
        %v3432 = vsel %vm3330, %v3303, %v2379
        %v3433 = vsel %vm3330, %v3304, %v2381
        %v3434 = vsel %vm3330, %v3305, %v2383
        %v3435 = vsel %vm3330, %v3306, %v2385
        %v3436 = vsel %vm3330, %v3307, %v2387
        %v3437 = vsel %vm3330, %v3308, %v2389
        %v3438 = vsel %vm3330, %v3309, %v2391
        %v3439 = vsel %vm3330, %v3310, %v2393
        %v3440 = vsel %vm3330, %v3311, %v2395
        %v3441 = vsel %vm3330, %v3312, %v2397
        %v3442 = vsel %vm3330, %v3313, %v2399
        %v3443 = vsel %vm3330, %v3314, %v2401
        %v3444 = vsel %vm3330, %v3315, %v2403
        %v3445 = vsel %vm3330, %v3316, %v2405
        %v3446 = vsel %vm3330, %v3317, %v2407
        %v3447 = vsel %vm3330, %v3318, %v2409
        %v3448 = vsel %vm3330, %v3319, %v2411
        %v3449 = vsel %vm3330, %v3320, %v2413
        %v3450 = vsel %vm3330, %v3321, %v2415
        %v3451 = vsel %vm3330, %v3322, %v2417
        %v3452 = vsel %vm3330, %v3323, %v2419
        %v3453 = vsel %vm3330, %v3324, %v2421
        %v3454 = vsel %vm3330, %v3325, %v2423
        %v3455 = vsel %vm3330, %v3326, %v2425
        %v3456 = vsel %vm3330, %v3327, %v2427
        %v3457 = vsel %vm3330, %v3328, %v2429
        %v3458 = vsel %vm3330, %v3329, %v2431
        %vm3459 = vcmask 97280
        %v3460 = vsel %vm3459, %v3331, %v2689
        %v3461 = vsel %vm3459, %v3332, %v2691
        %v3462 = vsel %vm3459, %v3333, %v2693
        %v3463 = vsel %vm3459, %v3334, %v2695
        %v3464 = vsel %vm3459, %v3335, %v2697
        %v3465 = vsel %vm3459, %v3336, %v2699
        %v3466 = vsel %vm3459, %v3337, %v2701
        %v3467 = vsel %vm3459, %v3338, %v2703
        %v3468 = vsel %vm3459, %v3339, %v2705
        %v3469 = vsel %vm3459, %v3340, %v2707
        %v3470 = vsel %vm3459, %v3341, %v2709
        %v3471 = vsel %vm3459, %v3342, %v2711
        %v3472 = vsel %vm3459, %v3343, %v2713
        %v3473 = vsel %vm3459, %v3344, %v2715
        %v3474 = vsel %vm3459, %v3345, %v2717
        %v3475 = vsel %vm3459, %v3346, %v2719
        %v3476 = vsel %vm3459, %v3347, %v2721
        %v3477 = vsel %vm3459, %v3348, %v2723
        %v3478 = vsel %vm3459, %v3349, %v2725
        %v3479 = vsel %vm3459, %v3350, %v2727
        %v3480 = vsel %vm3459, %v3351, %v2729
        %v3481 = vsel %vm3459, %v3352, %v2731
        %v3482 = vsel %vm3459, %v3353, %v2733
        %v3483 = vsel %vm3459, %v3354, %v2735
        %v3484 = vsel %vm3459, %v3355, %v2737
        %v3485 = vsel %vm3459, %v3356, %v2739
        %v3486 = vsel %vm3459, %v3357, %v2741
        %v3487 = vsel %vm3459, %v3358, %v2743
        %v3488 = vsel %vm3459, %v3359, %v2745
        %v3489 = vsel %vm3459, %v3360, %v2747
        %v3490 = vsel %vm3459, %v3361, %v2749
        %v3491 = vsel %vm3459, %v3362, %v2751
        %v3492 = vsel %vm3459, %v3363, %v2753
        %v3493 = vsel %vm3459, %v3364, %v2755
        %v3494 = vsel %vm3459, %v3365, %v2757
        %v3495 = vsel %vm3459, %v3366, %v2759
        %v3496 = vsel %vm3459, %v3367, %v2761
        %v3497 = vsel %vm3459, %v3368, %v2763
        %v3498 = vsel %vm3459, %v3369, %v2765
        %v3499 = vsel %vm3459, %v3370, %v2767
        %v3500 = vsel %vm3459, %v3371, %v2769
        %v3501 = vsel %vm3459, %v3372, %v2771
        %v3502 = vsel %vm3459, %v3373, %v2773
        %v3503 = vsel %vm3459, %v3374, %v2775
        %v3504 = vsel %vm3459, %v3375, %v2777
        %v3505 = vsel %vm3459, %v3376, %v2779
        %v3506 = vsel %vm3459, %v3377, %v2781
        %v3507 = vsel %vm3459, %v3378, %v2783
        %v3508 = vsel %vm3459, %v3379, %v2785
        %v3509 = vsel %vm3459, %v3380, %v2787
        %v3510 = vsel %vm3459, %v3381, %v2789
        %v3511 = vsel %vm3459, %v3382, %v2791
        %v3512 = vsel %vm3459, %v3383, %v2793
        %v3513 = vsel %vm3459, %v3384, %v2795
        %v3514 = vsel %vm3459, %v3385, %v2797
        %v3515 = vsel %vm3459, %v3386, %v2799
        %v3516 = vsel %vm3459, %v3387, %v2801
        %v3517 = vsel %vm3459, %v3388, %v2803
        %v3518 = vsel %vm3459, %v3389, %v2805
        %v3519 = vsel %vm3459, %v3390, %v2807
        %v3520 = vsel %vm3459, %v3391, %v2809
        %v3521 = vsel %vm3459, %v3392, %v2811
        %v3522 = vsel %vm3459, %v3393, %v2813
        %v3523 = vsel %vm3459, %v3394, %v2815
        %v3524 = vsel %vm3459, %v3395, %v2817
        %v3525 = vsel %vm3459, %v3396, %v2819
        %v3526 = vsel %vm3459, %v3397, %v2821
        %v3527 = vsel %vm3459, %v3398, %v2823
        %v3528 = vsel %vm3459, %v3399, %v2825
        %v3529 = vsel %vm3459, %v3400, %v2827
        %v3530 = vsel %vm3459, %v3401, %v2829
        %v3531 = vsel %vm3459, %v3402, %v2831
        %v3532 = vsel %vm3459, %v3403, %v2833
        %v3533 = vsel %vm3459, %v3404, %v2835
        %v3534 = vsel %vm3459, %v3405, %v2837
        %v3535 = vsel %vm3459, %v3406, %v2839
        %v3536 = vsel %vm3459, %v3407, %v2841
        %v3537 = vsel %vm3459, %v3408, %v2843
        %v3538 = vsel %vm3459, %v3409, %v2845
        %v3539 = vsel %vm3459, %v3410, %v2847
        %v3540 = vsel %vm3459, %v3411, %v2849
        %v3541 = vsel %vm3459, %v3412, %v2851
        %v3542 = vsel %vm3459, %v3413, %v2853
        %v3543 = vsel %vm3459, %v3414, %v2855
        %v3544 = vsel %vm3459, %v3415, %v2857
        %v3545 = vsel %vm3459, %v3416, %v2859
        %v3546 = vsel %vm3459, %v3417, %v2861
        %v3547 = vsel %vm3459, %v3418, %v2863
        %v3548 = vsel %vm3459, %v3419, %v2865
        %v3549 = vsel %vm3459, %v3420, %v2867
        %v3550 = vsel %vm3459, %v3421, %v2869
        %v3551 = vsel %vm3459, %v3422, %v2871
        %v3552 = vsel %vm3459, %v3423, %v2873
        %v3553 = vsel %vm3459, %v3424, %v2875
        %v3554 = vsel %vm3459, %v3425, %v2877
        %v3555 = vsel %vm3459, %v3426, %v2879
        %v3556 = vsel %vm3459, %v3427, %v2881
        %v3557 = vsel %vm3459, %v3428, %v2883
        %v3558 = vsel %vm3459, %v3429, %v2885
        %v3559 = vsel %vm3459, %v3430, %v2887
        %v3560 = vsel %vm3459, %v3431, %v2889
        %v3561 = vsel %vm3459, %v3432, %v2891
        %v3562 = vsel %vm3459, %v3433, %v2893
        %v3563 = vsel %vm3459, %v3434, %v2895
        %v3564 = vsel %vm3459, %v3435, %v2897
        %v3565 = vsel %vm3459, %v3436, %v2899
        %v3566 = vsel %vm3459, %v3437, %v2901
        %v3567 = vsel %vm3459, %v3438, %v2903
        %v3568 = vsel %vm3459, %v3439, %v2905
        %v3569 = vsel %vm3459, %v3440, %v2907
        %v3570 = vsel %vm3459, %v3441, %v2909
        %v3571 = vsel %vm3459, %v3442, %v2911
        %v3572 = vsel %vm3459, %v3443, %v2913
        %v3573 = vsel %vm3459, %v3444, %v2915
        %v3574 = vsel %vm3459, %v3445, %v2917
        %v3575 = vsel %vm3459, %v3446, %v2919
        %v3576 = vsel %vm3459, %v3447, %v2921
        %v3577 = vsel %vm3459, %v3448, %v2923
        %v3578 = vsel %vm3459, %v3449, %v2925
        %v3579 = vsel %vm3459, %v3450, %v2927
        %v3580 = vsel %vm3459, %v3451, %v2929
        %v3581 = vsel %vm3459, %v3452, %v2931
        %v3582 = vsel %vm3459, %v3453, %v2933
        %v3583 = vsel %vm3459, %v3454, %v2935
        %v3584 = vsel %vm3459, %v3455, %v2937
        %v3585 = vsel %vm3459, %v3456, %v2939
        %v3586 = vsel %vm3459, %v3457, %v2941
        %v3587 = vsel %vm3459, %v3458, %v2943
        %3700 = vrot.lane.b32.xlu0 %v3464, 15
        %v3701 = vpop.permute.xlu0 %3700
        %3702 = vrot.lane.b32.xlu0 %v3465, 15
        %v3703 = vpop.permute.xlu0 %3702
        %3704 = vrot.lane.b32.xlu0 %v3466, 15
        %v3705 = vpop.permute.xlu0 %3704
        %3706 = vrot.lane.b32.xlu0 %v3467, 15
        %v3707 = vpop.permute.xlu0 %3706
        %3708 = vrot.lane.b32.xlu0 %v3468, 15
        %v3709 = vpop.permute.xlu0 %3708
        %3710 = vrot.lane.b32.xlu0 %v3469, 15
        %v3711 = vpop.permute.xlu0 %3710
        %3712 = vrot.lane.b32.xlu0 %v3470, 15
        %v3713 = vpop.permute.xlu0 %3712
        %3714 = vrot.lane.b32.xlu0 %v3471, 15
        %v3715 = vpop.permute.xlu0 %3714
        %3716 = vrot.lane.b32.xlu0 %v3472, 15
        %v3717 = vpop.permute.xlu0 %3716
        %3718 = vrot.lane.b32.xlu0 %v3473, 15
        %v3719 = vpop.permute.xlu0 %3718
        %3720 = vrot.lane.b32.xlu0 %v3474, 15
        %v3721 = vpop.permute.xlu0 %3720
        %3722 = vrot.lane.b32.xlu0 %v3475, 15
        %v3723 = vpop.permute.xlu0 %3722
        %3724 = vrot.lane.b32.xlu0 %v3476, 15
        %v3725 = vpop.permute.xlu0 %3724
        %3726 = vrot.lane.b32.xlu0 %v3477, 15
        %v3727 = vpop.permute.xlu0 %3726
        %3728 = vrot.lane.b32.xlu0 %v3478, 15
        %v3729 = vpop.permute.xlu0 %3728
        %3730 = vrot.lane.b32.xlu0 %v3479, 15
        %v3731 = vpop.permute.xlu0 %3730
        %3732 = vrot.lane.b32.xlu0 %v3480, 15
        %v3733 = vpop.permute.xlu0 %3732
        %3734 = vrot.lane.b32.xlu0 %v3481, 15
        %v3735 = vpop.permute.xlu0 %3734
        %3736 = vrot.lane.b32.xlu0 %v3482, 15
        %v3737 = vpop.permute.xlu0 %3736
        %3738 = vrot.lane.b32.xlu0 %v3483, 15
        %v3739 = vpop.permute.xlu0 %3738
        %3740 = vrot.lane.b32.xlu0 %v3484, 15
        %v3741 = vpop.permute.xlu0 %3740
        %3742 = vrot.lane.b32.xlu0 %v3485, 15
        %v3743 = vpop.permute.xlu0 %3742
        %3744 = vrot.lane.b32.xlu0 %v3486, 15
        %v3745 = vpop.permute.xlu0 %3744
        %3746 = vrot.lane.b32.xlu0 %v3487, 15
        %v3747 = vpop.permute.xlu0 %3746
        %3748 = vrot.lane.b32.xlu0 %v3488, 15
        %v3749 = vpop.permute.xlu0 %3748
        %3750 = vrot.lane.b32.xlu0 %v3489, 15
        %v3751 = vpop.permute.xlu0 %3750
        %3752 = vrot.lane.b32.xlu0 %v3490, 15
        %v3753 = vpop.permute.xlu0 %3752
        %3754 = vrot.lane.b32.xlu0 %v3491, 15
        %v3755 = vpop.permute.xlu0 %3754
        %3756 = vrot.lane.b32.xlu0 %v3492, 15
        %v3757 = vpop.permute.xlu0 %3756
        %3758 = vrot.lane.b32.xlu0 %v3493, 15
        %v3759 = vpop.permute.xlu0 %3758
        %3760 = vrot.lane.b32.xlu0 %v3494, 15
        %v3761 = vpop.permute.xlu0 %3760
        %3762 = vrot.lane.b32.xlu0 %v3495, 15
        %v3763 = vpop.permute.xlu0 %3762
        %3764 = vrot.lane.b32.xlu0 %v3496, 15
        %v3765 = vpop.permute.xlu0 %3764
        %3766 = vrot.lane.b32.xlu0 %v3497, 15
        %v3767 = vpop.permute.xlu0 %3766
        %3768 = vrot.lane.b32.xlu0 %v3498, 15
        %v3769 = vpop.permute.xlu0 %3768
        %3770 = vrot.lane.b32.xlu0 %v3499, 15
        %v3771 = vpop.permute.xlu0 %3770
        %3772 = vrot.lane.b32.xlu0 %v3500, 15
        %v3773 = vpop.permute.xlu0 %3772
        %3774 = vrot.lane.b32.xlu0 %v3501, 15
        %v3775 = vpop.permute.xlu0 %3774
        %3776 = vrot.lane.b32.xlu0 %v3502, 15
        %v3777 = vpop.permute.xlu0 %3776
        %3778 = vrot.lane.b32.xlu0 %v3503, 15
        %v3779 = vpop.permute.xlu0 %3778
        %3780 = vrot.lane.b32.xlu0 %v3504, 15
        %v3781 = vpop.permute.xlu0 %3780
        %3782 = vrot.lane.b32.xlu0 %v3505, 15
        %v3783 = vpop.permute.xlu0 %3782
        %3784 = vrot.lane.b32.xlu0 %v3506, 15
        %v3785 = vpop.permute.xlu0 %3784
        %3786 = vrot.lane.b32.xlu0 %v3507, 15
        %v3787 = vpop.permute.xlu0 %3786
        %3788 = vrot.lane.b32.xlu0 %v3508, 15
        %v3789 = vpop.permute.xlu0 %3788
        %3790 = vrot.lane.b32.xlu0 %v3509, 15
        %v3791 = vpop.permute.xlu0 %3790
        %3792 = vrot.lane.b32.xlu0 %v3510, 15
        %v3793 = vpop.permute.xlu0 %3792
        %3794 = vrot.lane.b32.xlu0 %v3511, 15
        %v3795 = vpop.permute.xlu0 %3794
        %3796 = vrot.lane.b32.xlu0 %v3512, 15
        %v3797 = vpop.permute.xlu0 %3796
        %3798 = vrot.lane.b32.xlu0 %v3513, 15
        %v3799 = vpop.permute.xlu0 %3798
        %3800 = vrot.lane.b32.xlu0 %v3514, 15
        %v3801 = vpop.permute.xlu0 %3800
        %3802 = vrot.lane.b32.xlu0 %v3515, 15
        %v3803 = vpop.permute.xlu0 %3802
        %3804 = vrot.lane.b32.xlu0 %v3516, 15
        %v3805 = vpop.permute.xlu0 %3804
        %3806 = vrot.lane.b32.xlu0 %v3517, 15
        %v3807 = vpop.permute.xlu0 %3806
        %3808 = vrot.lane.b32.xlu0 %v3518, 15
        %v3809 = vpop.permute.xlu0 %3808
        %3810 = vrot.lane.b32.xlu0 %v3519, 15
        %v3811 = vpop.permute.xlu0 %3810
        %3812 = vrot.lane.b32.xlu0 %v3520, 15
        %v3813 = vpop.permute.xlu0 %3812
        %3814 = vrot.lane.b32.xlu0 %v3521, 15
        %v3815 = vpop.permute.xlu0 %3814
        %3816 = vrot.lane.b32.xlu0 %v3522, 15
        %v3817 = vpop.permute.xlu0 %3816
        %3818 = vrot.lane.b32.xlu0 %v3523, 15
        %v3819 = vpop.permute.xlu0 %3818
        %3820 = vrot.lane.b32.xlu0 %v3524, 15
        %v3821 = vpop.permute.xlu0 %3820
        %3822 = vrot.lane.b32.xlu0 %v3525, 15
        %v3823 = vpop.permute.xlu0 %3822
        %3824 = vrot.lane.b32.xlu0 %v3526, 15
        %v3825 = vpop.permute.xlu0 %3824
        %3826 = vrot.lane.b32.xlu0 %v3527, 15
        %v3827 = vpop.permute.xlu0 %3826
        %3828 = vrot.lane.b32.xlu0 %v3528, 15
        %v3829 = vpop.permute.xlu0 %3828
        %3830 = vrot.lane.b32.xlu0 %v3529, 15
        %v3831 = vpop.permute.xlu0 %3830
        %3832 = vrot.lane.b32.xlu0 %v3530, 15
        %v3833 = vpop.permute.xlu0 %3832
        %3834 = vrot.lane.b32.xlu0 %v3531, 15
        %v3835 = vpop.permute.xlu0 %3834
        %3836 = vrot.lane.b32.xlu0 %v3532, 15
        %v3837 = vpop.permute.xlu0 %3836
        %3838 = vrot.lane.b32.xlu0 %v3533, 15
        %v3839 = vpop.permute.xlu0 %3838
        %3840 = vrot.lane.b32.xlu0 %v3534, 15
        %v3841 = vpop.permute.xlu0 %3840
        %3842 = vrot.lane.b32.xlu0 %v3535, 15
        %v3843 = vpop.permute.xlu0 %3842
        %3844 = vrot.lane.b32.xlu0 %v3536, 15
        %v3845 = vpop.permute.xlu0 %3844
        %3846 = vrot.lane.b32.xlu0 %v3537, 15
        %v3847 = vpop.permute.xlu0 %3846
        %3848 = vrot.lane.b32.xlu0 %v3538, 15
        %v3849 = vpop.permute.xlu0 %3848
        %3850 = vrot.lane.b32.xlu0 %v3539, 15
        %v3851 = vpop.permute.xlu0 %3850
        %3852 = vrot.lane.b32.xlu0 %v3540, 15
        %v3853 = vpop.permute.xlu0 %3852
        %3854 = vrot.lane.b32.xlu0 %v3541, 15
        %v3855 = vpop.permute.xlu0 %3854
        %3856 = vrot.lane.b32.xlu0 %v3542, 15
        %v3857 = vpop.permute.xlu0 %3856
        %3858 = vrot.lane.b32.xlu0 %v3543, 15
        %v3859 = vpop.permute.xlu0 %3858
        %3860 = vrot.lane.b32.xlu0 %v3544, 15
        %v3861 = vpop.permute.xlu0 %3860
        %3862 = vrot.lane.b32.xlu0 %v3545, 15
        %v3863 = vpop.permute.xlu0 %3862
        %3864 = vrot.lane.b32.xlu0 %v3546, 15
        %v3865 = vpop.permute.xlu0 %3864
        %3866 = vrot.lane.b32.xlu0 %v3547, 15
        %v3867 = vpop.permute.xlu0 %3866
        %3868 = vrot.lane.b32.xlu0 %v3548, 15
        %v3869 = vpop.permute.xlu0 %3868
        %3870 = vrot.lane.b32.xlu0 %v3549, 15
        %v3871 = vpop.permute.xlu0 %3870
        %3872 = vrot.lane.b32.xlu0 %v3550, 15
        %v3873 = vpop.permute.xlu0 %3872
        %3874 = vrot.lane.b32.xlu0 %v3551, 15
        %v3875 = vpop.permute.xlu0 %3874
        %3876 = vrot.lane.b32.xlu0 %v3552, 15
        %v3877 = vpop.permute.xlu0 %3876
        %3878 = vrot.lane.b32.xlu0 %v3553, 15
        %v3879 = vpop.permute.xlu0 %3878
        %3880 = vrot.lane.b32.xlu0 %v3554, 15
        %v3881 = vpop.permute.xlu0 %3880
        %3882 = vrot.lane.b32.xlu0 %v3555, 15
        %v3883 = vpop.permute.xlu0 %3882
        %3884 = vrot.lane.b32.xlu0 %v3556, 15
        %v3885 = vpop.permute.xlu0 %3884
        %3886 = vrot.lane.b32.xlu0 %v3557, 15
        %v3887 = vpop.permute.xlu0 %3886
        %3888 = vrot.lane.b32.xlu0 %v3558, 15
        %v3889 = vpop.permute.xlu0 %3888
        %3890 = vrot.lane.b32.xlu0 %v3559, 15
        %v3891 = vpop.permute.xlu0 %3890
        %3892 = vrot.lane.b32.xlu0 %v3560, 15
        %v3893 = vpop.permute.xlu0 %3892
        %3894 = vrot.lane.b32.xlu0 %v3561, 15
        %v3895 = vpop.permute.xlu0 %3894
        %3896 = vrot.lane.b32.xlu0 %v3562, 15
        %v3897 = vpop.permute.xlu0 %3896
        %3898 = vrot.lane.b32.xlu0 %v3563, 15
        %v3899 = vpop.permute.xlu0 %3898
        %3900 = vrot.lane.b32.xlu0 %v3564, 15
        %v3901 = vpop.permute.xlu0 %3900
        %3902 = vrot.lane.b32.xlu0 %v3565, 15
        %v3903 = vpop.permute.xlu0 %3902
        %3904 = vrot.lane.b32.xlu0 %v3566, 15
        %v3905 = vpop.permute.xlu0 %3904
        %3906 = vrot.lane.b32.xlu0 %v3567, 15
        %v3907 = vpop.permute.xlu0 %3906
        %3908 = vrot.lane.b32.xlu0 %v3568, 15
        %v3909 = vpop.permute.xlu0 %3908
        %3910 = vrot.lane.b32.xlu0 %v3569, 15
        %v3911 = vpop.permute.xlu0 %3910
        %3912 = vrot.lane.b32.xlu0 %v3570, 15
        %v3913 = vpop.permute.xlu0 %3912
        %3914 = vrot.lane.b32.xlu0 %v3571, 15
        %v3915 = vpop.permute.xlu0 %3914
        %3916 = vrot.lane.b32.xlu0 %v3572, 15
        %v3917 = vpop.permute.xlu0 %3916
        %3918 = vrot.lane.b32.xlu0 %v3573, 15
        %v3919 = vpop.permute.xlu0 %3918
        %3920 = vrot.lane.b32.xlu0 %v3574, 15
        %v3921 = vpop.permute.xlu0 %3920
        %3922 = vrot.lane.b32.xlu0 %v3575, 15
        %v3923 = vpop.permute.xlu0 %3922
        %4040 = vrot.lane.b32.xlu0 %v3468, 30
        %v4041 = vpop.permute.xlu0 %4040
        %4042 = vrot.lane.b32.xlu0 %v3469, 30
        %v4043 = vpop.permute.xlu0 %4042
        %4044 = vrot.lane.b32.xlu0 %v3470, 30
        %v4045 = vpop.permute.xlu0 %4044
        %4046 = vrot.lane.b32.xlu0 %v3471, 30
        %v4047 = vpop.permute.xlu0 %4046
        %4048 = vrot.lane.b32.xlu0 %v3472, 30
        %v4049 = vpop.permute.xlu0 %4048
        %4050 = vrot.lane.b32.xlu0 %v3473, 30
        %v4051 = vpop.permute.xlu0 %4050
        %4052 = vrot.lane.b32.xlu0 %v3474, 30
        %v4053 = vpop.permute.xlu0 %4052
        %4054 = vrot.lane.b32.xlu0 %v3475, 30
        %v4055 = vpop.permute.xlu0 %4054
        %4056 = vrot.lane.b32.xlu0 %v3476, 30
        %v4057 = vpop.permute.xlu0 %4056
        %4058 = vrot.lane.b32.xlu0 %v3477, 30
        %v4059 = vpop.permute.xlu0 %4058
        %4060 = vrot.lane.b32.xlu0 %v3478, 30
        %v4061 = vpop.permute.xlu0 %4060
        %4062 = vrot.lane.b32.xlu0 %v3479, 30
        %v4063 = vpop.permute.xlu0 %4062
        %4064 = vrot.lane.b32.xlu0 %v3480, 30
        %v4065 = vpop.permute.xlu0 %4064
        %4066 = vrot.lane.b32.xlu0 %v3481, 30
        %v4067 = vpop.permute.xlu0 %4066
        %4068 = vrot.lane.b32.xlu0 %v3482, 30
        %v4069 = vpop.permute.xlu0 %4068
        %4070 = vrot.lane.b32.xlu0 %v3483, 30
        %v4071 = vpop.permute.xlu0 %4070
        %4072 = vrot.lane.b32.xlu0 %v3484, 30
        %v4073 = vpop.permute.xlu0 %4072
        %4074 = vrot.lane.b32.xlu0 %v3485, 30
        %v4075 = vpop.permute.xlu0 %4074
        %4076 = vrot.lane.b32.xlu0 %v3486, 30
        %v4077 = vpop.permute.xlu0 %4076
        %4078 = vrot.lane.b32.xlu0 %v3487, 30
        %v4079 = vpop.permute.xlu0 %4078
        %4080 = vrot.lane.b32.xlu0 %v3488, 30
        %v4081 = vpop.permute.xlu0 %4080
        %4082 = vrot.lane.b32.xlu0 %v3489, 30
        %v4083 = vpop.permute.xlu0 %4082
        %4084 = vrot.lane.b32.xlu0 %v3490, 30
        %v4085 = vpop.permute.xlu0 %4084
        %4086 = vrot.lane.b32.xlu0 %v3491, 30
        %v4087 = vpop.permute.xlu0 %4086
        %4088 = vrot.lane.b32.xlu0 %v3492, 30
        %v4089 = vpop.permute.xlu0 %4088
        %4090 = vrot.lane.b32.xlu0 %v3493, 30
        %v4091 = vpop.permute.xlu0 %4090
        %4092 = vrot.lane.b32.xlu0 %v3494, 30
        %v4093 = vpop.permute.xlu0 %4092
        %4094 = vrot.lane.b32.xlu0 %v3495, 30
        %v4095 = vpop.permute.xlu0 %4094
        %4096 = vrot.lane.b32.xlu0 %v3496, 30
        %v4097 = vpop.permute.xlu0 %4096
        %4098 = vrot.lane.b32.xlu0 %v3497, 30
        %v4099 = vpop.permute.xlu0 %4098
        %4100 = vrot.lane.b32.xlu0 %v3498, 30
        %v4101 = vpop.permute.xlu0 %4100
        %4102 = vrot.lane.b32.xlu0 %v3499, 30
        %v4103 = vpop.permute.xlu0 %4102
        %4104 = vrot.lane.b32.xlu0 %v3500, 30
        %v4105 = vpop.permute.xlu0 %4104
        %4106 = vrot.lane.b32.xlu0 %v3501, 30
        %v4107 = vpop.permute.xlu0 %4106
        %4108 = vrot.lane.b32.xlu0 %v3502, 30
        %v4109 = vpop.permute.xlu0 %4108
        %4110 = vrot.lane.b32.xlu0 %v3503, 30
        %v4111 = vpop.permute.xlu0 %4110
        %4112 = vrot.lane.b32.xlu0 %v3504, 30
        %v4113 = vpop.permute.xlu0 %4112
        %4114 = vrot.lane.b32.xlu0 %v3505, 30
        %v4115 = vpop.permute.xlu0 %4114
        %4116 = vrot.lane.b32.xlu0 %v3506, 30
        %v4117 = vpop.permute.xlu0 %4116
        %4118 = vrot.lane.b32.xlu0 %v3507, 30
        %v4119 = vpop.permute.xlu0 %4118
        %4120 = vrot.lane.b32.xlu0 %v3508, 30
        %v4121 = vpop.permute.xlu0 %4120
        %4122 = vrot.lane.b32.xlu0 %v3509, 30
        %v4123 = vpop.permute.xlu0 %4122
        %4124 = vrot.lane.b32.xlu0 %v3510, 30
        %v4125 = vpop.permute.xlu0 %4124
        %4126 = vrot.lane.b32.xlu0 %v3511, 30
        %v4127 = vpop.permute.xlu0 %4126
        %4128 = vrot.lane.b32.xlu0 %v3512, 30
        %v4129 = vpop.permute.xlu0 %4128
        %4130 = vrot.lane.b32.xlu0 %v3513, 30
        %v4131 = vpop.permute.xlu0 %4130
        %4132 = vrot.lane.b32.xlu0 %v3514, 30
        %v4133 = vpop.permute.xlu0 %4132
        %4134 = vrot.lane.b32.xlu0 %v3515, 30
        %v4135 = vpop.permute.xlu0 %4134
        %4136 = vrot.lane.b32.xlu0 %v3516, 30
        %v4137 = vpop.permute.xlu0 %4136
        %4138 = vrot.lane.b32.xlu0 %v3517, 30
        %v4139 = vpop.permute.xlu0 %4138
        %4140 = vrot.lane.b32.xlu0 %v3518, 30
        %v4141 = vpop.permute.xlu0 %4140
        %4142 = vrot.lane.b32.xlu0 %v3519, 30
        %v4143 = vpop.permute.xlu0 %4142
        %4144 = vrot.lane.b32.xlu0 %v3520, 30
        %v4145 = vpop.permute.xlu0 %4144
        %4146 = vrot.lane.b32.xlu0 %v3521, 30
        %v4147 = vpop.permute.xlu0 %4146
        %4148 = vrot.lane.b32.xlu0 %v3522, 30
        %v4149 = vpop.permute.xlu0 %4148
        %4150 = vrot.lane.b32.xlu0 %v3523, 30
        %v4151 = vpop.permute.xlu0 %4150
        %4152 = vrot.lane.b32.xlu0 %v3524, 30
        %v4153 = vpop.permute.xlu0 %4152
        %4154 = vrot.lane.b32.xlu0 %v3525, 30
        %v4155 = vpop.permute.xlu0 %4154
        %4156 = vrot.lane.b32.xlu0 %v3526, 30
        %v4157 = vpop.permute.xlu0 %4156
        %4158 = vrot.lane.b32.xlu0 %v3527, 30
        %v4159 = vpop.permute.xlu0 %4158
        %4160 = vrot.lane.b32.xlu0 %v3528, 30
        %v4161 = vpop.permute.xlu0 %4160
        %4162 = vrot.lane.b32.xlu0 %v3529, 30
        %v4163 = vpop.permute.xlu0 %4162
        %4164 = vrot.lane.b32.xlu0 %v3530, 30
        %v4165 = vpop.permute.xlu0 %4164
        %4166 = vrot.lane.b32.xlu0 %v3531, 30
        %v4167 = vpop.permute.xlu0 %4166
        %4168 = vrot.lane.b32.xlu0 %v3532, 30
        %v4169 = vpop.permute.xlu0 %4168
        %4170 = vrot.lane.b32.xlu0 %v3533, 30
        %v4171 = vpop.permute.xlu0 %4170
        %4172 = vrot.lane.b32.xlu0 %v3534, 30
        %v4173 = vpop.permute.xlu0 %4172
        %4174 = vrot.lane.b32.xlu0 %v3535, 30
        %v4175 = vpop.permute.xlu0 %4174
        %4176 = vrot.lane.b32.xlu0 %v3536, 30
        %v4177 = vpop.permute.xlu0 %4176
        %4178 = vrot.lane.b32.xlu0 %v3537, 30
        %v4179 = vpop.permute.xlu0 %4178
        %4180 = vrot.lane.b32.xlu0 %v3538, 30
        %v4181 = vpop.permute.xlu0 %4180
        %4182 = vrot.lane.b32.xlu0 %v3539, 30
        %v4183 = vpop.permute.xlu0 %4182
        %4184 = vrot.lane.b32.xlu0 %v3540, 30
        %v4185 = vpop.permute.xlu0 %4184
        %4186 = vrot.lane.b32.xlu0 %v3541, 30
        %v4187 = vpop.permute.xlu0 %4186
        %4188 = vrot.lane.b32.xlu0 %v3542, 30
        %v4189 = vpop.permute.xlu0 %4188
        %4190 = vrot.lane.b32.xlu0 %v3543, 30
        %v4191 = vpop.permute.xlu0 %4190
        %4192 = vrot.lane.b32.xlu0 %v3544, 30
        %v4193 = vpop.permute.xlu0 %4192
        %4194 = vrot.lane.b32.xlu0 %v3545, 30
        %v4195 = vpop.permute.xlu0 %4194
        %4196 = vrot.lane.b32.xlu0 %v3546, 30
        %v4197 = vpop.permute.xlu0 %4196
        %4198 = vrot.lane.b32.xlu0 %v3547, 30
        %v4199 = vpop.permute.xlu0 %4198
        %4200 = vrot.lane.b32.xlu0 %v3548, 30
        %v4201 = vpop.permute.xlu0 %4200
        %4202 = vrot.lane.b32.xlu0 %v3549, 30
        %v4203 = vpop.permute.xlu0 %4202
        %4204 = vrot.lane.b32.xlu0 %v3550, 30
        %v4205 = vpop.permute.xlu0 %4204
        %4206 = vrot.lane.b32.xlu0 %v3551, 30
        %v4207 = vpop.permute.xlu0 %4206
        %4208 = vrot.lane.b32.xlu0 %v3552, 30
        %v4209 = vpop.permute.xlu0 %4208
        %4210 = vrot.lane.b32.xlu0 %v3553, 30
        %v4211 = vpop.permute.xlu0 %4210
        %4212 = vrot.lane.b32.xlu0 %v3554, 30
        %v4213 = vpop.permute.xlu0 %4212
        %4214 = vrot.lane.b32.xlu0 %v3555, 30
        %v4215 = vpop.permute.xlu0 %4214
        %4216 = vrot.lane.b32.xlu0 %v3556, 30
        %v4217 = vpop.permute.xlu0 %4216
        %4218 = vrot.lane.b32.xlu0 %v3557, 30
        %v4219 = vpop.permute.xlu0 %4218
        %4220 = vrot.lane.b32.xlu0 %v3558, 30
        %v4221 = vpop.permute.xlu0 %4220
        %4222 = vrot.lane.b32.xlu0 %v3559, 30
        %v4223 = vpop.permute.xlu0 %4222
        %4224 = vrot.lane.b32.xlu0 %v3560, 30
        %v4225 = vpop.permute.xlu0 %4224
        %4226 = vrot.lane.b32.xlu0 %v3561, 30
        %v4227 = vpop.permute.xlu0 %4226
        %4228 = vrot.lane.b32.xlu0 %v3562, 30
        %v4229 = vpop.permute.xlu0 %4228
        %4230 = vrot.lane.b32.xlu0 %v3563, 30
        %v4231 = vpop.permute.xlu0 %4230
        %4232 = vrot.lane.b32.xlu0 %v3564, 30
        %v4233 = vpop.permute.xlu0 %4232
        %4234 = vrot.lane.b32.xlu0 %v3565, 30
        %v4235 = vpop.permute.xlu0 %4234
        %4236 = vrot.lane.b32.xlu0 %v3566, 30
        %v4237 = vpop.permute.xlu0 %4236
        %4238 = vrot.lane.b32.xlu0 %v3567, 30
        %v4239 = vpop.permute.xlu0 %4238
        %4240 = vrot.lane.b32.xlu0 %v3568, 30
        %v4241 = vpop.permute.xlu0 %4240
        %4242 = vrot.lane.b32.xlu0 %v3569, 30
        %v4243 = vpop.permute.xlu0 %4242
        %4244 = vrot.lane.b32.xlu0 %v3570, 30
        %v4245 = vpop.permute.xlu0 %4244
        %4246 = vrot.lane.b32.xlu0 %v3571, 30
        %v4247 = vpop.permute.xlu0 %4246
        %4248 = vrot.lane.b32.xlu0 %v3572, 30
        %v4249 = vpop.permute.xlu0 %4248
        %4250 = vrot.lane.b32.xlu0 %v3573, 30
        %v4251 = vpop.permute.xlu0 %4250
        %4252 = vrot.lane.b32.xlu0 %v3574, 30
        %v4253 = vpop.permute.xlu0 %4252
        %4254 = vrot.lane.b32.xlu0 %v3575, 30
        %v4255 = vpop.permute.xlu0 %4254
        %4256 = vrot.lane.b32.xlu0 %v3576, 30
        %v4257 = vpop.permute.xlu0 %4256
        %4258 = vrot.lane.b32.xlu0 %v3577, 30
        %v4259 = vpop.permute.xlu0 %4258
        %4260 = vrot.lane.b32.xlu0 %v3578, 30
        %v4261 = vpop.permute.xlu0 %4260
        %4262 = vrot.lane.b32.xlu0 %v3579, 30
        %v4263 = vpop.permute.xlu0 %4262
        %4380 = vrot.lane.b32.xlu0 %v3472, 45
        %v4381 = vpop.permute.xlu0 %4380
        %4382 = vrot.lane.b32.xlu0 %v3473, 45
        %v4383 = vpop.permute.xlu0 %4382
        %4384 = vrot.lane.b32.xlu0 %v3474, 45
        %v4385 = vpop.permute.xlu0 %4384
        %4386 = vrot.lane.b32.xlu0 %v3475, 45
        %v4387 = vpop.permute.xlu0 %4386
        %4388 = vrot.lane.b32.xlu0 %v3476, 45
        %v4389 = vpop.permute.xlu0 %4388
        %4390 = vrot.lane.b32.xlu0 %v3477, 45
        %v4391 = vpop.permute.xlu0 %4390
        %4392 = vrot.lane.b32.xlu0 %v3478, 45
        %v4393 = vpop.permute.xlu0 %4392
        %4394 = vrot.lane.b32.xlu0 %v3479, 45
        %v4395 = vpop.permute.xlu0 %4394
        %4396 = vrot.lane.b32.xlu0 %v3480, 45
        %v4397 = vpop.permute.xlu0 %4396
        %4398 = vrot.lane.b32.xlu0 %v3481, 45
        %v4399 = vpop.permute.xlu0 %4398
        %4400 = vrot.lane.b32.xlu0 %v3482, 45
        %v4401 = vpop.permute.xlu0 %4400
        %4402 = vrot.lane.b32.xlu0 %v3483, 45
        %v4403 = vpop.permute.xlu0 %4402
        %4404 = vrot.lane.b32.xlu0 %v3484, 45
        %v4405 = vpop.permute.xlu0 %4404
        %4406 = vrot.lane.b32.xlu0 %v3485, 45
        %v4407 = vpop.permute.xlu0 %4406
        %4408 = vrot.lane.b32.xlu0 %v3486, 45
        %v4409 = vpop.permute.xlu0 %4408
        %4410 = vrot.lane.b32.xlu0 %v3487, 45
        %v4411 = vpop.permute.xlu0 %4410
        %4412 = vrot.lane.b32.xlu0 %v3488, 45
        %v4413 = vpop.permute.xlu0 %4412
        %4414 = vrot.lane.b32.xlu0 %v3489, 45
        %v4415 = vpop.permute.xlu0 %4414
        %4416 = vrot.lane.b32.xlu0 %v3490, 45
        %v4417 = vpop.permute.xlu0 %4416
        %4418 = vrot.lane.b32.xlu0 %v3491, 45
        %v4419 = vpop.permute.xlu0 %4418
        %4420 = vrot.lane.b32.xlu0 %v3492, 45
        %v4421 = vpop.permute.xlu0 %4420
        %4422 = vrot.lane.b32.xlu0 %v3493, 45
        %v4423 = vpop.permute.xlu0 %4422
        %4424 = vrot.lane.b32.xlu0 %v3494, 45
        %v4425 = vpop.permute.xlu0 %4424
        %4426 = vrot.lane.b32.xlu0 %v3495, 45
        %v4427 = vpop.permute.xlu0 %4426
        %4428 = vrot.lane.b32.xlu0 %v3496, 45
        %v4429 = vpop.permute.xlu0 %4428
        %4430 = vrot.lane.b32.xlu0 %v3497, 45
        %v4431 = vpop.permute.xlu0 %4430
        %4432 = vrot.lane.b32.xlu0 %v3498, 45
        %v4433 = vpop.permute.xlu0 %4432
        %4434 = vrot.lane.b32.xlu0 %v3499, 45
        %v4435 = vpop.permute.xlu0 %4434
        %4436 = vrot.lane.b32.xlu0 %v3500, 45
        %v4437 = vpop.permute.xlu0 %4436
        %4438 = vrot.lane.b32.xlu0 %v3501, 45
        %v4439 = vpop.permute.xlu0 %4438
        %4440 = vrot.lane.b32.xlu0 %v3502, 45
        %v4441 = vpop.permute.xlu0 %4440
        %4442 = vrot.lane.b32.xlu0 %v3503, 45
        %v4443 = vpop.permute.xlu0 %4442
        %4444 = vrot.lane.b32.xlu0 %v3504, 45
        %v4445 = vpop.permute.xlu0 %4444
        %4446 = vrot.lane.b32.xlu0 %v3505, 45
        %v4447 = vpop.permute.xlu0 %4446
        %4448 = vrot.lane.b32.xlu0 %v3506, 45
        %v4449 = vpop.permute.xlu0 %4448
        %4450 = vrot.lane.b32.xlu0 %v3507, 45
        %v4451 = vpop.permute.xlu0 %4450
        %4452 = vrot.lane.b32.xlu0 %v3508, 45
        %v4453 = vpop.permute.xlu0 %4452
        %4454 = vrot.lane.b32.xlu0 %v3509, 45
        %v4455 = vpop.permute.xlu0 %4454
        %4456 = vrot.lane.b32.xlu0 %v3510, 45
        %v4457 = vpop.permute.xlu0 %4456
        %4458 = vrot.lane.b32.xlu0 %v3511, 45
        %v4459 = vpop.permute.xlu0 %4458
        %4460 = vrot.lane.b32.xlu0 %v3512, 45
        %v4461 = vpop.permute.xlu0 %4460
        %4462 = vrot.lane.b32.xlu0 %v3513, 45
        %v4463 = vpop.permute.xlu0 %4462
        %4464 = vrot.lane.b32.xlu0 %v3514, 45
        %v4465 = vpop.permute.xlu0 %4464
        %4466 = vrot.lane.b32.xlu0 %v3515, 45
        %v4467 = vpop.permute.xlu0 %4466
        %4468 = vrot.lane.b32.xlu0 %v3516, 45
        %v4469 = vpop.permute.xlu0 %4468
        %4470 = vrot.lane.b32.xlu0 %v3517, 45
        %v4471 = vpop.permute.xlu0 %4470
        %4472 = vrot.lane.b32.xlu0 %v3518, 45
        %v4473 = vpop.permute.xlu0 %4472
        %4474 = vrot.lane.b32.xlu0 %v3519, 45
        %v4475 = vpop.permute.xlu0 %4474
        %4476 = vrot.lane.b32.xlu0 %v3520, 45
        %v4477 = vpop.permute.xlu0 %4476
        %4478 = vrot.lane.b32.xlu0 %v3521, 45
        %v4479 = vpop.permute.xlu0 %4478
        %4480 = vrot.lane.b32.xlu0 %v3522, 45
        %v4481 = vpop.permute.xlu0 %4480
        %4482 = vrot.lane.b32.xlu0 %v3523, 45
        %v4483 = vpop.permute.xlu0 %4482
        %4484 = vrot.lane.b32.xlu0 %v3524, 45
        %v4485 = vpop.permute.xlu0 %4484
        %4486 = vrot.lane.b32.xlu0 %v3525, 45
        %v4487 = vpop.permute.xlu0 %4486
        %4488 = vrot.lane.b32.xlu0 %v3526, 45
        %v4489 = vpop.permute.xlu0 %4488
        %4490 = vrot.lane.b32.xlu0 %v3527, 45
        %v4491 = vpop.permute.xlu0 %4490
        %4492 = vrot.lane.b32.xlu0 %v3528, 45
        %v4493 = vpop.permute.xlu0 %4492
        %4494 = vrot.lane.b32.xlu0 %v3529, 45
        %v4495 = vpop.permute.xlu0 %4494
        %4496 = vrot.lane.b32.xlu0 %v3530, 45
        %v4497 = vpop.permute.xlu0 %4496
        %4498 = vrot.lane.b32.xlu0 %v3531, 45
        %v4499 = vpop.permute.xlu0 %4498
        %4500 = vrot.lane.b32.xlu0 %v3532, 45
        %v4501 = vpop.permute.xlu0 %4500
        %4502 = vrot.lane.b32.xlu0 %v3533, 45
        %v4503 = vpop.permute.xlu0 %4502
        %4504 = vrot.lane.b32.xlu0 %v3534, 45
        %v4505 = vpop.permute.xlu0 %4504
        %4506 = vrot.lane.b32.xlu0 %v3535, 45
        %v4507 = vpop.permute.xlu0 %4506
        %4508 = vrot.lane.b32.xlu0 %v3536, 45
        %v4509 = vpop.permute.xlu0 %4508
        %4510 = vrot.lane.b32.xlu0 %v3537, 45
        %v4511 = vpop.permute.xlu0 %4510
        %4512 = vrot.lane.b32.xlu0 %v3538, 45
        %v4513 = vpop.permute.xlu0 %4512
        %4514 = vrot.lane.b32.xlu0 %v3539, 45
        %v4515 = vpop.permute.xlu0 %4514
        %4516 = vrot.lane.b32.xlu0 %v3540, 45
        %v4517 = vpop.permute.xlu0 %4516
        %4518 = vrot.lane.b32.xlu0 %v3541, 45
        %v4519 = vpop.permute.xlu0 %4518
        %4520 = vrot.lane.b32.xlu0 %v3542, 45
        %v4521 = vpop.permute.xlu0 %4520
        %4522 = vrot.lane.b32.xlu0 %v3543, 45
        %v4523 = vpop.permute.xlu0 %4522
        %4524 = vrot.lane.b32.xlu0 %v3544, 45
        %v4525 = vpop.permute.xlu0 %4524
        %4526 = vrot.lane.b32.xlu0 %v3545, 45
        %v4527 = vpop.permute.xlu0 %4526
        %4528 = vrot.lane.b32.xlu0 %v3546, 45
        %v4529 = vpop.permute.xlu0 %4528
        %4530 = vrot.lane.b32.xlu0 %v3547, 45
        %v4531 = vpop.permute.xlu0 %4530
        %4532 = vrot.lane.b32.xlu0 %v3548, 45
        %v4533 = vpop.permute.xlu0 %4532
        %4534 = vrot.lane.b32.xlu0 %v3549, 45
        %v4535 = vpop.permute.xlu0 %4534
        %4536 = vrot.lane.b32.xlu0 %v3550, 45
        %v4537 = vpop.permute.xlu0 %4536
        %4538 = vrot.lane.b32.xlu0 %v3551, 45
        %v4539 = vpop.permute.xlu0 %4538
        %4540 = vrot.lane.b32.xlu0 %v3552, 45
        %v4541 = vpop.permute.xlu0 %4540
        %4542 = vrot.lane.b32.xlu0 %v3553, 45
        %v4543 = vpop.permute.xlu0 %4542
        %4544 = vrot.lane.b32.xlu0 %v3554, 45
        %v4545 = vpop.permute.xlu0 %4544
        %4546 = vrot.lane.b32.xlu0 %v3555, 45
        %v4547 = vpop.permute.xlu0 %4546
        %4548 = vrot.lane.b32.xlu0 %v3556, 45
        %v4549 = vpop.permute.xlu0 %4548
        %4550 = vrot.lane.b32.xlu0 %v3557, 45
        %v4551 = vpop.permute.xlu0 %4550
        %4552 = vrot.lane.b32.xlu0 %v3558, 45
        %v4553 = vpop.permute.xlu0 %4552
        %4554 = vrot.lane.b32.xlu0 %v3559, 45
        %v4555 = vpop.permute.xlu0 %4554
        %4556 = vrot.lane.b32.xlu0 %v3560, 45
        %v4557 = vpop.permute.xlu0 %4556
        %4558 = vrot.lane.b32.xlu0 %v3561, 45
        %v4559 = vpop.permute.xlu0 %4558
        %4560 = vrot.lane.b32.xlu0 %v3562, 45
        %v4561 = vpop.permute.xlu0 %4560
        %4562 = vrot.lane.b32.xlu0 %v3563, 45
        %v4563 = vpop.permute.xlu0 %4562
        %4564 = vrot.lane.b32.xlu0 %v3564, 45
        %v4565 = vpop.permute.xlu0 %4564
        %4566 = vrot.lane.b32.xlu0 %v3565, 45
        %v4567 = vpop.permute.xlu0 %4566
        %4568 = vrot.lane.b32.xlu0 %v3566, 45
        %v4569 = vpop.permute.xlu0 %4568
        %4570 = vrot.lane.b32.xlu0 %v3567, 45
        %v4571 = vpop.permute.xlu0 %4570
        %4572 = vrot.lane.b32.xlu0 %v3568, 45
        %v4573 = vpop.permute.xlu0 %4572
        %4574 = vrot.lane.b32.xlu0 %v3569, 45
        %v4575 = vpop.permute.xlu0 %4574
        %4576 = vrot.lane.b32.xlu0 %v3570, 45
        %v4577 = vpop.permute.xlu0 %4576
        %4578 = vrot.lane.b32.xlu0 %v3571, 45
        %v4579 = vpop.permute.xlu0 %4578
        %4580 = vrot.lane.b32.xlu0 %v3572, 45
        %v4581 = vpop.permute.xlu0 %4580
        %4582 = vrot.lane.b32.xlu0 %v3573, 45
        %v4583 = vpop.permute.xlu0 %4582
        %4584 = vrot.lane.b32.xlu0 %v3574, 45
        %v4585 = vpop.permute.xlu0 %4584
        %4586 = vrot.lane.b32.xlu0 %v3575, 45
        %v4587 = vpop.permute.xlu0 %4586
        %4588 = vrot.lane.b32.xlu0 %v3576, 45
        %v4589 = vpop.permute.xlu0 %4588
        %4590 = vrot.lane.b32.xlu0 %v3577, 45
        %v4591 = vpop.permute.xlu0 %4590
        %4592 = vrot.lane.b32.xlu0 %v3578, 45
        %v4593 = vpop.permute.xlu0 %4592
        %4594 = vrot.lane.b32.xlu0 %v3579, 45
        %v4595 = vpop.permute.xlu0 %4594
        %4596 = vrot.lane.b32.xlu0 %v3580, 45
        %v4597 = vpop.permute.xlu0 %4596
        %4598 = vrot.lane.b32.xlu0 %v3581, 45
        %v4599 = vpop.permute.xlu0 %4598
        %4600 = vrot.lane.b32.xlu0 %v3582, 45
        %v4601 = vpop.permute.xlu0 %4600
        %4602 = vrot.lane.b32.xlu0 %v3583, 45
        %v4603 = vpop.permute.xlu0 %4602
        %4720 = vrot.lane.b32.xlu0 %v3476, 60
        %v4721 = vpop.permute.xlu0 %4720
        %4722 = vrot.lane.b32.xlu0 %v3477, 60
        %v4723 = vpop.permute.xlu0 %4722
        %4724 = vrot.lane.b32.xlu0 %v3478, 60
        %v4725 = vpop.permute.xlu0 %4724
        %4726 = vrot.lane.b32.xlu0 %v3479, 60
        %v4727 = vpop.permute.xlu0 %4726
        %4728 = vrot.lane.b32.xlu0 %v3480, 60
        %v4729 = vpop.permute.xlu0 %4728
        %4730 = vrot.lane.b32.xlu0 %v3481, 60
        %v4731 = vpop.permute.xlu0 %4730
        %4732 = vrot.lane.b32.xlu0 %v3482, 60
        %v4733 = vpop.permute.xlu0 %4732
        %4734 = vrot.lane.b32.xlu0 %v3483, 60
        %v4735 = vpop.permute.xlu0 %4734
        %4736 = vrot.lane.b32.xlu0 %v3484, 60
        %v4737 = vpop.permute.xlu0 %4736
        %4738 = vrot.lane.b32.xlu0 %v3485, 60
        %v4739 = vpop.permute.xlu0 %4738
        %4740 = vrot.lane.b32.xlu0 %v3486, 60
        %v4741 = vpop.permute.xlu0 %4740
        %4742 = vrot.lane.b32.xlu0 %v3487, 60
        %v4743 = vpop.permute.xlu0 %4742
        %4744 = vrot.lane.b32.xlu0 %v3488, 60
        %v4745 = vpop.permute.xlu0 %4744
        %4746 = vrot.lane.b32.xlu0 %v3489, 60
        %v4747 = vpop.permute.xlu0 %4746
        %4748 = vrot.lane.b32.xlu0 %v3490, 60
        %v4749 = vpop.permute.xlu0 %4748
        %4750 = vrot.lane.b32.xlu0 %v3491, 60
        %v4751 = vpop.permute.xlu0 %4750
        %4752 = vrot.lane.b32.xlu0 %v3492, 60
        %v4753 = vpop.permute.xlu0 %4752
        %4754 = vrot.lane.b32.xlu0 %v3493, 60
        %v4755 = vpop.permute.xlu0 %4754
        %4756 = vrot.lane.b32.xlu0 %v3494, 60
        %v4757 = vpop.permute.xlu0 %4756
        %4758 = vrot.lane.b32.xlu0 %v3495, 60
        %v4759 = vpop.permute.xlu0 %4758
        %4760 = vrot.lane.b32.xlu0 %v3496, 60
        %v4761 = vpop.permute.xlu0 %4760
        %4762 = vrot.lane.b32.xlu0 %v3497, 60
        %v4763 = vpop.permute.xlu0 %4762
        %4764 = vrot.lane.b32.xlu0 %v3498, 60
        %v4765 = vpop.permute.xlu0 %4764
        %4766 = vrot.lane.b32.xlu0 %v3499, 60
        %v4767 = vpop.permute.xlu0 %4766
        %4768 = vrot.lane.b32.xlu0 %v3500, 60
        %v4769 = vpop.permute.xlu0 %4768
        %4770 = vrot.lane.b32.xlu0 %v3501, 60
        %v4771 = vpop.permute.xlu0 %4770
        %4772 = vrot.lane.b32.xlu0 %v3502, 60
        %v4773 = vpop.permute.xlu0 %4772
        %4774 = vrot.lane.b32.xlu0 %v3503, 60
        %v4775 = vpop.permute.xlu0 %4774
        %4776 = vrot.lane.b32.xlu0 %v3504, 60
        %v4777 = vpop.permute.xlu0 %4776
        %4778 = vrot.lane.b32.xlu0 %v3505, 60
        %v4779 = vpop.permute.xlu0 %4778
        %4780 = vrot.lane.b32.xlu0 %v3506, 60
        %v4781 = vpop.permute.xlu0 %4780
        %4782 = vrot.lane.b32.xlu0 %v3507, 60
        %v4783 = vpop.permute.xlu0 %4782
        %4784 = vrot.lane.b32.xlu0 %v3508, 60
        %v4785 = vpop.permute.xlu0 %4784
        %4786 = vrot.lane.b32.xlu0 %v3509, 60
        %v4787 = vpop.permute.xlu0 %4786
        %4788 = vrot.lane.b32.xlu0 %v3510, 60
        %v4789 = vpop.permute.xlu0 %4788
        %4790 = vrot.lane.b32.xlu0 %v3511, 60
        %v4791 = vpop.permute.xlu0 %4790
        %4792 = vrot.lane.b32.xlu0 %v3512, 60
        %v4793 = vpop.permute.xlu0 %4792
        %4794 = vrot.lane.b32.xlu0 %v3513, 60
        %v4795 = vpop.permute.xlu0 %4794
        %4796 = vrot.lane.b32.xlu0 %v3514, 60
        %v4797 = vpop.permute.xlu0 %4796
        %4798 = vrot.lane.b32.xlu0 %v3515, 60
        %v4799 = vpop.permute.xlu0 %4798
        %4800 = vrot.lane.b32.xlu0 %v3516, 60
        %v4801 = vpop.permute.xlu0 %4800
        %4802 = vrot.lane.b32.xlu0 %v3517, 60
        %v4803 = vpop.permute.xlu0 %4802
        %4804 = vrot.lane.b32.xlu0 %v3518, 60
        %v4805 = vpop.permute.xlu0 %4804
        %4806 = vrot.lane.b32.xlu0 %v3519, 60
        %v4807 = vpop.permute.xlu0 %4806
        %4808 = vrot.lane.b32.xlu0 %v3520, 60
        %v4809 = vpop.permute.xlu0 %4808
        %4810 = vrot.lane.b32.xlu0 %v3521, 60
        %v4811 = vpop.permute.xlu0 %4810
        %4812 = vrot.lane.b32.xlu0 %v3522, 60
        %v4813 = vpop.permute.xlu0 %4812
        %4814 = vrot.lane.b32.xlu0 %v3523, 60
        %v4815 = vpop.permute.xlu0 %4814
        %4816 = vrot.lane.b32.xlu0 %v3524, 60
        %v4817 = vpop.permute.xlu0 %4816
        %4818 = vrot.lane.b32.xlu0 %v3525, 60
        %v4819 = vpop.permute.xlu0 %4818
        %4820 = vrot.lane.b32.xlu0 %v3526, 60
        %v4821 = vpop.permute.xlu0 %4820
        %4822 = vrot.lane.b32.xlu0 %v3527, 60
        %v4823 = vpop.permute.xlu0 %4822
        %4824 = vrot.lane.b32.xlu0 %v3528, 60
        %v4825 = vpop.permute.xlu0 %4824
        %4826 = vrot.lane.b32.xlu0 %v3529, 60
        %v4827 = vpop.permute.xlu0 %4826
        %4828 = vrot.lane.b32.xlu0 %v3530, 60
        %v4829 = vpop.permute.xlu0 %4828
        %4830 = vrot.lane.b32.xlu0 %v3531, 60
        %v4831 = vpop.permute.xlu0 %4830
        %4832 = vrot.lane.b32.xlu0 %v3532, 60
        %v4833 = vpop.permute.xlu0 %4832
        %4834 = vrot.lane.b32.xlu0 %v3533, 60
        %v4835 = vpop.permute.xlu0 %4834
        %4836 = vrot.lane.b32.xlu0 %v3534, 60
        %v4837 = vpop.permute.xlu0 %4836
        %4838 = vrot.lane.b32.xlu0 %v3535, 60
        %v4839 = vpop.permute.xlu0 %4838
        %4840 = vrot.lane.b32.xlu0 %v3536, 60
        %v4841 = vpop.permute.xlu0 %4840
        %4842 = vrot.lane.b32.xlu0 %v3537, 60
        %v4843 = vpop.permute.xlu0 %4842
        %4844 = vrot.lane.b32.xlu0 %v3538, 60
        %v4845 = vpop.permute.xlu0 %4844
        %4846 = vrot.lane.b32.xlu0 %v3539, 60
        %v4847 = vpop.permute.xlu0 %4846
        %4848 = vrot.lane.b32.xlu0 %v3540, 60
        %v4849 = vpop.permute.xlu0 %4848
        %4850 = vrot.lane.b32.xlu0 %v3541, 60
        %v4851 = vpop.permute.xlu0 %4850
        %4852 = vrot.lane.b32.xlu0 %v3542, 60
        %v4853 = vpop.permute.xlu0 %4852
        %4854 = vrot.lane.b32.xlu0 %v3543, 60
        %v4855 = vpop.permute.xlu0 %4854
        %4856 = vrot.lane.b32.xlu0 %v3544, 60
        %v4857 = vpop.permute.xlu0 %4856
        %4858 = vrot.lane.b32.xlu0 %v3545, 60
        %v4859 = vpop.permute.xlu0 %4858
        %4860 = vrot.lane.b32.xlu0 %v3546, 60
        %v4861 = vpop.permute.xlu0 %4860
        %4862 = vrot.lane.b32.xlu0 %v3547, 60
        %v4863 = vpop.permute.xlu0 %4862
        %4864 = vrot.lane.b32.xlu0 %v3548, 60
        %v4865 = vpop.permute.xlu0 %4864
        %4866 = vrot.lane.b32.xlu0 %v3549, 60
        %v4867 = vpop.permute.xlu0 %4866
        %4868 = vrot.lane.b32.xlu0 %v3550, 60
        %v4869 = vpop.permute.xlu0 %4868
        %4870 = vrot.lane.b32.xlu0 %v3551, 60
        %v4871 = vpop.permute.xlu0 %4870
        %4872 = vrot.lane.b32.xlu0 %v3552, 60
        %v4873 = vpop.permute.xlu0 %4872
        %4874 = vrot.lane.b32.xlu0 %v3553, 60
        %v4875 = vpop.permute.xlu0 %4874
        %4876 = vrot.lane.b32.xlu0 %v3554, 60
        %v4877 = vpop.permute.xlu0 %4876
        %4878 = vrot.lane.b32.xlu0 %v3555, 60
        %v4879 = vpop.permute.xlu0 %4878
        %4880 = vrot.lane.b32.xlu0 %v3556, 60
        %v4881 = vpop.permute.xlu0 %4880
        %4882 = vrot.lane.b32.xlu0 %v3557, 60
        %v4883 = vpop.permute.xlu0 %4882
        %4884 = vrot.lane.b32.xlu0 %v3558, 60
        %v4885 = vpop.permute.xlu0 %4884
        %4886 = vrot.lane.b32.xlu0 %v3559, 60
        %v4887 = vpop.permute.xlu0 %4886
        %4888 = vrot.lane.b32.xlu0 %v3560, 60
        %v4889 = vpop.permute.xlu0 %4888
        %4890 = vrot.lane.b32.xlu0 %v3561, 60
        %v4891 = vpop.permute.xlu0 %4890
        %4892 = vrot.lane.b32.xlu0 %v3562, 60
        %v4893 = vpop.permute.xlu0 %4892
        %4894 = vrot.lane.b32.xlu0 %v3563, 60
        %v4895 = vpop.permute.xlu0 %4894
        %4896 = vrot.lane.b32.xlu0 %v3564, 60
        %v4897 = vpop.permute.xlu0 %4896
        %4898 = vrot.lane.b32.xlu0 %v3565, 60
        %v4899 = vpop.permute.xlu0 %4898
        %4900 = vrot.lane.b32.xlu0 %v3566, 60
        %v4901 = vpop.permute.xlu0 %4900
        %4902 = vrot.lane.b32.xlu0 %v3567, 60
        %v4903 = vpop.permute.xlu0 %4902
        %4904 = vrot.lane.b32.xlu0 %v3568, 60
        %v4905 = vpop.permute.xlu0 %4904
        %4906 = vrot.lane.b32.xlu0 %v3569, 60
        %v4907 = vpop.permute.xlu0 %4906
        %4908 = vrot.lane.b32.xlu0 %v3570, 60
        %v4909 = vpop.permute.xlu0 %4908
        %4910 = vrot.lane.b32.xlu0 %v3571, 60
        %v4911 = vpop.permute.xlu0 %4910
        %4912 = vrot.lane.b32.xlu0 %v3572, 60
        %v4913 = vpop.permute.xlu0 %4912
        %4914 = vrot.lane.b32.xlu0 %v3573, 60
        %v4915 = vpop.permute.xlu0 %4914
        %4916 = vrot.lane.b32.xlu0 %v3574, 60
        %v4917 = vpop.permute.xlu0 %4916
        %4918 = vrot.lane.b32.xlu0 %v3575, 60
        %v4919 = vpop.permute.xlu0 %4918
        %4920 = vrot.lane.b32.xlu0 %v3576, 60
        %v4921 = vpop.permute.xlu0 %4920
        %4922 = vrot.lane.b32.xlu0 %v3577, 60
        %v4923 = vpop.permute.xlu0 %4922
        %4924 = vrot.lane.b32.xlu0 %v3578, 60
        %v4925 = vpop.permute.xlu0 %4924
        %4926 = vrot.lane.b32.xlu0 %v3579, 60
        %v4927 = vpop.permute.xlu0 %4926
        %4928 = vrot.lane.b32.xlu0 %v3580, 60
        %v4929 = vpop.permute.xlu0 %4928
        %4930 = vrot.lane.b32.xlu0 %v3581, 60
        %v4931 = vpop.permute.xlu0 %4930
        %4932 = vrot.lane.b32.xlu0 %v3582, 60
        %v4933 = vpop.permute.xlu0 %4932
        %4934 = vrot.lane.b32.xlu0 %v3583, 60
        %v4935 = vpop.permute.xlu0 %4934
        %4936 = vrot.lane.b32.xlu0 %v3584, 60
        %v4937 = vpop.permute.xlu0 %4936
        %4938 = vrot.lane.b32.xlu0 %v3585, 60
        %v4939 = vpop.permute.xlu0 %4938
        %4940 = vrot.lane.b32.xlu0 %v3586, 60
        %v4941 = vpop.permute.xlu0 %4940
        %4942 = vrot.lane.b32.xlu0 %v3587, 60
        %v4943 = vpop.permute.xlu0 %4942
        %vm5056 = vcmask 121856
        %v5057 = vsel %vm5056, %v3460, %v3701
        %v5058 = vsel %vm5056, %v3461, %v3703
        %v5059 = vsel %vm5056, %v3462, %v3705
        %v5060 = vsel %vm5056, %v3463, %v3707
        %v5061 = vsel %vm5056, %v3464, %v3709
        %v5062 = vsel %vm5056, %v3465, %v3711
        %v5063 = vsel %vm5056, %v3466, %v3713
        %v5064 = vsel %vm5056, %v3467, %v3715
        %v5065 = vsel %vm5056, %v3468, %v3717
        %v5066 = vsel %vm5056, %v3469, %v3719
        %v5067 = vsel %vm5056, %v3470, %v3721
        %v5068 = vsel %vm5056, %v3471, %v3723
        %v5069 = vsel %vm5056, %v3472, %v3725
        %v5070 = vsel %vm5056, %v3473, %v3727
        %v5071 = vsel %vm5056, %v3474, %v3729
        %v5072 = vsel %vm5056, %v3475, %v3731
        %v5073 = vsel %vm5056, %v3476, %v3733
        %v5074 = vsel %vm5056, %v3477, %v3735
        %v5075 = vsel %vm5056, %v3478, %v3737
        %v5076 = vsel %vm5056, %v3479, %v3739
        %v5077 = vsel %vm5056, %v3480, %v3741
        %v5078 = vsel %vm5056, %v3481, %v3743
        %v5079 = vsel %vm5056, %v3482, %v3745
        %v5080 = vsel %vm5056, %v3483, %v3747
        %v5081 = vsel %vm5056, %v3484, %v3749
        %v5082 = vsel %vm5056, %v3485, %v3751
        %v5083 = vsel %vm5056, %v3486, %v3753
        %v5084 = vsel %vm5056, %v3487, %v3755
        %v5085 = vsel %vm5056, %v3488, %v3757
        %v5086 = vsel %vm5056, %v3489, %v3759
        %v5087 = vsel %vm5056, %v3490, %v3761
        %v5088 = vsel %vm5056, %v3491, %v3763
        %v5089 = vsel %vm5056, %v3492, %v3765
        %v5090 = vsel %vm5056, %v3493, %v3767
        %v5091 = vsel %vm5056, %v3494, %v3769
        %v5092 = vsel %vm5056, %v3495, %v3771
        %v5093 = vsel %vm5056, %v3496, %v3773
        %v5094 = vsel %vm5056, %v3497, %v3775
        %v5095 = vsel %vm5056, %v3498, %v3777
        %v5096 = vsel %vm5056, %v3499, %v3779
        %v5097 = vsel %vm5056, %v3500, %v3781
        %v5098 = vsel %vm5056, %v3501, %v3783
        %v5099 = vsel %vm5056, %v3502, %v3785
        %v5100 = vsel %vm5056, %v3503, %v3787
        %v5101 = vsel %vm5056, %v3504, %v3789
        %v5102 = vsel %vm5056, %v3505, %v3791
        %v5103 = vsel %vm5056, %v3506, %v3793
        %v5104 = vsel %vm5056, %v3507, %v3795
        %v5105 = vsel %vm5056, %v3508, %v3797
        %v5106 = vsel %vm5056, %v3509, %v3799
        %v5107 = vsel %vm5056, %v3510, %v3801
        %v5108 = vsel %vm5056, %v3511, %v3803
        %v5109 = vsel %vm5056, %v3512, %v3805
        %v5110 = vsel %vm5056, %v3513, %v3807
        %v5111 = vsel %vm5056, %v3514, %v3809
        %v5112 = vsel %vm5056, %v3515, %v3811
        %v5113 = vsel %vm5056, %v3516, %v3813
        %v5114 = vsel %vm5056, %v3517, %v3815
        %v5115 = vsel %vm5056, %v3518, %v3817
        %v5116 = vsel %vm5056, %v3519, %v3819
        %v5117 = vsel %vm5056, %v3520, %v3821
        %v5118 = vsel %vm5056, %v3521, %v3823
        %v5119 = vsel %vm5056, %v3522, %v3825
        %v5120 = vsel %vm5056, %v3523, %v3827
        %v5121 = vsel %vm5056, %v3524, %v3829
        %v5122 = vsel %vm5056, %v3525, %v3831
        %v5123 = vsel %vm5056, %v3526, %v3833
        %v5124 = vsel %vm5056, %v3527, %v3835
        %v5125 = vsel %vm5056, %v3528, %v3837
        %v5126 = vsel %vm5056, %v3529, %v3839
        %v5127 = vsel %vm5056, %v3530, %v3841
        %v5128 = vsel %vm5056, %v3531, %v3843
        %v5129 = vsel %vm5056, %v3532, %v3845
        %v5130 = vsel %vm5056, %v3533, %v3847
        %v5131 = vsel %vm5056, %v3534, %v3849
        %v5132 = vsel %vm5056, %v3535, %v3851
        %v5133 = vsel %vm5056, %v3536, %v3853
        %v5134 = vsel %vm5056, %v3537, %v3855
        %v5135 = vsel %vm5056, %v3538, %v3857
        %v5136 = vsel %vm5056, %v3539, %v3859
        %v5137 = vsel %vm5056, %v3540, %v3861
        %v5138 = vsel %vm5056, %v3541, %v3863
        %v5139 = vsel %vm5056, %v3542, %v3865
        %v5140 = vsel %vm5056, %v3543, %v3867
        %v5141 = vsel %vm5056, %v3544, %v3869
        %v5142 = vsel %vm5056, %v3545, %v3871
        %v5143 = vsel %vm5056, %v3546, %v3873
        %v5144 = vsel %vm5056, %v3547, %v3875
        %v5145 = vsel %vm5056, %v3548, %v3877
        %v5146 = vsel %vm5056, %v3549, %v3879
        %v5147 = vsel %vm5056, %v3550, %v3881
        %v5148 = vsel %vm5056, %v3551, %v3883
        %v5149 = vsel %vm5056, %v3552, %v3885
        %v5150 = vsel %vm5056, %v3553, %v3887
        %v5151 = vsel %vm5056, %v3554, %v3889
        %v5152 = vsel %vm5056, %v3555, %v3891
        %v5153 = vsel %vm5056, %v3556, %v3893
        %v5154 = vsel %vm5056, %v3557, %v3895
        %v5155 = vsel %vm5056, %v3558, %v3897
        %v5156 = vsel %vm5056, %v3559, %v3899
        %v5157 = vsel %vm5056, %v3560, %v3901
        %v5158 = vsel %vm5056, %v3561, %v3903
        %v5159 = vsel %vm5056, %v3562, %v3905
        %v5160 = vsel %vm5056, %v3563, %v3907
        %v5161 = vsel %vm5056, %v3564, %v3909
        %v5162 = vsel %vm5056, %v3565, %v3911
        %v5163 = vsel %vm5056, %v3566, %v3913
        %v5164 = vsel %vm5056, %v3567, %v3915
        %v5165 = vsel %vm5056, %v3568, %v3917
        %v5166 = vsel %vm5056, %v3569, %v3919
        %v5167 = vsel %vm5056, %v3570, %v3921
        %v5168 = vsel %vm5056, %v3571, %v3923
        %vm5169 = vcmask 244736
        %v5170 = vsel %vm5169, %v5057, %v4041
        %v5171 = vsel %vm5169, %v5058, %v4043
        %v5172 = vsel %vm5169, %v5059, %v4045
        %v5173 = vsel %vm5169, %v5060, %v4047
        %v5174 = vsel %vm5169, %v5061, %v4049
        %v5175 = vsel %vm5169, %v5062, %v4051
        %v5176 = vsel %vm5169, %v5063, %v4053
        %v5177 = vsel %vm5169, %v5064, %v4055
        %v5178 = vsel %vm5169, %v5065, %v4057
        %v5179 = vsel %vm5169, %v5066, %v4059
        %v5180 = vsel %vm5169, %v5067, %v4061
        %v5181 = vsel %vm5169, %v5068, %v4063
        %v5182 = vsel %vm5169, %v5069, %v4065
        %v5183 = vsel %vm5169, %v5070, %v4067
        %v5184 = vsel %vm5169, %v5071, %v4069
        %v5185 = vsel %vm5169, %v5072, %v4071
        %v5186 = vsel %vm5169, %v5073, %v4073
        %v5187 = vsel %vm5169, %v5074, %v4075
        %v5188 = vsel %vm5169, %v5075, %v4077
        %v5189 = vsel %vm5169, %v5076, %v4079
        %v5190 = vsel %vm5169, %v5077, %v4081
        %v5191 = vsel %vm5169, %v5078, %v4083
        %v5192 = vsel %vm5169, %v5079, %v4085
        %v5193 = vsel %vm5169, %v5080, %v4087
        %v5194 = vsel %vm5169, %v5081, %v4089
        %v5195 = vsel %vm5169, %v5082, %v4091
        %v5196 = vsel %vm5169, %v5083, %v4093
        %v5197 = vsel %vm5169, %v5084, %v4095
        %v5198 = vsel %vm5169, %v5085, %v4097
        %v5199 = vsel %vm5169, %v5086, %v4099
        %v5200 = vsel %vm5169, %v5087, %v4101
        %v5201 = vsel %vm5169, %v5088, %v4103
        %v5202 = vsel %vm5169, %v5089, %v4105
        %v5203 = vsel %vm5169, %v5090, %v4107
        %v5204 = vsel %vm5169, %v5091, %v4109
        %v5205 = vsel %vm5169, %v5092, %v4111
        %v5206 = vsel %vm5169, %v5093, %v4113
        %v5207 = vsel %vm5169, %v5094, %v4115
        %v5208 = vsel %vm5169, %v5095, %v4117
        %v5209 = vsel %vm5169, %v5096, %v4119
        %v5210 = vsel %vm5169, %v5097, %v4121
        %v5211 = vsel %vm5169, %v5098, %v4123
        %v5212 = vsel %vm5169, %v5099, %v4125
        %v5213 = vsel %vm5169, %v5100, %v4127
        %v5214 = vsel %vm5169, %v5101, %v4129
        %v5215 = vsel %vm5169, %v5102, %v4131
        %v5216 = vsel %vm5169, %v5103, %v4133
        %v5217 = vsel %vm5169, %v5104, %v4135
        %v5218 = vsel %vm5169, %v5105, %v4137
        %v5219 = vsel %vm5169, %v5106, %v4139
        %v5220 = vsel %vm5169, %v5107, %v4141
        %v5221 = vsel %vm5169, %v5108, %v4143
        %v5222 = vsel %vm5169, %v5109, %v4145
        %v5223 = vsel %vm5169, %v5110, %v4147
        %v5224 = vsel %vm5169, %v5111, %v4149
        %v5225 = vsel %vm5169, %v5112, %v4151
        %v5226 = vsel %vm5169, %v5113, %v4153
        %v5227 = vsel %vm5169, %v5114, %v4155
        %v5228 = vsel %vm5169, %v5115, %v4157
        %v5229 = vsel %vm5169, %v5116, %v4159
        %v5230 = vsel %vm5169, %v5117, %v4161
        %v5231 = vsel %vm5169, %v5118, %v4163
        %v5232 = vsel %vm5169, %v5119, %v4165
        %v5233 = vsel %vm5169, %v5120, %v4167
        %v5234 = vsel %vm5169, %v5121, %v4169
        %v5235 = vsel %vm5169, %v5122, %v4171
        %v5236 = vsel %vm5169, %v5123, %v4173
        %v5237 = vsel %vm5169, %v5124, %v4175
        %v5238 = vsel %vm5169, %v5125, %v4177
        %v5239 = vsel %vm5169, %v5126, %v4179
        %v5240 = vsel %vm5169, %v5127, %v4181
        %v5241 = vsel %vm5169, %v5128, %v4183
        %v5242 = vsel %vm5169, %v5129, %v4185
        %v5243 = vsel %vm5169, %v5130, %v4187
        %v5244 = vsel %vm5169, %v5131, %v4189
        %v5245 = vsel %vm5169, %v5132, %v4191
        %v5246 = vsel %vm5169, %v5133, %v4193
        %v5247 = vsel %vm5169, %v5134, %v4195
        %v5248 = vsel %vm5169, %v5135, %v4197
        %v5249 = vsel %vm5169, %v5136, %v4199
        %v5250 = vsel %vm5169, %v5137, %v4201
        %v5251 = vsel %vm5169, %v5138, %v4203
        %v5252 = vsel %vm5169, %v5139, %v4205
        %v5253 = vsel %vm5169, %v5140, %v4207
        %v5254 = vsel %vm5169, %v5141, %v4209
        %v5255 = vsel %vm5169, %v5142, %v4211
        %v5256 = vsel %vm5169, %v5143, %v4213
        %v5257 = vsel %vm5169, %v5144, %v4215
        %v5258 = vsel %vm5169, %v5145, %v4217
        %v5259 = vsel %vm5169, %v5146, %v4219
        %v5260 = vsel %vm5169, %v5147, %v4221
        %v5261 = vsel %vm5169, %v5148, %v4223
        %v5262 = vsel %vm5169, %v5149, %v4225
        %v5263 = vsel %vm5169, %v5150, %v4227
        %v5264 = vsel %vm5169, %v5151, %v4229
        %v5265 = vsel %vm5169, %v5152, %v4231
        %v5266 = vsel %vm5169, %v5153, %v4233
        %v5267 = vsel %vm5169, %v5154, %v4235
        %v5268 = vsel %vm5169, %v5155, %v4237
        %v5269 = vsel %vm5169, %v5156, %v4239
        %v5270 = vsel %vm5169, %v5157, %v4241
        %v5271 = vsel %vm5169, %v5158, %v4243
        %v5272 = vsel %vm5169, %v5159, %v4245
        %v5273 = vsel %vm5169, %v5160, %v4247
        %v5274 = vsel %vm5169, %v5161, %v4249
        %v5275 = vsel %vm5169, %v5162, %v4251
        %v5276 = vsel %vm5169, %v5163, %v4253
        %v5277 = vsel %vm5169, %v5164, %v4255
        %v5278 = vsel %vm5169, %v5165, %v4257
        %v5279 = vsel %vm5169, %v5166, %v4259
        %v5280 = vsel %vm5169, %v5167, %v4261
        %v5281 = vsel %vm5169, %v5168, %v4263
        %vm5282 = vcmask 367616
        %v5283 = vsel %vm5282, %v5170, %v4381
        %v5284 = vsel %vm5282, %v5171, %v4383
        %v5285 = vsel %vm5282, %v5172, %v4385
        %v5286 = vsel %vm5282, %v5173, %v4387
        %v5287 = vsel %vm5282, %v5174, %v4389
        %v5288 = vsel %vm5282, %v5175, %v4391
        %v5289 = vsel %vm5282, %v5176, %v4393
        %v5290 = vsel %vm5282, %v5177, %v4395
        %v5291 = vsel %vm5282, %v5178, %v4397
        %v5292 = vsel %vm5282, %v5179, %v4399
        %v5293 = vsel %vm5282, %v5180, %v4401
        %v5294 = vsel %vm5282, %v5181, %v4403
        %v5295 = vsel %vm5282, %v5182, %v4405
        %v5296 = vsel %vm5282, %v5183, %v4407
        %v5297 = vsel %vm5282, %v5184, %v4409
        %v5298 = vsel %vm5282, %v5185, %v4411
        %v5299 = vsel %vm5282, %v5186, %v4413
        %v5300 = vsel %vm5282, %v5187, %v4415
        %v5301 = vsel %vm5282, %v5188, %v4417
        %v5302 = vsel %vm5282, %v5189, %v4419
        %v5303 = vsel %vm5282, %v5190, %v4421
        %v5304 = vsel %vm5282, %v5191, %v4423
        %v5305 = vsel %vm5282, %v5192, %v4425
        %v5306 = vsel %vm5282, %v5193, %v4427
        %v5307 = vsel %vm5282, %v5194, %v4429
        %v5308 = vsel %vm5282, %v5195, %v4431
        %v5309 = vsel %vm5282, %v5196, %v4433
        %v5310 = vsel %vm5282, %v5197, %v4435
        %v5311 = vsel %vm5282, %v5198, %v4437
        %v5312 = vsel %vm5282, %v5199, %v4439
        %v5313 = vsel %vm5282, %v5200, %v4441
        %v5314 = vsel %vm5282, %v5201, %v4443
        %v5315 = vsel %vm5282, %v5202, %v4445
        %v5316 = vsel %vm5282, %v5203, %v4447
        %v5317 = vsel %vm5282, %v5204, %v4449
        %v5318 = vsel %vm5282, %v5205, %v4451
        %v5319 = vsel %vm5282, %v5206, %v4453
        %v5320 = vsel %vm5282, %v5207, %v4455
        %v5321 = vsel %vm5282, %v5208, %v4457
        %v5322 = vsel %vm5282, %v5209, %v4459
        %v5323 = vsel %vm5282, %v5210, %v4461
        %v5324 = vsel %vm5282, %v5211, %v4463
        %v5325 = vsel %vm5282, %v5212, %v4465
        %v5326 = vsel %vm5282, %v5213, %v4467
        %v5327 = vsel %vm5282, %v5214, %v4469
        %v5328 = vsel %vm5282, %v5215, %v4471
        %v5329 = vsel %vm5282, %v5216, %v4473
        %v5330 = vsel %vm5282, %v5217, %v4475
        %v5331 = vsel %vm5282, %v5218, %v4477
        %v5332 = vsel %vm5282, %v5219, %v4479
        %v5333 = vsel %vm5282, %v5220, %v4481
        %v5334 = vsel %vm5282, %v5221, %v4483
        %v5335 = vsel %vm5282, %v5222, %v4485
        %v5336 = vsel %vm5282, %v5223, %v4487
        %v5337 = vsel %vm5282, %v5224, %v4489
        %v5338 = vsel %vm5282, %v5225, %v4491
        %v5339 = vsel %vm5282, %v5226, %v4493
        %v5340 = vsel %vm5282, %v5227, %v4495
        %v5341 = vsel %vm5282, %v5228, %v4497
        %v5342 = vsel %vm5282, %v5229, %v4499
        %v5343 = vsel %vm5282, %v5230, %v4501
        %v5344 = vsel %vm5282, %v5231, %v4503
        %v5345 = vsel %vm5282, %v5232, %v4505
        %v5346 = vsel %vm5282, %v5233, %v4507
        %v5347 = vsel %vm5282, %v5234, %v4509
        %v5348 = vsel %vm5282, %v5235, %v4511
        %v5349 = vsel %vm5282, %v5236, %v4513
        %v5350 = vsel %vm5282, %v5237, %v4515
        %v5351 = vsel %vm5282, %v5238, %v4517
        %v5352 = vsel %vm5282, %v5239, %v4519
        %v5353 = vsel %vm5282, %v5240, %v4521
        %v5354 = vsel %vm5282, %v5241, %v4523
        %v5355 = vsel %vm5282, %v5242, %v4525
        %v5356 = vsel %vm5282, %v5243, %v4527
        %v5357 = vsel %vm5282, %v5244, %v4529
        %v5358 = vsel %vm5282, %v5245, %v4531
        %v5359 = vsel %vm5282, %v5246, %v4533
        %v5360 = vsel %vm5282, %v5247, %v4535
        %v5361 = vsel %vm5282, %v5248, %v4537
        %v5362 = vsel %vm5282, %v5249, %v4539
        %v5363 = vsel %vm5282, %v5250, %v4541
        %v5364 = vsel %vm5282, %v5251, %v4543
        %v5365 = vsel %vm5282, %v5252, %v4545
        %v5366 = vsel %vm5282, %v5253, %v4547
        %v5367 = vsel %vm5282, %v5254, %v4549
        %v5368 = vsel %vm5282, %v5255, %v4551
        %v5369 = vsel %vm5282, %v5256, %v4553
        %v5370 = vsel %vm5282, %v5257, %v4555
        %v5371 = vsel %vm5282, %v5258, %v4557
        %v5372 = vsel %vm5282, %v5259, %v4559
        %v5373 = vsel %vm5282, %v5260, %v4561
        %v5374 = vsel %vm5282, %v5261, %v4563
        %v5375 = vsel %vm5282, %v5262, %v4565
        %v5376 = vsel %vm5282, %v5263, %v4567
        %v5377 = vsel %vm5282, %v5264, %v4569
        %v5378 = vsel %vm5282, %v5265, %v4571
        %v5379 = vsel %vm5282, %v5266, %v4573
        %v5380 = vsel %vm5282, %v5267, %v4575
        %v5381 = vsel %vm5282, %v5268, %v4577
        %v5382 = vsel %vm5282, %v5269, %v4579
        %v5383 = vsel %vm5282, %v5270, %v4581
        %v5384 = vsel %vm5282, %v5271, %v4583
        %v5385 = vsel %vm5282, %v5272, %v4585
        %v5386 = vsel %vm5282, %v5273, %v4587
        %v5387 = vsel %vm5282, %v5274, %v4589
        %v5388 = vsel %vm5282, %v5275, %v4591
        %v5389 = vsel %vm5282, %v5276, %v4593
        %v5390 = vsel %vm5282, %v5277, %v4595
        %v5391 = vsel %vm5282, %v5278, %v4597
        %v5392 = vsel %vm5282, %v5279, %v4599
        %v5393 = vsel %vm5282, %v5280, %v4601
        %v5394 = vsel %vm5282, %v5281, %v4603
        %vm5395 = vcmask 490496
        %v5396 = vsel %vm5395, %v5283, %v4721
        %v5397 = vsel %vm5395, %v5284, %v4723
        %v5398 = vsel %vm5395, %v5285, %v4725
        %v5399 = vsel %vm5395, %v5286, %v4727
        %v5400 = vsel %vm5395, %v5287, %v4729
        %v5401 = vsel %vm5395, %v5288, %v4731
        %v5402 = vsel %vm5395, %v5289, %v4733
        %v5403 = vsel %vm5395, %v5290, %v4735
        %v5404 = vsel %vm5395, %v5291, %v4737
        %v5405 = vsel %vm5395, %v5292, %v4739
        %v5406 = vsel %vm5395, %v5293, %v4741
        %v5407 = vsel %vm5395, %v5294, %v4743
        %v5408 = vsel %vm5395, %v5295, %v4745
        %v5409 = vsel %vm5395, %v5296, %v4747
        %v5410 = vsel %vm5395, %v5297, %v4749
        %v5411 = vsel %vm5395, %v5298, %v4751
        %v5412 = vsel %vm5395, %v5299, %v4753
        %v5413 = vsel %vm5395, %v5300, %v4755
        %v5414 = vsel %vm5395, %v5301, %v4757
        %v5415 = vsel %vm5395, %v5302, %v4759
        %v5416 = vsel %vm5395, %v5303, %v4761
        %v5417 = vsel %vm5395, %v5304, %v4763
        %v5418 = vsel %vm5395, %v5305, %v4765
        %v5419 = vsel %vm5395, %v5306, %v4767
        %v5420 = vsel %vm5395, %v5307, %v4769
        %v5421 = vsel %vm5395, %v5308, %v4771
        %v5422 = vsel %vm5395, %v5309, %v4773
        %v5423 = vsel %vm5395, %v5310, %v4775
        %v5424 = vsel %vm5395, %v5311, %v4777
        %v5425 = vsel %vm5395, %v5312, %v4779
        %v5426 = vsel %vm5395, %v5313, %v4781
        %v5427 = vsel %vm5395, %v5314, %v4783
        %v5428 = vsel %vm5395, %v5315, %v4785
        %v5429 = vsel %vm5395, %v5316, %v4787
        %v5430 = vsel %vm5395, %v5317, %v4789
        %v5431 = vsel %vm5395, %v5318, %v4791
        %v5432 = vsel %vm5395, %v5319, %v4793
        %v5433 = vsel %vm5395, %v5320, %v4795
        %v5434 = vsel %vm5395, %v5321, %v4797
        %v5435 = vsel %vm5395, %v5322, %v4799
        %v5436 = vsel %vm5395, %v5323, %v4801
        %v5437 = vsel %vm5395, %v5324, %v4803
        %v5438 = vsel %vm5395, %v5325, %v4805
        %v5439 = vsel %vm5395, %v5326, %v4807
        %v5440 = vsel %vm5395, %v5327, %v4809
        %v5441 = vsel %vm5395, %v5328, %v4811
        %v5442 = vsel %vm5395, %v5329, %v4813
        %v5443 = vsel %vm5395, %v5330, %v4815
        %v5444 = vsel %vm5395, %v5331, %v4817
        %v5445 = vsel %vm5395, %v5332, %v4819
        %v5446 = vsel %vm5395, %v5333, %v4821
        %v5447 = vsel %vm5395, %v5334, %v4823
        %v5448 = vsel %vm5395, %v5335, %v4825
        %v5449 = vsel %vm5395, %v5336, %v4827
        %v5450 = vsel %vm5395, %v5337, %v4829
        %v5451 = vsel %vm5395, %v5338, %v4831
        %v5452 = vsel %vm5395, %v5339, %v4833
        %v5453 = vsel %vm5395, %v5340, %v4835
        %v5454 = vsel %vm5395, %v5341, %v4837
        %v5455 = vsel %vm5395, %v5342, %v4839
        %v5456 = vsel %vm5395, %v5343, %v4841
        %v5457 = vsel %vm5395, %v5344, %v4843
        %v5458 = vsel %vm5395, %v5345, %v4845
        %v5459 = vsel %vm5395, %v5346, %v4847
        %v5460 = vsel %vm5395, %v5347, %v4849
        %v5461 = vsel %vm5395, %v5348, %v4851
        %v5462 = vsel %vm5395, %v5349, %v4853
        %v5463 = vsel %vm5395, %v5350, %v4855
        %v5464 = vsel %vm5395, %v5351, %v4857
        %v5465 = vsel %vm5395, %v5352, %v4859
        %v5466 = vsel %vm5395, %v5353, %v4861
        %v5467 = vsel %vm5395, %v5354, %v4863
        %v5468 = vsel %vm5395, %v5355, %v4865
        %v5469 = vsel %vm5395, %v5356, %v4867
        %v5470 = vsel %vm5395, %v5357, %v4869
        %v5471 = vsel %vm5395, %v5358, %v4871
        %v5472 = vsel %vm5395, %v5359, %v4873
        %v5473 = vsel %vm5395, %v5360, %v4875
        %v5474 = vsel %vm5395, %v5361, %v4877
        %v5475 = vsel %vm5395, %v5362, %v4879
        %v5476 = vsel %vm5395, %v5363, %v4881
        %v5477 = vsel %vm5395, %v5364, %v4883
        %v5478 = vsel %vm5395, %v5365, %v4885
        %v5479 = vsel %vm5395, %v5366, %v4887
        %v5480 = vsel %vm5395, %v5367, %v4889
        %v5481 = vsel %vm5395, %v5368, %v4891
        %v5482 = vsel %vm5395, %v5369, %v4893
        %v5483 = vsel %vm5395, %v5370, %v4895
        %v5484 = vsel %vm5395, %v5371, %v4897
        %v5485 = vsel %vm5395, %v5372, %v4899
        %v5486 = vsel %vm5395, %v5373, %v4901
        %v5487 = vsel %vm5395, %v5374, %v4903
        %v5488 = vsel %vm5395, %v5375, %v4905
        %v5489 = vsel %vm5395, %v5376, %v4907
        %v5490 = vsel %vm5395, %v5377, %v4909
        %v5491 = vsel %vm5395, %v5378, %v4911
        %v5492 = vsel %vm5395, %v5379, %v4913
        %v5493 = vsel %vm5395, %v5380, %v4915
        %v5494 = vsel %vm5395, %v5381, %v4917
        %v5495 = vsel %vm5395, %v5382, %v4919
        %v5496 = vsel %vm5395, %v5383, %v4921
        %v5497 = vsel %vm5395, %v5384, %v4923
        %v5498 = vsel %vm5395, %v5385, %v4925
        %v5499 = vsel %vm5395, %v5386, %v4927
        %v5500 = vsel %vm5395, %v5387, %v4929
        %v5501 = vsel %vm5395, %v5388, %v4931
        %v5502 = vsel %vm5395, %v5389, %v4933
        %v5503 = vsel %vm5395, %v5390, %v4935
        %v5504 = vsel %vm5395, %v5391, %v4937
        %v5505 = vsel %vm5395, %v5392, %v4939
        %v5506 = vsel %vm5395, %v5393, %v4941
        %v5507 = vsel %vm5395, %v5394, %v4943
        %v5508 = vld [vmem:[%s1] sm:$0xff]
        %v5509 = vld [vmem:[%s1 + $0x8] sm:$0xff]
        %v5510 = vld [vmem:[%s1 + $0x10] sm:$0xff]
        %v5511 = vld [vmem:[%s1 + $0x18] sm:$0xff]
        %v5512 = vld [vmem:[%s1 + $0x20] sm:$0xff]
        %v5513 = vld [vmem:[%s1 + $0x28] sm:$0xff]
        %v5514 = vld [vmem:[%s1 + $0x30] sm:$0xff]
        %v5515 = vld [vmem:[%s1 + $0x38] sm:$0xff]
        %v5516 = vld [vmem:[%s1 + $0x40] sm:$0xff]
        %v5517 = vld [vmem:[%s1 + $0x48] sm:$0x7]
        %v5518 = vld [vmem:[%s2] sm:$0x1]
        %v5520 = vlaneseq
        %v5521 = vshrl.u32 %v5520, 7
        %v5522 = vsub.s32 0, %v5521
        %v5523 = vrot.slane %v5518, %v5522
        %vm5525 = vcmask 613376
        %v5527 = vsel %vm5525, %v5396, 0
        %v5530 = vsel %vm5525, %v5397, 0
        %v5533 = vsel %vm5525, %v5398, 0
        %v5536 = vsel %vm5525, %v5399, 0
        %v5539 = vsel %vm5525, %v5400, 0
        %v5542 = vsel %vm5525, %v5401, 0
        %v5545 = vsel %vm5525, %v5402, 0
        %v5548 = vsel %vm5525, %v5403, 0
        %v5551 = vsel %vm5525, %v5404, 0
        %v5554 = vsel %vm5525, %v5405, 0
        %v5557 = vsel %vm5525, %v5406, 0
        %v5560 = vsel %vm5525, %v5407, 0
        %v5563 = vsel %vm5525, %v5408, 0
        %v5566 = vsel %vm5525, %v5409, 0
        %v5569 = vsel %vm5525, %v5410, 0
        %v5572 = vsel %vm5525, %v5411, 0
        %v5575 = vsel %vm5525, %v5412, 0
        %v5578 = vsel %vm5525, %v5413, 0
        %v5581 = vsel %vm5525, %v5414, 0
        %v5584 = vsel %vm5525, %v5415, 0
        %v5587 = vsel %vm5525, %v5416, 0
        %v5590 = vsel %vm5525, %v5417, 0
        %v5593 = vsel %vm5525, %v5418, 0
        %v5596 = vsel %vm5525, %v5419, 0
        %v5599 = vsel %vm5525, %v5420, 0
        %v5602 = vsel %vm5525, %v5421, 0
        %v5605 = vsel %vm5525, %v5422, 0
        %v5608 = vsel %vm5525, %v5423, 0
        %v5611 = vsel %vm5525, %v5424, 0
        %v5614 = vsel %vm5525, %v5425, 0
        %v5617 = vsel %vm5525, %v5426, 0
        %v5620 = vsel %vm5525, %v5427, 0
        %v5623 = vsel %vm5525, %v5428, 0
        %v5626 = vsel %vm5525, %v5429, 0
        %v5629 = vsel %vm5525, %v5430, 0
        %v5632 = vsel %vm5525, %v5431, 0
        %v5635 = vsel %vm5525, %v5432, 0
        %v5638 = vsel %vm5525, %v5433, 0
        %v5641 = vsel %vm5525, %v5434, 0
        %v5644 = vsel %vm5525, %v5435, 0
        %v5647 = vsel %vm5525, %v5436, 0
        %v5650 = vsel %vm5525, %v5437, 0
        %v5653 = vsel %vm5525, %v5438, 0
        %v5656 = vsel %vm5525, %v5439, 0
        %v5659 = vsel %vm5525, %v5440, 0
        %v5662 = vsel %vm5525, %v5441, 0
        %v5665 = vsel %vm5525, %v5442, 0
        %v5668 = vsel %vm5525, %v5443, 0
        %v5671 = vsel %vm5525, %v5444, 0
        %v5674 = vsel %vm5525, %v5445, 0
        %v5677 = vsel %vm5525, %v5446, 0
        %v5680 = vsel %vm5525, %v5447, 0
        %v5683 = vsel %vm5525, %v5448, 0
        %v5686 = vsel %vm5525, %v5449, 0
        %v5689 = vsel %vm5525, %v5450, 0
        %v5692 = vsel %vm5525, %v5451, 0
        %v5695 = vsel %vm5525, %v5452, 0
        %v5698 = vsel %vm5525, %v5453, 0
        %v5701 = vsel %vm5525, %v5454, 0
        %v5704 = vsel %vm5525, %v5455, 0
        %v5707 = vsel %vm5525, %v5456, 0
        %v5710 = vsel %vm5525, %v5457, 0
        %v5713 = vsel %vm5525, %v5458, 0
        %v5716 = vsel %vm5525, %v5459, 0
        %v5719 = vsel %vm5525, %v5460, 0
        %v5722 = vsel %vm5525, %v5461, 0
        %v5725 = vsel %vm5525, %v5462, 0
        %v5728 = vsel %vm5525, %v5463, 0
        %v5731 = vsel %vm5525, %v5464, 0
        %v5734 = vsel %vm5525, %v5465, 0
        %v5737 = vsel %vm5525, %v5466, 0
        %v5740 = vsel %vm5525, %v5467, 0
        %v5743 = vsel %vm5525, %v5468, 0
        %v5746 = vsel %vm5525, %v5469, 0
        %v5749 = vsel %vm5525, %v5470, 0
        %v5752 = vsel %vm5525, %v5471, 0
        %v5755 = vsel %vm5525, %v5472, 0
        %v5758 = vsel %vm5525, %v5473, 0
        %v5761 = vsel %vm5525, %v5474, 0
        %v5764 = vsel %vm5525, %v5475, 0
        %v5767 = vsel %vm5525, %v5476, 0
        %v5770 = vsel %vm5525, %v5477, 0
        %v5773 = vsel %vm5525, %v5478, 0
        %v5776 = vsel %vm5525, %v5479, 0
        %v5779 = vsel %vm5525, %v5480, 0
        %v5782 = vsel %vm5525, %v5481, 0
        %v5785 = vsel %vm5525, %v5482, 0
        %v5788 = vsel %vm5525, %v5483, 0
        %v5791 = vsel %vm5525, %v5484, 0
        %v5794 = vsel %vm5525, %v5485, 0
        %v5797 = vsel %vm5525, %v5486, 0
        %v5800 = vsel %vm5525, %v5487, 0
        %v5803 = vsel %vm5525, %v5488, 0
        %v5806 = vsel %vm5525, %v5489, 0
        %v5809 = vsel %vm5525, %v5490, 0
        %v5812 = vsel %vm5525, %v5491, 0
        %v5815 = vsel %vm5525, %v5492, 0
        %v5818 = vsel %vm5525, %v5493, 0
        %v5821 = vsel %vm5525, %v5494, 0
        %v5824 = vsel %vm5525, %v5495, 0
        %v5827 = vsel %vm5525, %v5496, 0
        %v5830 = vsel %vm5525, %v5497, 0
        %v5833 = vsel %vm5525, %v5498, 0
        %v5836 = vsel %vm5525, %v5499, 0
        %v5839 = vsel %vm5525, %v5500, 0
        %v5842 = vsel %vm5525, %v5501, 0
        %v5845 = vsel %vm5525, %v5502, 0
        %v5848 = vsel %vm5525, %v5503, 0
        %v5851 = vsel %vm5525, %v5504, 0
        %v5854 = vsel %vm5525, %v5505, 0
        %v5857 = vsel %vm5525, %v5506, 0
        %v5860 = vsel %vm5525, %v5507, 0
        %vm5862 = vcmask 1042432
        %v5864 = vsel %vm5862, %v5517, 0
        %5866 = vmatprep.subr.mxu0 0.0
        %5867 = vmatpush1.msra.mxu0 %v5508
        %5868 = vmatprep.subr.mxu0 0.0
        %5869 = vmatpush1.msra.mxu0 %v5509
        %5870 = vmatprep.subr.mxu0 0.0
        %5871 = vmatpush1.msra.mxu0 %v5510
        %5872 = vmatprep.subr.mxu0 0.0
        %5873 = vmatpush1.msra.mxu0 %v5511
        %5874 = vmatprep.subr.mxu0 0.0
        %5875 = vmatpush1.msra.mxu0 %v5512
        %5876 = vmatprep.subr.mxu0 0.0
        %5877 = vmatpush1.msra.mxu0 %v5513
        %5878 = vmatprep.subr.mxu0 0.0
        %5879 = vmatpush1.msra.mxu0 %v5514
        %5880 = vmatprep.subr.mxu0 0.0
        %5881 = vmatpush1.msra.mxu0 %v5515
        %5882 = vmatprep.subr.mxu0 0.0
        %5883 = vmatpush1.msra.mxu0 %v5516
        %5884 = vmatprep.subr.mxu0 0.0
        %5885 = vmatpush1.msra.mxu0 %v5864
        %5886 = vmatprep.subr.mxu0 0.0
        %5887 = vmatpush1.msra.mxu0 0.0
        %5888 = vmatprep.subr.mxu0 0.0
        %5889 = vmatpush1.msra.mxu0 0.0
        %5890 = vmatprep.subr.mxu0 0.0
        %5891 = vmatpush1.msra.mxu0 0.0
        %5892 = vmatprep.subr.mxu0 0.0
        %5893 = vmatpush1.msra.mxu0 0.0
        %5894 = vmatprep.subr.mxu0 0.0
        %5895 = vmatpush1.msra.mxu0 0.0
        %5896 = vmatprep.subr.mxu0 0.0
        %5897 = vmatpush1.msra.mxu0 0.0
        %5898 = vmatprep.subr.mxu0 0.0
        %5899 = vmatpush1.msra.mxu0 0.0
        %5900 = vmatprep.subr.mxu0 0.0
        %5901 = vmatpush1.msra.mxu0 0.0
        %5902 = vmatprep.subr.mxu0 0.0
        %5903 = vmatpush1.msra.mxu0 0.0
        %5904 = vmatprep.subr.mxu0 0.0
        %5905 = vmatpush1.msra.mxu0 0.0
        %5906 = vmatprep.subr.mxu0 0.0
        %5907 = vmatpush1.msra.mxu0 0.0
        %5908 = vmatprep.subr.mxu0 0.0
        %5909 = vmatpush1.msra.mxu0 0.0
        %5910 = vmatprep.subr.mxu0 0.0
        %5911 = vmatpush1.msra.mxu0 0.0
        %5912 = vmatprep.subr.mxu0 0.0
        %5913 = vmatpush1.msra.mxu0 0.0
        %5914 = vmatprep.subr.mxu0 0.0
        %5915 = vmatpush1.msra.mxu0 0.0
        %5916 = vmatprep.subr.mxu0 0.0
        %5917 = vmatpush1.msra.mxu0 0.0
        %5918 = vmatprep.subr.mxu0 0.0
        %5919 = vmatpush1.msra.mxu0 0.0
        %5920 = vmatprep.subr.mxu0 0.0
        %5921 = vmatpush1.msra.mxu0 0.0
        %5922 = vmatprep.subr.mxu0 0.0
        %5923 = vmatpush1.msra.mxu0 0.0
        %5924 = vmatprep.subr.mxu0 0.0
        %5925 = vmatpush1.msra.mxu0 0.0
        %5926 = vmatprep.subr.mxu0 0.0
        %5927 = vmatpush1.msra.mxu0 0.0
        %5928 = vmatprep.subr.mxu0 0.0
        %5929 = vmatpush1.msra.mxu0 0.0
        %5930 = vmatprep.mubr.f32.mxu0 0.0
        %5931 = vmatmul.mubr.f32.gmra.mrb[0].mxu0 %v5527
        %v5932 = vpop.f32.mrb[0].mxu0
        %v5933 = vadd.f32 %v5523, %v5932
        %v5934 = vpop.f32.mrb[0].mxu0
        %5935 = vmatprep.mubr.f32.mxu0 0.0
        %5936 = vmatmul.mubr.f32.gmra.mrb[0].mxu0 %v5530
        %v5937 = vpop.f32.mrb[0].mxu0
        %v5938 = vadd.f32 %v5523, %v5937
        %v5939 = vpop.f32.mrb[0].mxu0
        %5940 = vmatprep.mubr.f32.mxu0 0.0
        %5941 = vmatmul.mubr.f32.gmra.mrb[0].mxu0 %v5533
        %v5942 = vpop.f32.mrb[0].mxu0
        %v5943 = vadd.f32 %v5523, %v5942
        %v5944 = vpop.f32.mrb[0].mxu0
        %5945 = vmatprep.mubr.f32.mxu0 0.0
        %5946 = vmatmul.mubr.f32.gmra.mrb[0].mxu0 %v5536
        %v5947 = vpop.f32.mrb[0].mxu0
        %v5948 = vadd.f32 %v5523, %v5947
        %v5949 = vpop.f32.mrb[0].mxu0
        %5950 = vmatprep.mubr.f32.mxu0 0.0
        %5951 = vmatmul.mubr.f32.gmra.mrb[0].mxu0 %v5539
        %v5952 = vpop.f32.mrb[0].mxu0
        %v5953 = vadd.f32 %v5523, %v5952
        %v5954 = vpop.f32.mrb[0].mxu0
        %5955 = vmatprep.mubr.f32.mxu0 0.0
        %5956 = vmatmul.mubr.f32.gmra.mrb[0].mxu0 %v5542
        %v5957 = vpop.f32.mrb[0].mxu0
        %v5958 = vadd.f32 %v5523, %v5957
        %v5959 = vpop.f32.mrb[0].mxu0
        %5960 = vmatprep.mubr.f32.mxu0 0.0
        %5961 = vmatmul.mubr.f32.gmra.mrb[0].mxu0 %v5545
        %v5962 = vpop.f32.mrb[0].mxu0
        %v5963 = vadd.f32 %v5523, %v5962
        %v5964 = vpop.f32.mrb[0].mxu0
        %5965 = vmatprep.mubr.f32.mxu0 0.0
        %5966 = vmatmul.mubr.f32.gmra.mrb[0].mxu0 %v5548
        %v5967 = vpop.f32.mrb[0].mxu0
        %v5968 = vadd.f32 %v5523, %v5967
        %v5969 = vpop.f32.mrb[0].mxu0
        %5970 = vmatprep.mubr.f32.mxu0 0.0
        %5971 = vmatmul.mubr.f32.gmra.mrb[0].mxu0 %v5551
        %v5972 = vpop.f32.mrb[0].mxu0
        %v5973 = vadd.f32 %v5523, %v5972
        %v5974 = vpop.f32.mrb[0].mxu0
        %5975 = vmatprep.mubr.f32.mxu0 0.0
        %5976 = vmatmul.mubr.f32.gmra.mrb[0].mxu0 %v5554
        %v5977 = vpop.f32.mrb[0].mxu0
        %v5978 = vadd.f32 %v5523, %v5977
        %v5979 = vpop.f32.mrb[0].mxu0
        %5980 = vmatprep.mubr.f32.mxu0 0.0
        %5981 = vmatmul.mubr.f32.gmra.mrb[0].mxu0 %v5557
        %v5982 = vpop.f32.mrb[0].mxu0
        %v5983 = vadd.f32 %v5523, %v5982
        %v5984 = vpop.f32.mrb[0].mxu0
        %5985 = vmatprep.mubr.f32.mxu0 0.0
        %5986 = vmatmul.mubr.f32.gmra.mrb[0].mxu0 %v5560
        %v5987 = vpop.f32.mrb[0].mxu0
        %v5988 = vadd.f32 %v5523, %v5987
        %v5989 = vpop.f32.mrb[0].mxu0
        %5990 = vmatprep.mubr.f32.mxu0 0.0
        %5991 = vmatmul.mubr.f32.gmra.mrb[0].mxu0 %v5563
        %v5992 = vpop.f32.mrb[0].mxu0
        %v5993 = vadd.f32 %v5523, %v5992
        %v5994 = vpop.f32.mrb[0].mxu0
        %5995 = vmatprep.mubr.f32.mxu0 0.0
        %5996 = vmatmul.mubr.f32.gmra.mrb[0].mxu0 %v5566
        %v5997 = vpop.f32.mrb[0].mxu0
        %v5998 = vadd.f32 %v5523, %v5997
        %v5999 = vpop.f32.mrb[0].mxu0
        %6000 = vmatprep.mubr.f32.mxu0 0.0
        %6001 = vmatmul.mubr.f32.gmra.mrb[0].mxu0 %v5569
        %v6002 = vpop.f32.mrb[0].mxu0
        %v6003 = vadd.f32 %v5523, %v6002
        %v6004 = vpop.f32.mrb[0].mxu0
        %6005 = vmatprep.mubr.f32.mxu0 0.0
        %6006 = vmatmul.mubr.f32.gmra.mrb[0].mxu0 %v5572
        %v6007 = vpop.f32.mrb[0].mxu0
        %v6008 = vadd.f32 %v5523, %v6007
        %v6009 = vpop.f32.mrb[0].mxu0
        %6010 = vmatprep.mubr.f32.mxu0 0.0
        %6011 = vmatmul.mubr.f32.gmra.mrb[0].mxu0 %v5575
        %v6012 = vpop.f32.mrb[0].mxu0
        %v6013 = vadd.f32 %v5523, %v6012
        %v6014 = vpop.f32.mrb[0].mxu0
        %6015 = vmatprep.mubr.f32.mxu0 0.0
        %6016 = vmatmul.mubr.f32.gmra.mrb[0].mxu0 %v5578
        %v6017 = vpop.f32.mrb[0].mxu0
        %v6018 = vadd.f32 %v5523, %v6017
        %v6019 = vpop.f32.mrb[0].mxu0
        %6020 = vmatprep.mubr.f32.mxu0 0.0
        %6021 = vmatmul.mubr.f32.gmra.mrb[0].mxu0 %v5581
        %v6022 = vpop.f32.mrb[0].mxu0
        %v6023 = vadd.f32 %v5523, %v6022
        %v6024 = vpop.f32.mrb[0].mxu0
        %6025 = vmatprep.mubr.f32.mxu0 0.0
        %6026 = vmatmul.mubr.f32.gmra.mrb[0].mxu0 %v5584
        %v6027 = vpop.f32.mrb[0].mxu0
        %v6028 = vadd.f32 %v5523, %v6027
        %v6029 = vpop.f32.mrb[0].mxu0
        %6030 = vmatprep.mubr.f32.mxu0 0.0
        %6031 = vmatmul.mubr.f32.gmra.mrb[0].mxu0 %v5587
        %v6032 = vpop.f32.mrb[0].mxu0
        %v6033 = vadd.f32 %v5523, %v6032
        %v6034 = vpop.f32.mrb[0].mxu0
        %6035 = vmatprep.mubr.f32.mxu0 0.0
        %6036 = vmatmul.mubr.f32.gmra.mrb[0].mxu0 %v5590
        %v6037 = vpop.f32.mrb[0].mxu0
        %v6038 = vadd.f32 %v5523, %v6037
        %v6039 = vpop.f32.mrb[0].mxu0
        %6040 = vmatprep.mubr.f32.mxu0 0.0
        %6041 = vmatmul.mubr.f32.gmra.mrb[0].mxu0 %v5593
        %v6042 = vpop.f32.mrb[0].mxu0
        %v6043 = vadd.f32 %v5523, %v6042
        %v6044 = vpop.f32.mrb[0].mxu0
        %6045 = vmatprep.mubr.f32.mxu0 0.0
        %6046 = vmatmul.mubr.f32.gmra.mrb[0].mxu0 %v5596
        %v6047 = vpop.f32.mrb[0].mxu0
        %v6048 = vadd.f32 %v5523, %v6047
        %v6049 = vpop.f32.mrb[0].mxu0
        %6050 = vmatprep.mubr.f32.mxu0 0.0
        %6051 = vmatmul.mubr.f32.gmra.mrb[0].mxu0 %v5599
        %v6052 = vpop.f32.mrb[0].mxu0
        %v6053 = vadd.f32 %v5523, %v6052
        %v6054 = vpop.f32.mrb[0].mxu0
        %6055 = vmatprep.mubr.f32.mxu0 0.0
        %6056 = vmatmul.mubr.f32.gmra.mrb[0].mxu0 %v5602
        %v6057 = vpop.f32.mrb[0].mxu0
        %v6058 = vadd.f32 %v5523, %v6057
        %v6059 = vpop.f32.mrb[0].mxu0
        %6060 = vmatprep.mubr.f32.mxu0 0.0
        %6061 = vmatmul.mubr.f32.gmra.mrb[0].mxu0 %v5605
        %v6062 = vpop.f32.mrb[0].mxu0
        %v6063 = vadd.f32 %v5523, %v6062
        %v6064 = vpop.f32.mrb[0].mxu0
        %6065 = vmatprep.mubr.f32.mxu0 0.0
        %6066 = vmatmul.mubr.f32.gmra.mrb[0].mxu0 %v5608
        %v6067 = vpop.f32.mrb[0].mxu0
        %v6068 = vadd.f32 %v5523, %v6067
        %v6069 = vpop.f32.mrb[0].mxu0
        %6070 = vmatprep.mubr.f32.mxu0 0.0
        %6071 = vmatmul.mubr.f32.gmra.mrb[0].mxu0 %v5611
        %v6072 = vpop.f32.mrb[0].mxu0
        %v6073 = vadd.f32 %v5523, %v6072
        %v6074 = vpop.f32.mrb[0].mxu0
        %6075 = vmatprep.mubr.f32.mxu0 0.0
        %6076 = vmatmul.mubr.f32.gmra.mrb[0].mxu0 %v5614
        %v6077 = vpop.f32.mrb[0].mxu0
        %v6078 = vadd.f32 %v5523, %v6077
        %v6079 = vpop.f32.mrb[0].mxu0
        %6080 = vmatprep.mubr.f32.mxu0 0.0
        %6081 = vmatmul.mubr.f32.gmra.mrb[0].mxu0 %v5617
        %v6082 = vpop.f32.mrb[0].mxu0
        %v6083 = vadd.f32 %v5523, %v6082
        %v6084 = vpop.f32.mrb[0].mxu0
        %6085 = vmatprep.mubr.f32.mxu0 0.0
        %6086 = vmatmul.mubr.f32.gmra.mrb[0].mxu0 %v5620
        %v6087 = vpop.f32.mrb[0].mxu0
        %v6088 = vadd.f32 %v5523, %v6087
        %v6089 = vpop.f32.mrb[0].mxu0
        %6090 = vmatprep.mubr.f32.mxu0 0.0
        %6091 = vmatmul.mubr.f32.gmra.mrb[0].mxu0 %v5623
        %v6092 = vpop.f32.mrb[0].mxu0
        %v6093 = vadd.f32 %v5523, %v6092
        %v6094 = vpop.f32.mrb[0].mxu0
        %6095 = vmatprep.mubr.f32.mxu0 0.0
        %6096 = vmatmul.mubr.f32.gmra.mrb[0].mxu0 %v5626
        %v6097 = vpop.f32.mrb[0].mxu0
        %v6098 = vadd.f32 %v5523, %v6097
        %v6099 = vpop.f32.mrb[0].mxu0
        %6100 = vmatprep.mubr.f32.mxu0 0.0
        %6101 = vmatmul.mubr.f32.gmra.mrb[0].mxu0 %v5629
        %v6102 = vpop.f32.mrb[0].mxu0
        %v6103 = vadd.f32 %v5523, %v6102
        %v6104 = vpop.f32.mrb[0].mxu0
        %6105 = vmatprep.mubr.f32.mxu0 0.0
        %6106 = vmatmul.mubr.f32.gmra.mrb[0].mxu0 %v5632
        %v6107 = vpop.f32.mrb[0].mxu0
        %v6108 = vadd.f32 %v5523, %v6107
        %v6109 = vpop.f32.mrb[0].mxu0
        %6110 = vmatprep.mubr.f32.mxu0 0.0
        %6111 = vmatmul.mubr.f32.gmra.mrb[0].mxu0 %v5635
        %v6112 = vpop.f32.mrb[0].mxu0
        %v6113 = vadd.f32 %v5523, %v6112
        %v6114 = vpop.f32.mrb[0].mxu0
        %6115 = vmatprep.mubr.f32.mxu0 0.0
        %6116 = vmatmul.mubr.f32.gmra.mrb[0].mxu0 %v5638
        %v6117 = vpop.f32.mrb[0].mxu0
        %v6118 = vadd.f32 %v5523, %v6117
        %v6119 = vpop.f32.mrb[0].mxu0
        %6120 = vmatprep.mubr.f32.mxu0 0.0
        %6121 = vmatmul.mubr.f32.gmra.mrb[0].mxu0 %v5641
        %v6122 = vpop.f32.mrb[0].mxu0
        %v6123 = vadd.f32 %v5523, %v6122
        %v6124 = vpop.f32.mrb[0].mxu0
        %6125 = vmatprep.mubr.f32.mxu0 0.0
        %6126 = vmatmul.mubr.f32.gmra.mrb[0].mxu0 %v5644
        %v6127 = vpop.f32.mrb[0].mxu0
        %v6128 = vadd.f32 %v5523, %v6127
        %v6129 = vpop.f32.mrb[0].mxu0
        %6130 = vmatprep.mubr.f32.mxu0 0.0
        %6131 = vmatmul.mubr.f32.gmra.mrb[0].mxu0 %v5647
        %v6132 = vpop.f32.mrb[0].mxu0
        %v6133 = vadd.f32 %v5523, %v6132
        %v6134 = vpop.f32.mrb[0].mxu0
        %6135 = vmatprep.mubr.f32.mxu0 0.0
        %6136 = vmatmul.mubr.f32.gmra.mrb[0].mxu0 %v5650
        %v6137 = vpop.f32.mrb[0].mxu0
        %v6138 = vadd.f32 %v5523, %v6137
        %v6139 = vpop.f32.mrb[0].mxu0
        %6140 = vmatprep.mubr.f32.mxu0 0.0
        %6141 = vmatmul.mubr.f32.gmra.mrb[0].mxu0 %v5653
        %v6142 = vpop.f32.mrb[0].mxu0
        %v6143 = vadd.f32 %v5523, %v6142
        %v6144 = vpop.f32.mrb[0].mxu0
        %6145 = vmatprep.mubr.f32.mxu0 0.0
        %6146 = vmatmul.mubr.f32.gmra.mrb[0].mxu0 %v5656
        %v6147 = vpop.f32.mrb[0].mxu0
        %v6148 = vadd.f32 %v5523, %v6147
        %v6149 = vpop.f32.mrb[0].mxu0
        %6150 = vmatprep.mubr.f32.mxu0 0.0
        %6151 = vmatmul.mubr.f32.gmra.mrb[0].mxu0 %v5659
        %v6152 = vpop.f32.mrb[0].mxu0
        %v6153 = vadd.f32 %v5523, %v6152
        %v6154 = vpop.f32.mrb[0].mxu0
        %6155 = vmatprep.mubr.f32.mxu0 0.0
        %6156 = vmatmul.mubr.f32.gmra.mrb[0].mxu0 %v5662
        %v6157 = vpop.f32.mrb[0].mxu0
        %v6158 = vadd.f32 %v5523, %v6157
        %v6159 = vpop.f32.mrb[0].mxu0
        %6160 = vmatprep.mubr.f32.mxu0 0.0
        %6161 = vmatmul.mubr.f32.gmra.mrb[0].mxu0 %v5665
        %v6162 = vpop.f32.mrb[0].mxu0
        %v6163 = vadd.f32 %v5523, %v6162
        %v6164 = vpop.f32.mrb[0].mxu0
        %6165 = vmatprep.mubr.f32.mxu0 0.0
        %6166 = vmatmul.mubr.f32.gmra.mrb[0].mxu0 %v5668
        %v6167 = vpop.f32.mrb[0].mxu0
        %v6168 = vadd.f32 %v5523, %v6167
        %v6169 = vpop.f32.mrb[0].mxu0
        %6170 = vmatprep.mubr.f32.mxu0 0.0
        %6171 = vmatmul.mubr.f32.gmra.mrb[0].mxu0 %v5671
        %v6172 = vpop.f32.mrb[0].mxu0
        %v6173 = vadd.f32 %v5523, %v6172
        %v6174 = vpop.f32.mrb[0].mxu0
        %6175 = vmatprep.mubr.f32.mxu0 0.0
        %6176 = vmatmul.mubr.f32.gmra.mrb[0].mxu0 %v5674
        %v6177 = vpop.f32.mrb[0].mxu0
        %v6178 = vadd.f32 %v5523, %v6177
        %v6179 = vpop.f32.mrb[0].mxu0
        %6180 = vmatprep.mubr.f32.mxu0 0.0
        %6181 = vmatmul.mubr.f32.gmra.mrb[0].mxu0 %v5677
        %v6182 = vpop.f32.mrb[0].mxu0
        %v6183 = vadd.f32 %v5523, %v6182
        %v6184 = vpop.f32.mrb[0].mxu0
        %6185 = vmatprep.mubr.f32.mxu0 0.0
        %6186 = vmatmul.mubr.f32.gmra.mrb[0].mxu0 %v5680
        %v6187 = vpop.f32.mrb[0].mxu0
        %v6188 = vadd.f32 %v5523, %v6187
        %v6189 = vpop.f32.mrb[0].mxu0
        %6190 = vmatprep.mubr.f32.mxu0 0.0
        %6191 = vmatmul.mubr.f32.gmra.mrb[0].mxu0 %v5683
        %v6192 = vpop.f32.mrb[0].mxu0
        %v6193 = vadd.f32 %v5523, %v6192
        %v6194 = vpop.f32.mrb[0].mxu0
        %6195 = vmatprep.mubr.f32.mxu0 0.0
        %6196 = vmatmul.mubr.f32.gmra.mrb[0].mxu0 %v5686
        %v6197 = vpop.f32.mrb[0].mxu0
        %v6198 = vadd.f32 %v5523, %v6197
        %v6199 = vpop.f32.mrb[0].mxu0
        %6200 = vmatprep.mubr.f32.mxu0 0.0
        %6201 = vmatmul.mubr.f32.gmra.mrb[0].mxu0 %v5689
        %v6202 = vpop.f32.mrb[0].mxu0
        %v6203 = vadd.f32 %v5523, %v6202
        %v6204 = vpop.f32.mrb[0].mxu0
        %6205 = vmatprep.mubr.f32.mxu0 0.0
        %6206 = vmatmul.mubr.f32.gmra.mrb[0].mxu0 %v5692
        %v6207 = vpop.f32.mrb[0].mxu0
        %v6208 = vadd.f32 %v5523, %v6207
        %v6209 = vpop.f32.mrb[0].mxu0
        %6210 = vmatprep.mubr.f32.mxu0 0.0
        %6211 = vmatmul.mubr.f32.gmra.mrb[0].mxu0 %v5695
        %v6212 = vpop.f32.mrb[0].mxu0
        %v6213 = vadd.f32 %v5523, %v6212
        %v6214 = vpop.f32.mrb[0].mxu0
        %6215 = vmatprep.mubr.f32.mxu0 0.0
        %6216 = vmatmul.mubr.f32.gmra.mrb[0].mxu0 %v5698
        %v6217 = vpop.f32.mrb[0].mxu0
        %v6218 = vadd.f32 %v5523, %v6217
        %v6219 = vpop.f32.mrb[0].mxu0
        %6220 = vmatprep.mubr.f32.mxu0 0.0
        %6221 = vmatmul.mubr.f32.gmra.mrb[0].mxu0 %v5701
        %v6222 = vpop.f32.mrb[0].mxu0
        %v6223 = vadd.f32 %v5523, %v6222
        %v6224 = vpop.f32.mrb[0].mxu0
        %6225 = vmatprep.mubr.f32.mxu0 0.0
        %6226 = vmatmul.mubr.f32.gmra.mrb[0].mxu0 %v5704
        %v6227 = vpop.f32.mrb[0].mxu0
        %v6228 = vadd.f32 %v5523, %v6227
        %v6229 = vpop.f32.mrb[0].mxu0
        %6230 = vmatprep.mubr.f32.mxu0 0.0
        %6231 = vmatmul.mubr.f32.gmra.mrb[0].mxu0 %v5707
        %v6232 = vpop.f32.mrb[0].mxu0
        %v6233 = vadd.f32 %v5523, %v6232
        %v6234 = vpop.f32.mrb[0].mxu0
        %6235 = vmatprep.mubr.f32.mxu0 0.0
        %6236 = vmatmul.mubr.f32.gmra.mrb[0].mxu0 %v5710
        %v6237 = vpop.f32.mrb[0].mxu0
        %v6238 = vadd.f32 %v5523, %v6237
        %v6239 = vpop.f32.mrb[0].mxu0
        %6240 = vmatprep.mubr.f32.mxu0 0.0
        %6241 = vmatmul.mubr.f32.gmra.mrb[0].mxu0 %v5713
        %v6242 = vpop.f32.mrb[0].mxu0
        %v6243 = vadd.f32 %v5523, %v6242
        %v6244 = vpop.f32.mrb[0].mxu0
        %6245 = vmatprep.mubr.f32.mxu0 0.0
        %6246 = vmatmul.mubr.f32.gmra.mrb[0].mxu0 %v5716
        %v6247 = vpop.f32.mrb[0].mxu0
        %v6248 = vadd.f32 %v5523, %v6247
        %v6249 = vpop.f32.mrb[0].mxu0
        %6250 = vmatprep.mubr.f32.mxu0 0.0
        %6251 = vmatmul.mubr.f32.gmra.mrb[0].mxu0 %v5719
        %v6252 = vpop.f32.mrb[0].mxu0
        %v6253 = vadd.f32 %v5523, %v6252
        %v6254 = vpop.f32.mrb[0].mxu0
        %6255 = vmatprep.mubr.f32.mxu0 0.0
        %6256 = vmatmul.mubr.f32.gmra.mrb[0].mxu0 %v5722
        %v6257 = vpop.f32.mrb[0].mxu0
        %v6258 = vadd.f32 %v5523, %v6257
        %v6259 = vpop.f32.mrb[0].mxu0
        %6260 = vmatprep.mubr.f32.mxu0 0.0
        %6261 = vmatmul.mubr.f32.gmra.mrb[0].mxu0 %v5725
        %v6262 = vpop.f32.mrb[0].mxu0
        %v6263 = vadd.f32 %v5523, %v6262
        %v6264 = vpop.f32.mrb[0].mxu0
        %6265 = vmatprep.mubr.f32.mxu0 0.0
        %6266 = vmatmul.mubr.f32.gmra.mrb[0].mxu0 %v5728
        %v6267 = vpop.f32.mrb[0].mxu0
        %v6268 = vadd.f32 %v5523, %v6267
        %v6269 = vpop.f32.mrb[0].mxu0
        %6270 = vmatprep.mubr.f32.mxu0 0.0
        %6271 = vmatmul.mubr.f32.gmra.mrb[0].mxu0 %v5731
        %v6272 = vpop.f32.mrb[0].mxu0
        %v6273 = vadd.f32 %v5523, %v6272
        %v6274 = vpop.f32.mrb[0].mxu0
        %6275 = vmatprep.mubr.f32.mxu0 0.0
        %6276 = vmatmul.mubr.f32.gmra.mrb[0].mxu0 %v5734
        %v6277 = vpop.f32.mrb[0].mxu0
        %v6278 = vadd.f32 %v5523, %v6277
        %v6279 = vpop.f32.mrb[0].mxu0
        %6280 = vmatprep.mubr.f32.mxu0 0.0
        %6281 = vmatmul.mubr.f32.gmra.mrb[0].mxu0 %v5737
        %v6282 = vpop.f32.mrb[0].mxu0
        %v6283 = vadd.f32 %v5523, %v6282
        %v6284 = vpop.f32.mrb[0].mxu0
        %6285 = vmatprep.mubr.f32.mxu0 0.0
        %6286 = vmatmul.mubr.f32.gmra.mrb[0].mxu0 %v5740
        %v6287 = vpop.f32.mrb[0].mxu0
        %v6288 = vadd.f32 %v5523, %v6287
        %v6289 = vpop.f32.mrb[0].mxu0
        %6290 = vmatprep.mubr.f32.mxu0 0.0
        %6291 = vmatmul.mubr.f32.gmra.mrb[0].mxu0 %v5743
        %v6292 = vpop.f32.mrb[0].mxu0
        %v6293 = vadd.f32 %v5523, %v6292
        %v6294 = vpop.f32.mrb[0].mxu0
        %6295 = vmatprep.mubr.f32.mxu0 0.0
        %6296 = vmatmul.mubr.f32.gmra.mrb[0].mxu0 %v5746
        %v6297 = vpop.f32.mrb[0].mxu0
        %v6298 = vadd.f32 %v5523, %v6297
        %v6299 = vpop.f32.mrb[0].mxu0
        %6300 = vmatprep.mubr.f32.mxu0 0.0
        %6301 = vmatmul.mubr.f32.gmra.mrb[0].mxu0 %v5749
        %v6302 = vpop.f32.mrb[0].mxu0
        %v6303 = vadd.f32 %v5523, %v6302
        %v6304 = vpop.f32.mrb[0].mxu0
        %6305 = vmatprep.mubr.f32.mxu0 0.0
        %6306 = vmatmul.mubr.f32.gmra.mrb[0].mxu0 %v5752
        %v6307 = vpop.f32.mrb[0].mxu0
        %v6308 = vadd.f32 %v5523, %v6307
        %v6309 = vpop.f32.mrb[0].mxu0
        %6310 = vmatprep.mubr.f32.mxu0 0.0
        %6311 = vmatmul.mubr.f32.gmra.mrb[0].mxu0 %v5755
        %v6312 = vpop.f32.mrb[0].mxu0
        %v6313 = vadd.f32 %v5523, %v6312
        %v6314 = vpop.f32.mrb[0].mxu0
        %6315 = vmatprep.mubr.f32.mxu0 0.0
        %6316 = vmatmul.mubr.f32.gmra.mrb[0].mxu0 %v5758
        %v6317 = vpop.f32.mrb[0].mxu0
        %v6318 = vadd.f32 %v5523, %v6317
        %v6319 = vpop.f32.mrb[0].mxu0
        %6320 = vmatprep.mubr.f32.mxu0 0.0
        %6321 = vmatmul.mubr.f32.gmra.mrb[0].mxu0 %v5761
        %v6322 = vpop.f32.mrb[0].mxu0
        %v6323 = vadd.f32 %v5523, %v6322
        %v6324 = vpop.f32.mrb[0].mxu0
        %6325 = vmatprep.mubr.f32.mxu0 0.0
        %6326 = vmatmul.mubr.f32.gmra.mrb[0].mxu0 %v5764
        %v6327 = vpop.f32.mrb[0].mxu0
        %v6328 = vadd.f32 %v5523, %v6327
        %v6329 = vpop.f32.mrb[0].mxu0
        %6330 = vmatprep.mubr.f32.mxu0 0.0
        %6331 = vmatmul.mubr.f32.gmra.mrb[0].mxu0 %v5767
        %v6332 = vpop.f32.mrb[0].mxu0
        %v6333 = vadd.f32 %v5523, %v6332
        %v6334 = vpop.f32.mrb[0].mxu0
        %6335 = vmatprep.mubr.f32.mxu0 0.0
        %6336 = vmatmul.mubr.f32.gmra.mrb[0].mxu0 %v5770
        %v6337 = vpop.f32.mrb[0].mxu0
        %v6338 = vadd.f32 %v5523, %v6337
        %v6339 = vpop.f32.mrb[0].mxu0
        %6340 = vmatprep.mubr.f32.mxu0 0.0
        %6341 = vmatmul.mubr.f32.gmra.mrb[0].mxu0 %v5773
        %v6342 = vpop.f32.mrb[0].mxu0
        %v6343 = vadd.f32 %v5523, %v6342
        %v6344 = vpop.f32.mrb[0].mxu0
        %6345 = vmatprep.mubr.f32.mxu0 0.0
        %6346 = vmatmul.mubr.f32.gmra.mrb[0].mxu0 %v5776
        %v6347 = vpop.f32.mrb[0].mxu0
        %v6348 = vadd.f32 %v5523, %v6347
        %v6349 = vpop.f32.mrb[0].mxu0
        %6350 = vmatprep.mubr.f32.mxu0 0.0
        %6351 = vmatmul.mubr.f32.gmra.mrb[0].mxu0 %v5779
        %v6352 = vpop.f32.mrb[0].mxu0
        %v6353 = vadd.f32 %v5523, %v6352
        %v6354 = vpop.f32.mrb[0].mxu0
        %6355 = vmatprep.mubr.f32.mxu0 0.0
        %6356 = vmatmul.mubr.f32.gmra.mrb[0].mxu0 %v5782
        %v6357 = vpop.f32.mrb[0].mxu0
        %v6358 = vadd.f32 %v5523, %v6357
        %v6359 = vpop.f32.mrb[0].mxu0
        %6360 = vmatprep.mubr.f32.mxu0 0.0
        %6361 = vmatmul.mubr.f32.gmra.mrb[0].mxu0 %v5785
        %v6362 = vpop.f32.mrb[0].mxu0
        %v6363 = vadd.f32 %v5523, %v6362
        %v6364 = vpop.f32.mrb[0].mxu0
        %6365 = vmatprep.mubr.f32.mxu0 0.0
        %6366 = vmatmul.mubr.f32.gmra.mrb[0].mxu0 %v5788
        %v6367 = vpop.f32.mrb[0].mxu0
        %v6368 = vadd.f32 %v5523, %v6367
        %v6369 = vpop.f32.mrb[0].mxu0
        %6370 = vmatprep.mubr.f32.mxu0 0.0
        %6371 = vmatmul.mubr.f32.gmra.mrb[0].mxu0 %v5791
        %v6372 = vpop.f32.mrb[0].mxu0
        %v6373 = vadd.f32 %v5523, %v6372
        %v6374 = vpop.f32.mrb[0].mxu0
        %6375 = vmatprep.mubr.f32.mxu0 0.0
        %6376 = vmatmul.mubr.f32.gmra.mrb[0].mxu0 %v5794
        %v6377 = vpop.f32.mrb[0].mxu0
        %v6378 = vadd.f32 %v5523, %v6377
        %v6379 = vpop.f32.mrb[0].mxu0
        %6380 = vmatprep.mubr.f32.mxu0 0.0
        %6381 = vmatmul.mubr.f32.gmra.mrb[0].mxu0 %v5797
        %v6382 = vpop.f32.mrb[0].mxu0
        %v6383 = vadd.f32 %v5523, %v6382
        %v6384 = vpop.f32.mrb[0].mxu0
        %6385 = vmatprep.mubr.f32.mxu0 0.0
        %6386 = vmatmul.mubr.f32.gmra.mrb[0].mxu0 %v5800
        %v6387 = vpop.f32.mrb[0].mxu0
        %v6388 = vadd.f32 %v5523, %v6387
        %v6389 = vpop.f32.mrb[0].mxu0
        %6390 = vmatprep.mubr.f32.mxu0 0.0
        %6391 = vmatmul.mubr.f32.gmra.mrb[0].mxu0 %v5803
        %v6392 = vpop.f32.mrb[0].mxu0
        %v6393 = vadd.f32 %v5523, %v6392
        %v6394 = vpop.f32.mrb[0].mxu0
        %6395 = vmatprep.mubr.f32.mxu0 0.0
        %6396 = vmatmul.mubr.f32.gmra.mrb[0].mxu0 %v5806
        %v6397 = vpop.f32.mrb[0].mxu0
        %v6398 = vadd.f32 %v5523, %v6397
        %v6399 = vpop.f32.mrb[0].mxu0
        %6400 = vmatprep.mubr.f32.mxu0 0.0
        %6401 = vmatmul.mubr.f32.gmra.mrb[0].mxu0 %v5809
        %v6402 = vpop.f32.mrb[0].mxu0
        %v6403 = vadd.f32 %v5523, %v6402
        %v6404 = vpop.f32.mrb[0].mxu0
        %6405 = vmatprep.mubr.f32.mxu0 0.0
        %6406 = vmatmul.mubr.f32.gmra.mrb[0].mxu0 %v5812
        %v6407 = vpop.f32.mrb[0].mxu0
        %v6408 = vadd.f32 %v5523, %v6407
        %v6409 = vpop.f32.mrb[0].mxu0
        %6410 = vmatprep.mubr.f32.mxu0 0.0
        %6411 = vmatmul.mubr.f32.gmra.mrb[0].mxu0 %v5815
        %v6412 = vpop.f32.mrb[0].mxu0
        %v6413 = vadd.f32 %v5523, %v6412
        %v6414 = vpop.f32.mrb[0].mxu0
        %6415 = vmatprep.mubr.f32.mxu0 0.0
        %6416 = vmatmul.mubr.f32.gmra.mrb[0].mxu0 %v5818
        %v6417 = vpop.f32.mrb[0].mxu0
        %v6418 = vadd.f32 %v5523, %v6417
        %v6419 = vpop.f32.mrb[0].mxu0
        %6420 = vmatprep.mubr.f32.mxu0 0.0
        %6421 = vmatmul.mubr.f32.gmra.mrb[0].mxu0 %v5821
        %v6422 = vpop.f32.mrb[0].mxu0
        %v6423 = vadd.f32 %v5523, %v6422
        %v6424 = vpop.f32.mrb[0].mxu0
        %6425 = vmatprep.mubr.f32.mxu0 0.0
        %6426 = vmatmul.mubr.f32.gmra.mrb[0].mxu0 %v5824
        %v6427 = vpop.f32.mrb[0].mxu0
        %v6428 = vadd.f32 %v5523, %v6427
        %v6429 = vpop.f32.mrb[0].mxu0
        %6430 = vmatprep.mubr.f32.mxu0 0.0
        %6431 = vmatmul.mubr.f32.gmra.mrb[0].mxu0 %v5827
        %v6432 = vpop.f32.mrb[0].mxu0
        %v6433 = vadd.f32 %v5523, %v6432
        %v6434 = vpop.f32.mrb[0].mxu0
        %6435 = vmatprep.mubr.f32.mxu0 0.0
        %6436 = vmatmul.mubr.f32.gmra.mrb[0].mxu0 %v5830
        %v6437 = vpop.f32.mrb[0].mxu0
        %v6438 = vadd.f32 %v5523, %v6437
        %v6439 = vpop.f32.mrb[0].mxu0
        %6440 = vmatprep.mubr.f32.mxu0 0.0
        %6441 = vmatmul.mubr.f32.gmra.mrb[0].mxu0 %v5833
        %v6442 = vpop.f32.mrb[0].mxu0
        %v6443 = vadd.f32 %v5523, %v6442
        %v6444 = vpop.f32.mrb[0].mxu0
        %6445 = vmatprep.mubr.f32.mxu0 0.0
        %6446 = vmatmul.mubr.f32.gmra.mrb[0].mxu0 %v5836
        %v6447 = vpop.f32.mrb[0].mxu0
        %v6448 = vadd.f32 %v5523, %v6447
        %v6449 = vpop.f32.mrb[0].mxu0
        %6450 = vmatprep.mubr.f32.mxu0 0.0
        %6451 = vmatmul.mubr.f32.gmra.mrb[0].mxu0 %v5839
        %v6452 = vpop.f32.mrb[0].mxu0
        %v6453 = vadd.f32 %v5523, %v6452
        %v6454 = vpop.f32.mrb[0].mxu0
        %6455 = vmatprep.mubr.f32.mxu0 0.0
        %6456 = vmatmul.mubr.f32.gmra.mrb[0].mxu0 %v5842
        %v6457 = vpop.f32.mrb[0].mxu0
        %v6458 = vadd.f32 %v5523, %v6457
        %v6459 = vpop.f32.mrb[0].mxu0
        %6460 = vmatprep.mubr.f32.mxu0 0.0
        %6461 = vmatmul.mubr.f32.gmra.mrb[0].mxu0 %v5845
        %v6462 = vpop.f32.mrb[0].mxu0
        %v6463 = vadd.f32 %v5523, %v6462
        %v6464 = vpop.f32.mrb[0].mxu0
        %6465 = vmatprep.mubr.f32.mxu0 0.0
        %6466 = vmatmul.mubr.f32.gmra.mrb[0].mxu0 %v5848
        %v6467 = vpop.f32.mrb[0].mxu0
        %v6468 = vadd.f32 %v5523, %v6467
        %v6469 = vpop.f32.mrb[0].mxu0
        %6470 = vmatprep.mubr.f32.mxu0 0.0
        %6471 = vmatmul.mubr.f32.gmra.mrb[0].mxu0 %v5851
        %v6472 = vpop.f32.mrb[0].mxu0
        %v6473 = vadd.f32 %v5523, %v6472
        %v6474 = vpop.f32.mrb[0].mxu0
        %6475 = vmatprep.mubr.f32.mxu0 0.0
        %6476 = vmatmul.mubr.f32.gmra.mrb[0].mxu0 %v5854
        %v6477 = vpop.f32.mrb[0].mxu0
        %v6478 = vadd.f32 %v5523, %v6477
        %v6479 = vpop.f32.mrb[0].mxu0
        %6480 = vmatprep.mubr.f32.mxu0 0.0
        %6481 = vmatmul.mubr.f32.gmra.mrb[0].mxu0 %v5857
        %v6482 = vpop.f32.mrb[0].mxu0
        %v6483 = vadd.f32 %v5523, %v6482
        %v6484 = vpop.f32.mrb[0].mxu0
        %6485 = vmatprep.mubr.f32.mxu0 0.0
        %6486 = vmatmul.mubr.f32.gmra.mrb[0].mxu0 %v5860
        %v6487 = vpop.f32.mrb[0].mxu0
        %v6488 = vadd.f32 %v5523, %v6487
        %v6489 = vpop.f32.mrb[0].mxu0
        %6490 = vdwg.mxu0
        %v6491 = vmax.f32 %v5933, 0.0
        %v6492 = vmax.f32 %v5938, 0.0
        %v6493 = vmax.f32 %v5943, 0.0
        %v6494 = vmax.f32 %v5948, 0.0
        %v6495 = vmax.f32 %v5953, 0.0
        %v6496 = vmax.f32 %v5958, 0.0
        %v6497 = vmax.f32 %v5963, 0.0
        %v6498 = vmax.f32 %v5968, 0.0
        %v6499 = vmax.f32 %v5973, 0.0
        %v6500 = vmax.f32 %v5978, 0.0
        %v6501 = vmax.f32 %v5983, 0.0
        %v6502 = vmax.f32 %v5988, 0.0
        %v6503 = vmax.f32 %v5993, 0.0
        %v6504 = vmax.f32 %v5998, 0.0
        %v6505 = vmax.f32 %v6003, 0.0
        %v6506 = vmax.f32 %v6008, 0.0
        %v6507 = vmax.f32 %v6013, 0.0
        %v6508 = vmax.f32 %v6018, 0.0
        %v6509 = vmax.f32 %v6023, 0.0
        %v6510 = vmax.f32 %v6028, 0.0
        %v6511 = vmax.f32 %v6033, 0.0
        %v6512 = vmax.f32 %v6038, 0.0
        %v6513 = vmax.f32 %v6043, 0.0
        %v6514 = vmax.f32 %v6048, 0.0
        %v6515 = vmax.f32 %v6053, 0.0
        %v6516 = vmax.f32 %v6058, 0.0
        %v6517 = vmax.f32 %v6063, 0.0
        %v6518 = vmax.f32 %v6068, 0.0
        %v6519 = vmax.f32 %v6073, 0.0
        %v6520 = vmax.f32 %v6078, 0.0
        %v6521 = vmax.f32 %v6083, 0.0
        %v6522 = vmax.f32 %v6088, 0.0
        %v6523 = vmax.f32 %v6093, 0.0
        %v6524 = vmax.f32 %v6098, 0.0
        %v6525 = vmax.f32 %v6103, 0.0
        %v6526 = vmax.f32 %v6108, 0.0
        %v6527 = vmax.f32 %v6113, 0.0
        %v6528 = vmax.f32 %v6118, 0.0
        %v6529 = vmax.f32 %v6123, 0.0
        %v6530 = vmax.f32 %v6128, 0.0
        %v6531 = vmax.f32 %v6133, 0.0
        %v6532 = vmax.f32 %v6138, 0.0
        %v6533 = vmax.f32 %v6143, 0.0
        %v6534 = vmax.f32 %v6148, 0.0
        %v6535 = vmax.f32 %v6153, 0.0
        %v6536 = vmax.f32 %v6158, 0.0
        %v6537 = vmax.f32 %v6163, 0.0
        %v6538 = vmax.f32 %v6168, 0.0
        %v6539 = vmax.f32 %v6173, 0.0
        %v6540 = vmax.f32 %v6178, 0.0
        %v6541 = vmax.f32 %v6183, 0.0
        %v6542 = vmax.f32 %v6188, 0.0
        %v6543 = vmax.f32 %v6193, 0.0
        %v6544 = vmax.f32 %v6198, 0.0
        %v6545 = vmax.f32 %v6203, 0.0
        %v6546 = vmax.f32 %v6208, 0.0
        %v6547 = vmax.f32 %v6213, 0.0
        %v6548 = vmax.f32 %v6218, 0.0
        %v6549 = vmax.f32 %v6223, 0.0
        %v6550 = vmax.f32 %v6228, 0.0
        %v6551 = vmax.f32 %v6233, 0.0
        %v6552 = vmax.f32 %v6238, 0.0
        %v6553 = vmax.f32 %v6243, 0.0
        %v6554 = vmax.f32 %v6248, 0.0
        %v6555 = vmax.f32 %v6253, 0.0
        %v6556 = vmax.f32 %v6258, 0.0
        %v6557 = vmax.f32 %v6263, 0.0
        %v6558 = vmax.f32 %v6268, 0.0
        %v6559 = vmax.f32 %v6273, 0.0
        %v6560 = vmax.f32 %v6278, 0.0
        %v6561 = vmax.f32 %v6283, 0.0
        %v6562 = vmax.f32 %v6288, 0.0
        %v6563 = vmax.f32 %v6293, 0.0
        %v6564 = vmax.f32 %v6298, 0.0
        %v6565 = vmax.f32 %v6303, 0.0
        %v6566 = vmax.f32 %v6308, 0.0
        %v6567 = vmax.f32 %v6313, 0.0
        %v6568 = vmax.f32 %v6318, 0.0
        %v6569 = vmax.f32 %v6323, 0.0
        %v6570 = vmax.f32 %v6328, 0.0
        %v6571 = vmax.f32 %v6333, 0.0
        %v6572 = vmax.f32 %v6338, 0.0
        %v6573 = vmax.f32 %v6343, 0.0
        %v6574 = vmax.f32 %v6348, 0.0
        %v6575 = vmax.f32 %v6353, 0.0
        %v6576 = vmax.f32 %v6358, 0.0
        %v6577 = vmax.f32 %v6363, 0.0
        %v6578 = vmax.f32 %v6368, 0.0
        %v6579 = vmax.f32 %v6373, 0.0
        %v6580 = vmax.f32 %v6378, 0.0
        %v6581 = vmax.f32 %v6383, 0.0
        %v6582 = vmax.f32 %v6388, 0.0
        %v6583 = vmax.f32 %v6393, 0.0
        %v6584 = vmax.f32 %v6398, 0.0
        %v6585 = vmax.f32 %v6403, 0.0
        %v6586 = vmax.f32 %v6408, 0.0
        %v6587 = vmax.f32 %v6413, 0.0
        %v6588 = vmax.f32 %v6418, 0.0
        %v6589 = vmax.f32 %v6423, 0.0
        %v6590 = vmax.f32 %v6428, 0.0
        %v6591 = vmax.f32 %v6433, 0.0
        %v6592 = vmax.f32 %v6438, 0.0
        %v6593 = vmax.f32 %v6443, 0.0
        %v6594 = vmax.f32 %v6448, 0.0
        %v6595 = vmax.f32 %v6453, 0.0
        %v6596 = vmax.f32 %v6458, 0.0
        %v6597 = vmax.f32 %v6463, 0.0
        %v6598 = vmax.f32 %v6468, 0.0
        %v6599 = vmax.f32 %v6473, 0.0
        %v6600 = vmax.f32 %v6478, 0.0
        %v6601 = vmax.f32 %v6483, 0.0
        %v6602 = vmax.f32 %v6488, 0.0
        %6603 = vst [vmem:[#allocation2] sm:$0xff] %v6491
        %6604 = vst [vmem:[#allocation2 + $0x8] sm:$0xff] %v6492
        %6605 = vst [vmem:[#allocation2 + $0x10] sm:$0xff] %v6493
        %6606 = vst [vmem:[#allocation2 + $0x18] sm:$0xff] %v6494
        %6607 = vst [vmem:[#allocation2 + $0x20] sm:$0xff] %v6495
        %6608 = vst [vmem:[#allocation2 + $0x28] sm:$0xff] %v6496
        %6609 = vst [vmem:[#allocation2 + $0x30] sm:$0xff] %v6497
        %6610 = vst [vmem:[#allocation2 + $0x38] sm:$0xff] %v6498
        %6611 = vst [vmem:[#allocation2 + $0x40] sm:$0xff] %v6499
        %6612 = vst [vmem:[#allocation2 + $0x48] sm:$0xff] %v6500
        %6613 = vst [vmem:[#allocation2 + $0x50] sm:$0xff] %v6501
        %6614 = vst [vmem:[#allocation2 + $0x58] sm:$0xff] %v6502
        %6615 = vst [vmem:[#allocation2 + $0x60] sm:$0xff] %v6503
        %6616 = vst [vmem:[#allocation2 + $0x68] sm:$0xff] %v6504
        %6617 = vst [vmem:[#allocation2 + $0x70] sm:$0xff] %v6505
        %6618 = vst [vmem:[#allocation2 + $0x78] sm:$0xff] %v6506
        %6619 = vst [vmem:[#allocation2 + $0x80] sm:$0xff] %v6507
        %6620 = vst [vmem:[#allocation2 + $0x88] sm:$0xff] %v6508
        %6621 = vst [vmem:[#allocation2 + $0x90] sm:$0xff] %v6509
        %6622 = vst [vmem:[#allocation2 + $0x98] sm:$0xff] %v6510
        %6623 = vst [vmem:[#allocation2 + $0xa0] sm:$0xff] %v6511
        %6624 = vst [vmem:[#allocation2 + $0xa8] sm:$0xff] %v6512
        %6625 = vst [vmem:[#allocation2 + $0xb0] sm:$0xff] %v6513
        %6626 = vst [vmem:[#allocation2 + $0xb8] sm:$0xff] %v6514
        %6627 = vst [vmem:[#allocation2 + $0xc0] sm:$0xff] %v6515
        %6628 = vst [vmem:[#allocation2 + $0xc8] sm:$0xff] %v6516
        %6629 = vst [vmem:[#allocation2 + $0xd0] sm:$0xff] %v6517
        %6630 = vst [vmem:[#allocation2 + $0xd8] sm:$0xff] %v6518
        %6631 = vst [vmem:[#allocation2 + $0xe0] sm:$0xff] %v6519
        %6632 = vst [vmem:[#allocation2 + $0xe8] sm:$0xff] %v6520
        %6633 = vst [vmem:[#allocation2 + $0xf0] sm:$0xff] %v6521
        %6634 = vst [vmem:[#allocation2 + $0xf8] sm:$0xff] %v6522
        %6635 = vst [vmem:[#allocation2 + $0x100] sm:$0xff] %v6523
        %6636 = vst [vmem:[#allocation2 + $0x108] sm:$0xff] %v6524
        %6637 = vst [vmem:[#allocation2 + $0x110] sm:$0xff] %v6525
        %6638 = vst [vmem:[#allocation2 + $0x118] sm:$0xff] %v6526
        %6639 = vst [vmem:[#allocation2 + $0x120] sm:$0xff] %v6527
        %6640 = vst [vmem:[#allocation2 + $0x128] sm:$0xff] %v6528
        %6641 = vst [vmem:[#allocation2 + $0x130] sm:$0xff] %v6529
        %6642 = vst [vmem:[#allocation2 + $0x138] sm:$0xff] %v6530
        %6643 = vst [vmem:[#allocation2 + $0x140] sm:$0xff] %v6531
        %6644 = vst [vmem:[#allocation2 + $0x148] sm:$0xff] %v6532
        %6645 = vst [vmem:[#allocation2 + $0x150] sm:$0xff] %v6533
        %6646 = vst [vmem:[#allocation2 + $0x158] sm:$0xff] %v6534
        %6647 = vst [vmem:[#allocation2 + $0x160] sm:$0xff] %v6535
        %6648 = vst [vmem:[#allocation2 + $0x168] sm:$0xff] %v6536
        %6649 = vst [vmem:[#allocation2 + $0x170] sm:$0xff] %v6537
        %6650 = vst [vmem:[#allocation2 + $0x178] sm:$0xff] %v6538
        %6651 = vst [vmem:[#allocation2 + $0x180] sm:$0xff] %v6539
        %6652 = vst [vmem:[#allocation2 + $0x188] sm:$0xff] %v6540
        %6653 = vst [vmem:[#allocation2 + $0x190] sm:$0xff] %v6541
        %6654 = vst [vmem:[#allocation2 + $0x198] sm:$0xff] %v6542
        %6655 = vst [vmem:[#allocation2 + $0x1a0] sm:$0xff] %v6543
        %6656 = vst [vmem:[#allocation2 + $0x1a8] sm:$0xff] %v6544
        %6657 = vst [vmem:[#allocation2 + $0x1b0] sm:$0xff] %v6545
        %6658 = vst [vmem:[#allocation2 + $0x1b8] sm:$0xff] %v6546
        %6659 = vst [vmem:[#allocation2 + $0x1c0] sm:$0xff] %v6547
        %6660 = vst [vmem:[#allocation2 + $0x1c8] sm:$0xff] %v6548
        %6661 = vst [vmem:[#allocation2 + $0x1d0] sm:$0xff] %v6549
        %6662 = vst [vmem:[#allocation2 + $0x1d8] sm:$0xff] %v6550
        %6663 = vst [vmem:[#allocation2 + $0x1e0] sm:$0xff] %v6551
        %6664 = vst [vmem:[#allocation2 + $0x1e8] sm:$0xff] %v6552
        %6665 = vst [vmem:[#allocation2 + $0x1f0] sm:$0xff] %v6553
        %6666 = vst [vmem:[#allocation2 + $0x1f8] sm:$0xff] %v6554
        %6667 = vst [vmem:[#allocation2 + $0x200] sm:$0xff] %v6555
        %6668 = vst [vmem:[#allocation2 + $0x208] sm:$0xff] %v6556
        %6669 = vst [vmem:[#allocation2 + $0x210] sm:$0xff] %v6557
        %6670 = vst [vmem:[#allocation2 + $0x218] sm:$0xff] %v6558
        %6671 = vst [vmem:[#allocation2 + $0x220] sm:$0xff] %v6559
        %6672 = vst [vmem:[#allocation2 + $0x228] sm:$0xff] %v6560
        %6673 = vst [vmem:[#allocation2 + $0x230] sm:$0xff] %v6561
        %6674 = vst [vmem:[#allocation2 + $0x238] sm:$0xff] %v6562
        %6675 = vst [vmem:[#allocation2 + $0x240] sm:$0xff] %v6563
        %6676 = vst [vmem:[#allocation2 + $0x248] sm:$0xff] %v6564
        %6677 = vst [vmem:[#allocation2 + $0x250] sm:$0xff] %v6565
        %6678 = vst [vmem:[#allocation2 + $0x258] sm:$0xff] %v6566
        %6679 = vst [vmem:[#allocation2 + $0x260] sm:$0xff] %v6567
        %6680 = vst [vmem:[#allocation2 + $0x268] sm:$0xff] %v6568
        %6681 = vst [vmem:[#allocation2 + $0x270] sm:$0xff] %v6569
        %6682 = vst [vmem:[#allocation2 + $0x278] sm:$0xff] %v6570
        %6683 = vst [vmem:[#allocation2 + $0x280] sm:$0xff] %v6571
        %6684 = vst [vmem:[#allocation2 + $0x288] sm:$0xff] %v6572
        %6685 = vst [vmem:[#allocation2 + $0x290] sm:$0xff] %v6573
        %6686 = vst [vmem:[#allocation2 + $0x298] sm:$0xff] %v6574
        %6687 = vst [vmem:[#allocation2 + $0x2a0] sm:$0xff] %v6575
        %6688 = vst [vmem:[#allocation2 + $0x2a8] sm:$0xff] %v6576
        %6689 = vst [vmem:[#allocation2 + $0x2b0] sm:$0xff] %v6577
        %6690 = vst [vmem:[#allocation2 + $0x2b8] sm:$0xff] %v6578
        %6691 = vst [vmem:[#allocation2 + $0x2c0] sm:$0xff] %v6579
        %6692 = vst [vmem:[#allocation2 + $0x2c8] sm:$0xff] %v6580
        %6693 = vst [vmem:[#allocation2 + $0x2d0] sm:$0xff] %v6581
        %6694 = vst [vmem:[#allocation2 + $0x2d8] sm:$0xff] %v6582
        %6695 = vst [vmem:[#allocation2 + $0x2e0] sm:$0xff] %v6583
        %6696 = vst [vmem:[#allocation2 + $0x2e8] sm:$0xff] %v6584
        %6697 = vst [vmem:[#allocation2 + $0x2f0] sm:$0xff] %v6585
        %6698 = vst [vmem:[#allocation2 + $0x2f8] sm:$0xff] %v6586
        %6699 = vst [vmem:[#allocation2 + $0x300] sm:$0xff] %v6587
        %6700 = vst [vmem:[#allocation2 + $0x308] sm:$0xff] %v6588
        %6701 = vst [vmem:[#allocation2 + $0x310] sm:$0xff] %v6589
        %6702 = vst [vmem:[#allocation2 + $0x318] sm:$0xff] %v6590
        %6703 = vst [vmem:[#allocation2 + $0x320] sm:$0xff] %v6591
        %6704 = vst [vmem:[#allocation2 + $0x328] sm:$0xff] %v6592
        %6705 = vst [vmem:[#allocation2 + $0x330] sm:$0xff] %v6593
        %6706 = vst [vmem:[#allocation2 + $0x338] sm:$0xff] %v6594
        %6707 = vst [vmem:[#allocation2 + $0x340] sm:$0xff] %v6595
        %6708 = vst [vmem:[#allocation2 + $0x348] sm:$0xff] %v6596
        %6709 = vst [vmem:[#allocation2 + $0x350] sm:$0xff] %v6597
        %6710 = vst [vmem:[#allocation2 + $0x358] sm:$0xff] %v6598
        %6711 = vst [vmem:[#allocation2 + $0x360] sm:$0xff] %v6599
        %6712 = vst [vmem:[#allocation2 + $0x368] sm:$0xff] %v6600
        %6713 = vst [vmem:[#allocation2 + $0x370] sm:$0xff] %v6601
        %6714 = vst [vmem:[#allocation2 + $0x378] sm:$0xf] %v6602
        %v6715 = vld [vmem:[#allocation2] sm:$0xff]
        %v6716 = vld [vmem:[#allocation2 + $0x8] sm:$0xff]
        %v6717 = vld [vmem:[#allocation2 + $0x10] sm:$0xff]
        %v6718 = vld [vmem:[#allocation2 + $0x18] sm:$0xff]
        %v6719 = vld [vmem:[#allocation2 + $0x20] sm:$0xff]
        %v6720 = vld [vmem:[#allocation2 + $0x28] sm:$0xff]
        %v6721 = vld [vmem:[#allocation2 + $0x30] sm:$0xff]
        %v6722 = vld [vmem:[#allocation2 + $0x38] sm:$0xff]
        %v6723 = vld [vmem:[#allocation2 + $0x40] sm:$0xff]
        %v6724 = vld [vmem:[#allocation2 + $0x48] sm:$0xff]
        %v6725 = vld [vmem:[#allocation2 + $0x50] sm:$0xff]
        %v6726 = vld [vmem:[#allocation2 + $0x58] sm:$0xff]
        %v6727 = vld [vmem:[#allocation2 + $0x60] sm:$0xff]
        %v6728 = vld [vmem:[#allocation2 + $0x68] sm:$0xff]
        %v6729 = vld [vmem:[#allocation2 + $0x70] sm:$0xff]
        %v6730 = vld [vmem:[#allocation2 + $0x78] sm:$0xff]
        %v6731 = vld [vmem:[#allocation2 + $0x80] sm:$0xff]
        %v6732 = vld [vmem:[#allocation2 + $0x88] sm:$0xff]
        %v6733 = vld [vmem:[#allocation2 + $0x90] sm:$0xff]
        %v6734 = vld [vmem:[#allocation2 + $0x98] sm:$0xff]
        %v6735 = vld [vmem:[#allocation2 + $0xa0] sm:$0xff]
        %v6736 = vld [vmem:[#allocation2 + $0xa8] sm:$0xff]
        %v6737 = vld [vmem:[#allocation2 + $0xb0] sm:$0xff]
        %v6738 = vld [vmem:[#allocation2 + $0xb8] sm:$0xff]
        %v6739 = vld [vmem:[#allocation2 + $0xc0] sm:$0xff]
        %v6740 = vld [vmem:[#allocation2 + $0xc8] sm:$0xff]
        %v6741 = vld [vmem:[#allocation2 + $0xd0] sm:$0xff]
        %v6742 = vld [vmem:[#allocation2 + $0xd8] sm:$0xff]
        %v6743 = vld [vmem:[#allocation2 + $0xe0] sm:$0xff]
        %v6744 = vld [vmem:[#allocation2 + $0xe8] sm:$0xff]
        %v6745 = vld [vmem:[#allocation2 + $0xf0] sm:$0xff]
        %v6746 = vld [vmem:[#allocation2 + $0xf8] sm:$0xff]
        %v6747 = vld [vmem:[#allocation2 + $0x100] sm:$0xff]
        %v6748 = vld [vmem:[#allocation2 + $0x108] sm:$0xff]
        %v6749 = vld [vmem:[#allocation2 + $0x110] sm:$0xff]
        %v6750 = vld [vmem:[#allocation2 + $0x118] sm:$0xff]
        %v6751 = vld [vmem:[#allocation2 + $0x120] sm:$0xff]
        %v6752 = vld [vmem:[#allocation2 + $0x128] sm:$0xff]
        %v6753 = vld [vmem:[#allocation2 + $0x130] sm:$0xff]
        %v6754 = vld [vmem:[#allocation2 + $0x138] sm:$0xff]
        %v6755 = vld [vmem:[#allocation2 + $0x140] sm:$0xff]
        %v6756 = vld [vmem:[#allocation2 + $0x148] sm:$0xff]
        %v6757 = vld [vmem:[#allocation2 + $0x150] sm:$0xff]
        %v6758 = vld [vmem:[#allocation2 + $0x158] sm:$0xff]
        %v6759 = vld [vmem:[#allocation2 + $0x160] sm:$0xff]
        %v6760 = vld [vmem:[#allocation2 + $0x168] sm:$0xff]
        %v6761 = vld [vmem:[#allocation2 + $0x170] sm:$0xff]
        %v6762 = vld [vmem:[#allocation2 + $0x178] sm:$0xff]
        %v6763 = vld [vmem:[#allocation2 + $0x180] sm:$0xff]
        %v6764 = vld [vmem:[#allocation2 + $0x188] sm:$0xff]
        %v6765 = vld [vmem:[#allocation2 + $0x190] sm:$0xff]
        %v6766 = vld [vmem:[#allocation2 + $0x198] sm:$0xff]
        %v6767 = vld [vmem:[#allocation2 + $0x1a0] sm:$0xff]
        %v6768 = vld [vmem:[#allocation2 + $0x1a8] sm:$0xff]
        %v6769 = vld [vmem:[#allocation2 + $0x1b0] sm:$0xff]
        %v6770 = vld [vmem:[#allocation2 + $0x1b8] sm:$0xff]
        %v6771 = vld [vmem:[#allocation2 + $0x1c0] sm:$0xff]
        %v6772 = vld [vmem:[#allocation2 + $0x1c8] sm:$0xff]
        %v6773 = vld [vmem:[#allocation2 + $0x1d0] sm:$0xff]
        %v6774 = vld [vmem:[#allocation2 + $0x1d8] sm:$0xff]
        %v6775 = vld [vmem:[#allocation2 + $0x1e0] sm:$0xff]
        %v6776 = vld [vmem:[#allocation2 + $0x1e8] sm:$0xff]
        %v6777 = vld [vmem:[#allocation2 + $0x1f0] sm:$0xff]
        %v6778 = vld [vmem:[#allocation2 + $0x1f8] sm:$0xff]
        %v6779 = vld [vmem:[#allocation2 + $0x200] sm:$0xff]
        %v6780 = vld [vmem:[#allocation2 + $0x208] sm:$0xff]
        %v6781 = vld [vmem:[#allocation2 + $0x210] sm:$0xff]
        %v6782 = vld [vmem:[#allocation2 + $0x218] sm:$0xff]
        %v6783 = vld [vmem:[#allocation2 + $0x220] sm:$0xff]
        %v6784 = vld [vmem:[#allocation2 + $0x228] sm:$0xff]
        %v6785 = vld [vmem:[#allocation2 + $0x230] sm:$0xff]
        %v6786 = vld [vmem:[#allocation2 + $0x238] sm:$0xff]
        %v6787 = vld [vmem:[#allocation2 + $0x240] sm:$0xff]
        %v6788 = vld [vmem:[#allocation2 + $0x248] sm:$0xff]
        %v6789 = vld [vmem:[#allocation2 + $0x250] sm:$0xff]
        %v6790 = vld [vmem:[#allocation2 + $0x258] sm:$0xff]
        %v6791 = vld [vmem:[#allocation2 + $0x260] sm:$0xff]
        %v6792 = vld [vmem:[#allocation2 + $0x268] sm:$0xff]
        %v6793 = vld [vmem:[#allocation2 + $0x270] sm:$0xff]
        %v6794 = vld [vmem:[#allocation2 + $0x278] sm:$0xff]
        %v6795 = vld [vmem:[#allocation2 + $0x280] sm:$0xff]
        %v6796 = vld [vmem:[#allocation2 + $0x288] sm:$0xff]
        %v6797 = vld [vmem:[#allocation2 + $0x290] sm:$0xff]
        %v6798 = vld [vmem:[#allocation2 + $0x298] sm:$0xff]
        %v6799 = vld [vmem:[#allocation2 + $0x2a0] sm:$0xff]
        %v6800 = vld [vmem:[#allocation2 + $0x2a8] sm:$0xff]
        %v6801 = vld [vmem:[#allocation2 + $0x2b0] sm:$0xff]
        %v6802 = vld [vmem:[#allocation2 + $0x2b8] sm:$0xff]
        %v6803 = vld [vmem:[#allocation2 + $0x2c0] sm:$0xff]
        %v6804 = vld [vmem:[#allocation2 + $0x2c8] sm:$0xff]
        %v6805 = vld [vmem:[#allocation2 + $0x2d0] sm:$0xff]
        %v6806 = vld [vmem:[#allocation2 + $0x2d8] sm:$0xff]
        %v6807 = vld [vmem:[#allocation2 + $0x2e0] sm:$0xff]
        %v6808 = vld [vmem:[#allocation2 + $0x2e8] sm:$0xff]
        %v6809 = vld [vmem:[#allocation2 + $0x2f0] sm:$0xff]
        %v6810 = vld [vmem:[#allocation2 + $0x2f8] sm:$0xff]
        %v6811 = vld [vmem:[#allocation2 + $0x300] sm:$0xff]
        %v6812 = vld [vmem:[#allocation2 + $0x308] sm:$0xff]
        %v6813 = vld [vmem:[#allocation2 + $0x310] sm:$0xff]
        %v6814 = vld [vmem:[#allocation2 + $0x318] sm:$0xff]
        %v6815 = vld [vmem:[#allocation2 + $0x320] sm:$0xff]
        %v6816 = vld [vmem:[#allocation2 + $0x328] sm:$0xff]
        %v6817 = vld [vmem:[#allocation2 + $0x330] sm:$0xff]
        %v6818 = vld [vmem:[#allocation2 + $0x338] sm:$0xff]
        %v6819 = vld [vmem:[#allocation2 + $0x340] sm:$0xff]
        %v6820 = vld [vmem:[#allocation2 + $0x348] sm:$0xff]
        %v6821 = vld [vmem:[#allocation2 + $0x350] sm:$0xff]
        %v6822 = vld [vmem:[#allocation2 + $0x358] sm:$0x7]
        %v6823 = vld [vmem:[#allocation2 + $0x1] sm:$0xff]
        %v6824 = vld [vmem:[#allocation2 + $0x9] sm:$0xff]
        %v6825 = vld [vmem:[#allocation2 + $0x11] sm:$0xff]
        %v6826 = vld [vmem:[#allocation2 + $0x19] sm:$0xff]
        %v6827 = vld [vmem:[#allocation2 + $0x21] sm:$0xff]
        %v6828 = vld [vmem:[#allocation2 + $0x29] sm:$0xff]
        %v6829 = vld [vmem:[#allocation2 + $0x31] sm:$0xff]
        %v6830 = vld [vmem:[#allocation2 + $0x39] sm:$0xff]
        %v6831 = vld [vmem:[#allocation2 + $0x41] sm:$0xff]
        %v6832 = vld [vmem:[#allocation2 + $0x49] sm:$0xff]
        %v6833 = vld [vmem:[#allocation2 + $0x51] sm:$0xff]
        %v6834 = vld [vmem:[#allocation2 + $0x59] sm:$0xff]
        %v6835 = vld [vmem:[#allocation2 + $0x61] sm:$0xff]
        %v6836 = vld [vmem:[#allocation2 + $0x69] sm:$0xff]
        %v6837 = vld [vmem:[#allocation2 + $0x71] sm:$0xff]
        %v6838 = vld [vmem:[#allocation2 + $0x79] sm:$0xff]
        %v6839 = vld [vmem:[#allocation2 + $0x81] sm:$0xff]
        %v6840 = vld [vmem:[#allocation2 + $0x89] sm:$0xff]
        %v6841 = vld [vmem:[#allocation2 + $0x91] sm:$0xff]
        %v6842 = vld [vmem:[#allocation2 + $0x99] sm:$0xff]
        %v6843 = vld [vmem:[#allocation2 + $0xa1] sm:$0xff]
        %v6844 = vld [vmem:[#allocation2 + $0xa9] sm:$0xff]
        %v6845 = vld [vmem:[#allocation2 + $0xb1] sm:$0xff]
        %v6846 = vld [vmem:[#allocation2 + $0xb9] sm:$0xff]
        %v6847 = vld [vmem:[#allocation2 + $0xc1] sm:$0xff]
        %v6848 = vld [vmem:[#allocation2 + $0xc9] sm:$0xff]
        %v6849 = vld [vmem:[#allocation2 + $0xd1] sm:$0xff]
        %v6850 = vld [vmem:[#allocation2 + $0xd9] sm:$0xff]
        %v6851 = vld [vmem:[#allocation2 + $0xe1] sm:$0xff]
        %v6852 = vld [vmem:[#allocation2 + $0xe9] sm:$0xff]
        %v6853 = vld [vmem:[#allocation2 + $0xf1] sm:$0xff]
        %v6854 = vld [vmem:[#allocation2 + $0xf9] sm:$0xff]
        %v6855 = vld [vmem:[#allocation2 + $0x101] sm:$0xff]
        %v6856 = vld [vmem:[#allocation2 + $0x109] sm:$0xff]
        %v6857 = vld [vmem:[#allocation2 + $0x111] sm:$0xff]
        %v6858 = vld [vmem:[#allocation2 + $0x119] sm:$0xff]
        %v6859 = vld [vmem:[#allocation2 + $0x121] sm:$0xff]
        %v6860 = vld [vmem:[#allocation2 + $0x129] sm:$0xff]
        %v6861 = vld [vmem:[#allocation2 + $0x131] sm:$0xff]
        %v6862 = vld [vmem:[#allocation2 + $0x139] sm:$0xff]
        %v6863 = vld [vmem:[#allocation2 + $0x141] sm:$0xff]
        %v6864 = vld [vmem:[#allocation2 + $0x149] sm:$0xff]
        %v6865 = vld [vmem:[#allocation2 + $0x151] sm:$0xff]
        %v6866 = vld [vmem:[#allocation2 + $0x159] sm:$0xff]
        %v6867 = vld [vmem:[#allocation2 + $0x161] sm:$0xff]
        %v6868 = vld [vmem:[#allocation2 + $0x169] sm:$0xff]
        %v6869 = vld [vmem:[#allocation2 + $0x171] sm:$0xff]
        %v6870 = vld [vmem:[#allocation2 + $0x179] sm:$0xff]
        %v6871 = vld [vmem:[#allocation2 + $0x181] sm:$0xff]
        %v6872 = vld [vmem:[#allocation2 + $0x189] sm:$0xff]
        %v6873 = vld [vmem:[#allocation2 + $0x191] sm:$0xff]
        %v6874 = vld [vmem:[#allocation2 + $0x199] sm:$0xff]
        %v6875 = vld [vmem:[#allocation2 + $0x1a1] sm:$0xff]
        %v6876 = vld [vmem:[#allocation2 + $0x1a9] sm:$0xff]
        %v6877 = vld [vmem:[#allocation2 + $0x1b1] sm:$0xff]
        %v6878 = vld [vmem:[#allocation2 + $0x1b9] sm:$0xff]
        %v6879 = vld [vmem:[#allocation2 + $0x1c1] sm:$0xff]
        %v6880 = vld [vmem:[#allocation2 + $0x1c9] sm:$0xff]
        %v6881 = vld [vmem:[#allocation2 + $0x1d1] sm:$0xff]
        %v6882 = vld [vmem:[#allocation2 + $0x1d9] sm:$0xff]
        %v6883 = vld [vmem:[#allocation2 + $0x1e1] sm:$0xff]
        %v6884 = vld [vmem:[#allocation2 + $0x1e9] sm:$0xff]
        %v6885 = vld [vmem:[#allocation2 + $0x1f1] sm:$0xff]
        %v6886 = vld [vmem:[#allocation2 + $0x1f9] sm:$0xff]
        %v6887 = vld [vmem:[#allocation2 + $0x201] sm:$0xff]
        %v6888 = vld [vmem:[#allocation2 + $0x209] sm:$0xff]
        %v6889 = vld [vmem:[#allocation2 + $0x211] sm:$0xff]
        %v6890 = vld [vmem:[#allocation2 + $0x219] sm:$0xff]
        %v6891 = vld [vmem:[#allocation2 + $0x221] sm:$0xff]
        %v6892 = vld [vmem:[#allocation2 + $0x229] sm:$0xff]
        %v6893 = vld [vmem:[#allocation2 + $0x231] sm:$0xff]
        %v6894 = vld [vmem:[#allocation2 + $0x239] sm:$0xff]
        %v6895 = vld [vmem:[#allocation2 + $0x241] sm:$0xff]
        %v6896 = vld [vmem:[#allocation2 + $0x249] sm:$0xff]
        %v6897 = vld [vmem:[#allocation2 + $0x251] sm:$0xff]
        %v6898 = vld [vmem:[#allocation2 + $0x259] sm:$0xff]
        %v6899 = vld [vmem:[#allocation2 + $0x261] sm:$0xff]
        %v6900 = vld [vmem:[#allocation2 + $0x269] sm:$0xff]
        %v6901 = vld [vmem:[#allocation2 + $0x271] sm:$0xff]
        %v6902 = vld [vmem:[#allocation2 + $0x279] sm:$0xff]
        %v6903 = vld [vmem:[#allocation2 + $0x281] sm:$0xff]
        %v6904 = vld [vmem:[#allocation2 + $0x289] sm:$0xff]
        %v6905 = vld [vmem:[#allocation2 + $0x291] sm:$0xff]
        %v6906 = vld [vmem:[#allocation2 + $0x299] sm:$0xff]
        %v6907 = vld [vmem:[#allocation2 + $0x2a1] sm:$0xff]
        %v6908 = vld [vmem:[#allocation2 + $0x2a9] sm:$0xff]
        %v6909 = vld [vmem:[#allocation2 + $0x2b1] sm:$0xff]
        %v6910 = vld [vmem:[#allocation2 + $0x2b9] sm:$0xff]
        %v6911 = vld [vmem:[#allocation2 + $0x2c1] sm:$0xff]
        %v6912 = vld [vmem:[#allocation2 + $0x2c9] sm:$0xff]
        %v6913 = vld [vmem:[#allocation2 + $0x2d1] sm:$0xff]
        %v6914 = vld [vmem:[#allocation2 + $0x2d9] sm:$0xff]
        %v6915 = vld [vmem:[#allocation2 + $0x2e1] sm:$0xff]
        %v6916 = vld [vmem:[#allocation2 + $0x2e9] sm:$0xff]
        %v6917 = vld [vmem:[#allocation2 + $0x2f1] sm:$0xff]
        %v6918 = vld [vmem:[#allocation2 + $0x2f9] sm:$0xff]
        %v6919 = vld [vmem:[#allocation2 + $0x301] sm:$0xff]
        %v6920 = vld [vmem:[#allocation2 + $0x309] sm:$0xff]
        %v6921 = vld [vmem:[#allocation2 + $0x311] sm:$0xff]
        %v6922 = vld [vmem:[#allocation2 + $0x319] sm:$0xff]
        %v6923 = vld [vmem:[#allocation2 + $0x321] sm:$0xff]
        %v6924 = vld [vmem:[#allocation2 + $0x329] sm:$0xff]
        %v6925 = vld [vmem:[#allocation2 + $0x331] sm:$0xff]
        %v6926 = vld [vmem:[#allocation2 + $0x339] sm:$0xff]
        %v6927 = vld [vmem:[#allocation2 + $0x341] sm:$0xff]
        %v6928 = vld [vmem:[#allocation2 + $0x349] sm:$0xff]
        %v6929 = vld [vmem:[#allocation2 + $0x351] sm:$0xff]
        %v6930 = vld [vmem:[#allocation2 + $0x359] sm:$0x7]
        %v6931 = vmax.f32 %v6715, %v6823
        %v6932 = vmax.f32 %v6716, %v6824
        %v6933 = vmax.f32 %v6717, %v6825
        %v6934 = vmax.f32 %v6718, %v6826
        %v6935 = vmax.f32 %v6719, %v6827
        %v6936 = vmax.f32 %v6720, %v6828
        %v6937 = vmax.f32 %v6721, %v6829
        %v6938 = vmax.f32 %v6722, %v6830
        %v6939 = vmax.f32 %v6723, %v6831
        %v6940 = vmax.f32 %v6724, %v6832
        %v6941 = vmax.f32 %v6725, %v6833
        %v6942 = vmax.f32 %v6726, %v6834
        %v6943 = vmax.f32 %v6727, %v6835
        %v6944 = vmax.f32 %v6728, %v6836
        %v6945 = vmax.f32 %v6729, %v6837
        %v6946 = vmax.f32 %v6730, %v6838
        %v6947 = vmax.f32 %v6731, %v6839
        %v6948 = vmax.f32 %v6732, %v6840
        %v6949 = vmax.f32 %v6733, %v6841
        %v6950 = vmax.f32 %v6734, %v6842
        %v6951 = vmax.f32 %v6735, %v6843
        %v6952 = vmax.f32 %v6736, %v6844
        %v6953 = vmax.f32 %v6737, %v6845
        %v6954 = vmax.f32 %v6738, %v6846
        %v6955 = vmax.f32 %v6739, %v6847
        %v6956 = vmax.f32 %v6740, %v6848
        %v6957 = vmax.f32 %v6741, %v6849
        %v6958 = vmax.f32 %v6742, %v6850
        %v6959 = vmax.f32 %v6743, %v6851
        %v6960 = vmax.f32 %v6744, %v6852
        %v6961 = vmax.f32 %v6745, %v6853
        %v6962 = vmax.f32 %v6746, %v6854
        %v6963 = vmax.f32 %v6747, %v6855
        %v6964 = vmax.f32 %v6748, %v6856
        %v6965 = vmax.f32 %v6749, %v6857
        %v6966 = vmax.f32 %v6750, %v6858
        %v6967 = vmax.f32 %v6751, %v6859
        %v6968 = vmax.f32 %v6752, %v6860
        %v6969 = vmax.f32 %v6753, %v6861
        %v6970 = vmax.f32 %v6754, %v6862
        %v6971 = vmax.f32 %v6755, %v6863
        %v6972 = vmax.f32 %v6756, %v6864
        %v6973 = vmax.f32 %v6757, %v6865
        %v6974 = vmax.f32 %v6758, %v6866
        %v6975 = vmax.f32 %v6759, %v6867
        %v6976 = vmax.f32 %v6760, %v6868
        %v6977 = vmax.f32 %v6761, %v6869
        %v6978 = vmax.f32 %v6762, %v6870
        %v6979 = vmax.f32 %v6763, %v6871
        %v6980 = vmax.f32 %v6764, %v6872
        %v6981 = vmax.f32 %v6765, %v6873
        %v6982 = vmax.f32 %v6766, %v6874
        %v6983 = vmax.f32 %v6767, %v6875
        %v6984 = vmax.f32 %v6768, %v6876
        %v6985 = vmax.f32 %v6769, %v6877
        %v6986 = vmax.f32 %v6770, %v6878
        %v6987 = vmax.f32 %v6771, %v6879
        %v6988 = vmax.f32 %v6772, %v6880
        %v6989 = vmax.f32 %v6773, %v6881
        %v6990 = vmax.f32 %v6774, %v6882
        %v6991 = vmax.f32 %v6775, %v6883
        %v6992 = vmax.f32 %v6776, %v6884
        %v6993 = vmax.f32 %v6777, %v6885
        %v6994 = vmax.f32 %v6778, %v6886
        %v6995 = vmax.f32 %v6779, %v6887
        %v6996 = vmax.f32 %v6780, %v6888
        %v6997 = vmax.f32 %v6781, %v6889
        %v6998 = vmax.f32 %v6782, %v6890
        %v6999 = vmax.f32 %v6783, %v6891
        %v7000 = vmax.f32 %v6784, %v6892
        %v7001 = vmax.f32 %v6785, %v6893
        %v7002 = vmax.f32 %v6786, %v6894
        %v7003 = vmax.f32 %v6787, %v6895
        %v7004 = vmax.f32 %v6788, %v6896
        %v7005 = vmax.f32 %v6789, %v6897
        %v7006 = vmax.f32 %v6790, %v6898
        %v7007 = vmax.f32 %v6791, %v6899
        %v7008 = vmax.f32 %v6792, %v6900
        %v7009 = vmax.f32 %v6793, %v6901
        %v7010 = vmax.f32 %v6794, %v6902
        %v7011 = vmax.f32 %v6795, %v6903
        %v7012 = vmax.f32 %v6796, %v6904
        %v7013 = vmax.f32 %v6797, %v6905
        %v7014 = vmax.f32 %v6798, %v6906
        %v7015 = vmax.f32 %v6799, %v6907
        %v7016 = vmax.f32 %v6800, %v6908
        %v7017 = vmax.f32 %v6801, %v6909
        %v7018 = vmax.f32 %v6802, %v6910
        %v7019 = vmax.f32 %v6803, %v6911
        %v7020 = vmax.f32 %v6804, %v6912
        %v7021 = vmax.f32 %v6805, %v6913
        %v7022 = vmax.f32 %v6806, %v6914
        %v7023 = vmax.f32 %v6807, %v6915
        %v7024 = vmax.f32 %v6808, %v6916
        %v7025 = vmax.f32 %v6809, %v6917
        %v7026 = vmax.f32 %v6810, %v6918
        %v7027 = vmax.f32 %v6811, %v6919
        %v7028 = vmax.f32 %v6812, %v6920
        %v7029 = vmax.f32 %v6813, %v6921
        %v7030 = vmax.f32 %v6814, %v6922
        %v7031 = vmax.f32 %v6815, %v6923
        %v7032 = vmax.f32 %v6816, %v6924
        %v7033 = vmax.f32 %v6817, %v6925
        %v7034 = vmax.f32 %v6818, %v6926
        %v7035 = vmax.f32 %v6819, %v6927
        %v7036 = vmax.f32 %v6820, %v6928
        %v7037 = vmax.f32 %v6821, %v6929
        %v7038 = vmax.f32 %v6822, %v6930
        %v7039 = vld [vmem:[#allocation2 + $0x358] sm:$0xff]
        %v7040 = vld [vmem:[#allocation2 + $0x360] sm:$0xff]
        %v7041 = vld [vmem:[#allocation2 + $0x368] sm:$0xff]
        %v7042 = vld [vmem:[#allocation2 + $0x370] sm:$0xff]
        %v7043 = vld [vmem:[#allocation2 + $0x378] sm:$0x7]
        %v7044 = vld [vmem:[#allocation2 + $0x359] sm:$0xff]
        %v7045 = vld [vmem:[#allocation2 + $0x361] sm:$0xff]
        %v7046 = vld [vmem:[#allocation2 + $0x369] sm:$0xff]
        %v7047 = vld [vmem:[#allocation2 + $0x371] sm:$0xff]
        %v7048 = vld [vmem:[#allocation2 + $0x379] sm:$0x7]
        %v7049 = vmax.f32 %v7039, %v7044
        %v7050 = vmax.f32 %v7040, %v7045
        %v7051 = vmax.f32 %v7041, %v7046
        %v7052 = vmax.f32 %v7042, %v7047
        %v7053 = vmax.f32 %v7043, %v7048
        %v7054 = vmax.f32 %v6931, %v6935
        %v7055 = vmax.f32 %v6932, %v6936
        %v7056 = vmax.f32 %v6933, %v6937
        %v7057 = vmax.f32 %v6934, %v6938
        %v7058 = vmax.f32 %v6935, %v6939
        %v7059 = vmax.f32 %v6936, %v6940
        %v7060 = vmax.f32 %v6937, %v6941
        %v7061 = vmax.f32 %v6938, %v6942
        %v7062 = vmax.f32 %v6939, %v6943
        %v7063 = vmax.f32 %v6940, %v6944
        %v7064 = vmax.f32 %v6941, %v6945
        %v7065 = vmax.f32 %v6942, %v6946
        %v7066 = vmax.f32 %v6943, %v6947
        %v7067 = vmax.f32 %v6944, %v6948
        %v7068 = vmax.f32 %v6945, %v6949
        %v7069 = vmax.f32 %v6946, %v6950
        %v7070 = vmax.f32 %v6947, %v6951
        %v7071 = vmax.f32 %v6948, %v6952
        %v7072 = vmax.f32 %v6949, %v6953
        %v7073 = vmax.f32 %v6950, %v6954
        %v7074 = vmax.f32 %v6951, %v6955
        %v7075 = vmax.f32 %v6952, %v6956
        %v7076 = vmax.f32 %v6953, %v6957
        %v7077 = vmax.f32 %v6954, %v6958
        %v7078 = vmax.f32 %v6955, %v6959
        %v7079 = vmax.f32 %v6956, %v6960
        %v7080 = vmax.f32 %v6957, %v6961
        %v7081 = vmax.f32 %v6958, %v6962
        %v7082 = vmax.f32 %v6959, %v6963
        %v7083 = vmax.f32 %v6960, %v6964
        %v7084 = vmax.f32 %v6961, %v6965
        %v7085 = vmax.f32 %v6962, %v6966
        %v7086 = vmax.f32 %v6963, %v6967
        %v7087 = vmax.f32 %v6964, %v6968
        %v7088 = vmax.f32 %v6965, %v6969
        %v7089 = vmax.f32 %v6966, %v6970
        %v7090 = vmax.f32 %v6967, %v6971
        %v7091 = vmax.f32 %v6968, %v6972
        %v7092 = vmax.f32 %v6969, %v6973
        %v7093 = vmax.f32 %v6970, %v6974
        %v7094 = vmax.f32 %v6971, %v6975
        %v7095 = vmax.f32 %v6972, %v6976
        %v7096 = vmax.f32 %v6973, %v6977
        %v7097 = vmax.f32 %v6974, %v6978
        %v7098 = vmax.f32 %v6975, %v6979
        %v7099 = vmax.f32 %v6976, %v6980
        %v7100 = vmax.f32 %v6977, %v6981
        %v7101 = vmax.f32 %v6978, %v6982
        %v7102 = vmax.f32 %v6979, %v6983
        %v7103 = vmax.f32 %v6980, %v6984
        %v7104 = vmax.f32 %v6981, %v6985
        %v7105 = vmax.f32 %v6982, %v6986
        %v7106 = vmax.f32 %v6983, %v6987
        %v7107 = vmax.f32 %v6984, %v6988
        %v7108 = vmax.f32 %v6985, %v6989
        %v7109 = vmax.f32 %v6986, %v6990
        %v7110 = vmax.f32 %v6987, %v6991
        %v7111 = vmax.f32 %v6988, %v6992
        %v7112 = vmax.f32 %v6989, %v6993
        %v7113 = vmax.f32 %v6990, %v6994
        %v7114 = vmax.f32 %v6991, %v6995
        %v7115 = vmax.f32 %v6992, %v6996
        %v7116 = vmax.f32 %v6993, %v6997
        %v7117 = vmax.f32 %v6994, %v6998
        %v7118 = vmax.f32 %v6995, %v6999
        %v7119 = vmax.f32 %v6996, %v7000
        %v7120 = vmax.f32 %v6997, %v7001
        %v7121 = vmax.f32 %v6998, %v7002
        %v7122 = vmax.f32 %v6999, %v7003
        %v7123 = vmax.f32 %v7000, %v7004
        %v7124 = vmax.f32 %v7001, %v7005
        %v7125 = vmax.f32 %v7002, %v7006
        %v7126 = vmax.f32 %v7003, %v7007
        %v7127 = vmax.f32 %v7004, %v7008
        %v7128 = vmax.f32 %v7005, %v7009
        %v7129 = vmax.f32 %v7006, %v7010
        %v7130 = vmax.f32 %v7007, %v7011
        %v7131 = vmax.f32 %v7008, %v7012
        %v7132 = vmax.f32 %v7009, %v7013
        %v7133 = vmax.f32 %v7010, %v7014
        %v7134 = vmax.f32 %v7011, %v7015
        %v7135 = vmax.f32 %v7012, %v7016
        %v7136 = vmax.f32 %v7013, %v7017
        %v7137 = vmax.f32 %v7014, %v7018
        %v7138 = vmax.f32 %v7015, %v7019
        %v7139 = vmax.f32 %v7016, %v7020
        %v7140 = vmax.f32 %v7017, %v7021
        %v7141 = vmax.f32 %v7018, %v7022
        %v7142 = vmax.f32 %v7019, %v7023
        %v7143 = vmax.f32 %v7020, %v7024
        %v7144 = vmax.f32 %v7021, %v7025
        %v7145 = vmax.f32 %v7022, %v7026
        %v7146 = vmax.f32 %v7023, %v7027
        %v7147 = vmax.f32 %v7024, %v7028
        %v7148 = vmax.f32 %v7025, %v7029
        %v7149 = vmax.f32 %v7026, %v7030
        %v7150 = vmax.f32 %v7027, %v7031
        %v7151 = vmax.f32 %v7028, %v7032
        %v7152 = vmax.f32 %v7029, %v7033
        %v7153 = vmax.f32 %v7030, %v7034
        %v7154 = vmax.f32 %v7031, %v7035
        %v7155 = vmax.f32 %v7032, %v7036
        %v7156 = vmax.f32 %v7033, %v7037
        %v7157 = vmax.f32 %v7034, %v7049
        %v7158 = vmax.f32 %v7035, %v7050
        %v7159 = vmax.f32 %v7036, %v7051
        %v7160 = vmax.f32 %v7037, %v7052
        %v7161 = vmax.f32 %v7038, %v7053
        %7162 = vst [vmem:[#allocation2] sm:$0xff] %v7054
        %7163 = vst [vmem:[#allocation2 + $0x8] sm:$0xff] %v7055
        %7164 = vst [vmem:[#allocation2 + $0x10] sm:$0xff] %v7056
        %7165 = vst [vmem:[#allocation2 + $0x18] sm:$0xff] %v7057
        %7166 = vst [vmem:[#allocation2 + $0x20] sm:$0xff] %v7058
        %7167 = vst [vmem:[#allocation2 + $0x28] sm:$0xff] %v7059
        %7168 = vst [vmem:[#allocation2 + $0x30] sm:$0xff] %v7060
        %7169 = vst [vmem:[#allocation2 + $0x38] sm:$0xff] %v7061
        %7170 = vst [vmem:[#allocation2 + $0x40] sm:$0xff] %v7062
        %7171 = vst [vmem:[#allocation2 + $0x48] sm:$0xff] %v7063
        %7172 = vst [vmem:[#allocation2 + $0x50] sm:$0xff] %v7064
        %7173 = vst [vmem:[#allocation2 + $0x58] sm:$0xff] %v7065
        %7174 = vst [vmem:[#allocation2 + $0x60] sm:$0xff] %v7066
        %7175 = vst [vmem:[#allocation2 + $0x68] sm:$0xff] %v7067
        %7176 = vst [vmem:[#allocation2 + $0x70] sm:$0xff] %v7068
        %7177 = vst [vmem:[#allocation2 + $0x78] sm:$0xff] %v7069
        %7178 = vst [vmem:[#allocation2 + $0x80] sm:$0xff] %v7070
        %7179 = vst [vmem:[#allocation2 + $0x88] sm:$0xff] %v7071
        %7180 = vst [vmem:[#allocation2 + $0x90] sm:$0xff] %v7072
        %7181 = vst [vmem:[#allocation2 + $0x98] sm:$0xff] %v7073
        %7182 = vst [vmem:[#allocation2 + $0xa0] sm:$0xff] %v7074
        %7183 = vst [vmem:[#allocation2 + $0xa8] sm:$0xff] %v7075
        %7184 = vst [vmem:[#allocation2 + $0xb0] sm:$0xff] %v7076
        %7185 = vst [vmem:[#allocation2 + $0xb8] sm:$0xff] %v7077
        %7186 = vst [vmem:[#allocation2 + $0xc0] sm:$0xff] %v7078
        %7187 = vst [vmem:[#allocation2 + $0xc8] sm:$0xff] %v7079
        %7188 = vst [vmem:[#allocation2 + $0xd0] sm:$0xff] %v7080
        %7189 = vst [vmem:[#allocation2 + $0xd8] sm:$0xff] %v7081
        %7190 = vst [vmem:[#allocation2 + $0xe0] sm:$0xff] %v7082
        %7191 = vst [vmem:[#allocation2 + $0xe8] sm:$0xff] %v7083
        %7192 = vst [vmem:[#allocation2 + $0xf0] sm:$0xff] %v7084
        %7193 = vst [vmem:[#allocation2 + $0xf8] sm:$0xff] %v7085
        %7194 = vst [vmem:[#allocation2 + $0x100] sm:$0xff] %v7086
        %7195 = vst [vmem:[#allocation2 + $0x108] sm:$0xff] %v7087
        %7196 = vst [vmem:[#allocation2 + $0x110] sm:$0xff] %v7088
        %7197 = vst [vmem:[#allocation2 + $0x118] sm:$0xff] %v7089
        %7198 = vst [vmem:[#allocation2 + $0x120] sm:$0xff] %v7090
        %7199 = vst [vmem:[#allocation2 + $0x128] sm:$0xff] %v7091
        %7200 = vst [vmem:[#allocation2 + $0x130] sm:$0xff] %v7092
        %7201 = vst [vmem:[#allocation2 + $0x138] sm:$0xff] %v7093
        %7202 = vst [vmem:[#allocation2 + $0x140] sm:$0xff] %v7094
        %7203 = vst [vmem:[#allocation2 + $0x148] sm:$0xff] %v7095
        %7204 = vst [vmem:[#allocation2 + $0x150] sm:$0xff] %v7096
        %7205 = vst [vmem:[#allocation2 + $0x158] sm:$0xff] %v7097
        %7206 = vst [vmem:[#allocation2 + $0x160] sm:$0xff] %v7098
        %7207 = vst [vmem:[#allocation2 + $0x168] sm:$0xff] %v7099
        %7208 = vst [vmem:[#allocation2 + $0x170] sm:$0xff] %v7100
        %7209 = vst [vmem:[#allocation2 + $0x178] sm:$0xff] %v7101
        %7210 = vst [vmem:[#allocation2 + $0x180] sm:$0xff] %v7102
        %7211 = vst [vmem:[#allocation2 + $0x188] sm:$0xff] %v7103
        %7212 = vst [vmem:[#allocation2 + $0x190] sm:$0xff] %v7104
        %7213 = vst [vmem:[#allocation2 + $0x198] sm:$0xff] %v7105
        %7214 = vst [vmem:[#allocation2 + $0x1a0] sm:$0xff] %v7106
        %7215 = vst [vmem:[#allocation2 + $0x1a8] sm:$0xff] %v7107
        %7216 = vst [vmem:[#allocation2 + $0x1b0] sm:$0xff] %v7108
        %7217 = vst [vmem:[#allocation2 + $0x1b8] sm:$0xff] %v7109
        %7218 = vst [vmem:[#allocation2 + $0x1c0] sm:$0xff] %v7110
        %7219 = vst [vmem:[#allocation2 + $0x1c8] sm:$0xff] %v7111
        %7220 = vst [vmem:[#allocation2 + $0x1d0] sm:$0xff] %v7112
        %7221 = vst [vmem:[#allocation2 + $0x1d8] sm:$0xff] %v7113
        %7222 = vst [vmem:[#allocation2 + $0x1e0] sm:$0xff] %v7114
        %7223 = vst [vmem:[#allocation2 + $0x1e8] sm:$0xff] %v7115
        %7224 = vst [vmem:[#allocation2 + $0x1f0] sm:$0xff] %v7116
        %7225 = vst [vmem:[#allocation2 + $0x1f8] sm:$0xff] %v7117
        %7226 = vst [vmem:[#allocation2 + $0x200] sm:$0xff] %v7118
        %7227 = vst [vmem:[#allocation2 + $0x208] sm:$0xff] %v7119
        %7228 = vst [vmem:[#allocation2 + $0x210] sm:$0xff] %v7120
        %7229 = vst [vmem:[#allocation2 + $0x218] sm:$0xff] %v7121
        %7230 = vst [vmem:[#allocation2 + $0x220] sm:$0xff] %v7122
        %7231 = vst [vmem:[#allocation2 + $0x228] sm:$0xff] %v7123
        %7232 = vst [vmem:[#allocation2 + $0x230] sm:$0xff] %v7124
        %7233 = vst [vmem:[#allocation2 + $0x238] sm:$0xff] %v7125
        %7234 = vst [vmem:[#allocation2 + $0x240] sm:$0xff] %v7126
        %7235 = vst [vmem:[#allocation2 + $0x248] sm:$0xff] %v7127
        %7236 = vst [vmem:[#allocation2 + $0x250] sm:$0xff] %v7128
        %7237 = vst [vmem:[#allocation2 + $0x258] sm:$0xff] %v7129
        %7238 = vst [vmem:[#allocation2 + $0x260] sm:$0xff] %v7130
        %7239 = vst [vmem:[#allocation2 + $0x268] sm:$0xff] %v7131
        %7240 = vst [vmem:[#allocation2 + $0x270] sm:$0xff] %v7132
        %7241 = vst [vmem:[#allocation2 + $0x278] sm:$0xff] %v7133
        %7242 = vst [vmem:[#allocation2 + $0x280] sm:$0xff] %v7134
        %7243 = vst [vmem:[#allocation2 + $0x288] sm:$0xff] %v7135
        %7244 = vst [vmem:[#allocation2 + $0x290] sm:$0xff] %v7136
        %7245 = vst [vmem:[#allocation2 + $0x298] sm:$0xff] %v7137
        %7246 = vst [vmem:[#allocation2 + $0x2a0] sm:$0xff] %v7138
        %7247 = vst [vmem:[#allocation2 + $0x2a8] sm:$0xff] %v7139
        %7248 = vst [vmem:[#allocation2 + $0x2b0] sm:$0xff] %v7140
        %7249 = vst [vmem:[#allocation2 + $0x2b8] sm:$0xff] %v7141
        %7250 = vst [vmem:[#allocation2 + $0x2c0] sm:$0xff] %v7142
        %7251 = vst [vmem:[#allocation2 + $0x2c8] sm:$0xff] %v7143
        %7252 = vst [vmem:[#allocation2 + $0x2d0] sm:$0xff] %v7144
        %7253 = vst [vmem:[#allocation2 + $0x2d8] sm:$0xff] %v7145
        %7254 = vst [vmem:[#allocation2 + $0x2e0] sm:$0xff] %v7146
        %7255 = vst [vmem:[#allocation2 + $0x2e8] sm:$0xff] %v7147
        %7256 = vst [vmem:[#allocation2 + $0x2f0] sm:$0xff] %v7148
        %7257 = vst [vmem:[#allocation2 + $0x2f8] sm:$0xff] %v7149
        %7258 = vst [vmem:[#allocation2 + $0x300] sm:$0xff] %v7150
        %7259 = vst [vmem:[#allocation2 + $0x308] sm:$0xff] %v7151
        %7260 = vst [vmem:[#allocation2 + $0x310] sm:$0xff] %v7152
        %7261 = vst [vmem:[#allocation2 + $0x318] sm:$0xff] %v7153
        %7262 = vst [vmem:[#allocation2 + $0x320] sm:$0xff] %v7154
        %7263 = vst [vmem:[#allocation2 + $0x328] sm:$0xff] %v7155
        %7264 = vst [vmem:[#allocation2 + $0x330] sm:$0xff] %v7156
        %7265 = vst [vmem:[#allocation2 + $0x338] sm:$0xff] %v7157
        %7266 = vst [vmem:[#allocation2 + $0x340] sm:$0xff] %v7158
        %7267 = vst [vmem:[#allocation2 + $0x348] sm:$0xff] %v7159
        %7268 = vst [vmem:[#allocation2 + $0x350] sm:$0xff] %v7160
        %7269 = vst [vmem:[#allocation2 + $0x358] sm:$0x7] %v7161
        %v7270 = vld [vmem:[#allocation2] ss:$2 sm:$0xff]
        %s7271 = scalar_lea.vmem [#allocation2], 16
        %v7272 = vld [vmem:[%s7271] ss:$2 sm:$0x3f]
        %7273 = vst [vmem:[#allocation3] sm:$0xff] %v7270
        %7274 = vst [vmem:[#allocation3 + $0x8] sm:$0x3f] %v7272
        %s7275 = scalar_lea.vmem [#allocation2], 64
        %v7276 = vld [vmem:[%s7275] ss:$2 sm:$0xff]
        %s7277 = scalar_lea.vmem [#allocation2], 80
        %v7278 = vld [vmem:[%s7277] ss:$2 sm:$0x3f]
        %7279 = vst [vmem:[#allocation3 + $0xe] sm:$0xff] %v7276
        %7280 = vst [vmem:[#allocation3 + $0x16] sm:$0x3f] %v7278
        %s7281 = scalar_lea.vmem [#allocation2], 128
        %v7282 = vld [vmem:[%s7281] ss:$2 sm:$0xff]
        %s7283 = scalar_lea.vmem [#allocation2], 144
        %v7284 = vld [vmem:[%s7283] ss:$2 sm:$0x3f]
        %7285 = vst [vmem:[#allocation3 + $0x1c] sm:$0xff] %v7282
        %7286 = vst [vmem:[#allocation3 + $0x24] sm:$0x3f] %v7284
        %s7287 = scalar_lea.vmem [#allocation2], 192
        %v7288 = vld [vmem:[%s7287] ss:$2 sm:$0xff]
        %s7289 = scalar_lea.vmem [#allocation2], 208
        %v7290 = vld [vmem:[%s7289] ss:$2 sm:$0x3f]
        %7291 = vst [vmem:[#allocation3 + $0x2a] sm:$0xff] %v7288
        %7292 = vst [vmem:[#allocation3 + $0x32] sm:$0x3f] %v7290
        %s7293 = scalar_lea.vmem [#allocation2], 256
        %v7294 = vld [vmem:[%s7293] ss:$2 sm:$0xff]
        %s7295 = scalar_lea.vmem [#allocation2], 272
        %v7296 = vld [vmem:[%s7295] ss:$2 sm:$0x3f]
        %7297 = vst [vmem:[#allocation3 + $0x38] sm:$0xff] %v7294
        %7298 = vst [vmem:[#allocation3 + $0x40] sm:$0x3f] %v7296
        %s7299 = scalar_lea.vmem [#allocation2], 320
        %v7300 = vld [vmem:[%s7299] ss:$2 sm:$0xff]
        %s7301 = scalar_lea.vmem [#allocation2], 336
        %v7302 = vld [vmem:[%s7301] ss:$2 sm:$0x3f]
        %7303 = vst [vmem:[#allocation3 + $0x46] sm:$0xff] %v7300
        %7304 = vst [vmem:[#allocation3 + $0x4e] sm:$0x3f] %v7302
        %s7305 = scalar_lea.vmem [#allocation2], 384
        %v7306 = vld [vmem:[%s7305] ss:$2 sm:$0xff]
        %s7307 = scalar_lea.vmem [#allocation2], 400
        %v7308 = vld [vmem:[%s7307] ss:$2 sm:$0x3f]
        %7309 = vst [vmem:[#allocation3 + $0x54] sm:$0xff] %v7306
        %7310 = vst [vmem:[#allocation3 + $0x5c] sm:$0x3f] %v7308
        %s7311 = scalar_lea.vmem [#allocation2], 448
        %v7312 = vld [vmem:[%s7311] ss:$2 sm:$0xff]
        %s7313 = scalar_lea.vmem [#allocation2], 464
        %v7314 = vld [vmem:[%s7313] ss:$2 sm:$0x3f]
        %7315 = vst [vmem:[#allocation3 + $0x62] sm:$0xff] %v7312
        %7316 = vst [vmem:[#allocation3 + $0x6a] sm:$0x3f] %v7314
        %s7317 = scalar_lea.vmem [#allocation2], 512
        %v7318 = vld [vmem:[%s7317] ss:$2 sm:$0xff]
        %s7319 = scalar_lea.vmem [#allocation2], 528
        %v7320 = vld [vmem:[%s7319] ss:$2 sm:$0x3f]
        %7321 = vst [vmem:[#allocation3 + $0x70] sm:$0xff] %v7318
        %7322 = vst [vmem:[#allocation3 + $0x78] sm:$0x3f] %v7320
        %s7323 = scalar_lea.vmem [#allocation2], 576
        %v7324 = vld [vmem:[%s7323] ss:$2 sm:$0xff]
        %s7325 = scalar_lea.vmem [#allocation2], 592
        %v7326 = vld [vmem:[%s7325] ss:$2 sm:$0x3f]
        %7327 = vst [vmem:[#allocation3 + $0x7e] sm:$0xff] %v7324
        %7328 = vst [vmem:[#allocation3 + $0x86] sm:$0x3f] %v7326
        %s7329 = scalar_lea.vmem [#allocation2], 640
        %v7330 = vld [vmem:[%s7329] ss:$2 sm:$0xff]
        %s7331 = scalar_lea.vmem [#allocation2], 656
        %v7332 = vld [vmem:[%s7331] ss:$2 sm:$0x3f]
        %7333 = vst [vmem:[#allocation3 + $0x8c] sm:$0xff] %v7330
        %7334 = vst [vmem:[#allocation3 + $0x94] sm:$0x3f] %v7332
        %s7335 = scalar_lea.vmem [#allocation2], 704
        %v7336 = vld [vmem:[%s7335] ss:$2 sm:$0xff]
        %s7337 = scalar_lea.vmem [#allocation2], 720
        %v7338 = vld [vmem:[%s7337] ss:$2 sm:$0x3f]
        %7339 = vst [vmem:[#allocation3 + $0x9a] sm:$0xff] %v7336
        %7340 = vst [vmem:[#allocation3 + $0xa2] sm:$0x3f] %v7338
        %s7341 = scalar_lea.vmem [#allocation2], 768
        %v7342 = vld [vmem:[%s7341] ss:$2 sm:$0xff]
        %s7343 = scalar_lea.vmem [#allocation2], 784
        %v7344 = vld [vmem:[%s7343] ss:$2 sm:$0x3f]
        %7345 = vst [vmem:[#allocation3 + $0xa8] sm:$0xff] %v7342
        %7346 = vst [vmem:[#allocation3 + $0xb0] sm:$0x3f] %v7344
        %s7347 = scalar_lea.vmem [#allocation2], 832
        %v7348 = vld [vmem:[%s7347] ss:$2 sm:$0xff]
        %s7349 = scalar_lea.vmem [#allocation2], 848
        %v7350 = vld [vmem:[%s7349] ss:$2 sm:$0x3f]
        %7351 = vst [vmem:[#allocation3 + $0xb6] sm:$0xff] %v7348
        %7352 = vst [vmem:[#allocation3 + $0xbe] sm:$0x3f] %v7350
        %v7353 = vld [vmem:[#allocation3] sm:$0xff]
        %v7354 = vld [vmem:[#allocation3 + $0x8] sm:$0xff]
        %v7355 = vld [vmem:[#allocation3 + $0x10] sm:$0xff]
        %v7356 = vld [vmem:[#allocation3 + $0x18] sm:$0xff]
        %v7357 = vld [vmem:[#allocation3 + $0x20] sm:$0xff]
        %v7358 = vld [vmem:[#allocation3 + $0x28] sm:$0xff]
        %v7359 = vld [vmem:[#allocation3 + $0x30] sm:$0xff]
        %v7360 = vld [vmem:[#allocation3 + $0x38] sm:$0xff]
        %v7361 = vld [vmem:[#allocation3 + $0x40] sm:$0xff]
        %v7362 = vld [vmem:[#allocation3 + $0x48] sm:$0xff]
        %v7363 = vld [vmem:[#allocation3 + $0x50] sm:$0xff]
        %v7364 = vld [vmem:[#allocation3 + $0x58] sm:$0xff]
        %v7365 = vld [vmem:[#allocation3 + $0x60] sm:$0xff]
        %v7366 = vld [vmem:[#allocation3 + $0x68] sm:$0xff]
        %v7367 = vld [vmem:[#allocation3 + $0x70] sm:$0xff]
        %v7368 = vld [vmem:[#allocation3 + $0x78] sm:$0xff]
        %v7369 = vld [vmem:[#allocation3 + $0x80] sm:$0xff]
        %v7370 = vld [vmem:[#allocation3 + $0x1] sm:$0xff]
        %v7371 = vld [vmem:[#allocation3 + $0x9] sm:$0xff]
        %v7372 = vld [vmem:[#allocation3 + $0x11] sm:$0xff]
        %v7373 = vld [vmem:[#allocation3 + $0x19] sm:$0xff]
        %v7374 = vld [vmem:[#allocation3 + $0x21] sm:$0xff]
        %v7375 = vld [vmem:[#allocation3 + $0x29] sm:$0xff]
        %v7376 = vld [vmem:[#allocation3 + $0x31] sm:$0xff]
        %v7377 = vld [vmem:[#allocation3 + $0x39] sm:$0xff]
        %v7378 = vld [vmem:[#allocation3 + $0x41] sm:$0xff]
        %v7379 = vld [vmem:[#allocation3 + $0x49] sm:$0xff]
        %v7380 = vld [vmem:[#allocation3 + $0x51] sm:$0xff]
        %v7381 = vld [vmem:[#allocation3 + $0x59] sm:$0xff]
        %v7382 = vld [vmem:[#allocation3 + $0x61] sm:$0xff]
        %v7383 = vld [vmem:[#allocation3 + $0x69] sm:$0xff]
        %v7384 = vld [vmem:[#allocation3 + $0x71] sm:$0xff]
        %v7385 = vld [vmem:[#allocation3 + $0x79] sm:$0xff]
        %v7386 = vld [vmem:[#allocation3 + $0x81] sm:$0xff]
        %v7387 = vld [vmem:[#allocation3 + $0x2] sm:$0xff]
        %v7388 = vld [vmem:[#allocation3 + $0xa] sm:$0xff]
        %v7389 = vld [vmem:[#allocation3 + $0x12] sm:$0xff]
        %v7390 = vld [vmem:[#allocation3 + $0x1a] sm:$0xff]
        %v7391 = vld [vmem:[#allocation3 + $0x22] sm:$0xff]
        %v7392 = vld [vmem:[#allocation3 + $0x2a] sm:$0xff]
        %v7393 = vld [vmem:[#allocation3 + $0x32] sm:$0xff]
        %v7394 = vld [vmem:[#allocation3 + $0x3a] sm:$0xff]
        %v7395 = vld [vmem:[#allocation3 + $0x42] sm:$0xff]
        %v7396 = vld [vmem:[#allocation3 + $0x4a] sm:$0xff]
        %v7397 = vld [vmem:[#allocation3 + $0x52] sm:$0xff]
        %v7398 = vld [vmem:[#allocation3 + $0x5a] sm:$0xff]
        %v7399 = vld [vmem:[#allocation3 + $0x62] sm:$0xff]
        %v7400 = vld [vmem:[#allocation3 + $0x6a] sm:$0xff]
        %v7401 = vld [vmem:[#allocation3 + $0x72] sm:$0xff]
        %v7402 = vld [vmem:[#allocation3 + $0x7a] sm:$0xff]
        %v7403 = vld [vmem:[#allocation3 + $0x82] sm:$0xff]
        %v7404 = vld [vmem:[#allocation3 + $0x3] sm:$0xff]
        %v7405 = vld [vmem:[#allocation3 + $0xb] sm:$0xff]
        %v7406 = vld [vmem:[#allocation3 + $0x13] sm:$0xff]
        %v7407 = vld [vmem:[#allocation3 + $0x1b] sm:$0xff]
        %v7408 = vld [vmem:[#allocation3 + $0x23] sm:$0xff]
        %v7409 = vld [vmem:[#allocation3 + $0x2b] sm:$0xff]
        %v7410 = vld [vmem:[#allocation3 + $0x33] sm:$0xff]
        %v7411 = vld [vmem:[#allocation3 + $0x3b] sm:$0xff]
        %v7412 = vld [vmem:[#allocation3 + $0x43] sm:$0xff]
        %v7413 = vld [vmem:[#allocation3 + $0x4b] sm:$0xff]
        %v7414 = vld [vmem:[#allocation3 + $0x53] sm:$0xff]
        %v7415 = vld [vmem:[#allocation3 + $0x5b] sm:$0xff]
        %v7416 = vld [vmem:[#allocation3 + $0x63] sm:$0xff]
        %v7417 = vld [vmem:[#allocation3 + $0x6b] sm:$0xff]
        %v7418 = vld [vmem:[#allocation3 + $0x73] sm:$0xff]
        %v7419 = vld [vmem:[#allocation3 + $0x7b] sm:$0xff]
        %v7420 = vld [vmem:[#allocation3 + $0x83] sm:$0xff]
        %v7421 = vld [vmem:[#allocation3 + $0x4] sm:$0xff]
        %v7422 = vld [vmem:[#allocation3 + $0xc] sm:$0xff]
        %v7423 = vld [vmem:[#allocation3 + $0x14] sm:$0xff]
        %v7424 = vld [vmem:[#allocation3 + $0x1c] sm:$0xff]
        %v7425 = vld [vmem:[#allocation3 + $0x24] sm:$0xff]
        %v7426 = vld [vmem:[#allocation3 + $0x2c] sm:$0xff]
        %v7427 = vld [vmem:[#allocation3 + $0x34] sm:$0xff]
        %v7428 = vld [vmem:[#allocation3 + $0x3c] sm:$0xff]
        %v7429 = vld [vmem:[#allocation3 + $0x44] sm:$0xff]
        %v7430 = vld [vmem:[#allocation3 + $0x4c] sm:$0xff]
        %v7431 = vld [vmem:[#allocation3 + $0x54] sm:$0xff]
        %v7432 = vld [vmem:[#allocation3 + $0x5c] sm:$0xff]
        %v7433 = vld [vmem:[#allocation3 + $0x64] sm:$0xff]
        %v7434 = vld [vmem:[#allocation3 + $0x6c] sm:$0xff]
        %v7435 = vld [vmem:[#allocation3 + $0x74] sm:$0xff]
        %v7436 = vld [vmem:[#allocation3 + $0x7c] sm:$0xff]
        %v7437 = vld [vmem:[#allocation3 + $0x84] sm:$0xff]
        %v7438 = vld [vmem:[#allocation3 + $0xe] sm:$0xff]
        %v7439 = vld [vmem:[#allocation3 + $0x16] sm:$0xff]
        %v7440 = vld [vmem:[#allocation3 + $0x1e] sm:$0xff]
        %v7441 = vld [vmem:[#allocation3 + $0x26] sm:$0xff]
        %v7442 = vld [vmem:[#allocation3 + $0x2e] sm:$0xff]
        %v7443 = vld [vmem:[#allocation3 + $0x36] sm:$0xff]
        %v7444 = vld [vmem:[#allocation3 + $0x3e] sm:$0xff]
        %v7445 = vld [vmem:[#allocation3 + $0x46] sm:$0xff]
        %v7446 = vld [vmem:[#allocation3 + $0x4e] sm:$0xff]
        %v7447 = vld [vmem:[#allocation3 + $0x56] sm:$0xff]
        %v7448 = vld [vmem:[#allocation3 + $0x5e] sm:$0xff]
        %v7449 = vld [vmem:[#allocation3 + $0x66] sm:$0xff]
        %v7450 = vld [vmem:[#allocation3 + $0x6e] sm:$0xff]
        %v7451 = vld [vmem:[#allocation3 + $0x76] sm:$0xff]
        %v7452 = vld [vmem:[#allocation3 + $0x7e] sm:$0xff]
        %v7453 = vld [vmem:[#allocation3 + $0x86] sm:$0xff]
        %v7454 = vld [vmem:[#allocation3 + $0x8e] sm:$0xff]
        %v7455 = vld [vmem:[#allocation3 + $0xf] sm:$0xff]
        %v7456 = vld [vmem:[#allocation3 + $0x17] sm:$0xff]
        %v7457 = vld [vmem:[#allocation3 + $0x1f] sm:$0xff]
        %v7458 = vld [vmem:[#allocation3 + $0x27] sm:$0xff]
        %v7459 = vld [vmem:[#allocation3 + $0x2f] sm:$0xff]
        %v7460 = vld [vmem:[#allocation3 + $0x37] sm:$0xff]
        %v7461 = vld [vmem:[#allocation3 + $0x3f] sm:$0xff]
        %v7462 = vld [vmem:[#allocation3 + $0x47] sm:$0xff]
        %v7463 = vld [vmem:[#allocation3 + $0x4f] sm:$0xff]
        %v7464 = vld [vmem:[#allocation3 + $0x57] sm:$0xff]
        %v7465 = vld [vmem:[#allocation3 + $0x5f] sm:$0xff]
        %v7466 = vld [vmem:[#allocation3 + $0x67] sm:$0xff]
        %v7467 = vld [vmem:[#allocation3 + $0x6f] sm:$0xff]
        %v7468 = vld [vmem:[#allocation3 + $0x77] sm:$0xff]
        %v7469 = vld [vmem:[#allocation3 + $0x7f] sm:$0xff]
        %v7470 = vld [vmem:[#allocation3 + $0x87] sm:$0xff]
        %v7471 = vld [vmem:[#allocation3 + $0x8f] sm:$0xff]
        %v7472 = vld [vmem:[#allocation3 + $0x88] sm:$0xff]
        %v7473 = vld [vmem:[#allocation3 + $0x90] sm:$0xff]
        %v7474 = vld [vmem:[#allocation3 + $0x89] sm:$0xff]
        %v7475 = vld [vmem:[#allocation3 + $0x91] sm:$0xff]
        %v7476 = vld [vmem:[#allocation3 + $0x8a] sm:$0xff]
        %v7477 = vld [vmem:[#allocation3 + $0x92] sm:$0xff]
        %v7478 = vld [vmem:[#allocation3 + $0x8c] sm:$0xff]
        %v7479 = vld [vmem:[#allocation3 + $0x94] sm:$0xff]
        %v7480 = vld [vmem:[#allocation3 + $0x9c] sm:$0xff]
        %v7481 = vld [vmem:[#allocation3 + $0x1d] sm:$0xff]
        %v7482 = vld [vmem:[#allocation3 + $0x25] sm:$0xff]
        %v7483 = vld [vmem:[#allocation3 + $0x2d] sm:$0xff]
        %v7484 = vld [vmem:[#allocation3 + $0x35] sm:$0xff]
        %v7485 = vld [vmem:[#allocation3 + $0x3d] sm:$0xff]
        %v7486 = vld [vmem:[#allocation3 + $0x45] sm:$0xff]
        %v7487 = vld [vmem:[#allocation3 + $0x4d] sm:$0xff]
        %v7488 = vld [vmem:[#allocation3 + $0x55] sm:$0xff]
        %v7489 = vld [vmem:[#allocation3 + $0x5d] sm:$0xff]
        %v7490 = vld [vmem:[#allocation3 + $0x65] sm:$0xff]
        %v7491 = vld [vmem:[#allocation3 + $0x6d] sm:$0xff]
        %v7492 = vld [vmem:[#allocation3 + $0x75] sm:$0xff]
        %v7493 = vld [vmem:[#allocation3 + $0x7d] sm:$0xff]
        %v7494 = vld [vmem:[#allocation3 + $0x85] sm:$0xff]
        %v7495 = vld [vmem:[#allocation3 + $0x8d] sm:$0xff]
        %v7496 = vld [vmem:[#allocation3 + $0x95] sm:$0xff]
        %v7497 = vld [vmem:[#allocation3 + $0x9d] sm:$0xff]
        %v7498 = vld [vmem:[#allocation3 + $0x96] sm:$0xff]
        %v7499 = vld [vmem:[#allocation3 + $0x9e] sm:$0xff]
        %v7500 = vld [vmem:[#allocation3 + $0x97] sm:$0xff]
        %v7501 = vld [vmem:[#allocation3 + $0x9f] sm:$0xff]
        %v7502 = vld [vmem:[#allocation3 + $0x98] sm:$0xff]
        %v7503 = vld [vmem:[#allocation3 + $0xa0] sm:$0xff]
        %v7504 = vld [vmem:[#allocation3 + $0x9a] sm:$0xff]
        %v7505 = vld [vmem:[#allocation3 + $0xa2] sm:$0xff]
        %v7506 = vld [vmem:[#allocation3 + $0xaa] sm:$0xff]
        %v7507 = vld [vmem:[#allocation3 + $0x8b] sm:$0xff]
        %v7508 = vld [vmem:[#allocation3 + $0x93] sm:$0xff]
        %v7509 = vld [vmem:[#allocation3 + $0x9b] sm:$0xff]
        %v7510 = vld [vmem:[#allocation3 + $0xa3] sm:$0xff]
        %v7511 = vld [vmem:[#allocation3 + $0xab] sm:$0xff]
        %v7512 = vld [vmem:[#allocation3 + $0xa4] sm:$0xff]
        %v7513 = vld [vmem:[#allocation3 + $0xac] sm:$0xff]
        %v7514 = vld [vmem:[#allocation3 + $0xa5] sm:$0xff]
        %v7515 = vld [vmem:[#allocation3 + $0xad] sm:$0xff]
        %v7516 = vld [vmem:[#allocation3 + $0xa6] sm:$0xff]
        %v7517 = vld [vmem:[#allocation3 + $0xae] sm:$0xff]
        %v7518 = vld [vmem:[#allocation3 + $0xa8] sm:$0xff]
        %v7519 = vld [vmem:[#allocation3 + $0xb0] sm:$0xff]
        %v7520 = vld [vmem:[#allocation3 + $0xb8] sm:$0xff]
        %v7521 = vld [vmem:[#allocation3 + $0x99] sm:$0xff]
        %v7522 = vld [vmem:[#allocation3 + $0xa1] sm:$0xff]
        %v7523 = vld [vmem:[#allocation3 + $0xa9] sm:$0xff]
        %v7524 = vld [vmem:[#allocation3 + $0xb1] sm:$0xff]
        %v7525 = vld [vmem:[#allocation3 + $0xb9] sm:$0xff]
        %v7526 = vld [vmem:[#allocation3 + $0xb2] sm:$0xff]
        %v7527 = vld [vmem:[#allocation3 + $0xba] sm:$0xff]
        %v7528 = vld [vmem:[#allocation3 + $0xb3] sm:$0xff]
        %v7529 = vld [vmem:[#allocation3 + $0xbb] sm:$0xff]
        %v7530 = vld [vmem:[#allocation3 + $0xb4] sm:$0xff]
        %v7531 = vld [vmem:[#allocation3 + $0xbc] sm:$0xff]
        %7549 = vrot.lane.b32.xlu0 %v7370, 6
        %v7550 = vpop.permute.xlu0 %7549
        %7551 = vrot.lane.b32.xlu0 %v7371, 6
        %v7552 = vpop.permute.xlu0 %7551
        %7553 = vrot.lane.b32.xlu0 %v7372, 6
        %v7554 = vpop.permute.xlu0 %7553
        %7555 = vrot.lane.b32.xlu0 %v7373, 6
        %v7556 = vpop.permute.xlu0 %7555
        %7557 = vrot.lane.b32.xlu0 %v7374, 6
        %v7558 = vpop.permute.xlu0 %7557
        %7559 = vrot.lane.b32.xlu0 %v7375, 6
        %v7560 = vpop.permute.xlu0 %7559
        %7561 = vrot.lane.b32.xlu0 %v7376, 6
        %v7562 = vpop.permute.xlu0 %7561
        %7563 = vrot.lane.b32.xlu0 %v7377, 6
        %v7564 = vpop.permute.xlu0 %7563
        %7565 = vrot.lane.b32.xlu0 %v7378, 6
        %v7566 = vpop.permute.xlu0 %7565
        %7567 = vrot.lane.b32.xlu0 %v7379, 6
        %v7568 = vpop.permute.xlu0 %7567
        %7569 = vrot.lane.b32.xlu0 %v7380, 6
        %v7570 = vpop.permute.xlu0 %7569
        %7571 = vrot.lane.b32.xlu0 %v7381, 6
        %v7572 = vpop.permute.xlu0 %7571
        %7573 = vrot.lane.b32.xlu0 %v7382, 6
        %v7574 = vpop.permute.xlu0 %7573
        %7575 = vrot.lane.b32.xlu0 %v7383, 6
        %v7576 = vpop.permute.xlu0 %7575
        %7577 = vrot.lane.b32.xlu0 %v7384, 6
        %v7578 = vpop.permute.xlu0 %7577
        %7579 = vrot.lane.b32.xlu0 %v7385, 6
        %v7580 = vpop.permute.xlu0 %7579
        %7581 = vrot.lane.b32.xlu0 %v7386, 6
        %v7582 = vpop.permute.xlu0 %7581
        %7617 = vrot.lane.b32.xlu0 %v7387, 12
        %v7618 = vpop.permute.xlu0 %7617
        %7619 = vrot.lane.b32.xlu0 %v7388, 12
        %v7620 = vpop.permute.xlu0 %7619
        %7621 = vrot.lane.b32.xlu0 %v7389, 12
        %v7622 = vpop.permute.xlu0 %7621
        %7623 = vrot.lane.b32.xlu0 %v7390, 12
        %v7624 = vpop.permute.xlu0 %7623
        %7625 = vrot.lane.b32.xlu0 %v7391, 12
        %v7626 = vpop.permute.xlu0 %7625
        %7627 = vrot.lane.b32.xlu0 %v7392, 12
        %v7628 = vpop.permute.xlu0 %7627
        %7629 = vrot.lane.b32.xlu0 %v7393, 12
        %v7630 = vpop.permute.xlu0 %7629
        %7631 = vrot.lane.b32.xlu0 %v7394, 12
        %v7632 = vpop.permute.xlu0 %7631
        %7633 = vrot.lane.b32.xlu0 %v7395, 12
        %v7634 = vpop.permute.xlu0 %7633
        %7635 = vrot.lane.b32.xlu0 %v7396, 12
        %v7636 = vpop.permute.xlu0 %7635
        %7637 = vrot.lane.b32.xlu0 %v7397, 12
        %v7638 = vpop.permute.xlu0 %7637
        %7639 = vrot.lane.b32.xlu0 %v7398, 12
        %v7640 = vpop.permute.xlu0 %7639
        %7641 = vrot.lane.b32.xlu0 %v7399, 12
        %v7642 = vpop.permute.xlu0 %7641
        %7643 = vrot.lane.b32.xlu0 %v7400, 12
        %v7644 = vpop.permute.xlu0 %7643
        %7645 = vrot.lane.b32.xlu0 %v7401, 12
        %v7646 = vpop.permute.xlu0 %7645
        %7647 = vrot.lane.b32.xlu0 %v7402, 12
        %v7648 = vpop.permute.xlu0 %7647
        %7649 = vrot.lane.b32.xlu0 %v7403, 12
        %v7650 = vpop.permute.xlu0 %7649
        %7685 = vrot.lane.b32.xlu0 %v7404, 18
        %v7686 = vpop.permute.xlu0 %7685
        %7687 = vrot.lane.b32.xlu0 %v7405, 18
        %v7688 = vpop.permute.xlu0 %7687
        %7689 = vrot.lane.b32.xlu0 %v7406, 18
        %v7690 = vpop.permute.xlu0 %7689
        %7691 = vrot.lane.b32.xlu0 %v7407, 18
        %v7692 = vpop.permute.xlu0 %7691
        %7693 = vrot.lane.b32.xlu0 %v7408, 18
        %v7694 = vpop.permute.xlu0 %7693
        %7695 = vrot.lane.b32.xlu0 %v7409, 18
        %v7696 = vpop.permute.xlu0 %7695
        %7697 = vrot.lane.b32.xlu0 %v7410, 18
        %v7698 = vpop.permute.xlu0 %7697
        %7699 = vrot.lane.b32.xlu0 %v7411, 18
        %v7700 = vpop.permute.xlu0 %7699
        %7701 = vrot.lane.b32.xlu0 %v7412, 18
        %v7702 = vpop.permute.xlu0 %7701
        %7703 = vrot.lane.b32.xlu0 %v7413, 18
        %v7704 = vpop.permute.xlu0 %7703
        %7705 = vrot.lane.b32.xlu0 %v7414, 18
        %v7706 = vpop.permute.xlu0 %7705
        %7707 = vrot.lane.b32.xlu0 %v7415, 18
        %v7708 = vpop.permute.xlu0 %7707
        %7709 = vrot.lane.b32.xlu0 %v7416, 18
        %v7710 = vpop.permute.xlu0 %7709
        %7711 = vrot.lane.b32.xlu0 %v7417, 18
        %v7712 = vpop.permute.xlu0 %7711
        %7713 = vrot.lane.b32.xlu0 %v7418, 18
        %v7714 = vpop.permute.xlu0 %7713
        %7715 = vrot.lane.b32.xlu0 %v7419, 18
        %v7716 = vpop.permute.xlu0 %7715
        %7717 = vrot.lane.b32.xlu0 %v7420, 18
        %v7718 = vpop.permute.xlu0 %7717
        %7753 = vrot.lane.b32.xlu0 %v7421, 24
        %v7754 = vpop.permute.xlu0 %7753
        %7755 = vrot.lane.b32.xlu0 %v7422, 24
        %v7756 = vpop.permute.xlu0 %7755
        %7757 = vrot.lane.b32.xlu0 %v7423, 24
        %v7758 = vpop.permute.xlu0 %7757
        %7759 = vrot.lane.b32.xlu0 %v7424, 24
        %v7760 = vpop.permute.xlu0 %7759
        %7761 = vrot.lane.b32.xlu0 %v7425, 24
        %v7762 = vpop.permute.xlu0 %7761
        %7763 = vrot.lane.b32.xlu0 %v7426, 24
        %v7764 = vpop.permute.xlu0 %7763
        %7765 = vrot.lane.b32.xlu0 %v7427, 24
        %v7766 = vpop.permute.xlu0 %7765
        %7767 = vrot.lane.b32.xlu0 %v7428, 24
        %v7768 = vpop.permute.xlu0 %7767
        %7769 = vrot.lane.b32.xlu0 %v7429, 24
        %v7770 = vpop.permute.xlu0 %7769
        %7771 = vrot.lane.b32.xlu0 %v7430, 24
        %v7772 = vpop.permute.xlu0 %7771
        %7773 = vrot.lane.b32.xlu0 %v7431, 24
        %v7774 = vpop.permute.xlu0 %7773
        %7775 = vrot.lane.b32.xlu0 %v7432, 24
        %v7776 = vpop.permute.xlu0 %7775
        %7777 = vrot.lane.b32.xlu0 %v7433, 24
        %v7778 = vpop.permute.xlu0 %7777
        %7779 = vrot.lane.b32.xlu0 %v7434, 24
        %v7780 = vpop.permute.xlu0 %7779
        %7781 = vrot.lane.b32.xlu0 %v7435, 24
        %v7782 = vpop.permute.xlu0 %7781
        %7783 = vrot.lane.b32.xlu0 %v7436, 24
        %v7784 = vpop.permute.xlu0 %7783
        %7785 = vrot.lane.b32.xlu0 %v7437, 24
        %v7786 = vpop.permute.xlu0 %7785
        %7821 = vrot.lane.b32.xlu0 %v7438, 30
        %v7822 = vpop.permute.xlu0 %7821
        %7823 = vrot.lane.b32.xlu0 %v7439, 30
        %v7824 = vpop.permute.xlu0 %7823
        %7825 = vrot.lane.b32.xlu0 %v7440, 30
        %v7826 = vpop.permute.xlu0 %7825
        %7827 = vrot.lane.b32.xlu0 %v7441, 30
        %v7828 = vpop.permute.xlu0 %7827
        %7829 = vrot.lane.b32.xlu0 %v7442, 30
        %v7830 = vpop.permute.xlu0 %7829
        %7831 = vrot.lane.b32.xlu0 %v7443, 30
        %v7832 = vpop.permute.xlu0 %7831
        %7833 = vrot.lane.b32.xlu0 %v7444, 30
        %v7834 = vpop.permute.xlu0 %7833
        %7835 = vrot.lane.b32.xlu0 %v7445, 30
        %v7836 = vpop.permute.xlu0 %7835
        %7837 = vrot.lane.b32.xlu0 %v7446, 30
        %v7838 = vpop.permute.xlu0 %7837
        %7839 = vrot.lane.b32.xlu0 %v7447, 30
        %v7840 = vpop.permute.xlu0 %7839
        %7841 = vrot.lane.b32.xlu0 %v7448, 30
        %v7842 = vpop.permute.xlu0 %7841
        %7843 = vrot.lane.b32.xlu0 %v7449, 30
        %v7844 = vpop.permute.xlu0 %7843
        %7845 = vrot.lane.b32.xlu0 %v7450, 30
        %v7846 = vpop.permute.xlu0 %7845
        %7847 = vrot.lane.b32.xlu0 %v7451, 30
        %v7848 = vpop.permute.xlu0 %7847
        %7849 = vrot.lane.b32.xlu0 %v7452, 30
        %v7850 = vpop.permute.xlu0 %7849
        %7851 = vrot.lane.b32.xlu0 %v7453, 30
        %v7852 = vpop.permute.xlu0 %7851
        %7853 = vrot.lane.b32.xlu0 %v7454, 30
        %v7854 = vpop.permute.xlu0 %7853
        %7889 = vrot.lane.b32.xlu0 %v7455, 36
        %v7890 = vpop.permute.xlu0 %7889
        %7891 = vrot.lane.b32.xlu0 %v7456, 36
        %v7892 = vpop.permute.xlu0 %7891
        %7893 = vrot.lane.b32.xlu0 %v7457, 36
        %v7894 = vpop.permute.xlu0 %7893
        %7895 = vrot.lane.b32.xlu0 %v7458, 36
        %v7896 = vpop.permute.xlu0 %7895
        %7897 = vrot.lane.b32.xlu0 %v7459, 36
        %v7898 = vpop.permute.xlu0 %7897
        %7899 = vrot.lane.b32.xlu0 %v7460, 36
        %v7900 = vpop.permute.xlu0 %7899
        %7901 = vrot.lane.b32.xlu0 %v7461, 36
        %v7902 = vpop.permute.xlu0 %7901
        %7903 = vrot.lane.b32.xlu0 %v7462, 36
        %v7904 = vpop.permute.xlu0 %7903
        %7905 = vrot.lane.b32.xlu0 %v7463, 36
        %v7906 = vpop.permute.xlu0 %7905
        %7907 = vrot.lane.b32.xlu0 %v7464, 36
        %v7908 = vpop.permute.xlu0 %7907
        %7909 = vrot.lane.b32.xlu0 %v7465, 36
        %v7910 = vpop.permute.xlu0 %7909
        %7911 = vrot.lane.b32.xlu0 %v7466, 36
        %v7912 = vpop.permute.xlu0 %7911
        %7913 = vrot.lane.b32.xlu0 %v7467, 36
        %v7914 = vpop.permute.xlu0 %7913
        %7915 = vrot.lane.b32.xlu0 %v7468, 36
        %v7916 = vpop.permute.xlu0 %7915
        %7917 = vrot.lane.b32.xlu0 %v7469, 36
        %v7918 = vpop.permute.xlu0 %7917
        %7919 = vrot.lane.b32.xlu0 %v7470, 36
        %v7920 = vpop.permute.xlu0 %7919
        %7921 = vrot.lane.b32.xlu0 %v7471, 36
        %v7922 = vpop.permute.xlu0 %7921
        %7957 = vrot.lane.b32.xlu0 %v7355, 42
        %v7958 = vpop.permute.xlu0 %7957
        %7959 = vrot.lane.b32.xlu0 %v7356, 42
        %v7960 = vpop.permute.xlu0 %7959
        %7961 = vrot.lane.b32.xlu0 %v7357, 42
        %v7962 = vpop.permute.xlu0 %7961
        %7963 = vrot.lane.b32.xlu0 %v7358, 42
        %v7964 = vpop.permute.xlu0 %7963
        %7965 = vrot.lane.b32.xlu0 %v7359, 42
        %v7966 = vpop.permute.xlu0 %7965
        %7967 = vrot.lane.b32.xlu0 %v7360, 42
        %v7968 = vpop.permute.xlu0 %7967
        %7969 = vrot.lane.b32.xlu0 %v7361, 42
        %v7970 = vpop.permute.xlu0 %7969
        %7971 = vrot.lane.b32.xlu0 %v7362, 42
        %v7972 = vpop.permute.xlu0 %7971
        %7973 = vrot.lane.b32.xlu0 %v7363, 42
        %v7974 = vpop.permute.xlu0 %7973
        %7975 = vrot.lane.b32.xlu0 %v7364, 42
        %v7976 = vpop.permute.xlu0 %7975
        %7977 = vrot.lane.b32.xlu0 %v7365, 42
        %v7978 = vpop.permute.xlu0 %7977
        %7979 = vrot.lane.b32.xlu0 %v7366, 42
        %v7980 = vpop.permute.xlu0 %7979
        %7981 = vrot.lane.b32.xlu0 %v7367, 42
        %v7982 = vpop.permute.xlu0 %7981
        %7983 = vrot.lane.b32.xlu0 %v7368, 42
        %v7984 = vpop.permute.xlu0 %7983
        %7985 = vrot.lane.b32.xlu0 %v7369, 42
        %v7986 = vpop.permute.xlu0 %7985
        %7987 = vrot.lane.b32.xlu0 %v7472, 42
        %v7988 = vpop.permute.xlu0 %7987
        %7989 = vrot.lane.b32.xlu0 %v7473, 42
        %v7990 = vpop.permute.xlu0 %7989
        %8010 = vrot.lane.b32.xlu0 %v7372, 48
        %v8011 = vpop.permute.xlu0 %8010
        %8012 = vrot.lane.b32.xlu0 %v7373, 48
        %v8013 = vpop.permute.xlu0 %8012
        %8014 = vrot.lane.b32.xlu0 %v7374, 48
        %v8015 = vpop.permute.xlu0 %8014
        %8016 = vrot.lane.b32.xlu0 %v7375, 48
        %v8017 = vpop.permute.xlu0 %8016
        %8018 = vrot.lane.b32.xlu0 %v7376, 48
        %v8019 = vpop.permute.xlu0 %8018
        %8020 = vrot.lane.b32.xlu0 %v7377, 48
        %v8021 = vpop.permute.xlu0 %8020
        %8022 = vrot.lane.b32.xlu0 %v7378, 48
        %v8023 = vpop.permute.xlu0 %8022
        %8024 = vrot.lane.b32.xlu0 %v7379, 48
        %v8025 = vpop.permute.xlu0 %8024
        %8026 = vrot.lane.b32.xlu0 %v7380, 48
        %v8027 = vpop.permute.xlu0 %8026
        %8028 = vrot.lane.b32.xlu0 %v7381, 48
        %v8029 = vpop.permute.xlu0 %8028
        %8030 = vrot.lane.b32.xlu0 %v7382, 48
        %v8031 = vpop.permute.xlu0 %8030
        %8032 = vrot.lane.b32.xlu0 %v7383, 48
        %v8033 = vpop.permute.xlu0 %8032
        %8034 = vrot.lane.b32.xlu0 %v7384, 48
        %v8035 = vpop.permute.xlu0 %8034
        %8036 = vrot.lane.b32.xlu0 %v7385, 48
        %v8037 = vpop.permute.xlu0 %8036
        %8038 = vrot.lane.b32.xlu0 %v7386, 48
        %v8039 = vpop.permute.xlu0 %8038
        %8040 = vrot.lane.b32.xlu0 %v7474, 48
        %v8041 = vpop.permute.xlu0 %8040
        %8042 = vrot.lane.b32.xlu0 %v7475, 48
        %v8043 = vpop.permute.xlu0 %8042
        %8063 = vrot.lane.b32.xlu0 %v7389, 54
        %v8064 = vpop.permute.xlu0 %8063
        %8065 = vrot.lane.b32.xlu0 %v7390, 54
        %v8066 = vpop.permute.xlu0 %8065
        %8067 = vrot.lane.b32.xlu0 %v7391, 54
        %v8068 = vpop.permute.xlu0 %8067
        %8069 = vrot.lane.b32.xlu0 %v7392, 54
        %v8070 = vpop.permute.xlu0 %8069
        %8071 = vrot.lane.b32.xlu0 %v7393, 54
        %v8072 = vpop.permute.xlu0 %8071
        %8073 = vrot.lane.b32.xlu0 %v7394, 54
        %v8074 = vpop.permute.xlu0 %8073
        %8075 = vrot.lane.b32.xlu0 %v7395, 54
        %v8076 = vpop.permute.xlu0 %8075
        %8077 = vrot.lane.b32.xlu0 %v7396, 54
        %v8078 = vpop.permute.xlu0 %8077
        %8079 = vrot.lane.b32.xlu0 %v7397, 54
        %v8080 = vpop.permute.xlu0 %8079
        %8081 = vrot.lane.b32.xlu0 %v7398, 54
        %v8082 = vpop.permute.xlu0 %8081
        %8083 = vrot.lane.b32.xlu0 %v7399, 54
        %v8084 = vpop.permute.xlu0 %8083
        %8085 = vrot.lane.b32.xlu0 %v7400, 54
        %v8086 = vpop.permute.xlu0 %8085
        %8087 = vrot.lane.b32.xlu0 %v7401, 54
        %v8088 = vpop.permute.xlu0 %8087
        %8089 = vrot.lane.b32.xlu0 %v7402, 54
        %v8090 = vpop.permute.xlu0 %8089
        %8091 = vrot.lane.b32.xlu0 %v7403, 54
        %v8092 = vpop.permute.xlu0 %8091
        %8093 = vrot.lane.b32.xlu0 %v7476, 54
        %v8094 = vpop.permute.xlu0 %8093
        %8095 = vrot.lane.b32.xlu0 %v7477, 54
        %v8096 = vpop.permute.xlu0 %8095
        %8117 = vrot.lane.b32.xlu0 %v7424, 60
        %v8118 = vpop.permute.xlu0 %8117
        %8119 = vrot.lane.b32.xlu0 %v7425, 60
        %v8120 = vpop.permute.xlu0 %8119
        %8121 = vrot.lane.b32.xlu0 %v7426, 60
        %v8122 = vpop.permute.xlu0 %8121
        %8123 = vrot.lane.b32.xlu0 %v7427, 60
        %v8124 = vpop.permute.xlu0 %8123
        %8125 = vrot.lane.b32.xlu0 %v7428, 60
        %v8126 = vpop.permute.xlu0 %8125
        %8127 = vrot.lane.b32.xlu0 %v7429, 60
        %v8128 = vpop.permute.xlu0 %8127
        %8129 = vrot.lane.b32.xlu0 %v7430, 60
        %v8130 = vpop.permute.xlu0 %8129
        %8131 = vrot.lane.b32.xlu0 %v7431, 60
        %v8132 = vpop.permute.xlu0 %8131
        %8133 = vrot.lane.b32.xlu0 %v7432, 60
        %v8134 = vpop.permute.xlu0 %8133
        %8135 = vrot.lane.b32.xlu0 %v7433, 60
        %v8136 = vpop.permute.xlu0 %8135
        %8137 = vrot.lane.b32.xlu0 %v7434, 60
        %v8138 = vpop.permute.xlu0 %8137
        %8139 = vrot.lane.b32.xlu0 %v7435, 60
        %v8140 = vpop.permute.xlu0 %8139
        %8141 = vrot.lane.b32.xlu0 %v7436, 60
        %v8142 = vpop.permute.xlu0 %8141
        %8143 = vrot.lane.b32.xlu0 %v7437, 60
        %v8144 = vpop.permute.xlu0 %8143
        %8145 = vrot.lane.b32.xlu0 %v7478, 60
        %v8146 = vpop.permute.xlu0 %8145
        %8147 = vrot.lane.b32.xlu0 %v7479, 60
        %v8148 = vpop.permute.xlu0 %8147
        %8149 = vrot.lane.b32.xlu0 %v7480, 60
        %v8150 = vpop.permute.xlu0 %8149
        %8185 = vrot.lane.b32.xlu0 %v7481, 66
        %v8186 = vpop.permute.xlu0 %8185
        %8187 = vrot.lane.b32.xlu0 %v7482, 66
        %v8188 = vpop.permute.xlu0 %8187
        %8189 = vrot.lane.b32.xlu0 %v7483, 66
        %v8190 = vpop.permute.xlu0 %8189
        %8191 = vrot.lane.b32.xlu0 %v7484, 66
        %v8192 = vpop.permute.xlu0 %8191
        %8193 = vrot.lane.b32.xlu0 %v7485, 66
        %v8194 = vpop.permute.xlu0 %8193
        %8195 = vrot.lane.b32.xlu0 %v7486, 66
        %v8196 = vpop.permute.xlu0 %8195
        %8197 = vrot.lane.b32.xlu0 %v7487, 66
        %v8198 = vpop.permute.xlu0 %8197
        %8199 = vrot.lane.b32.xlu0 %v7488, 66
        %v8200 = vpop.permute.xlu0 %8199
        %8201 = vrot.lane.b32.xlu0 %v7489, 66
        %v8202 = vpop.permute.xlu0 %8201
        %8203 = vrot.lane.b32.xlu0 %v7490, 66
        %v8204 = vpop.permute.xlu0 %8203
        %8205 = vrot.lane.b32.xlu0 %v7491, 66
        %v8206 = vpop.permute.xlu0 %8205
        %8207 = vrot.lane.b32.xlu0 %v7492, 66
        %v8208 = vpop.permute.xlu0 %8207
        %8209 = vrot.lane.b32.xlu0 %v7493, 66
        %v8210 = vpop.permute.xlu0 %8209
        %8211 = vrot.lane.b32.xlu0 %v7494, 66
        %v8212 = vpop.permute.xlu0 %8211
        %8213 = vrot.lane.b32.xlu0 %v7495, 66
        %v8214 = vpop.permute.xlu0 %8213
        %8215 = vrot.lane.b32.xlu0 %v7496, 66
        %v8216 = vpop.permute.xlu0 %8215
        %8217 = vrot.lane.b32.xlu0 %v7497, 66
        %v8218 = vpop.permute.xlu0 %8217
        %8238 = vrot.lane.b32.xlu0 %v7440, 72
        %v8239 = vpop.permute.xlu0 %8238
        %8240 = vrot.lane.b32.xlu0 %v7441, 72
        %v8241 = vpop.permute.xlu0 %8240
        %8242 = vrot.lane.b32.xlu0 %v7442, 72
        %v8243 = vpop.permute.xlu0 %8242
        %8244 = vrot.lane.b32.xlu0 %v7443, 72
        %v8245 = vpop.permute.xlu0 %8244
        %8246 = vrot.lane.b32.xlu0 %v7444, 72
        %v8247 = vpop.permute.xlu0 %8246
        %8248 = vrot.lane.b32.xlu0 %v7445, 72
        %v8249 = vpop.permute.xlu0 %8248
        %8250 = vrot.lane.b32.xlu0 %v7446, 72
        %v8251 = vpop.permute.xlu0 %8250
        %8252 = vrot.lane.b32.xlu0 %v7447, 72
        %v8253 = vpop.permute.xlu0 %8252
        %8254 = vrot.lane.b32.xlu0 %v7448, 72
        %v8255 = vpop.permute.xlu0 %8254
        %8256 = vrot.lane.b32.xlu0 %v7449, 72
        %v8257 = vpop.permute.xlu0 %8256
        %8258 = vrot.lane.b32.xlu0 %v7450, 72
        %v8259 = vpop.permute.xlu0 %8258
        %8260 = vrot.lane.b32.xlu0 %v7451, 72
        %v8261 = vpop.permute.xlu0 %8260
        %8262 = vrot.lane.b32.xlu0 %v7452, 72
        %v8263 = vpop.permute.xlu0 %8262
        %8264 = vrot.lane.b32.xlu0 %v7453, 72
        %v8265 = vpop.permute.xlu0 %8264
        %8266 = vrot.lane.b32.xlu0 %v7454, 72
        %v8267 = vpop.permute.xlu0 %8266
        %8268 = vrot.lane.b32.xlu0 %v7498, 72
        %v8269 = vpop.permute.xlu0 %8268
        %8270 = vrot.lane.b32.xlu0 %v7499, 72
        %v8271 = vpop.permute.xlu0 %8270
        %8291 = vrot.lane.b32.xlu0 %v7457, 78
        %v8292 = vpop.permute.xlu0 %8291
        %8293 = vrot.lane.b32.xlu0 %v7458, 78
        %v8294 = vpop.permute.xlu0 %8293
        %8295 = vrot.lane.b32.xlu0 %v7459, 78
        %v8296 = vpop.permute.xlu0 %8295
        %8297 = vrot.lane.b32.xlu0 %v7460, 78
        %v8298 = vpop.permute.xlu0 %8297
        %8299 = vrot.lane.b32.xlu0 %v7461, 78
        %v8300 = vpop.permute.xlu0 %8299
        %8301 = vrot.lane.b32.xlu0 %v7462, 78
        %v8302 = vpop.permute.xlu0 %8301
        %8303 = vrot.lane.b32.xlu0 %v7463, 78
        %v8304 = vpop.permute.xlu0 %8303
        %8305 = vrot.lane.b32.xlu0 %v7464, 78
        %v8306 = vpop.permute.xlu0 %8305
        %8307 = vrot.lane.b32.xlu0 %v7465, 78
        %v8308 = vpop.permute.xlu0 %8307
        %8309 = vrot.lane.b32.xlu0 %v7466, 78
        %v8310 = vpop.permute.xlu0 %8309
        %8311 = vrot.lane.b32.xlu0 %v7467, 78
        %v8312 = vpop.permute.xlu0 %8311
        %8313 = vrot.lane.b32.xlu0 %v7468, 78
        %v8314 = vpop.permute.xlu0 %8313
        %8315 = vrot.lane.b32.xlu0 %v7469, 78
        %v8316 = vpop.permute.xlu0 %8315
        %8317 = vrot.lane.b32.xlu0 %v7470, 78
        %v8318 = vpop.permute.xlu0 %8317
        %8319 = vrot.lane.b32.xlu0 %v7471, 78
        %v8320 = vpop.permute.xlu0 %8319
        %8321 = vrot.lane.b32.xlu0 %v7500, 78
        %v8322 = vpop.permute.xlu0 %8321
        %8323 = vrot.lane.b32.xlu0 %v7501, 78
        %v8324 = vpop.permute.xlu0 %8323
        %8344 = vrot.lane.b32.xlu0 %v7357, 84
        %v8345 = vpop.permute.xlu0 %8344
        %8346 = vrot.lane.b32.xlu0 %v7358, 84
        %v8347 = vpop.permute.xlu0 %8346
        %8348 = vrot.lane.b32.xlu0 %v7359, 84
        %v8349 = vpop.permute.xlu0 %8348
        %8350 = vrot.lane.b32.xlu0 %v7360, 84
        %v8351 = vpop.permute.xlu0 %8350
        %8352 = vrot.lane.b32.xlu0 %v7361, 84
        %v8353 = vpop.permute.xlu0 %8352
        %8354 = vrot.lane.b32.xlu0 %v7362, 84
        %v8355 = vpop.permute.xlu0 %8354
        %8356 = vrot.lane.b32.xlu0 %v7363, 84
        %v8357 = vpop.permute.xlu0 %8356
        %8358 = vrot.lane.b32.xlu0 %v7364, 84
        %v8359 = vpop.permute.xlu0 %8358
        %8360 = vrot.lane.b32.xlu0 %v7365, 84
        %v8361 = vpop.permute.xlu0 %8360
        %8362 = vrot.lane.b32.xlu0 %v7366, 84
        %v8363 = vpop.permute.xlu0 %8362
        %8364 = vrot.lane.b32.xlu0 %v7367, 84
        %v8365 = vpop.permute.xlu0 %8364
        %8366 = vrot.lane.b32.xlu0 %v7368, 84
        %v8367 = vpop.permute.xlu0 %8366
        %8368 = vrot.lane.b32.xlu0 %v7369, 84
        %v8369 = vpop.permute.xlu0 %8368
        %8370 = vrot.lane.b32.xlu0 %v7472, 84
        %v8371 = vpop.permute.xlu0 %8370
        %8372 = vrot.lane.b32.xlu0 %v7473, 84
        %v8373 = vpop.permute.xlu0 %8372
        %8374 = vrot.lane.b32.xlu0 %v7502, 84
        %v8375 = vpop.permute.xlu0 %8374
        %8376 = vrot.lane.b32.xlu0 %v7503, 84
        %v8377 = vpop.permute.xlu0 %8376
        %8398 = vrot.lane.b32.xlu0 %v7392, 90
        %v8399 = vpop.permute.xlu0 %8398
        %8400 = vrot.lane.b32.xlu0 %v7393, 90
        %v8401 = vpop.permute.xlu0 %8400
        %8402 = vrot.lane.b32.xlu0 %v7394, 90
        %v8403 = vpop.permute.xlu0 %8402
        %8404 = vrot.lane.b32.xlu0 %v7395, 90
        %v8405 = vpop.permute.xlu0 %8404
        %8406 = vrot.lane.b32.xlu0 %v7396, 90
        %v8407 = vpop.permute.xlu0 %8406
        %8408 = vrot.lane.b32.xlu0 %v7397, 90
        %v8409 = vpop.permute.xlu0 %8408
        %8410 = vrot.lane.b32.xlu0 %v7398, 90
        %v8411 = vpop.permute.xlu0 %8410
        %8412 = vrot.lane.b32.xlu0 %v7399, 90
        %v8413 = vpop.permute.xlu0 %8412
        %8414 = vrot.lane.b32.xlu0 %v7400, 90
        %v8415 = vpop.permute.xlu0 %8414
        %8416 = vrot.lane.b32.xlu0 %v7401, 90
        %v8417 = vpop.permute.xlu0 %8416
        %8418 = vrot.lane.b32.xlu0 %v7402, 90
        %v8419 = vpop.permute.xlu0 %8418
        %8420 = vrot.lane.b32.xlu0 %v7403, 90
        %v8421 = vpop.permute.xlu0 %8420
        %8422 = vrot.lane.b32.xlu0 %v7476, 90
        %v8423 = vpop.permute.xlu0 %8422
        %8424 = vrot.lane.b32.xlu0 %v7477, 90
        %v8425 = vpop.permute.xlu0 %8424
        %8426 = vrot.lane.b32.xlu0 %v7504, 90
        %v8427 = vpop.permute.xlu0 %8426
        %8428 = vrot.lane.b32.xlu0 %v7505, 90
        %v8429 = vpop.permute.xlu0 %8428
        %8430 = vrot.lane.b32.xlu0 %v7506, 90
        %v8431 = vpop.permute.xlu0 %8430
        %v8449 = vsel %vm3201, %v7353, %v7550
        %v8450 = vsel %vm3201, %v7354, %v7552
        %v8451 = vsel %vm3201, %v7355, %v7554
        %v8452 = vsel %vm3201, %v7356, %v7556
        %v8453 = vsel %vm3201, %v7357, %v7558
        %v8454 = vsel %vm3201, %v7358, %v7560
        %v8455 = vsel %vm3201, %v7359, %v7562
        %v8456 = vsel %vm3201, %v7360, %v7564
        %v8457 = vsel %vm3201, %v7361, %v7566
        %v8458 = vsel %vm3201, %v7362, %v7568
        %v8459 = vsel %vm3201, %v7363, %v7570
        %v8460 = vsel %vm3201, %v7364, %v7572
        %v8461 = vsel %vm3201, %v7365, %v7574
        %v8462 = vsel %vm3201, %v7366, %v7576
        %v8463 = vsel %vm3201, %v7367, %v7578
        %v8464 = vsel %vm3201, %v7368, %v7580
        %v8465 = vsel %vm3201, %v7369, %v7582
        %v8466 = vsel %vm3459, %v8449, %v7618
        %v8467 = vsel %vm3459, %v8450, %v7620
        %v8468 = vsel %vm3459, %v8451, %v7622
        %v8469 = vsel %vm3459, %v8452, %v7624
        %v8470 = vsel %vm3459, %v8453, %v7626
        %v8471 = vsel %vm3459, %v8454, %v7628
        %v8472 = vsel %vm3459, %v8455, %v7630
        %v8473 = vsel %vm3459, %v8456, %v7632
        %v8474 = vsel %vm3459, %v8457, %v7634
        %v8475 = vsel %vm3459, %v8458, %v7636
        %v8476 = vsel %vm3459, %v8459, %v7638
        %v8477 = vsel %vm3459, %v8460, %v7640
        %v8478 = vsel %vm3459, %v8461, %v7642
        %v8479 = vsel %vm3459, %v8462, %v7644
        %v8480 = vsel %vm3459, %v8463, %v7646
        %v8481 = vsel %vm3459, %v8464, %v7648
        %v8482 = vsel %vm3459, %v8465, %v7650
        %vm8483 = vcmask 146432
        %v8484 = vsel %vm8483, %v8466, %v7686
        %v8485 = vsel %vm8483, %v8467, %v7688
        %v8486 = vsel %vm8483, %v8468, %v7690
        %v8487 = vsel %vm8483, %v8469, %v7692
        %v8488 = vsel %vm8483, %v8470, %v7694
        %v8489 = vsel %vm8483, %v8471, %v7696
        %v8490 = vsel %vm8483, %v8472, %v7698
        %v8491 = vsel %vm8483, %v8473, %v7700
        %v8492 = vsel %vm8483, %v8474, %v7702
        %v8493 = vsel %vm8483, %v8475, %v7704
        %v8494 = vsel %vm8483, %v8476, %v7706
        %v8495 = vsel %vm8483, %v8477, %v7708
        %v8496 = vsel %vm8483, %v8478, %v7710
        %v8497 = vsel %vm8483, %v8479, %v7712
        %v8498 = vsel %vm8483, %v8480, %v7714
        %v8499 = vsel %vm8483, %v8481, %v7716
        %v8500 = vsel %vm8483, %v8482, %v7718
        %vm8501 = vcmask 195584
        %v8502 = vsel %vm8501, %v8484, %v7754
        %v8503 = vsel %vm8501, %v8485, %v7756
        %v8504 = vsel %vm8501, %v8486, %v7758
        %v8505 = vsel %vm8501, %v8487, %v7760
        %v8506 = vsel %vm8501, %v8488, %v7762
        %v8507 = vsel %vm8501, %v8489, %v7764
        %v8508 = vsel %vm8501, %v8490, %v7766
        %v8509 = vsel %vm8501, %v8491, %v7768
        %v8510 = vsel %vm8501, %v8492, %v7770
        %v8511 = vsel %vm8501, %v8493, %v7772
        %v8512 = vsel %vm8501, %v8494, %v7774
        %v8513 = vsel %vm8501, %v8495, %v7776
        %v8514 = vsel %vm8501, %v8496, %v7778
        %v8515 = vsel %vm8501, %v8497, %v7780
        %v8516 = vsel %vm8501, %v8498, %v7782
        %v8517 = vsel %vm8501, %v8499, %v7784
        %v8518 = vsel %vm8501, %v8500, %v7786
        %v8519 = vsel %vm5169, %v8502, %v7822
        %v8520 = vsel %vm5169, %v8503, %v7824
        %v8521 = vsel %vm5169, %v8504, %v7826
        %v8522 = vsel %vm5169, %v8505, %v7828
        %v8523 = vsel %vm5169, %v8506, %v7830
        %v8524 = vsel %vm5169, %v8507, %v7832
        %v8525 = vsel %vm5169, %v8508, %v7834
        %v8526 = vsel %vm5169, %v8509, %v7836
        %v8527 = vsel %vm5169, %v8510, %v7838
        %v8528 = vsel %vm5169, %v8511, %v7840
        %v8529 = vsel %vm5169, %v8512, %v7842
        %v8530 = vsel %vm5169, %v8513, %v7844
        %v8531 = vsel %vm5169, %v8514, %v7846
        %v8532 = vsel %vm5169, %v8515, %v7848
        %v8533 = vsel %vm5169, %v8516, %v7850
        %v8534 = vsel %vm5169, %v8517, %v7852
        %v8535 = vsel %vm5169, %v8518, %v7854
        %vm8536 = vcmask 293888
        %v8537 = vsel %vm8536, %v8519, %v7890
        %v8538 = vsel %vm8536, %v8520, %v7892
        %v8539 = vsel %vm8536, %v8521, %v7894
        %v8540 = vsel %vm8536, %v8522, %v7896
        %v8541 = vsel %vm8536, %v8523, %v7898
        %v8542 = vsel %vm8536, %v8524, %v7900
        %v8543 = vsel %vm8536, %v8525, %v7902
        %v8544 = vsel %vm8536, %v8526, %v7904
        %v8545 = vsel %vm8536, %v8527, %v7906
        %v8546 = vsel %vm8536, %v8528, %v7908
        %v8547 = vsel %vm8536, %v8529, %v7910
        %v8548 = vsel %vm8536, %v8530, %v7912
        %v8549 = vsel %vm8536, %v8531, %v7914
        %v8550 = vsel %vm8536, %v8532, %v7916
        %v8551 = vsel %vm8536, %v8533, %v7918
        %v8552 = vsel %vm8536, %v8534, %v7920
        %v8553 = vsel %vm8536, %v8535, %v7922
        %vm8554 = vcmask 343040
        %v8555 = vsel %vm8554, %v8537, %v7958
        %v8556 = vsel %vm8554, %v8538, %v7960
        %v8557 = vsel %vm8554, %v8539, %v7962
        %v8558 = vsel %vm8554, %v8540, %v7964
        %v8559 = vsel %vm8554, %v8541, %v7966
        %v8560 = vsel %vm8554, %v8542, %v7968
        %v8561 = vsel %vm8554, %v8543, %v7970
        %v8562 = vsel %vm8554, %v8544, %v7972
        %v8563 = vsel %vm8554, %v8545, %v7974
        %v8564 = vsel %vm8554, %v8546, %v7976
        %v8565 = vsel %vm8554, %v8547, %v7978
        %v8566 = vsel %vm8554, %v8548, %v7980
        %v8567 = vsel %vm8554, %v8549, %v7982
        %v8568 = vsel %vm8554, %v8550, %v7984
        %v8569 = vsel %vm8554, %v8551, %v7986
        %v8570 = vsel %vm8554, %v8552, %v7988
        %v8571 = vsel %vm8554, %v8553, %v7990
        %vm8572 = vcmask 392192
        %v8573 = vsel %vm8572, %v8555, %v8011
        %v8574 = vsel %vm8572, %v8556, %v8013
        %v8575 = vsel %vm8572, %v8557, %v8015
        %v8576 = vsel %vm8572, %v8558, %v8017
        %v8577 = vsel %vm8572, %v8559, %v8019
        %v8578 = vsel %vm8572, %v8560, %v8021
        %v8579 = vsel %vm8572, %v8561, %v8023
        %v8580 = vsel %vm8572, %v8562, %v8025
        %v8581 = vsel %vm8572, %v8563, %v8027
        %v8582 = vsel %vm8572, %v8564, %v8029
        %v8583 = vsel %vm8572, %v8565, %v8031
        %v8584 = vsel %vm8572, %v8566, %v8033
        %v8585 = vsel %vm8572, %v8567, %v8035
        %v8586 = vsel %vm8572, %v8568, %v8037
        %v8587 = vsel %vm8572, %v8569, %v8039
        %v8588 = vsel %vm8572, %v8570, %v8041
        %v8589 = vsel %vm8572, %v8571, %v8043
        %vm8590 = vcmask 441344
        %v8591 = vsel %vm8590, %v8573, %v8064
        %v8592 = vsel %vm8590, %v8574, %v8066
        %v8593 = vsel %vm8590, %v8575, %v8068
        %v8594 = vsel %vm8590, %v8576, %v8070
        %v8595 = vsel %vm8590, %v8577, %v8072
        %v8596 = vsel %vm8590, %v8578, %v8074
        %v8597 = vsel %vm8590, %v8579, %v8076
        %v8598 = vsel %vm8590, %v8580, %v8078
        %v8599 = vsel %vm8590, %v8581, %v8080
        %v8600 = vsel %vm8590, %v8582, %v8082
        %v8601 = vsel %vm8590, %v8583, %v8084
        %v8602 = vsel %vm8590, %v8584, %v8086
        %v8603 = vsel %vm8590, %v8585, %v8088
        %v8604 = vsel %vm8590, %v8586, %v8090
        %v8605 = vsel %vm8590, %v8587, %v8092
        %v8606 = vsel %vm8590, %v8588, %v8094
        %v8607 = vsel %vm8590, %v8589, %v8096
        %v8608 = vsel %vm5395, %v8591, %v8118
        %v8609 = vsel %vm5395, %v8592, %v8120
        %v8610 = vsel %vm5395, %v8593, %v8122
        %v8611 = vsel %vm5395, %v8594, %v8124
        %v8612 = vsel %vm5395, %v8595, %v8126
        %v8613 = vsel %vm5395, %v8596, %v8128
        %v8614 = vsel %vm5395, %v8597, %v8130
        %v8615 = vsel %vm5395, %v8598, %v8132
        %v8616 = vsel %vm5395, %v8599, %v8134
        %v8617 = vsel %vm5395, %v8600, %v8136
        %v8618 = vsel %vm5395, %v8601, %v8138
        %v8619 = vsel %vm5395, %v8602, %v8140
        %v8620 = vsel %vm5395, %v8603, %v8142
        %v8621 = vsel %vm5395, %v8604, %v8144
        %v8622 = vsel %vm5395, %v8605, %v8146
        %v8623 = vsel %vm5395, %v8606, %v8148
        %v8624 = vsel %vm5395, %v8607, %v8150
        %vm8625 = vcmask 539648
        %v8626 = vsel %vm8625, %v8608, %v8186
        %v8627 = vsel %vm8625, %v8609, %v8188
        %v8628 = vsel %vm8625, %v8610, %v8190
        %v8629 = vsel %vm8625, %v8611, %v8192
        %v8630 = vsel %vm8625, %v8612, %v8194
        %v8631 = vsel %vm8625, %v8613, %v8196
        %v8632 = vsel %vm8625, %v8614, %v8198
        %v8633 = vsel %vm8625, %v8615, %v8200
        %v8634 = vsel %vm8625, %v8616, %v8202
        %v8635 = vsel %vm8625, %v8617, %v8204
        %v8636 = vsel %vm8625, %v8618, %v8206
        %v8637 = vsel %vm8625, %v8619, %v8208
        %v8638 = vsel %vm8625, %v8620, %v8210
        %v8639 = vsel %vm8625, %v8621, %v8212
        %v8640 = vsel %vm8625, %v8622, %v8214
        %v8641 = vsel %vm8625, %v8623, %v8216
        %v8642 = vsel %vm8625, %v8624, %v8218
        %vm8643 = vcmask 588800
        %v8644 = vsel %vm8643, %v8626, %v8239
        %v8645 = vsel %vm8643, %v8627, %v8241
        %v8646 = vsel %vm8643, %v8628, %v8243
        %v8647 = vsel %vm8643, %v8629, %v8245
        %v8648 = vsel %vm8643, %v8630, %v8247
        %v8649 = vsel %vm8643, %v8631, %v8249
        %v8650 = vsel %vm8643, %v8632, %v8251
        %v8651 = vsel %vm8643, %v8633, %v8253
        %v8652 = vsel %vm8643, %v8634, %v8255
        %v8653 = vsel %vm8643, %v8635, %v8257
        %v8654 = vsel %vm8643, %v8636, %v8259
        %v8655 = vsel %vm8643, %v8637, %v8261
        %v8656 = vsel %vm8643, %v8638, %v8263
        %v8657 = vsel %vm8643, %v8639, %v8265
        %v8658 = vsel %vm8643, %v8640, %v8267
        %v8659 = vsel %vm8643, %v8641, %v8269
        %v8660 = vsel %vm8643, %v8642, %v8271
        %vm8661 = vcmask 637952
        %v8662 = vsel %vm8661, %v8644, %v8292
        %v8663 = vsel %vm8661, %v8645, %v8294
        %v8664 = vsel %vm8661, %v8646, %v8296
        %v8665 = vsel %vm8661, %v8647, %v8298
        %v8666 = vsel %vm8661, %v8648, %v8300
        %v8667 = vsel %vm8661, %v8649, %v8302
        %v8668 = vsel %vm8661, %v8650, %v8304
        %v8669 = vsel %vm8661, %v8651, %v8306
        %v8670 = vsel %vm8661, %v8652, %v8308
        %v8671 = vsel %vm8661, %v8653, %v8310
        %v8672 = vsel %vm8661, %v8654, %v8312
        %v8673 = vsel %vm8661, %v8655, %v8314
        %v8674 = vsel %vm8661, %v8656, %v8316
        %v8675 = vsel %vm8661, %v8657, %v8318
        %v8676 = vsel %vm8661, %v8658, %v8320
        %v8677 = vsel %vm8661, %v8659, %v8322
        %v8678 = vsel %vm8661, %v8660, %v8324
        %vm8679 = vcmask 687104
        %v8680 = vsel %vm8679, %v8662, %v8345
        %v8681 = vsel %vm8679, %v8663, %v8347
        %v8682 = vsel %vm8679, %v8664, %v8349
        %v8683 = vsel %vm8679, %v8665, %v8351
        %v8684 = vsel %vm8679, %v8666, %v8353
        %v8685 = vsel %vm8679, %v8667, %v8355
        %v8686 = vsel %vm8679, %v8668, %v8357
        %v8687 = vsel %vm8679, %v8669, %v8359
        %v8688 = vsel %vm8679, %v8670, %v8361
        %v8689 = vsel %vm8679, %v8671, %v8363
        %v8690 = vsel %vm8679, %v8672, %v8365
        %v8691 = vsel %vm8679, %v8673, %v8367
        %v8692 = vsel %vm8679, %v8674, %v8369
        %v8693 = vsel %vm8679, %v8675, %v8371
        %v8694 = vsel %vm8679, %v8676, %v8373
        %v8695 = vsel %vm8679, %v8677, %v8375
        %v8696 = vsel %vm8679, %v8678, %v8377
        %vm8697 = vcmask 736256
        %v8698 = vsel %vm8697, %v8680, %v8399
        %v8699 = vsel %vm8697, %v8681, %v8401
        %v8700 = vsel %vm8697, %v8682, %v8403
        %v8701 = vsel %vm8697, %v8683, %v8405
        %v8702 = vsel %vm8697, %v8684, %v8407
        %v8703 = vsel %vm8697, %v8685, %v8409
        %v8704 = vsel %vm8697, %v8686, %v8411
        %v8705 = vsel %vm8697, %v8687, %v8413
        %v8706 = vsel %vm8697, %v8688, %v8415
        %v8707 = vsel %vm8697, %v8689, %v8417
        %v8708 = vsel %vm8697, %v8690, %v8419
        %v8709 = vsel %vm8697, %v8691, %v8421
        %v8710 = vsel %vm8697, %v8692, %v8423
        %v8711 = vsel %vm8697, %v8693, %v8425
        %v8712 = vsel %vm8697, %v8694, %v8427
        %v8713 = vsel %vm8697, %v8695, %v8429
        %v8714 = vsel %vm8697, %v8696, %v8431
        %8717 = vrot.lane.b32.xlu0 %v7426, 6
        %v8718 = vpop.permute.xlu0 %8717
        %8719 = vrot.lane.b32.xlu0 %v7427, 6
        %v8720 = vpop.permute.xlu0 %8719
        %8721 = vrot.lane.b32.xlu0 %v7428, 6
        %v8722 = vpop.permute.xlu0 %8721
        %8723 = vrot.lane.b32.xlu0 %v7429, 6
        %v8724 = vpop.permute.xlu0 %8723
        %8725 = vrot.lane.b32.xlu0 %v7430, 6
        %v8726 = vpop.permute.xlu0 %8725
        %8727 = vrot.lane.b32.xlu0 %v7431, 6
        %v8728 = vpop.permute.xlu0 %8727
        %8729 = vrot.lane.b32.xlu0 %v7432, 6
        %v8730 = vpop.permute.xlu0 %8729
        %8731 = vrot.lane.b32.xlu0 %v7433, 6
        %v8732 = vpop.permute.xlu0 %8731
        %8733 = vrot.lane.b32.xlu0 %v7434, 6
        %v8734 = vpop.permute.xlu0 %8733
        %8735 = vrot.lane.b32.xlu0 %v7435, 6
        %v8736 = vpop.permute.xlu0 %8735
        %8737 = vrot.lane.b32.xlu0 %v7436, 6
        %v8738 = vpop.permute.xlu0 %8737
        %8739 = vrot.lane.b32.xlu0 %v7437, 6
        %v8740 = vpop.permute.xlu0 %8739
        %8741 = vrot.lane.b32.xlu0 %v7478, 6
        %v8742 = vpop.permute.xlu0 %8741
        %8743 = vrot.lane.b32.xlu0 %v7479, 6
        %v8744 = vpop.permute.xlu0 %8743
        %8745 = vrot.lane.b32.xlu0 %v7480, 6
        %v8746 = vpop.permute.xlu0 %8745
        %8747 = vrot.lane.b32.xlu0 %v7512, 6
        %v8748 = vpop.permute.xlu0 %8747
        %8749 = vrot.lane.b32.xlu0 %v7513, 6
        %v8750 = vpop.permute.xlu0 %8749
        %8770 = vrot.lane.b32.xlu0 %v7483, 12
        %v8771 = vpop.permute.xlu0 %8770
        %8772 = vrot.lane.b32.xlu0 %v7484, 12
        %v8773 = vpop.permute.xlu0 %8772
        %8774 = vrot.lane.b32.xlu0 %v7485, 12
        %v8775 = vpop.permute.xlu0 %8774
        %8776 = vrot.lane.b32.xlu0 %v7486, 12
        %v8777 = vpop.permute.xlu0 %8776
        %8778 = vrot.lane.b32.xlu0 %v7487, 12
        %v8779 = vpop.permute.xlu0 %8778
        %8780 = vrot.lane.b32.xlu0 %v7488, 12
        %v8781 = vpop.permute.xlu0 %8780
        %8782 = vrot.lane.b32.xlu0 %v7489, 12
        %v8783 = vpop.permute.xlu0 %8782
        %8784 = vrot.lane.b32.xlu0 %v7490, 12
        %v8785 = vpop.permute.xlu0 %8784
        %8786 = vrot.lane.b32.xlu0 %v7491, 12
        %v8787 = vpop.permute.xlu0 %8786
        %8788 = vrot.lane.b32.xlu0 %v7492, 12
        %v8789 = vpop.permute.xlu0 %8788
        %8790 = vrot.lane.b32.xlu0 %v7493, 12
        %v8791 = vpop.permute.xlu0 %8790
        %8792 = vrot.lane.b32.xlu0 %v7494, 12
        %v8793 = vpop.permute.xlu0 %8792
        %8794 = vrot.lane.b32.xlu0 %v7495, 12
        %v8795 = vpop.permute.xlu0 %8794
        %8796 = vrot.lane.b32.xlu0 %v7496, 12
        %v8797 = vpop.permute.xlu0 %8796
        %8798 = vrot.lane.b32.xlu0 %v7497, 12
        %v8799 = vpop.permute.xlu0 %8798
        %8800 = vrot.lane.b32.xlu0 %v7514, 12
        %v8801 = vpop.permute.xlu0 %8800
        %8802 = vrot.lane.b32.xlu0 %v7515, 12
        %v8803 = vpop.permute.xlu0 %8802
        %8823 = vrot.lane.b32.xlu0 %v7442, 18
        %v8824 = vpop.permute.xlu0 %8823
        %8825 = vrot.lane.b32.xlu0 %v7443, 18
        %v8826 = vpop.permute.xlu0 %8825
        %8827 = vrot.lane.b32.xlu0 %v7444, 18
        %v8828 = vpop.permute.xlu0 %8827
        %8829 = vrot.lane.b32.xlu0 %v7445, 18
        %v8830 = vpop.permute.xlu0 %8829
        %8831 = vrot.lane.b32.xlu0 %v7446, 18
        %v8832 = vpop.permute.xlu0 %8831
        %8833 = vrot.lane.b32.xlu0 %v7447, 18
        %v8834 = vpop.permute.xlu0 %8833
        %8835 = vrot.lane.b32.xlu0 %v7448, 18
        %v8836 = vpop.permute.xlu0 %8835
        %8837 = vrot.lane.b32.xlu0 %v7449, 18
        %v8838 = vpop.permute.xlu0 %8837
        %8839 = vrot.lane.b32.xlu0 %v7450, 18
        %v8840 = vpop.permute.xlu0 %8839
        %8841 = vrot.lane.b32.xlu0 %v7451, 18
        %v8842 = vpop.permute.xlu0 %8841
        %8843 = vrot.lane.b32.xlu0 %v7452, 18
        %v8844 = vpop.permute.xlu0 %8843
        %8845 = vrot.lane.b32.xlu0 %v7453, 18
        %v8846 = vpop.permute.xlu0 %8845
        %8847 = vrot.lane.b32.xlu0 %v7454, 18
        %v8848 = vpop.permute.xlu0 %8847
        %8849 = vrot.lane.b32.xlu0 %v7498, 18
        %v8850 = vpop.permute.xlu0 %8849
        %8851 = vrot.lane.b32.xlu0 %v7499, 18
        %v8852 = vpop.permute.xlu0 %8851
        %8853 = vrot.lane.b32.xlu0 %v7516, 18
        %v8854 = vpop.permute.xlu0 %8853
        %8855 = vrot.lane.b32.xlu0 %v7517, 18
        %v8856 = vpop.permute.xlu0 %8855
        %8877 = vrot.lane.b32.xlu0 %v7360, 24
        %v8878 = vpop.permute.xlu0 %8877
        %8879 = vrot.lane.b32.xlu0 %v7361, 24
        %v8880 = vpop.permute.xlu0 %8879
        %8881 = vrot.lane.b32.xlu0 %v7362, 24
        %v8882 = vpop.permute.xlu0 %8881
        %8883 = vrot.lane.b32.xlu0 %v7363, 24
        %v8884 = vpop.permute.xlu0 %8883
        %8885 = vrot.lane.b32.xlu0 %v7364, 24
        %v8886 = vpop.permute.xlu0 %8885
        %8887 = vrot.lane.b32.xlu0 %v7365, 24
        %v8888 = vpop.permute.xlu0 %8887
        %8889 = vrot.lane.b32.xlu0 %v7366, 24
        %v8890 = vpop.permute.xlu0 %8889
        %8891 = vrot.lane.b32.xlu0 %v7367, 24
        %v8892 = vpop.permute.xlu0 %8891
        %8893 = vrot.lane.b32.xlu0 %v7368, 24
        %v8894 = vpop.permute.xlu0 %8893
        %8895 = vrot.lane.b32.xlu0 %v7369, 24
        %v8896 = vpop.permute.xlu0 %8895
        %8897 = vrot.lane.b32.xlu0 %v7472, 24
        %v8898 = vpop.permute.xlu0 %8897
        %8899 = vrot.lane.b32.xlu0 %v7473, 24
        %v8900 = vpop.permute.xlu0 %8899
        %8901 = vrot.lane.b32.xlu0 %v7502, 24
        %v8902 = vpop.permute.xlu0 %8901
        %8903 = vrot.lane.b32.xlu0 %v7503, 24
        %v8904 = vpop.permute.xlu0 %8903
        %8905 = vrot.lane.b32.xlu0 %v7518, 24
        %v8906 = vpop.permute.xlu0 %8905
        %8907 = vrot.lane.b32.xlu0 %v7519, 24
        %v8908 = vpop.permute.xlu0 %8907
        %8909 = vrot.lane.b32.xlu0 %v7520, 24
        %v8910 = vpop.permute.xlu0 %8909
        %8933 = vrot.lane.b32.xlu0 %v7377, 30
        %v8934 = vpop.permute.xlu0 %8933
        %8935 = vrot.lane.b32.xlu0 %v7378, 30
        %v8936 = vpop.permute.xlu0 %8935
        %8937 = vrot.lane.b32.xlu0 %v7379, 30
        %v8938 = vpop.permute.xlu0 %8937
        %8939 = vrot.lane.b32.xlu0 %v7380, 30
        %v8940 = vpop.permute.xlu0 %8939
        %8941 = vrot.lane.b32.xlu0 %v7381, 30
        %v8942 = vpop.permute.xlu0 %8941
        %8943 = vrot.lane.b32.xlu0 %v7382, 30
        %v8944 = vpop.permute.xlu0 %8943
        %8945 = vrot.lane.b32.xlu0 %v7383, 30
        %v8946 = vpop.permute.xlu0 %8945
        %8947 = vrot.lane.b32.xlu0 %v7384, 30
        %v8948 = vpop.permute.xlu0 %8947
        %8949 = vrot.lane.b32.xlu0 %v7385, 30
        %v8950 = vpop.permute.xlu0 %8949
        %8951 = vrot.lane.b32.xlu0 %v7386, 30
        %v8952 = vpop.permute.xlu0 %8951
        %8953 = vrot.lane.b32.xlu0 %v7474, 30
        %v8954 = vpop.permute.xlu0 %8953
        %8955 = vrot.lane.b32.xlu0 %v7475, 30
        %v8956 = vpop.permute.xlu0 %8955
        %8957 = vrot.lane.b32.xlu0 %v7521, 30
        %v8958 = vpop.permute.xlu0 %8957
        %8959 = vrot.lane.b32.xlu0 %v7522, 30
        %v8960 = vpop.permute.xlu0 %8959
        %8961 = vrot.lane.b32.xlu0 %v7523, 30
        %v8962 = vpop.permute.xlu0 %8961
        %8963 = vrot.lane.b32.xlu0 %v7524, 30
        %v8964 = vpop.permute.xlu0 %8963
        %8965 = vrot.lane.b32.xlu0 %v7525, 30
        %v8966 = vpop.permute.xlu0 %8965
        %8986 = vrot.lane.b32.xlu0 %v7394, 36
        %v8987 = vpop.permute.xlu0 %8986
        %8988 = vrot.lane.b32.xlu0 %v7395, 36
        %v8989 = vpop.permute.xlu0 %8988
        %8990 = vrot.lane.b32.xlu0 %v7396, 36
        %v8991 = vpop.permute.xlu0 %8990
        %8992 = vrot.lane.b32.xlu0 %v7397, 36
        %v8993 = vpop.permute.xlu0 %8992
        %8994 = vrot.lane.b32.xlu0 %v7398, 36
        %v8995 = vpop.permute.xlu0 %8994
        %8996 = vrot.lane.b32.xlu0 %v7399, 36
        %v8997 = vpop.permute.xlu0 %8996
        %8998 = vrot.lane.b32.xlu0 %v7400, 36
        %v8999 = vpop.permute.xlu0 %8998
        %9000 = vrot.lane.b32.xlu0 %v7401, 36
        %v9001 = vpop.permute.xlu0 %9000
        %9002 = vrot.lane.b32.xlu0 %v7402, 36
        %v9003 = vpop.permute.xlu0 %9002
        %9004 = vrot.lane.b32.xlu0 %v7403, 36
        %v9005 = vpop.permute.xlu0 %9004
        %9006 = vrot.lane.b32.xlu0 %v7476, 36
        %v9007 = vpop.permute.xlu0 %9006
        %9008 = vrot.lane.b32.xlu0 %v7477, 36
        %v9009 = vpop.permute.xlu0 %9008
        %9010 = vrot.lane.b32.xlu0 %v7504, 36
        %v9011 = vpop.permute.xlu0 %9010
        %9012 = vrot.lane.b32.xlu0 %v7505, 36
        %v9013 = vpop.permute.xlu0 %9012
        %9014 = vrot.lane.b32.xlu0 %v7506, 36
        %v9015 = vpop.permute.xlu0 %9014
        %9016 = vrot.lane.b32.xlu0 %v7526, 36
        %v9017 = vpop.permute.xlu0 %9016
        %9018 = vrot.lane.b32.xlu0 %v7527, 36
        %v9019 = vpop.permute.xlu0 %9018
        %9044 = vrot.lane.b32.xlu0 %v7411, 42
        %v9045 = vpop.permute.xlu0 %9044
        %9046 = vrot.lane.b32.xlu0 %v7412, 42
        %v9047 = vpop.permute.xlu0 %9046
        %9048 = vrot.lane.b32.xlu0 %v7413, 42
        %v9049 = vpop.permute.xlu0 %9048
        %9050 = vrot.lane.b32.xlu0 %v7414, 42
        %v9051 = vpop.permute.xlu0 %9050
        %9052 = vrot.lane.b32.xlu0 %v7415, 42
        %v9053 = vpop.permute.xlu0 %9052
        %9054 = vrot.lane.b32.xlu0 %v7416, 42
        %v9055 = vpop.permute.xlu0 %9054
        %9056 = vrot.lane.b32.xlu0 %v7417, 42
        %v9057 = vpop.permute.xlu0 %9056
        %9058 = vrot.lane.b32.xlu0 %v7418, 42
        %v9059 = vpop.permute.xlu0 %9058
        %9060 = vrot.lane.b32.xlu0 %v7419, 42
        %v9061 = vpop.permute.xlu0 %9060
        %9062 = vrot.lane.b32.xlu0 %v7420, 42
        %v9063 = vpop.permute.xlu0 %9062
        %9064 = vrot.lane.b32.xlu0 %v7507, 42
        %v9065 = vpop.permute.xlu0 %9064
        %9066 = vrot.lane.b32.xlu0 %v7508, 42
        %v9067 = vpop.permute.xlu0 %9066
        %9068 = vrot.lane.b32.xlu0 %v7509, 42
        %v9069 = vpop.permute.xlu0 %9068
        %9070 = vrot.lane.b32.xlu0 %v7510, 42
        %v9071 = vpop.permute.xlu0 %9070
        %9072 = vrot.lane.b32.xlu0 %v7511, 42
        %v9073 = vpop.permute.xlu0 %9072
        %9074 = vrot.lane.b32.xlu0 %v7528, 42
        %v9075 = vpop.permute.xlu0 %9074
        %9076 = vrot.lane.b32.xlu0 %v7529, 42
        %v9077 = vpop.permute.xlu0 %9076
        %9097 = vrot.lane.b32.xlu0 %v7428, 48
        %v9098 = vpop.permute.xlu0 %9097
        %9099 = vrot.lane.b32.xlu0 %v7429, 48
        %v9100 = vpop.permute.xlu0 %9099
        %9101 = vrot.lane.b32.xlu0 %v7430, 48
        %v9102 = vpop.permute.xlu0 %9101
        %9103 = vrot.lane.b32.xlu0 %v7431, 48
        %v9104 = vpop.permute.xlu0 %9103
        %9105 = vrot.lane.b32.xlu0 %v7432, 48
        %v9106 = vpop.permute.xlu0 %9105
        %9107 = vrot.lane.b32.xlu0 %v7433, 48
        %v9108 = vpop.permute.xlu0 %9107
        %9109 = vrot.lane.b32.xlu0 %v7434, 48
        %v9110 = vpop.permute.xlu0 %9109
        %9111 = vrot.lane.b32.xlu0 %v7435, 48
        %v9112 = vpop.permute.xlu0 %9111
        %9113 = vrot.lane.b32.xlu0 %v7436, 48
        %v9114 = vpop.permute.xlu0 %9113
        %9115 = vrot.lane.b32.xlu0 %v7437, 48
        %v9116 = vpop.permute.xlu0 %9115
        %9117 = vrot.lane.b32.xlu0 %v7478, 48
        %v9118 = vpop.permute.xlu0 %9117
        %9119 = vrot.lane.b32.xlu0 %v7479, 48
        %v9120 = vpop.permute.xlu0 %9119
        %9121 = vrot.lane.b32.xlu0 %v7480, 48
        %v9122 = vpop.permute.xlu0 %9121
        %9123 = vrot.lane.b32.xlu0 %v7512, 48
        %v9124 = vpop.permute.xlu0 %9123
        %9125 = vrot.lane.b32.xlu0 %v7513, 48
        %v9126 = vpop.permute.xlu0 %9125
        %9127 = vrot.lane.b32.xlu0 %v7530, 48
        %v9128 = vpop.permute.xlu0 %9127
        %9129 = vrot.lane.b32.xlu0 %v7531, 48
        %v9130 = vpop.permute.xlu0 %9129
        %v9148 = vsel %vm3201, %v7409, %v8718
        %v9149 = vsel %vm3201, %v7410, %v8720
        %v9150 = vsel %vm3201, %v7411, %v8722
        %v9151 = vsel %vm3201, %v7412, %v8724
        %v9152 = vsel %vm3201, %v7413, %v8726
        %v9153 = vsel %vm3201, %v7414, %v8728
        %v9154 = vsel %vm3201, %v7415, %v8730
        %v9155 = vsel %vm3201, %v7416, %v8732
        %v9156 = vsel %vm3201, %v7417, %v8734
        %v9157 = vsel %vm3201, %v7418, %v8736
        %v9158 = vsel %vm3201, %v7419, %v8738
        %v9159 = vsel %vm3201, %v7420, %v8740
        %v9160 = vsel %vm3201, %v7507, %v8742
        %v9161 = vsel %vm3201, %v7508, %v8744
        %v9162 = vsel %vm3201, %v7509, %v8746
        %v9163 = vsel %vm3201, %v7510, %v8748
        %v9164 = vsel %vm3201, %v7511, %v8750
        %v9165 = vsel %vm3459, %v9148, %v8771
        %v9166 = vsel %vm3459, %v9149, %v8773
        %v9167 = vsel %vm3459, %v9150, %v8775
        %v9168 = vsel %vm3459, %v9151, %v8777
        %v9169 = vsel %vm3459, %v9152, %v8779
        %v9170 = vsel %vm3459, %v9153, %v8781
        %v9171 = vsel %vm3459, %v9154, %v8783
        %v9172 = vsel %vm3459, %v9155, %v8785
        %v9173 = vsel %vm3459, %v9156, %v8787
        %v9174 = vsel %vm3459, %v9157, %v8789
        %v9175 = vsel %vm3459, %v9158, %v8791
        %v9176 = vsel %vm3459, %v9159, %v8793
        %v9177 = vsel %vm3459, %v9160, %v8795
        %v9178 = vsel %vm3459, %v9161, %v8797
        %v9179 = vsel %vm3459, %v9162, %v8799
        %v9180 = vsel %vm3459, %v9163, %v8801
        %v9181 = vsel %vm3459, %v9164, %v8803
        %v9182 = vsel %vm8483, %v9165, %v8824
        %v9183 = vsel %vm8483, %v9166, %v8826
        %v9184 = vsel %vm8483, %v9167, %v8828
        %v9185 = vsel %vm8483, %v9168, %v8830
        %v9186 = vsel %vm8483, %v9169, %v8832
        %v9187 = vsel %vm8483, %v9170, %v8834
        %v9188 = vsel %vm8483, %v9171, %v8836
        %v9189 = vsel %vm8483, %v9172, %v8838
        %v9190 = vsel %vm8483, %v9173, %v8840
        %v9191 = vsel %vm8483, %v9174, %v8842
        %v9192 = vsel %vm8483, %v9175, %v8844
        %v9193 = vsel %vm8483, %v9176, %v8846
        %v9194 = vsel %vm8483, %v9177, %v8848
        %v9195 = vsel %vm8483, %v9178, %v8850
        %v9196 = vsel %vm8483, %v9179, %v8852
        %v9197 = vsel %vm8483, %v9180, %v8854
        %v9198 = vsel %vm8483, %v9181, %v8856
        %v9199 = vsel %vm8501, %v9182, %v8878
        %v9200 = vsel %vm8501, %v9183, %v8880
        %v9201 = vsel %vm8501, %v9184, %v8882
        %v9202 = vsel %vm8501, %v9185, %v8884
        %v9203 = vsel %vm8501, %v9186, %v8886
        %v9204 = vsel %vm8501, %v9187, %v8888
        %v9205 = vsel %vm8501, %v9188, %v8890
        %v9206 = vsel %vm8501, %v9189, %v8892
        %v9207 = vsel %vm8501, %v9190, %v8894
        %v9208 = vsel %vm8501, %v9191, %v8896
        %v9209 = vsel %vm8501, %v9192, %v8898
        %v9210 = vsel %vm8501, %v9193, %v8900
        %v9211 = vsel %vm8501, %v9194, %v8902
        %v9212 = vsel %vm8501, %v9195, %v8904
        %v9213 = vsel %vm8501, %v9196, %v8906
        %v9214 = vsel %vm8501, %v9197, %v8908
        %v9215 = vsel %vm8501, %v9198, %v8910
        %v9216 = vsel %vm5169, %v9199, %v8934
        %v9217 = vsel %vm5169, %v9200, %v8936
        %v9218 = vsel %vm5169, %v9201, %v8938
        %v9219 = vsel %vm5169, %v9202, %v8940
        %v9220 = vsel %vm5169, %v9203, %v8942
        %v9221 = vsel %vm5169, %v9204, %v8944
        %v9222 = vsel %vm5169, %v9205, %v8946
        %v9223 = vsel %vm5169, %v9206, %v8948
        %v9224 = vsel %vm5169, %v9207, %v8950
        %v9225 = vsel %vm5169, %v9208, %v8952
        %v9226 = vsel %vm5169, %v9209, %v8954
        %v9227 = vsel %vm5169, %v9210, %v8956
        %v9228 = vsel %vm5169, %v9211, %v8958
        %v9229 = vsel %vm5169, %v9212, %v8960
        %v9230 = vsel %vm5169, %v9213, %v8962
        %v9231 = vsel %vm5169, %v9214, %v8964
        %v9232 = vsel %vm5169, %v9215, %v8966
        %v9233 = vsel %vm8536, %v9216, %v8987
        %v9234 = vsel %vm8536, %v9217, %v8989
        %v9235 = vsel %vm8536, %v9218, %v8991
        %v9236 = vsel %vm8536, %v9219, %v8993
        %v9237 = vsel %vm8536, %v9220, %v8995
        %v9238 = vsel %vm8536, %v9221, %v8997
        %v9239 = vsel %vm8536, %v9222, %v8999
        %v9240 = vsel %vm8536, %v9223, %v9001
        %v9241 = vsel %vm8536, %v9224, %v9003
        %v9242 = vsel %vm8536, %v9225, %v9005
        %v9243 = vsel %vm8536, %v9226, %v9007
        %v9244 = vsel %vm8536, %v9227, %v9009
        %v9245 = vsel %vm8536, %v9228, %v9011
        %v9246 = vsel %vm8536, %v9229, %v9013
        %v9247 = vsel %vm8536, %v9230, %v9015
        %v9248 = vsel %vm8536, %v9231, %v9017
        %v9249 = vsel %vm8536, %v9232, %v9019
        %v9250 = vsel %vm8554, %v9233, %v9045
        %v9251 = vsel %vm8554, %v9234, %v9047
        %v9252 = vsel %vm8554, %v9235, %v9049
        %v9253 = vsel %vm8554, %v9236, %v9051
        %v9254 = vsel %vm8554, %v9237, %v9053
        %v9255 = vsel %vm8554, %v9238, %v9055
        %v9256 = vsel %vm8554, %v9239, %v9057
        %v9257 = vsel %vm8554, %v9240, %v9059
        %v9258 = vsel %vm8554, %v9241, %v9061
        %v9259 = vsel %vm8554, %v9242, %v9063
        %v9260 = vsel %vm8554, %v9243, %v9065
        %v9261 = vsel %vm8554, %v9244, %v9067
        %v9262 = vsel %vm8554, %v9245, %v9069
        %v9263 = vsel %vm8554, %v9246, %v9071
        %v9264 = vsel %vm8554, %v9247, %v9073
        %v9265 = vsel %vm8554, %v9248, %v9075
        %v9266 = vsel %vm8554, %v9249, %v9077
        %v9267 = vsel %vm8572, %v9250, %v9098
        %v9268 = vsel %vm8572, %v9251, %v9100
        %v9269 = vsel %vm8572, %v9252, %v9102
        %v9270 = vsel %vm8572, %v9253, %v9104
        %v9271 = vsel %vm8572, %v9254, %v9106
        %v9272 = vsel %vm8572, %v9255, %v9108
        %v9273 = vsel %vm8572, %v9256, %v9110
        %v9274 = vsel %vm8572, %v9257, %v9112
        %v9275 = vsel %vm8572, %v9258, %v9114
        %v9276 = vsel %vm8572, %v9259, %v9116
        %v9277 = vsel %vm8572, %v9260, %v9118
        %v9278 = vsel %vm8572, %v9261, %v9120
        %v9279 = vsel %vm8572, %v9262, %v9122
        %v9280 = vsel %vm8572, %v9263, %v9124
        %v9281 = vsel %vm8572, %v9264, %v9126
        %v9282 = vsel %vm8572, %v9265, %v9128
        %v9283 = vsel %vm8572, %v9266, %v9130
        %9301 = vrot.lane.b32.xlu0 %v9267, 96
        %v9302 = vpop.permute.xlu0 %9301
        %9303 = vrot.lane.b32.xlu0 %v9268, 96
        %v9304 = vpop.permute.xlu0 %9303
        %9305 = vrot.lane.b32.xlu0 %v9269, 96
        %v9306 = vpop.permute.xlu0 %9305
        %9307 = vrot.lane.b32.xlu0 %v9270, 96
        %v9308 = vpop.permute.xlu0 %9307
        %9309 = vrot.lane.b32.xlu0 %v9271, 96
        %v9310 = vpop.permute.xlu0 %9309
        %9311 = vrot.lane.b32.xlu0 %v9272, 96
        %v9312 = vpop.permute.xlu0 %9311
        %9313 = vrot.lane.b32.xlu0 %v9273, 96
        %v9314 = vpop.permute.xlu0 %9313
        %9315 = vrot.lane.b32.xlu0 %v9274, 96
        %v9316 = vpop.permute.xlu0 %9315
        %9317 = vrot.lane.b32.xlu0 %v9275, 96
        %v9318 = vpop.permute.xlu0 %9317
        %9319 = vrot.lane.b32.xlu0 %v9276, 96
        %v9320 = vpop.permute.xlu0 %9319
        %9321 = vrot.lane.b32.xlu0 %v9277, 96
        %v9322 = vpop.permute.xlu0 %9321
        %9323 = vrot.lane.b32.xlu0 %v9278, 96
        %v9324 = vpop.permute.xlu0 %9323
        %9325 = vrot.lane.b32.xlu0 %v9279, 96
        %v9326 = vpop.permute.xlu0 %9325
        %9327 = vrot.lane.b32.xlu0 %v9280, 96
        %v9328 = vpop.permute.xlu0 %9327
        %9329 = vrot.lane.b32.xlu0 %v9281, 96
        %v9330 = vpop.permute.xlu0 %9329
        %9331 = vrot.lane.b32.xlu0 %v9282, 96
        %v9332 = vpop.permute.xlu0 %9331
        %9333 = vrot.lane.b32.xlu0 %v9283, 96
        %v9334 = vpop.permute.xlu0 %9333
        %vm9352 = vcmask 785408
        %v9353 = vsel %vm9352, %v8698, %v9302
        %v9354 = vsel %vm9352, %v8699, %v9304
        %v9355 = vsel %vm9352, %v8700, %v9306
        %v9356 = vsel %vm9352, %v8701, %v9308
        %v9357 = vsel %vm9352, %v8702, %v9310
        %v9358 = vsel %vm9352, %v8703, %v9312
        %v9359 = vsel %vm9352, %v8704, %v9314
        %v9360 = vsel %vm9352, %v8705, %v9316
        %v9361 = vsel %vm9352, %v8706, %v9318
        %v9362 = vsel %vm9352, %v8707, %v9320
        %v9363 = vsel %vm9352, %v8708, %v9322
        %v9364 = vsel %vm9352, %v8709, %v9324
        %v9365 = vsel %vm9352, %v8710, %v9326
        %v9366 = vsel %vm9352, %v8711, %v9328
        %v9367 = vsel %vm9352, %v8712, %v9330
        %v9368 = vsel %vm9352, %v8713, %v9332
        %v9369 = vsel %vm9352, %v8714, %v9334
        %v9370 = vld [vmem:[%s3] sm:$0xff]
        %v9371 = vld [vmem:[%s3 + $0x8] sm:$0xff]
        %v9372 = vld [vmem:[%s3 + $0x10] sm:$0xff]
        %v9373 = vld [vmem:[%s3 + $0x18] sm:$0xff]
        %v9374 = vld [vmem:[%s3 + $0x20] sm:$0xff]
        %v9375 = vld [vmem:[%s3 + $0x28] sm:$0xff]
        %v9376 = vld [vmem:[%s3 + $0x30] sm:$0xff]
        %v9377 = vld [vmem:[%s3 + $0x38] sm:$0xff]
        %v9378 = vld [vmem:[%s3 + $0x40] sm:$0xff]
        %v9379 = vld [vmem:[%s3 + $0x48] sm:$0xff]
        %v9380 = vld [vmem:[%s3 + $0x50] sm:$0xff]
        %v9381 = vld [vmem:[%s3 + $0x58] sm:$0xff]
        %v9382 = vld [vmem:[%s3 + $0x60] sm:$0xff]
        %v9383 = vld [vmem:[%s3 + $0x68] sm:$0xff]
        %v9384 = vld [vmem:[%s3 + $0x70] sm:$0xff]
        %v9385 = vld [vmem:[%s3 + $0x78] sm:$0xff]
        %v9386 = vld [vmem:[%s3 + $0x80] sm:$0xff]
        %v9387 = vld [vmem:[%s3 + $0x88] sm:$0xff]
        %v9388 = vld [vmem:[%s3 + $0x90] sm:$0x3f]
        %v9389 = vld [vmem:[%s4] sm:$0x1]
        %v9391 = vlaneseq
        %v9392 = vshrl.u32 %v9391, 7
        %v9393 = vsub.s32 0, %v9392
        %v9394 = vrot.slane %v9389, %v9393
        %vm9396 = vcmask 179200
        %v9397 = vsel %vm9396, %v9302, 0
        %v9399 = vsel %vm9396, %v9304, 0
        %v9401 = vsel %vm9396, %v9306, 0
        %v9403 = vsel %vm9396, %v9308, 0
        %v9405 = vsel %vm9396, %v9310, 0
        %v9407 = vsel %vm9396, %v9312, 0
        %v9409 = vsel %vm9396, %v9314, 0
        %v9411 = vsel %vm9396, %v9316, 0
        %v9413 = vsel %vm9396, %v9318, 0
        %v9415 = vsel %vm9396, %v9320, 0
        %v9417 = vsel %vm9396, %v9322, 0
        %v9419 = vsel %vm9396, %v9324, 0
        %v9421 = vsel %vm9396, %v9326, 0
        %v9423 = vsel %vm9396, %v9328, 0
        %v9425 = vsel %vm9396, %v9330, 0
        %v9427 = vsel %vm9396, %v9332, 0
        %v9429 = vsel %vm9396, %v9334, 0
        %vm9431 = vcmask 1045504
        %v9433 = vsel %vm9431, %v9388, 0
        %9435 = vmatprep.subr.mxu0 0.0
        %9436 = vmatpush1.msra.mxu0 %v9370
        %9437 = vmatprep.subr.mxu0 0.0
        %9438 = vmatpush1.msra.mxu0 %v9371
        %9439 = vmatprep.subr.mxu0 0.0
        %9440 = vmatpush1.msra.mxu0 %v9372
        %9441 = vmatprep.subr.mxu0 0.0
        %9442 = vmatpush1.msra.mxu0 %v9373
        %9443 = vmatprep.subr.mxu0 0.0
        %9444 = vmatpush1.msra.mxu0 %v9374
        %9445 = vmatprep.subr.mxu0 0.0
        %9446 = vmatpush1.msra.mxu0 %v9375
        %9447 = vmatprep.subr.mxu0 0.0
        %9448 = vmatpush1.msra.mxu0 %v9376
        %9449 = vmatprep.subr.mxu0 0.0
        %9450 = vmatpush1.msra.mxu0 %v9377
        %9451 = vmatprep.subr.mxu0 0.0
        %9452 = vmatpush1.msra.mxu0 %v9378
        %9453 = vmatprep.subr.mxu0 0.0
        %9454 = vmatpush1.msra.mxu0 %v9379
        %9455 = vmatprep.subr.mxu0 0.0
        %9456 = vmatpush1.msra.mxu0 %v9380
        %9457 = vmatprep.subr.mxu0 0.0
        %9458 = vmatpush1.msra.mxu0 %v9381
        %9459 = vmatprep.subr.mxu0 0.0
        %9460 = vmatpush1.msra.mxu0 %v9382
        %9461 = vmatprep.subr.mxu0 0.0
        %9462 = vmatpush1.msra.mxu0 %v9383
        %9463 = vmatprep.subr.mxu0 0.0
        %9464 = vmatpush1.msra.mxu0 %v9384
        %9465 = vmatprep.subr.mxu0 0.0
        %9466 = vmatpush1.msra.mxu0 %v9385
        %9467 = vmatprep.subr.mxu0 0.0
        %9468 = vmatpush1.msra.mxu0 %v9386
        %9469 = vmatprep.subr.mxu0 0.0
        %9470 = vmatpush1.msra.mxu0 %v9387
        %9471 = vmatprep.subr.mxu0 0.0
        %9472 = vmatpush1.msra.mxu0 %v9433
        %9473 = vmatprep.subr.mxu0 0.0
        %9474 = vmatpush1.msra.mxu0 0.0
        %9475 = vmatprep.subr.mxu0 0.0
        %9476 = vmatpush1.msra.mxu0 0.0
        %9477 = vmatprep.subr.mxu0 0.0
        %9478 = vmatpush1.msra.mxu0 0.0
        %9479 = vmatprep.subr.mxu0 0.0
        %9480 = vmatpush1.msra.mxu0 0.0
        %9481 = vmatprep.subr.mxu0 0.0
        %9482 = vmatpush1.msra.mxu0 0.0
        %9483 = vmatprep.subr.mxu0 0.0
        %9484 = vmatpush1.msra.mxu0 0.0
        %9485 = vmatprep.subr.mxu0 0.0
        %9486 = vmatpush1.msra.mxu0 0.0
        %9487 = vmatprep.subr.mxu0 0.0
        %9488 = vmatpush1.msra.mxu0 0.0
        %9489 = vmatprep.subr.mxu0 0.0
        %9490 = vmatpush1.msra.mxu0 0.0
        %9491 = vmatprep.subr.mxu0 0.0
        %9492 = vmatpush1.msra.mxu0 0.0
        %9493 = vmatprep.subr.mxu0 0.0
        %9494 = vmatpush1.msra.mxu0 0.0
        %9495 = vmatprep.subr.mxu0 0.0
        %9496 = vmatpush1.msra.mxu0 0.0
        %9497 = vmatprep.subr.mxu0 0.0
        %9498 = vmatpush1.msra.mxu0 0.0
        %9499 = vmatprep.mubr.f32.mxu0 %v9397
        %9500 = vmatmul.mubr.f32.gmra.mrb[0].mxu0 %v9353
        %v9501 = vpop.f32.mrb[0].mxu0
        %v9502 = vadd.f32 %v9394, %v9501
        %v9503 = vpop.f32.mrb[0].mxu0
        %9504 = vmatprep.mubr.f32.mxu0 %v9399
        %9505 = vmatmul.mubr.f32.gmra.mrb[0].mxu0 %v9354
        %v9506 = vpop.f32.mrb[0].mxu0
        %v9507 = vadd.f32 %v9394, %v9506
        %v9508 = vpop.f32.mrb[0].mxu0
        %9509 = vmatprep.mubr.f32.mxu0 %v9401
        %9510 = vmatmul.mubr.f32.gmra.mrb[0].mxu0 %v9355
        %v9511 = vpop.f32.mrb[0].mxu0
        %v9512 = vadd.f32 %v9394, %v9511
        %v9513 = vpop.f32.mrb[0].mxu0
        %9514 = vmatprep.mubr.f32.mxu0 %v9403
        %9515 = vmatmul.mubr.f32.gmra.mrb[0].mxu0 %v9356
        %v9516 = vpop.f32.mrb[0].mxu0
        %v9517 = vadd.f32 %v9394, %v9516
        %v9518 = vpop.f32.mrb[0].mxu0
        %9519 = vmatprep.mubr.f32.mxu0 %v9405
        %9520 = vmatmul.mubr.f32.gmra.mrb[0].mxu0 %v9357
        %v9521 = vpop.f32.mrb[0].mxu0
        %v9522 = vadd.f32 %v9394, %v9521
        %v9523 = vpop.f32.mrb[0].mxu0
        %9524 = vmatprep.mubr.f32.mxu0 %v9407
        %9525 = vmatmul.mubr.f32.gmra.mrb[0].mxu0 %v9358
        %v9526 = vpop.f32.mrb[0].mxu0
        %v9527 = vadd.f32 %v9394, %v9526
        %v9528 = vpop.f32.mrb[0].mxu0
        %9529 = vmatprep.mubr.f32.mxu0 %v9409
        %9530 = vmatmul.mubr.f32.gmra.mrb[0].mxu0 %v9359
        %v9531 = vpop.f32.mrb[0].mxu0
        %v9532 = vadd.f32 %v9394, %v9531
        %v9533 = vpop.f32.mrb[0].mxu0
        %9534 = vmatprep.mubr.f32.mxu0 %v9411
        %9535 = vmatmul.mubr.f32.gmra.mrb[0].mxu0 %v9360
        %v9536 = vpop.f32.mrb[0].mxu0
        %v9537 = vadd.f32 %v9394, %v9536
        %v9538 = vpop.f32.mrb[0].mxu0
        %9539 = vmatprep.mubr.f32.mxu0 %v9413
        %9540 = vmatmul.mubr.f32.gmra.mrb[0].mxu0 %v9361
        %v9541 = vpop.f32.mrb[0].mxu0
        %v9542 = vadd.f32 %v9394, %v9541
        %v9543 = vpop.f32.mrb[0].mxu0
        %9544 = vmatprep.mubr.f32.mxu0 %v9415
        %9545 = vmatmul.mubr.f32.gmra.mrb[0].mxu0 %v9362
        %v9546 = vpop.f32.mrb[0].mxu0
        %v9547 = vadd.f32 %v9394, %v9546
        %v9548 = vpop.f32.mrb[0].mxu0
        %9549 = vmatprep.mubr.f32.mxu0 %v9417
        %9550 = vmatmul.mubr.f32.gmra.mrb[0].mxu0 %v9363
        %v9551 = vpop.f32.mrb[0].mxu0
        %v9552 = vadd.f32 %v9394, %v9551
        %v9553 = vpop.f32.mrb[0].mxu0
        %9554 = vmatprep.mubr.f32.mxu0 %v9419
        %9555 = vmatmul.mubr.f32.gmra.mrb[0].mxu0 %v9364
        %v9556 = vpop.f32.mrb[0].mxu0
        %v9557 = vadd.f32 %v9394, %v9556
        %v9558 = vpop.f32.mrb[0].mxu0
        %9559 = vmatprep.mubr.f32.mxu0 %v9421
        %9560 = vmatmul.mubr.f32.gmra.mrb[0].mxu0 %v9365
        %v9561 = vpop.f32.mrb[0].mxu0
        %v9562 = vadd.f32 %v9394, %v9561
        %v9563 = vpop.f32.mrb[0].mxu0
        %9564 = vmatprep.mubr.f32.mxu0 %v9423
        %9565 = vmatmul.mubr.f32.gmra.mrb[0].mxu0 %v9366
        %v9566 = vpop.f32.mrb[0].mxu0
        %v9567 = vadd.f32 %v9394, %v9566
        %v9568 = vpop.f32.mrb[0].mxu0
        %9569 = vmatprep.mubr.f32.mxu0 %v9425
        %9570 = vmatmul.mubr.f32.gmra.mrb[0].mxu0 %v9367
        %v9571 = vpop.f32.mrb[0].mxu0
        %v9572 = vadd.f32 %v9394, %v9571
        %v9573 = vpop.f32.mrb[0].mxu0
        %9574 = vmatprep.mubr.f32.mxu0 %v9427
        %9575 = vmatmul.mubr.f32.gmra.mrb[0].mxu0 %v9368
        %v9576 = vpop.f32.mrb[0].mxu0
        %v9577 = vadd.f32 %v9394, %v9576
        %v9578 = vpop.f32.mrb[0].mxu0
        %9579 = vmatprep.mubr.f32.mxu0 %v9429
        %9580 = vmatmul.mubr.f32.gmra.mrb[0].mxu0 %v9369
        %v9581 = vpop.f32.mrb[0].mxu0
        %v9582 = vadd.f32 %v9394, %v9581
        %v9583 = vpop.f32.mrb[0].mxu0
        %9584 = vdwg.mxu0
        %v9585 = vmax.f32 %v9502, 0.0
        %v9586 = vmax.f32 %v9507, 0.0
        %v9587 = vmax.f32 %v9512, 0.0
        %v9588 = vmax.f32 %v9517, 0.0
        %v9589 = vmax.f32 %v9522, 0.0
        %v9590 = vmax.f32 %v9527, 0.0
        %v9591 = vmax.f32 %v9532, 0.0
        %v9592 = vmax.f32 %v9537, 0.0
        %v9593 = vmax.f32 %v9542, 0.0
        %v9594 = vmax.f32 %v9547, 0.0
        %v9595 = vmax.f32 %v9552, 0.0
        %v9596 = vmax.f32 %v9557, 0.0
        %v9597 = vmax.f32 %v9562, 0.0
        %v9598 = vmax.f32 %v9567, 0.0
        %v9599 = vmax.f32 %v9572, 0.0
        %v9600 = vmax.f32 %v9577, 0.0
        %v9601 = vmax.f32 %v9582, 0.0
        %9602 = vst [vmem:[#allocation2] sm:$0xff] %v9585
        %9603 = vst [vmem:[#allocation2 + $0x8] sm:$0xff] %v9586
        %9604 = vst [vmem:[#allocation2 + $0x10] sm:$0xff] %v9587
        %9605 = vst [vmem:[#allocation2 + $0x18] sm:$0xff] %v9588
        %9606 = vst [vmem:[#allocation2 + $0x20] sm:$0xff] %v9589
        %9607 = vst [vmem:[#allocation2 + $0x28] sm:$0xff] %v9590
        %9608 = vst [vmem:[#allocation2 + $0x30] sm:$0xff] %v9591
        %9609 = vst [vmem:[#allocation2 + $0x38] sm:$0xff] %v9592
        %9610 = vst [vmem:[#allocation2 + $0x40] sm:$0xff] %v9593
        %9611 = vst [vmem:[#allocation2 + $0x48] sm:$0xff] %v9594
        %9612 = vst [vmem:[#allocation2 + $0x50] sm:$0xff] %v9595
        %9613 = vst [vmem:[#allocation2 + $0x58] sm:$0xff] %v9596
        %9614 = vst [vmem:[#allocation2 + $0x60] sm:$0xff] %v9597
        %9615 = vst [vmem:[#allocation2 + $0x68] sm:$0xff] %v9598
        %9616 = vst [vmem:[#allocation2 + $0x70] sm:$0xff] %v9599
        %9617 = vst [vmem:[#allocation2 + $0x78] sm:$0xff] %v9600
        %9618 = vst [vmem:[#allocation2 + $0x80] sm:$0xff] %v9601
        %v9619 = vld [vmem:[#allocation2] sm:$0xff]
        %v9620 = vld [vmem:[#allocation2 + $0x8] sm:$0xff]
        %v9621 = vld [vmem:[#allocation2 + $0x10] sm:$0xff]
        %v9622 = vld [vmem:[#allocation2 + $0x18] sm:$0xff]
        %v9623 = vld [vmem:[#allocation2 + $0x20] sm:$0xff]
        %v9624 = vld [vmem:[#allocation2 + $0x28] sm:$0xff]
        %v9625 = vld [vmem:[#allocation2 + $0x30] sm:$0xff]
        %v9626 = vld [vmem:[#allocation2 + $0x38] sm:$0xff]
        %v9627 = vld [vmem:[#allocation2 + $0x40] sm:$0xff]
        %v9628 = vld [vmem:[#allocation2 + $0x48] sm:$0xff]
        %v9629 = vld [vmem:[#allocation2 + $0x50] sm:$0xff]
        %v9630 = vld [vmem:[#allocation2 + $0x58] sm:$0xff]
        %v9631 = vld [vmem:[#allocation2 + $0x60] sm:$0xff]
        %v9632 = vld [vmem:[#allocation2 + $0x68] sm:$0xff]
        %v9633 = vld [vmem:[#allocation2 + $0x70] sm:$0xff]
        %v9634 = vld [vmem:[#allocation2 + $0x78] sm:$0x1]
        %v9635 = vld [vmem:[#allocation2 + $0x1] sm:$0xff]
        %v9636 = vld [vmem:[#allocation2 + $0x9] sm:$0xff]
        %v9637 = vld [vmem:[#allocation2 + $0x11] sm:$0xff]
        %v9638 = vld [vmem:[#allocation2 + $0x19] sm:$0xff]
        %v9639 = vld [vmem:[#allocation2 + $0x21] sm:$0xff]
        %v9640 = vld [vmem:[#allocation2 + $0x29] sm:$0xff]
        %v9641 = vld [vmem:[#allocation2 + $0x31] sm:$0xff]
        %v9642 = vld [vmem:[#allocation2 + $0x39] sm:$0xff]
        %v9643 = vld [vmem:[#allocation2 + $0x41] sm:$0xff]
        %v9644 = vld [vmem:[#allocation2 + $0x49] sm:$0xff]
        %v9645 = vld [vmem:[#allocation2 + $0x51] sm:$0xff]
        %v9646 = vld [vmem:[#allocation2 + $0x59] sm:$0xff]
        %v9647 = vld [vmem:[#allocation2 + $0x61] sm:$0xff]
        %v9648 = vld [vmem:[#allocation2 + $0x69] sm:$0xff]
        %v9649 = vld [vmem:[#allocation2 + $0x71] sm:$0xff]
        %v9650 = vld [vmem:[#allocation2 + $0x79] sm:$0x1]
        %v9651 = vmax.f32 %v9619, %v9635
        %v9652 = vmax.f32 %v9620, %v9636
        %v9653 = vmax.f32 %v9621, %v9637
        %v9654 = vmax.f32 %v9622, %v9638
        %v9655 = vmax.f32 %v9623, %v9639
        %v9656 = vmax.f32 %v9624, %v9640
        %v9657 = vmax.f32 %v9625, %v9641
        %v9658 = vmax.f32 %v9626, %v9642
        %v9659 = vmax.f32 %v9627, %v9643
        %v9660 = vmax.f32 %v9628, %v9644
        %v9661 = vmax.f32 %v9629, %v9645
        %v9662 = vmax.f32 %v9630, %v9646
        %v9663 = vmax.f32 %v9631, %v9647
        %v9664 = vmax.f32 %v9632, %v9648
        %v9665 = vmax.f32 %v9633, %v9649
        %v9666 = vmax.f32 %v9634, %v9650
        %v9667 = vld [vmem:[#allocation2 + $0xe] sm:$0xff]
        %v9668 = vld [vmem:[#allocation2 + $0x16] sm:$0xff]
        %v9669 = vld [vmem:[#allocation2 + $0x1e] sm:$0xff]
        %v9670 = vld [vmem:[#allocation2 + $0x26] sm:$0xff]
        %v9671 = vld [vmem:[#allocation2 + $0x2e] sm:$0xff]
        %v9672 = vld [vmem:[#allocation2 + $0x36] sm:$0xff]
        %v9673 = vld [vmem:[#allocation2 + $0x3e] sm:$0xff]
        %v9674 = vld [vmem:[#allocation2 + $0x46] sm:$0xff]
        %v9675 = vld [vmem:[#allocation2 + $0x4e] sm:$0xff]
        %v9676 = vld [vmem:[#allocation2 + $0x56] sm:$0xff]
        %v9677 = vld [vmem:[#allocation2 + $0x5e] sm:$0xff]
        %v9678 = vld [vmem:[#allocation2 + $0x66] sm:$0xff]
        %v9679 = vld [vmem:[#allocation2 + $0x6e] sm:$0xff]
        %v9680 = vld [vmem:[#allocation2 + $0x76] sm:$0xff]
        %v9681 = vld [vmem:[#allocation2 + $0x7e] sm:$0xff]
        %v9682 = vld [vmem:[#allocation2 + $0x86] sm:$0x1]
        %v9683 = vld [vmem:[#allocation2 + $0xf] sm:$0xff]
        %v9684 = vld [vmem:[#allocation2 + $0x17] sm:$0xff]
        %v9685 = vld [vmem:[#allocation2 + $0x1f] sm:$0xff]
        %v9686 = vld [vmem:[#allocation2 + $0x27] sm:$0xff]
        %v9687 = vld [vmem:[#allocation2 + $0x2f] sm:$0xff]
        %v9688 = vld [vmem:[#allocation2 + $0x37] sm:$0xff]
        %v9689 = vld [vmem:[#allocation2 + $0x3f] sm:$0xff]
        %v9690 = vld [vmem:[#allocation2 + $0x47] sm:$0xff]
        %v9691 = vld [vmem:[#allocation2 + $0x4f] sm:$0xff]
        %v9692 = vld [vmem:[#allocation2 + $0x57] sm:$0xff]
        %v9693 = vld [vmem:[#allocation2 + $0x5f] sm:$0xff]
        %v9694 = vld [vmem:[#allocation2 + $0x67] sm:$0xff]
        %v9695 = vld [vmem:[#allocation2 + $0x6f] sm:$0xff]
        %v9696 = vld [vmem:[#allocation2 + $0x77] sm:$0xff]
        %v9697 = vld [vmem:[#allocation2 + $0x7f] sm:$0xff]
        %v9698 = vld [vmem:[#allocation2 + $0x87] sm:$0x1]
        %v9699 = vmax.f32 %v9667, %v9683
        %v9700 = vmax.f32 %v9668, %v9684
        %v9701 = vmax.f32 %v9669, %v9685
        %v9702 = vmax.f32 %v9670, %v9686
        %v9703 = vmax.f32 %v9671, %v9687
        %v9704 = vmax.f32 %v9672, %v9688
        %v9705 = vmax.f32 %v9673, %v9689
        %v9706 = vmax.f32 %v9674, %v9690
        %v9707 = vmax.f32 %v9675, %v9691
        %v9708 = vmax.f32 %v9676, %v9692
        %v9709 = vmax.f32 %v9677, %v9693
        %v9710 = vmax.f32 %v9678, %v9694
        %v9711 = vmax.f32 %v9679, %v9695
        %v9712 = vmax.f32 %v9680, %v9696
        %v9713 = vmax.f32 %v9681, %v9697
        %v9714 = vmax.f32 %v9682, %v9698
        %v9715 = vmax.f32 %v9651, %v9699
        %v9716 = vmax.f32 %v9652, %v9700
        %v9717 = vmax.f32 %v9653, %v9701
        %v9718 = vmax.f32 %v9654, %v9702
        %v9719 = vmax.f32 %v9655, %v9703
        %v9720 = vmax.f32 %v9656, %v9704
        %v9721 = vmax.f32 %v9657, %v9705
        %v9722 = vmax.f32 %v9658, %v9706
        %v9723 = vmax.f32 %v9659, %v9707
        %v9724 = vmax.f32 %v9660, %v9708
        %v9725 = vmax.f32 %v9661, %v9709
        %v9726 = vmax.f32 %v9662, %v9710
        %v9727 = vmax.f32 %v9663, %v9711
        %v9728 = vmax.f32 %v9664, %v9712
        %v9729 = vmax.f32 %v9665, %v9713
        %v9730 = vmax.f32 %v9666, %v9714
        %9731 = vst [vmem:[#allocation2] sm:$0xff] %v9715
        %9732 = vst [vmem:[#allocation2 + $0x8] sm:$0xff] %v9716
        %9733 = vst [vmem:[#allocation2 + $0x10] sm:$0xff] %v9717
        %9734 = vst [vmem:[#allocation2 + $0x18] sm:$0xff] %v9718
        %9735 = vst [vmem:[#allocation2 + $0x20] sm:$0xff] %v9719
        %9736 = vst [vmem:[#allocation2 + $0x28] sm:$0xff] %v9720
        %9737 = vst [vmem:[#allocation2 + $0x30] sm:$0xff] %v9721
        %9738 = vst [vmem:[#allocation2 + $0x38] sm:$0xff] %v9722
        %9739 = vst [vmem:[#allocation2 + $0x40] sm:$0xff] %v9723
        %9740 = vst [vmem:[#allocation2 + $0x48] sm:$0xff] %v9724
        %9741 = vst [vmem:[#allocation2 + $0x50] sm:$0xff] %v9725
        %9742 = vst [vmem:[#allocation2 + $0x58] sm:$0xff] %v9726
        %9743 = vst [vmem:[#allocation2 + $0x60] sm:$0xff] %v9727
        %9744 = vst [vmem:[#allocation2 + $0x68] sm:$0xff] %v9728
        %9745 = vst [vmem:[#allocation2 + $0x70] sm:$0xff] %v9729
        %9746 = vst [vmem:[#allocation2 + $0x78] sm:$0x1] %v9730
        %v9747 = vld [vmem:[#allocation2] ss:$2 sm:$0x1f]
        %9748 = vst [vmem:[#allocation4] sm:$0x1f] %v9747
        %s9749 = scalar_lea.vmem [#allocation2], 28
        %v9750 = vld [vmem:[%s9749] ss:$2 sm:$0x1f]
        %9751 = vst [vmem:[#allocation4 + $0x5] sm:$0x1f] %v9750
        %s9752 = scalar_lea.vmem [#allocation2], 56
        %v9753 = vld [vmem:[%s9752] ss:$2 sm:$0x1f]
        %9754 = vst [vmem:[#allocation4 + $0xa] sm:$0x1f] %v9753
        %s9755 = scalar_lea.vmem [#allocation2], 84
        %v9756 = vld [vmem:[%s9755] ss:$2 sm:$0x1f]
        %9757 = vst [vmem:[#allocation4 + $0xf] sm:$0x1f] %v9756
        %s9758 = scalar_lea.vmem [#allocation2], 112
        %v9759 = vld [vmem:[%s9758] ss:$2 sm:$0x1f]
        %9760 = vst [vmem:[#allocation4 + $0x14] sm:$0x1f] %v9759
        %v9761 = vld [vmem:[#allocation4] sm:$0x1]
        %v9762 = vld [vmem:[#allocation4 + $0x1] sm:$0x1]
        %v9763 = vld [vmem:[#allocation4 + $0x2] sm:$0x1]
        %v9764 = vld [vmem:[#allocation4 + $0x3] sm:$0x1]
        %v9765 = vld [vmem:[#allocation4 + $0x4] sm:$0x1]
        %v9766 = vld [vmem:[#allocation4 + $0x5] sm:$0x1]
        %v9767 = vld [vmem:[#allocation4 + $0x6] sm:$0x1]
        %v9768 = vld [vmem:[#allocation4 + $0x7] sm:$0x1]
        %v9769 = vld [vmem:[#allocation4 + $0x8] sm:$0x1]
        %v9770 = vld [vmem:[#allocation4 + $0x9] sm:$0x1]
        %v9771 = vld [vmem:[#allocation4 + $0xa] sm:$0x1]
        %v9772 = vld [vmem:[#allocation4 + $0xb] sm:$0x1]
        %v9773 = vld [vmem:[#allocation4 + $0xc] sm:$0x1]
        %v9774 = vld [vmem:[#allocation4 + $0xd] sm:$0x1]
        %v9775 = vld [vmem:[#allocation4 + $0xe] sm:$0x1]
        %v9776 = vld [vmem:[#allocation4 + $0xf] sm:$0x1]
        %v9777 = vld [vmem:[#allocation4 + $0x10] sm:$0x1]
        %v9778 = vld [vmem:[#allocation4 + $0x11] sm:$0x1]
        %v9779 = vld [vmem:[#allocation4 + $0x12] sm:$0x1]
        %v9780 = vld [vmem:[#allocation4 + $0x13] sm:$0x1]
        %v9781 = vld [vmem:[#allocation4 + $0x14] sm:$0x1]
        %v9782 = vld [vmem:[#allocation4 + $0x15] sm:$0x1]
        %v9783 = vld [vmem:[#allocation4 + $0x16] sm:$0x1]
        %v9784 = vld [vmem:[#allocation4 + $0x17] sm:$0x1]
        %v9785 = vld [vmem:[#allocation4 + $0x18] sm:$0x1]
        %9787 = vrot.lane.b32.xlu0 %v9762, 16
        %v9788 = vpop.permute.xlu0 %9787
        %9791 = vrot.lane.b32.xlu0 %v9763, 32
        %v9792 = vpop.permute.xlu0 %9791
        %9795 = vrot.lane.b32.xlu0 %v9764, 48
        %v9796 = vpop.permute.xlu0 %9795
        %9799 = vrot.lane.b32.xlu0 %v9765, 64
        %v9800 = vpop.permute.xlu0 %9799
        %9803 = vrot.lane.b32.xlu0 %v9766, 80
        %v9804 = vpop.permute.xlu0 %9803
        %9807 = vrot.lane.b32.xlu0 %v9767, 96
        %v9808 = vpop.permute.xlu0 %9807
        %9811 = vrot.lane.b32.xlu0 %v9768, 112
        %v9812 = vpop.permute.xlu0 %9811
        %9815 = vrot.lane.b32.xlu0 %v9770, 16
        %v9816 = vpop.permute.xlu0 %9815
        %9819 = vrot.lane.b32.xlu0 %v9771, 32
        %v9820 = vpop.permute.xlu0 %9819
        %9823 = vrot.lane.b32.xlu0 %v9772, 48
        %v9824 = vpop.permute.xlu0 %9823
        %9827 = vrot.lane.b32.xlu0 %v9773, 64
        %v9828 = vpop.permute.xlu0 %9827
        %9831 = vrot.lane.b32.xlu0 %v9774, 80
        %v9832 = vpop.permute.xlu0 %9831
        %9835 = vrot.lane.b32.xlu0 %v9775, 96
        %v9836 = vpop.permute.xlu0 %9835
        %9839 = vrot.lane.b32.xlu0 %v9776, 112
        %v9840 = vpop.permute.xlu0 %9839
        %vm9842 = vcmask 130048
        %v9843 = vsel %vm9842, %v9761, %v9788
        %vm9844 = vcmask 261120
        %v9845 = vsel %vm9844, %v9843, %v9792
        %v9846 = vsel %vm8572, %v9845, %v9796
        %vm9847 = vcmask 523264
        %v9848 = vsel %vm9847, %v9846, %v9800
        %vm9849 = vcmask 654336
        %v9850 = vsel %vm9849, %v9848, %v9804
        %v9851 = vsel %vm9352, %v9850, %v9808
        %vm9852 = vcmask 916480
        %v9853 = vsel %vm9852, %v9851, %v9812
        %v9854 = vsel %vm9842, %v9769, %v9816
        %v9855 = vsel %vm9844, %v9854, %v9820
        %v9856 = vsel %vm8572, %v9855, %v9824
        %v9857 = vsel %vm9847, %v9856, %v9828
        %v9858 = vsel %vm9849, %v9857, %v9832
        %v9859 = vsel %vm9352, %v9858, %v9836
        %v9860 = vsel %vm9852, %v9859, %v9840
        %9862 = vrot.lane.b32.xlu0 %v9778, 16
        %v9863 = vpop.permute.xlu0 %9862
        %9866 = vrot.lane.b32.xlu0 %v9779, 32
        %v9867 = vpop.permute.xlu0 %9866
        %9870 = vrot.lane.b32.xlu0 %v9780, 48
        %v9871 = vpop.permute.xlu0 %9870
        %9874 = vrot.lane.b32.xlu0 %v9781, 64
        %v9875 = vpop.permute.xlu0 %9874
        %9878 = vrot.lane.b32.xlu0 %v9782, 80
        %v9879 = vpop.permute.xlu0 %9878
        %9882 = vrot.lane.b32.xlu0 %v9783, 96
        %v9883 = vpop.permute.xlu0 %9882
        %9886 = vrot.lane.b32.xlu0 %v9784, 112
        %v9887 = vpop.permute.xlu0 %9886
        %v9889 = vsel %vm9842, %v9777, %v9863
        %v9890 = vsel %vm9844, %v9889, %v9867
        %v9891 = vsel %vm8572, %v9890, %v9871
        %v9892 = vsel %vm9847, %v9891, %v9875
        %v9893 = vsel %vm9849, %v9892, %v9879
        %v9894 = vsel %vm9352, %v9893, %v9883
        %v9895 = vsel %vm9852, %v9894, %v9887
        %v9896 = vld [vmem:[%s5] sm:$0xff]
        %v9897 = vld [vmem:[%s5 + $0x8] sm:$0xff]
        %v9898 = vld [vmem:[%s5 + $0x10] sm:$0xff]
        %v9899 = vld [vmem:[%s5 + $0x18] sm:$0xff]
        %v9900 = vld [vmem:[%s5 + $0x20] sm:$0xff]
        %v9901 = vld [vmem:[%s5 + $0x28] sm:$0xff]
        %v9902 = vld [vmem:[%s5 + $0x30] sm:$0xff]
        %v9903 = vld [vmem:[%s5 + $0x38] sm:$0xff]
        %v9904 = vld [vmem:[%s5 + $0x40] sm:$0xff]
        %v9905 = vld [vmem:[%s5 + $0x48] sm:$0xff]
        %v9906 = vld [vmem:[%s5 + $0x50] sm:$0xff]
        %v9907 = vld [vmem:[%s5 + $0x58] sm:$0xff]
        %v9908 = vld [vmem:[%s5 + $0x60] sm:$0xff]
        %v9909 = vld [vmem:[%s5 + $0x68] sm:$0xff]
        %v9910 = vld [vmem:[%s5 + $0x70] sm:$0xff]
        %v9911 = vld [vmem:[%s5 + $0x78] sm:$0xff]
        %v9912 = vld [vmem:[%s5 + $0x80] sm:$0xff]
        %v9913 = vld [vmem:[%s5 + $0x88] sm:$0xff]
        %v9914 = vld [vmem:[%s5 + $0x90] sm:$0xff]
        %v9915 = vld [vmem:[%s5 + $0x98] sm:$0xff]
        %v9916 = vld [vmem:[%s5 + $0xa0] sm:$0xff]
        %v9917 = vld [vmem:[%s5 + $0xa8] sm:$0xff]
        %v9918 = vld [vmem:[%s5 + $0xb0] sm:$0xff]
        %v9919 = vld [vmem:[%s5 + $0xb8] sm:$0xff]
        %v9920 = vld [vmem:[%s5 + $0xc0] sm:$0xff]
        %v9921 = vld [vmem:[%s5 + $0xc8] sm:$0xff]
        %v9922 = vld [vmem:[%s5 + $0xd0] sm:$0xff]
        %v9923 = vld [vmem:[%s5 + $0xd8] sm:$0xff]
        %v9924 = vld [vmem:[%s5 + $0xe0] sm:$0xff]
        %v9925 = vld [vmem:[%s5 + $0xe8] sm:$0xff]
        %v9926 = vld [vmem:[%s5 + $0xf0] sm:$0xff]
        %v9927 = vld [vmem:[%s5 + $0xf8] sm:$0xff]
        %v9928 = vld [vmem:[%s5 + $0x100] sm:$0xff]
        %v9929 = vld [vmem:[%s5 + $0x108] sm:$0xff]
        %v9930 = vld [vmem:[%s5 + $0x110] sm:$0xff]
        %v9931 = vld [vmem:[%s5 + $0x118] sm:$0xff]
        %v9932 = vld [vmem:[%s5 + $0x120] sm:$0xff]
        %v9933 = vld [vmem:[%s5 + $0x128] sm:$0xff]
        %v9934 = vld [vmem:[%s5 + $0x130] sm:$0xff]
        %v9935 = vld [vmem:[%s5 + $0x138] sm:$0xff]
        %v9936 = vld [vmem:[%s5 + $0x140] sm:$0xff]
        %v9937 = vld [vmem:[%s5 + $0x148] sm:$0xff]
        %v9938 = vld [vmem:[%s5 + $0x150] sm:$0xff]
        %v9939 = vld [vmem:[%s5 + $0x158] sm:$0xff]
        %v9940 = vld [vmem:[%s5 + $0x160] sm:$0xff]
        %v9941 = vld [vmem:[%s5 + $0x168] sm:$0xff]
        %v9942 = vld [vmem:[%s5 + $0x170] sm:$0xff]
        %v9943 = vld [vmem:[%s5 + $0x178] sm:$0xff]
        %v9944 = vld [vmem:[%s5 + $0x180] sm:$0xff]
        %v9945 = vld [vmem:[%s5 + $0x188] sm:$0xff]
        %v9946 = vld [vmem:[%s6] sm:$0x1]
        %v9948 = vsel %vm9842, %v9785, 0
        %9950 = vmatprep.subr.mxu0 0.0
        %9951 = vmatpush1.msra.mxu0 %v9896
        %9952 = vmatprep.subr.mxu0 0.0
        %9953 = vmatpush1.msra.mxu0 %v9897
        %9954 = vmatprep.subr.mxu0 0.0
        %9955 = vmatpush1.msra.mxu0 %v9898
        %9956 = vmatprep.subr.mxu0 0.0
        %9957 = vmatpush1.msra.mxu0 %v9899
        %9958 = vmatprep.subr.mxu0 0.0
        %9959 = vmatpush1.msra.mxu0 %v9900
        %9960 = vmatprep.subr.mxu0 0.0
        %9961 = vmatpush1.msra.mxu0 %v9901
        %9962 = vmatprep.subr.mxu0 0.0
        %9963 = vmatpush1.msra.mxu0 %v9902
        %9964 = vmatprep.subr.mxu0 0.0
        %9965 = vmatpush1.msra.mxu0 %v9903
        %9966 = vmatprep.subr.mxu0 0.0
        %9967 = vmatpush1.msra.mxu0 %v9904
        %9968 = vmatprep.subr.mxu0 0.0
        %9969 = vmatpush1.msra.mxu0 %v9905
        %9970 = vmatprep.subr.mxu0 0.0
        %9971 = vmatpush1.msra.mxu0 %v9906
        %9972 = vmatprep.subr.mxu0 0.0
        %9973 = vmatpush1.msra.mxu0 %v9907
        %9974 = vmatprep.subr.mxu0 0.0
        %9975 = vmatpush1.msra.mxu0 %v9908
        %9976 = vmatprep.subr.mxu0 0.0
        %9977 = vmatpush1.msra.mxu0 %v9909
        %9978 = vmatprep.subr.mxu0 0.0
        %9979 = vmatpush1.msra.mxu0 %v9910
        %9980 = vmatprep.subr.mxu0 0.0
        %9981 = vmatpush1.msra.mxu0 %v9911
        %9982 = vmatprep.subr.mxu0 0.0
        %9983 = vmatpush1.msra.mxu0 %v9912
        %9984 = vmatprep.subr.mxu0 0.0
        %9985 = vmatpush1.msra.mxu0 %v9913
        %9986 = vmatprep.subr.mxu0 0.0
        %9987 = vmatpush1.msra.mxu0 %v9914
        %9988 = vmatprep.subr.mxu0 0.0
        %9989 = vmatpush1.msra.mxu0 %v9915
        %9990 = vmatprep.subr.mxu0 0.0
        %9991 = vmatpush1.msra.mxu0 %v9916
        %9992 = vmatprep.subr.mxu0 0.0
        %9993 = vmatpush1.msra.mxu0 %v9917
        %9994 = vmatprep.subr.mxu0 0.0
        %9995 = vmatpush1.msra.mxu0 %v9918
        %9996 = vmatprep.subr.mxu0 0.0
        %9997 = vmatpush1.msra.mxu0 %v9919
        %9998 = vmatprep.subr.mxu0 0.0
        %9999 = vmatpush1.msra.mxu0 %v9920
        %10000 = vmatprep.subr.mxu0 0.0
        %10001 = vmatpush1.msra.mxu0 %v9921
        %10002 = vmatprep.subr.mxu0 0.0
        %10003 = vmatpush1.msra.mxu0 %v9922
        %10004 = vmatprep.subr.mxu0 0.0
        %10005 = vmatpush1.msra.mxu0 %v9923
        %10006 = vmatprep.subr.mxu0 0.0
        %10007 = vmatpush1.msra.mxu0 %v9924
        %10008 = vmatprep.subr.mxu0 0.0
        %10009 = vmatpush1.msra.mxu0 %v9925
        %10010 = vmatprep.subr.mxu0 0.0
        %10011 = vmatpush1.msra.mxu0 %v9926
        %10012 = vmatprep.subr.mxu0 0.0
        %10013 = vmatpush1.msra.mxu0 %v9927
        %10014 = vmatprep.mubr.f32.mxu0 %v9860
        %10015 = vmatmul.mubr.f32.gmra.mrb[0].mxu0 %v9853
        %v10016 = vpop.f32.mrb[0].mxu0
        %v10017 = vadd.f32 %v9946, %v10016
        %v10018 = vpop.f32.mrb[0].mxu0
        %10019 = vdwg.mxu0
        %10020 = vmatprep.subr.mxu0 0.0
        %10021 = vmatpush1.msra.mxu0 %v9928
        %10022 = vmatprep.subr.mxu0 0.0
        %10023 = vmatpush1.msra.mxu0 %v9929
        %10024 = vmatprep.subr.mxu0 0.0
        %10025 = vmatpush1.msra.mxu0 %v9930
        %10026 = vmatprep.subr.mxu0 0.0
        %10027 = vmatpush1.msra.mxu0 %v9931
        %10028 = vmatprep.subr.mxu0 0.0
        %10029 = vmatpush1.msra.mxu0 %v9932
        %10030 = vmatprep.subr.mxu0 0.0
        %10031 = vmatpush1.msra.mxu0 %v9933
        %10032 = vmatprep.subr.mxu0 0.0
        %10033 = vmatpush1.msra.mxu0 %v9934
        %10034 = vmatprep.subr.mxu0 0.0
        %10035 = vmatpush1.msra.mxu0 %v9935
        %10036 = vmatprep.subr.mxu0 0.0
        %10037 = vmatpush1.msra.mxu0 %v9936
        %10038 = vmatprep.subr.mxu0 0.0
        %10039 = vmatpush1.msra.mxu0 %v9937
        %10040 = vmatprep.subr.mxu0 0.0
        %10041 = vmatpush1.msra.mxu0 %v9938
        %10042 = vmatprep.subr.mxu0 0.0
        %10043 = vmatpush1.msra.mxu0 %v9939
        %10044 = vmatprep.subr.mxu0 0.0
        %10045 = vmatpush1.msra.mxu0 %v9940
        %10046 = vmatprep.subr.mxu0 0.0
        %10047 = vmatpush1.msra.mxu0 %v9941
        %10048 = vmatprep.subr.mxu0 0.0
        %10049 = vmatpush1.msra.mxu0 %v9942
        %10050 = vmatprep.subr.mxu0 0.0
        %10051 = vmatpush1.msra.mxu0 %v9943
        %10052 = vmatprep.subr.mxu0 0.0
        %10053 = vmatpush1.msra.mxu0 %v9944
        %10054 = vmatprep.subr.mxu0 0.0
        %10055 = vmatpush1.msra.mxu0 %v9945
        %10056 = vmatprep.subr.mxu0 0.0
        %10057 = vmatpush1.msra.mxu0 0.0
        %10058 = vmatprep.subr.mxu0 0.0
        %10059 = vmatpush1.msra.mxu0 0.0
        %10060 = vmatprep.subr.mxu0 0.0
        %10061 = vmatpush1.msra.mxu0 0.0
        %10062 = vmatprep.subr.mxu0 0.0
        %10063 = vmatpush1.msra.mxu0 0.0
        %10064 = vmatprep.subr.mxu0 0.0
        %10065 = vmatpush1.msra.mxu0 0.0
        %10066 = vmatprep.subr.mxu0 0.0
        %10067 = vmatpush1.msra.mxu0 0.0
        %10068 = vmatprep.subr.mxu0 0.0
        %10069 = vmatpush1.msra.mxu0 0.0
        %10070 = vmatprep.subr.mxu0 0.0
        %10071 = vmatpush1.msra.mxu0 0.0
        %10072 = vmatprep.subr.mxu0 0.0
        %10073 = vmatpush1.msra.mxu0 0.0
        %10074 = vmatprep.subr.mxu0 0.0
        %10075 = vmatpush1.msra.mxu0 0.0
        %10076 = vmatprep.subr.mxu0 0.0
        %10077 = vmatpush1.msra.mxu0 0.0
        %10078 = vmatprep.subr.mxu0 0.0
        %10079 = vmatpush1.msra.mxu0 0.0
        %10080 = vmatprep.subr.mxu0 0.0
        %10081 = vmatpush1.msra.mxu0 0.0
        %10082 = vmatprep.subr.mxu0 0.0
        %10083 = vmatpush1.msra.mxu0 0.0
        %10084 = vmatprep.mubr.f32.mxu0 %v9948
        %10085 = vmatmul.mubr.f32.gmra.mrb[0].mxu0 %v9895
        %v10086 = vpop.f32.mrb[0].mxu0
        %v10087 = vadd.f32 %v10017, %v10086
        %v10088 = vpop.f32.mrb[0].mxu0
        %10089 = vdwg.mxu0
        %v10090 = vmax.f32 %v10087, 0.0
        %v10091 = vld [vmem:[%s7] sm:$0xff]
        %v10092 = vld [vmem:[%s7 + $0x8] sm:$0xff]
        %v10093 = vld [vmem:[%s7 + $0x10] sm:$0xff]
        %v10094 = vld [vmem:[%s7 + $0x18] sm:$0xff]
        %v10095 = vld [vmem:[%s7 + $0x20] sm:$0xff]
        %v10096 = vld [vmem:[%s7 + $0x28] sm:$0xff]
        %v10097 = vld [vmem:[%s7 + $0x30] sm:$0xff]
        %v10098 = vld [vmem:[%s7 + $0x38] sm:$0xff]
        %v10099 = vld [vmem:[%s7 + $0x40] sm:$0xff]
        %v10100 = vld [vmem:[%s7 + $0x48] sm:$0xff]
        %v10101 = vld [vmem:[%s7 + $0x50] sm:$0xff]
        %v10102 = vld [vmem:[%s7 + $0x58] sm:$0xff]
        %v10103 = vld [vmem:[%s7 + $0x60] sm:$0xff]
        %v10104 = vld [vmem:[%s7 + $0x68] sm:$0xff]
        %v10105 = vld [vmem:[%s7 + $0x70] sm:$0xff]
        %v10106 = vld [vmem:[%s8] sm:$0x1]
        %vm10107 = vcmask 982016
        %v10109 = vsel %vm10107, %v10090, 0
        %10111 = vmatprep.subr.mxu0 0.0
        %10112 = vmatpush1.msra.mxu0 %v10091
        %10113 = vmatprep.subr.mxu0 0.0
        %10114 = vmatpush1.msra.mxu0 %v10092
        %10115 = vmatprep.subr.mxu0 0.0
        %10116 = vmatpush1.msra.mxu0 %v10093
        %10117 = vmatprep.subr.mxu0 0.0
        %10118 = vmatpush1.msra.mxu0 %v10094
        %10119 = vmatprep.subr.mxu0 0.0
        %10120 = vmatpush1.msra.mxu0 %v10095
        %10121 = vmatprep.subr.mxu0 0.0
        %10122 = vmatpush1.msra.mxu0 %v10096
        %10123 = vmatprep.subr.mxu0 0.0
        %10124 = vmatpush1.msra.mxu0 %v10097
        %10125 = vmatprep.subr.mxu0 0.0
        %10126 = vmatpush1.msra.mxu0 %v10098
        %10127 = vmatprep.subr.mxu0 0.0
        %10128 = vmatpush1.msra.mxu0 %v10099
        %10129 = vmatprep.subr.mxu0 0.0
        %10130 = vmatpush1.msra.mxu0 %v10100
        %10131 = vmatprep.subr.mxu0 0.0
        %10132 = vmatpush1.msra.mxu0 %v10101
        %10133 = vmatprep.subr.mxu0 0.0
        %10134 = vmatpush1.msra.mxu0 %v10102
        %10135 = vmatprep.subr.mxu0 0.0
        %10136 = vmatpush1.msra.mxu0 %v10103
        %10137 = vmatprep.subr.mxu0 0.0
        %10138 = vmatpush1.msra.mxu0 %v10104
        %10139 = vmatprep.subr.mxu0 0.0
        %10140 = vmatpush1.msra.mxu0 %v10105
        %10141 = vmatprep.subr.mxu0 0.0
        %10142 = vmatpush1.msra.mxu0 0.0
        %10143 = vmatprep.subr.mxu0 0.0
        %10144 = vmatpush1.msra.mxu0 0.0
        %10145 = vmatprep.subr.mxu0 0.0
        %10146 = vmatpush1.msra.mxu0 0.0
        %10147 = vmatprep.subr.mxu0 0.0
        %10148 = vmatpush1.msra.mxu0 0.0
        %10149 = vmatprep.subr.mxu0 0.0
        %10150 = vmatpush1.msra.mxu0 0.0
        %10151 = vmatprep.subr.mxu0 0.0
        %10152 = vmatpush1.msra.mxu0 0.0
        %10153 = vmatprep.subr.mxu0 0.0
        %10154 = vmatpush1.msra.mxu0 0.0
        %10155 = vmatprep.subr.mxu0 0.0
        %10156 = vmatpush1.msra.mxu0 0.0
        %10157 = vmatprep.subr.mxu0 0.0
        %10158 = vmatpush1.msra.mxu0 0.0
        %10159 = vmatprep.subr.mxu0 0.0
        %10160 = vmatpush1.msra.mxu0 0.0
        %10161 = vmatprep.subr.mxu0 0.0
        %10162 = vmatpush1.msra.mxu0 0.0
        %10163 = vmatprep.subr.mxu0 0.0
        %10164 = vmatpush1.msra.mxu0 0.0
        %10165 = vmatprep.subr.mxu0 0.0
        %10166 = vmatpush1.msra.mxu0 0.0
        %10167 = vmatprep.subr.mxu0 0.0
        %10168 = vmatpush1.msra.mxu0 0.0
        %10169 = vmatprep.subr.mxu0 0.0
        %10170 = vmatpush1.msra.mxu0 0.0
        %10171 = vmatprep.subr.mxu0 0.0
        %10172 = vmatpush1.msra.mxu0 0.0
        %10173 = vmatprep.subr.mxu0 0.0
        %10174 = vmatpush1.msra.mxu0 0.0
        %10175 = vmatprep.mubr.f32.mxu0 0.0
        %10176 = vmatmul.mubr.f32.gmra.mrb[0].mxu0 %v10109
        %v10177 = vpop.f32.mrb[0].mxu0
        %v10178 = vadd.f32 %v10106, %v10177
        %v10179 = vpop.f32.mrb[0].mxu0
        %10180 = vdwg.mxu0
        %v10181 = vmax.f32 %v10178, 0.0
        %v10182 = vld [vmem:[%s9] sm:$0xff]
        %v10183 = vld [vmem:[%s9 + $0x8] sm:$0xff]
        %v10184 = vld [vmem:[%s9 + $0x10] sm:$0xff]
        %v10185 = vld [vmem:[%s9 + $0x18] sm:$0xff]
        %v10186 = vld [vmem:[%s9 + $0x20] sm:$0xff]
        %v10187 = vld [vmem:[%s9 + $0x28] sm:$0xff]
        %v10188 = vld [vmem:[%s9 + $0x30] sm:$0xff]
        %v10189 = vld [vmem:[%s9 + $0x38] sm:$0xff]
        %v10190 = vld [vmem:[%s9 + $0x40] sm:$0xff]
        %v10191 = vld [vmem:[%s9 + $0x48] sm:$0xff]
        %v10192 = vld [vmem:[%s9 + $0x50] sm:$0xf]
        %v10193 = vld [vmem:[%s10] sm:$0x1]
        %v10195 = vsel %vm8679, %v10181, 0
        %vm10197 = vcmask 1043456
        %v10199 = vsel %vm10197, %v10192, 0
        %10201 = vmatprep.subr.mxu0 0.0
        %10202 = vmatpush1.msra.mxu0 %v10182
        %10203 = vmatprep.subr.mxu0 0.0
        %10204 = vmatpush1.msra.mxu0 %v10183
        %10205 = vmatprep.subr.mxu0 0.0
        %10206 = vmatpush1.msra.mxu0 %v10184
        %10207 = vmatprep.subr.mxu0 0.0
        %10208 = vmatpush1.msra.mxu0 %v10185
        %10209 = vmatprep.subr.mxu0 0.0
        %10210 = vmatpush1.msra.mxu0 %v10186
        %10211 = vmatprep.subr.mxu0 0.0
        %10212 = vmatpush1.msra.mxu0 %v10187
        %10213 = vmatprep.subr.mxu0 0.0
        %10214 = vmatpush1.msra.mxu0 %v10188
        %10215 = vmatprep.subr.mxu0 0.0
        %10216 = vmatpush1.msra.mxu0 %v10189
        %10217 = vmatprep.subr.mxu0 0.0
        %10218 = vmatpush1.msra.mxu0 %v10190
        %10219 = vmatprep.subr.mxu0 0.0
        %10220 = vmatpush1.msra.mxu0 %v10191
        %10221 = vmatprep.subr.mxu0 0.0
        %10222 = vmatpush1.msra.mxu0 %v10199
        %10223 = vmatprep.subr.mxu0 0.0
        %10224 = vmatpush1.msra.mxu0 0.0
        %10225 = vmatprep.subr.mxu0 0.0
        %10226 = vmatpush1.msra.mxu0 0.0
        %10227 = vmatprep.subr.mxu0 0.0
        %10228 = vmatpush1.msra.mxu0 0.0
        %10229 = vmatprep.subr.mxu0 0.0
        %10230 = vmatpush1.msra.mxu0 0.0
        %10231 = vmatprep.subr.mxu0 0.0
        %10232 = vmatpush1.msra.mxu0 0.0
        %10233 = vmatprep.subr.mxu0 0.0
        %10234 = vmatpush1.msra.mxu0 0.0
        %10235 = vmatprep.subr.mxu0 0.0
        %10236 = vmatpush1.msra.mxu0 0.0
        %10237 = vmatprep.subr.mxu0 0.0
        %10238 = vmatpush1.msra.mxu0 0.0
        %10239 = vmatprep.subr.mxu0 0.0
        %10240 = vmatpush1.msra.mxu0 0.0
        %10241 = vmatprep.subr.mxu0 0.0
        %10242 = vmatpush1.msra.mxu0 0.0
        %10243 = vmatprep.subr.mxu0 0.0
        %10244 = vmatpush1.msra.mxu0 0.0
        %10245 = vmatprep.subr.mxu0 0.0
        %10246 = vmatpush1.msra.mxu0 0.0
        %10247 = vmatprep.subr.mxu0 0.0
        %10248 = vmatpush1.msra.mxu0 0.0
        %10249 = vmatprep.subr.mxu0 0.0
        %10250 = vmatpush1.msra.mxu0 0.0
        %10251 = vmatprep.subr.mxu0 0.0
        %10252 = vmatpush1.msra.mxu0 0.0
        %10253 = vmatprep.subr.mxu0 0.0
        %10254 = vmatpush1.msra.mxu0 0.0
        %10255 = vmatprep.subr.mxu0 0.0
        %10256 = vmatpush1.msra.mxu0 0.0
        %10257 = vmatprep.subr.mxu0 0.0
        %10258 = vmatpush1.msra.mxu0 0.0
        %10259 = vmatprep.subr.mxu0 0.0
        %10260 = vmatpush1.msra.mxu0 0.0
        %10261 = vmatprep.subr.mxu0 0.0
        %10262 = vmatpush1.msra.mxu0 0.0
        %10263 = vmatprep.subr.mxu0 0.0
        %10264 = vmatpush1.msra.mxu0 0.0
        %10265 = vmatprep.mubr.f32.mxu0 0.0
        %10266 = vmatmul.mubr.f32.gmra.mrb[0].mxu0 %v10195
        %v10267 = vpop.f32.mrb[0].mxu0
        %v10268 = vadd.f32 %v10193, %v10267
        %v10269 = vpop.f32.mrb[0].mxu0
        %10270 = vdwg.mxu0
        %vm10271 = vcmask 73728
        %10272 = vst.msk [vmem:[%s378] sm:$0x1] %vm10271, %v10268
        %s10273 = sand.u32 %s269, 1
        %s10274 = scalar_lea.sflag [#allocation6], %s10273
        %s10275 = sand.u32 %s269, 1
        %s10276 = scalar_lea.vmem [#allocation5], %s10275
        // Predicated region
        $region65: #{net_forward.1} parent=63 // pred_check
          %p10277 = pneg %p279
        $region66: #{net_forward.1} parent=63 // pred_check_branch
          %10279 = sbr.rel (%p10277) target = $region68
        $region67: #{net_forward.1} parent=63 // pred_region
          %s10281 = ssub.s32 16, 16
          %10282 = vsyncadd %s10274, %s10281
          %s10283 = smul.addr %s25, 16
          %s10284 = scalar_lea.hbm %s11, %s10283
          %s10286 = sshll.u32 %s10276, 4
          %s10287 = int_to_ptr.vmem [resolvable:$true] %s10286
          %10289 = dma.vmem_to_hbm [thread:$0]  %s10287, 16, %s10284, %s10274
        $region68: #{net_forward.1} parent=63 // pred_fallthru
          _
      $region64: #{net_forward.1} parent=5 // pred_fallthru
        _
      %p10290 = scmp.le.s32.totalorder 2, %s20
      // Predicated region
      $region69: #{net_forward.1} parent=5 // pred_check
        %p10291 = pneg %p10290
      $region70: #{net_forward.1} parent=5 // pred_check_branch
        %10293 = sbr.rel (%p10291) target = $region72
      $region71: #{net_forward.1} parent=5 // pred_region
        %s10294 = ssub.s32 %s20, 2
        // Predicated region
        $region73: #{net_forward.1} parent=71 // pred_check
          %p10295 = pneg %p285
        $region74: #{net_forward.1} parent=71 // pred_check_branch
          %10297 = sbr.rel (%p10295) target = $region76
        $region75: #{net_forward.1} parent=71 // pred_region
          %s10298 = sand.u32 %s270, 1
          %s10299 = scalar_lea.sflag [#allocation6], %s10298
          %s10300 = sand.u32 %s270, 1
          %s10301 = scalar_lea.vmem [#allocation5], %s10300
          %10302 = dma.done %s10299, 16
        $region76: #{net_forward.1} parent=71 // pred_fallthru
          _
      $region72: #{net_forward.1} parent=5 // pred_fallthru
        _
    $region6: #{net_forward.1} parent=1 // loop_footer
      %s24 = sadd.s32 1, %s20
    $region7: #{net_forward.1} parent=1 // loop_footer_branch
      %19 = sbr.rel target = $region3
    $region8: #{net_forward.1} parent=1 // loop_exit
      _
    %10303 = vsyncpa [#allocation6], 1
    %s10304 = scalar_lea.sflag [#allocation6], 1
    %10305 = vsyncpa %s10304, 1

</llo_original>
